<compile_context>
chip_gen: v6e
topology: v6e:2x2x1
jax: 0.10.0
libtpu: 0.0.40
codegen_flags: <defaults>
</compile_context>

<pallas_src>
import functools
import numpy as np
import jax
import jax.numpy as jnp
from jax.experimental import pallas as pl
from jax.experimental.pallas import tpu as pltpu

BN_SCALE = 1.0 / float(np.sqrt(1.0 + 1e-5))  # eval-mode BatchNorm1d with default stats


# ----------------------------------------------------------------------------
# Host-side constant builders
# ----------------------------------------------------------------------------
def _pool_select_matrix(L_valid, stride_in, s, bblk):
    """0/1 matrix turning the window-max of a lane-stacked array (segments at
    `stride_in`, valid length `L_valid`) into the floor-mode stride-`s` pooled
    array (segments packed at stride L_pool).  pooled = window_max @ M."""
    L_pool = (L_valid - s) // s + 1
    M = np.zeros((bblk * stride_in - s + 1, bblk * L_pool), np.float32)
    for b in range(bblk):
        for i in range(L_pool):
            M[b * stride_in + i * s, b * L_pool + i] = 1.0
    return M


def _interp_matrix_bd(L_in, L_out, bblk):
    """Block-diagonal (over the batch block) transposed linear-interp matrix matching
    F.interpolate(mode='linear', align_corners=False):  up_stacked = x_stacked @ M."""
    M = np.zeros((bblk * L_in, bblk * L_out), np.float32)
    scale = L_in / L_out
    for i in range(L_out):
        src = max((i + 0.5) * scale - 0.5, 0.0)
        i0 = min(int(np.floor(src)), L_in - 1)
        i1 = min(i0 + 1, L_in - 1)
        w1 = src - i0
        for b in range(bblk):
            M[b * L_in + i0, b * L_out + i] += 1.0 - w1
            M[b * L_in + i1, b * L_out + i] += w1
    return M


# ----------------------------------------------------------------------------
# In-kernel helpers (operate on lane-stacked (C, bblk*L) tiles)
# ----------------------------------------------------------------------------
def _window_max(y, s):
    """Sliding-window max of width s along the lane axis (cross-segment columns are
    computed but never selected by the pool selection matrices)."""
    W = y.shape[1]
    Wm = W - s + 1
    m = y[:, 0:Wm]
    for j in range(1, s):
        m = jnp.maximum(m, y[:, j:j + Wm])
    return m


def _valid_conv_stacked(inp, w_ref, b_ref, cols_ref, K, bblk, lin):
    """'valid' Conv1d + bias + ReLU over bblk lane-stacked segments of length lin."""
    C = inp.shape[0]
    lout = lin - K + 1
    x = inp.astype(jnp.bfloat16)
    for b in range(bblk):                      # static unroll: K slice-stores / example
        for k in range(K):
            cols_ref[k * C:(k + 1) * C, b * lout:(b + 1) * lout] = \
                x[:, b * lin + k:b * lin + k + lout]
    y = jnp.dot(w_ref[...], cols_ref[...], preferred_element_type=jnp.float32) + b_ref[...]
    return jnp.maximum(y, 0.0)


def _blend_conv(inp, w_ref, cols_ref, bblk, lseg):
    """'same' (pad=1, K=3) Conv1d, no bias, over bblk lane-stacked segments of length
    lseg.  Only the per-segment halo columns are (re)written each call (no full-scratch
    zeroing, no reliance on scratch persistence -> safe with 'parallel' grid axes)."""
    C = inp.shape[0]
    W = bblk * lseg
    x = inp.astype(jnp.bfloat16)
    zc = jnp.zeros((C, 1), jnp.bfloat16)
    cols_ref[C:2 * C, :] = x                               # tap k=1 -> z[l]
    cols_ref[0:C, 1:W] = x[:, 0:W - 1]                     # tap k=0 -> z[l-1]
    cols_ref[2 * C:3 * C, 0:W - 1] = x[:, 1:W]             # tap k=2 -> z[l+1]
    for b in range(bblk):                                  # zero halos (overwrite spill-over)
        cols_ref[0:C, b * lseg:b * lseg + 1] = zc
        cols_ref[2 * C:3 * C, (b + 1) * lseg - 1:(b + 1) * lseg] = zc
    return jnp.dot(w_ref[...], cols_ref[...], preferred_element_type=jnp.float32)


# ----------------------------------------------------------------------------
# Fused FCNP forward kernel (bblk batch elements per grid step)
# ----------------------------------------------------------------------------
def _fcnp_kernel(x_ref, w1, b1, w2, b2, w3, b3, w4, b4,
                 wb4, wb3, wb2, wb1, sel1, sel2, sel3, m3t, m2t, m1t,
                 out_ref, score_ref,
                 cols1, cols2, cols3, cb4, cb3, cb2, cb1, xs,
                 *, motiflen, bblk):
    f32, bf16 = jnp.float32, jnp.bfloat16
    relu = lambda v: jnp.maximum(v, 0.0)

    _, cpad, L = x_ref.shape
    K1 = motiflen
    L1 = L - K1 + 1
    L1p = score_ref.shape[2]                 # L1 rounded up to a multiple of 128 (lane-dense)
    P1 = (L1 - 4) // 4 + 1
    L2 = P1 - 5 + 1
    P2 = (L2 - 4) // 4 + 1
    L3 = P2 - 3 + 1
    P3 = (L3 - 2) // 2 + 1
    c_skip = xs.shape[0]                     # true input channel count (4)

    # ---------------- conv1 (valid, K=motiflen): 128-aligned segment stride L1p --------
    if L1p > L1:
        pad_zeros = jnp.zeros((K1 * cpad, L1p - L1), bf16)   # hoisted, reused per example
    for b in range(bblk):
        xs[:, b * L:(b + 1) * L] = x_ref[b, 0:c_skip, :]     # raw skip1 copy (f32)
        xb = x_ref[b, :, :].astype(bf16)                     # (cpad, L), channels padded to 8
        base = b * L1p
        for k in range(K1):
            cols1[k * cpad:(k + 1) * cpad, base:base + L1] = xb[:, k:k + L1]
        if L1p > L1:
            cols1[:, base + L1:base + L1p] = pad_zeros       # keep pad-lane conv outputs finite
    c1 = jnp.dot(w1[...], cols1[...], preferred_element_type=f32) + b1[...]
    c1 = relu(c1)                                            # (128, bblk*L1p)
    for b in range(bblk):                                    # lane-dense, 128-aligned writeback
        score_ref[b, :, :] = c1[:, b * L1p:(b + 1) * L1p].astype(score_ref.dtype)

    # ---------------- encoder: pools via precomputed 0/1 selection matmuls --------------
    p1 = jnp.dot(_window_max(c1, 4).astype(bf16), sel1[...], preferred_element_type=f32)
    c2 = _valid_conv_stacked(p1, w2, b2, cols2, 5, bblk, P1)
    p2 = jnp.dot(_window_max(c2, 4).astype(bf16), sel2[...], preferred_element_type=f32)
    c3 = _valid_conv_stacked(p2, w3, b3, cols3, 3, bblk, P2)
    p3 = jnp.dot(_window_max(c3, 2).astype(bf16), sel3[...], preferred_element_type=f32)
    c4 = relu(jnp.dot(w4[...], p3.astype(bf16), preferred_element_type=f32) + b4[...])
    # dropout(p=0.1) layers are identity in eval mode.

    # ---------------- decoder: block-diag interp matmuls + skips + blend convs ----------
    # eval-mode BatchNorm scale is pre-folded into wb4/wb3/wb2/wb1.
    up4 = c4 + p3                                            # P3 -> P3 linear resize == identity
    bl4 = _blend_conv(relu(up4), wb4, cb4, bblk, P3)         # (64,  bblk*P3)
    up3 = jnp.dot(bl4.astype(bf16), m3t[...], preferred_element_type=f32) + p2
    bl3 = _blend_conv(relu(up3), wb3, cb3, bblk, P2)         # (128, bblk*P2)
    up2 = jnp.dot(bl3.astype(bf16), m2t[...], preferred_element_type=f32) + p1
    bl2 = _blend_conv(relu(up2), wb2, cb2, bblk, P1)         # (4,   bblk*P1)
    up1 = jnp.dot(bl2.astype(bf16), m1t[...], preferred_element_type=f32) + xs[...]
    bl1 = _blend_conv(relu(up1), wb1, cb1, bblk, L)          # (1,   bblk*L)
    y = jax.nn.sigmoid(bl1)
    for b in range(bblk):
        out_ref[b, :, :] = y[:, b * L:(b + 1) * L].astype(out_ref.dtype)


# ----------------------------------------------------------------------------
# Parameters (deterministic xavier_uniform, zero biases — matches _init_weights)
# ----------------------------------------------------------------------------
def _xavier_uniform(key, c_out, c_in, k):
    fan_in, fan_out = c_in * k, c_out * k
    bound = float(np.sqrt(6.0 / (fan_in + fan_out)))
    return jax.random.uniform(key, (c_out, c_in, k), jnp.float32, -bound, bound)


def _to_mat(w_pt, c_in_pad=None):
    """PyTorch (C_out, C_in, K) -> matrix (C_out, K*C_in_pad), column index k*C_in_pad + c."""
    co, ci, k = w_pt.shape
    if c_in_pad is not None and c_in_pad > ci:
        w_pt = jnp.concatenate([w_pt, jnp.zeros((co, c_in_pad - ci, k), w_pt.dtype)], axis=1)
        ci = c_in_pad
    return jnp.transpose(w_pt, (0, 2, 1)).reshape(co, k * ci)


def init_params(key, motiflen=13):
    specs = [('conv1', 'w1', 128, 4, motiflen, True),
             ('conv2', 'w2', 64, 128, 5, True),
             ('conv3', 'w3', 32, 64, 3, True),
             ('conv4', 'w4', 32, 32, 1, True),
             ('blend4', 'wb4', 64, 32, 3, False),
             ('blend3', 'wb3', 128, 64, 3, False),
             ('blend2', 'wb2', 4, 128, 3, False),
             ('blend1', 'wb1', 1, 4, 3, False)]
    keys = jax.random.split(key, len(specs))
    params = {}
    for kk, (name, tag, co, ci, ks, has_bias) in zip(keys, specs):
        w_pt = _xavier_uniform(kk, co, ci, ks)
        if name == 'conv1':
            params['motif_weight'] = w_pt               # keep PyTorch layout (C_out, C_in, K), f32
            wm = _to_mat(w_pt, c_in_pad=8)              # pad C_in 4 -> 8: aligned im2col stores
        else:
            wm = _to_mat(w_pt)
        if not has_bias:
            wm = wm * BN_SCALE                          # fold eval-mode BatchNorm scale
        params[tag] = wm.astype(jnp.bfloat16)           # MXU-native operand dtype
        if has_bias:
            params['b' + tag[1:]] = jnp.zeros((co, 1), jnp.float32)
    return params


# ----------------------------------------------------------------------------
# FCNP forward (single fused pallas_call, bblk examples per grid step)
# ----------------------------------------------------------------------------
def fcnp_forward(data_ncl, params, *, bblk=4):
    B, c_in, L = data_ncl.shape
    motiflen = params['motif_weight'].shape[2]
    cpad = params['w1'].shape[1] // motiflen
    c1_out = params['w1'].shape[0]
    c_skip = params['wb2'].shape[0]

    L1 = L - motiflen + 1
    P1 = (L1 - 4) // 4 + 1
    L2 = P1 - 5 + 1
    P2 = (L2 - 4) // 4 + 1
    L3 = P2 - 3 + 1
    P3 = (L3 - 2) // 2 + 1
    assert L2 >= 5 and L3 >= 2 and P3 >= 1, "sequence too short for FCNP"
    L1p = ((L1 + 127) // 128) * 128                     # lane-dense score segments / output

    # bblk is tunable: for larger B, raise it (8-16) to fill 256 MXU lanes on v6e/v7x,
    # but keep grid >= 2 steps so both v7x TensorCores get work.
    bblk = int(max(1, min(bblk, B)))
    B_pad = ((B + bblk - 1) // bblk) * bblk

    x = data_ncl.astype(jnp.float32)
    x = jnp.pad(x, ((0, B_pad - B), (0, cpad - c_in), (0, 0)))

    bf = jnp.bfloat16
    sel1 = jnp.asarray(_pool_select_matrix(L1, L1p, 4, bblk), bf)
    sel2 = jnp.asarray(_pool_select_matrix(L2, L2, 4, bblk), bf)
    sel3 = jnp.asarray(_pool_select_matrix(L3, L3, 2, bblk), bf)
    m3t = jnp.asarray(_interp_matrix_bd(P3, P2, bblk), bf)
    m2t = jnp.asarray(_interp_matrix_bd(P2, P1, bblk), bf)
    m1t = jnp.asarray(_interp_matrix_bd(P1, L, bblk), bf)

    consts = (params['w1'], params['b1'], params['w2'], params['b2'],
              params['w3'], params['b3'], params['w4'], params['b4'],
              params['wb4'], params['wb3'], params['wb2'], params['wb1'],
              sel1, sel2, sel3, m3t, m2t, m1t)

    def _const_spec(a):
        nd = a.ndim
        return pl.BlockSpec(a.shape, lambda *_: (0,) * nd)

    out3, score_p = pl.pallas_call(
        functools.partial(_fcnp_kernel, motiflen=motiflen, bblk=bblk),
        out_shape=(jax.ShapeDtypeStruct((B_pad, 1, L), jnp.float32),
                   jax.ShapeDtypeStruct((B_pad, c1_out, L1p), jnp.float32)),
        grid=(B_pad // bblk,),
        in_specs=[pl.BlockSpec((bblk, cpad, L), lambda i: (i, 0, 0))]
                 + [_const_spec(a) for a in consts],
        out_specs=(pl.BlockSpec((bblk, 1, L), lambda i: (i, 0, 0)),
                   pl.BlockSpec((bblk, c1_out, L1p), lambda i: (i, 0, 0))),
        scratch_shapes=[
            pltpu.VMEM((params['w1'].shape[1], bblk * L1p), bf),   # conv1 im2col (aligned segs)
            pltpu.VMEM((params['w2'].shape[1], bblk * L2), bf),    # conv2 im2col
            pltpu.VMEM((params['w3'].shape[1], bblk * L3), bf),    # conv3 im2col
            pltpu.VMEM((params['wb4'].shape[1], bblk * P3), bf),   # blend4 im2col
            pltpu.VMEM((params['wb3'].shape[1], bblk * P2), bf),   # blend3 im2col
            pltpu.VMEM((params['wb2'].shape[1], bblk * P1), bf),   # blend2 im2col
            pltpu.VMEM((params['wb1'].shape[1], bblk * L), bf),    # blend1 im2col
            pltpu.VMEM((c_skip, bblk * L), jnp.float32),           # lane-stacked raw input (skip1)
        ],
        compiler_params=pltpu.CompilerParams(
            dimension_semantics=("parallel",),
            vmem_limit_bytes=32 * 1024 * 1024),
    )(x, *consts)

    out_dense = out3.reshape(B_pad, L)[:B]
    score = score_p[:B, :, :L1]
    return out_dense, score, params['motif_weight']


# ----------------------------------------------------------------------------
# Plain-JAX f32 reference (same folded-BN, bf16-stored weights upcast to f32)
# ----------------------------------------------------------------------------
def _reference_forward(data, params, motiflen):
    hp = jax.lax.Precision.HIGHEST
    f32 = jnp.float32
    B, c_in, L = data.shape
    cpad = params['w1'].shape[1] // motiflen
    relu = jax.nn.relu

    def valid_conv(x, wmat, bias, K):
        Bq, C, Lx = x.shape
        Lout = Lx - K + 1
        cols = jnp.concatenate([x[:, :, k:k + Lout] for k in range(K)], axis=1)  # rows k*C + c
        y = jnp.einsum('oc,bcl->bol', wmat.astype(f32), cols, precision=hp)
        return y if bias is None else y + bias

    def maxpool(x, s):
        Bq, C, Lx = x.shape
        Lp = (Lx - s) // s + 1
        return x[:, :, :Lp * s].reshape(Bq, C, Lp, s).max(axis=-1)

    def up(x, L_out):
        Mt = jnp.asarray(_interp_matrix_bd(x.shape[-1], L_out, 1))
        return jnp.einsum('bcl,lm->bcm', x, Mt, precision=hp)

    def blend(x, wmat):
        xp = jnp.pad(x, ((0, 0), (0, 0), (1, 1)))
        return valid_conv(xp, wmat, None, 3)

    xpad = jnp.pad(data.astype(f32), ((0, 0), (0, cpad - c_in), (0, 0)))
    c1 = relu(valid_conv(xpad, params['w1'], params['b1'], motiflen))
    score = c1
    p1 = maxpool(c1, 4)
    c2 = relu(valid_conv(p1, params['w2'], params['b2'], 5))
    p2 = maxpool(c2, 4)
    c3 = relu(valid_conv(p2, params['w3'], params['b3'], 3))
    p3 = maxpool(c3, 2)
    c4 = relu(valid_conv(p3, params['w4'], params['b4'], 1))
    u4 = up(c4, p3.shape[-1]) + p3
    b4 = blend(relu(u4), params['wb4'])
    u3 = up(b4, p2.shape[-1]) + p2
    b3 = blend(relu(u3), params['wb3'])
    u2 = up(b3, p1.shape[-1]) + p1
    b2 = blend(relu(u2), params['wb2'])
    u1 = up(b2, L) + data.astype(f32)
    b1 = blend(relu(u1), params['wb1'])
    return jax.nn.sigmoid(b1).reshape(B, -1), score


if __name__ == "__main__":
    B, C_IN, L, MOTIFLEN = 8, 4, 128, 13
    data = jax.random.normal(jax.random.PRNGKey(0), (B, C_IN, L), jnp.float32)
    params = init_params(jax.random.PRNGKey(42), motiflen=MOTIFLEN)

    fwd = jax.jit(functools.partial(fcnp_forward, bblk=4))   # 2 grid steps (megacore on v7x)
    out_dense, score, motif_w = fwd(data, params)
    jax.block_until_ready((out_dense, score, motif_w))

    assert out_dense.shape == (B, L)
    assert score.shape == (B, 128, L - MOTIFLEN + 1)
    assert motif_w.shape == (128, 4, MOTIFLEN)
    assert bool(jnp.all(jnp.isfinite(out_dense)))
    assert bool(jnp.all((out_dense >= 0.0) & (out_dense <= 1.0)))

    # numerical check vs. a plain-JAX f32 reference (kernel uses bf16 MXU operands)
    ref_out, ref_score = jax.jit(
        functools.partial(_reference_forward, motiflen=MOTIFLEN))(data, params)
    jax.block_until_ready((ref_out, ref_score))
    np.testing.assert_allclose(np.asarray(out_dense), np.asarray(ref_out), atol=3e-2, rtol=3e-2)
    np.testing.assert_allclose(np.asarray(score), np.asarray(ref_score), atol=3e-2, rtol=3e-2)
    print("KERNEL_OK")
</pallas_src>

<mosaic_0001>
module attributes {stable_mosaic.version = 11 : i64} {
  func.func @_fcnp_kernel(%arg0: i32, %arg1: memref<4x8x128xf32, #tpu.memory_space<vmem>>, %arg2: memref<128x104xbf16, #tpu.memory_space<vmem>>, %arg3: memref<128x1xf32, #tpu.memory_space<vmem>>, %arg4: memref<64x640xbf16, #tpu.memory_space<vmem>>, %arg5: memref<64x1xf32, #tpu.memory_space<vmem>>, %arg6: memref<32x192xbf16, #tpu.memory_space<vmem>>, %arg7: memref<32x1xf32, #tpu.memory_space<vmem>>, %arg8: memref<32x32xbf16, #tpu.memory_space<vmem>>, %arg9: memref<32x1xf32, #tpu.memory_space<vmem>>, %arg10: memref<64x96xbf16, #tpu.memory_space<vmem>>, %arg11: memref<128x192xbf16, #tpu.memory_space<vmem>>, %arg12: memref<4x384xbf16, #tpu.memory_space<vmem>>, %arg13: memref<1x12xbf16, #tpu.memory_space<vmem>>, %arg14: memref<509x116xbf16, #tpu.memory_space<vmem>>, %arg15: memref<97x24xbf16, #tpu.memory_space<vmem>>, %arg16: memref<15x8xbf16, #tpu.memory_space<vmem>>, %arg17: memref<8x24xbf16, #tpu.memory_space<vmem>>, %arg18: memref<24x116xbf16, #tpu.memory_space<vmem>>, %arg19: memref<116x512xbf16, #tpu.memory_space<vmem>>, %arg20: memref<4x1x128xf32, #tpu.memory_space<vmem>>, %arg21: memref<4x128x128xf32, #tpu.memory_space<vmem>>, %arg22: memref<104x512xbf16, #tpu.memory_space<vmem>>, %arg23: memref<640x100xbf16, #tpu.memory_space<vmem>>, %arg24: memref<192x16xbf16, #tpu.memory_space<vmem>>, %arg25: memref<96x8xbf16, #tpu.memory_space<vmem>>, %arg26: memref<192x24xbf16, #tpu.memory_space<vmem>>, %arg27: memref<384x116xbf16, #tpu.memory_space<vmem>>, %arg28: memref<12x512xbf16, #tpu.memory_space<vmem>>, %arg29: memref<4x512xf32, #tpu.memory_space<vmem>>) attributes {dimension_semantics = [#tpu.dimension_semantics<parallel>], iteration_bounds = array<i64: 2>, scalar_prefetch = 0 : i64, scratch_operands = 8 : i64, tpu.core_type = #tpu.core_type<tc>, window_params = [{transform_indices = @transform_0, window_bounds = array<i64: 4, 8, 128>}, {pipeline_mode = #tpu.pipeline_mode<synchronous>, transform_indices = @transform_1, window_bounds = array<i64: 128, 104>}, {pipeline_mode = #tpu.pipeline_mode<synchronous>, transform_indices = @transform_2, window_bounds = array<i64: 128, 1>}, {pipeline_mode = #tpu.pipeline_mode<synchronous>, transform_indices = @transform_3, window_bounds = array<i64: 64, 640>}, {pipeline_mode = #tpu.pipeline_mode<synchronous>, transform_indices = @transform_4, window_bounds = array<i64: 64, 1>}, {pipeline_mode = #tpu.pipeline_mode<synchronous>, transform_indices = @transform_5, window_bounds = array<i64: 32, 192>}, {pipeline_mode = #tpu.pipeline_mode<synchronous>, transform_indices = @transform_6, window_bounds = array<i64: 32, 1>}, {pipeline_mode = #tpu.pipeline_mode<synchronous>, transform_indices = @transform_7, window_bounds = array<i64: 32, 32>}, {pipeline_mode = #tpu.pipeline_mode<synchronous>, transform_indices = @transform_8, window_bounds = array<i64: 32, 1>}, {pipeline_mode = #tpu.pipeline_mode<synchronous>, transform_indices = @transform_9, window_bounds = array<i64: 64, 96>}, {pipeline_mode = #tpu.pipeline_mode<synchronous>, transform_indices = @transform_10, window_bounds = array<i64: 128, 192>}, {pipeline_mode = #tpu.pipeline_mode<synchronous>, transform_indices = @transform_11, window_bounds = array<i64: 4, 384>}, {pipeline_mode = #tpu.pipeline_mode<synchronous>, transform_indices = @transform_12, window_bounds = array<i64: 1, 12>}, {pipeline_mode = #tpu.pipeline_mode<synchronous>, transform_indices = @transform_13, window_bounds = array<i64: 509, 116>}, {pipeline_mode = #tpu.pipeline_mode<synchronous>, transform_indices = @transform_14, window_bounds = array<i64: 97, 24>}, {pipeline_mode = #tpu.pipeline_mode<synchronous>, transform_indices = @transform_15, window_bounds = array<i64: 15, 8>}, {pipeline_mode = #tpu.pipeline_mode<synchronous>, transform_indices = @transform_16, window_bounds = array<i64: 8, 24>}, {pipeline_mode = #tpu.pipeline_mode<synchronous>, transform_indices = @transform_17, window_bounds = array<i64: 24, 116>}, {pipeline_mode = #tpu.pipeline_mode<synchronous>, transform_indices = @transform_18, window_bounds = array<i64: 116, 512>}, {transform_indices = @transform_19, window_bounds = array<i64: 4, 1, 128>}, {transform_indices = @transform_20, window_bounds = array<i64: 4, 128, 128>}]} {
    %cst = arith.constant 0.000000e+00 : bf16
    %0 = vector.broadcast %cst : bf16 to vector<104x12xbf16>
    %c0 = arith.constant 0 : index
    %c0_0 = arith.constant 0 : index
    %c0_1 = arith.constant 0 : index
    %1 = vector.load %arg1[%c0, %c0_0, %c0_1] : memref<4x8x128xf32, #tpu.memory_space<vmem>>, vector<1x4x128xf32>
    %2 = vector.shape_cast %1 : vector<1x4x128xf32> to vector<4x128xf32>
    %c0_2 = arith.constant 0 : index
    %c0_3 = arith.constant 0 : index
    %3 = vector.load %arg29[%c0_2, %c0_3] : memref<4x512xf32, #tpu.memory_space<vmem>>, vector<4x128xf32>
    tpu.vector_store %arg29[%c0_2, %c0_3], %2 {strides = array<i32>} : memref<4x512xf32, #tpu.memory_space<vmem>>, vector<4x128xf32>,
    %c0_4 = arith.constant 0 : index
    %c0_5 = arith.constant 0 : index
    %c0_6 = arith.constant 0 : index
    %4 = vector.load %arg1[%c0_4, %c0_5, %c0_6] : memref<4x8x128xf32, #tpu.memory_space<vmem>>, vector<1x8x128xf32>
    %5 = vector.shape_cast %4 : vector<1x8x128xf32> to vector<8x128xf32>
    %6 = arith.truncf %5 : vector<8x128xf32> to vector<8x128xbf16>
    %7 = vector.extract_strided_slice %6 {offsets = [0, 0], sizes = [8, 116], strides = [1, 1]} : vector<8x128xbf16> to vector<8x116xbf16>
    %c0_7 = arith.constant 0 : index
    %c0_8 = arith.constant 0 : index
    %8 = vector.load %arg22[%c0_7, %c0_8] : memref<104x512xbf16, #tpu.memory_space<vmem>>, vector<8x116xbf16>
    tpu.vector_store %arg22[%c0_7, %c0_8], %7 {strides = array<i32>} : memref<104x512xbf16, #tpu.memory_space<vmem>>, vector<8x116xbf16>,
    %9 = vector.extract_strided_slice %6 {offsets = [0, 1], sizes = [8, 116], strides = [1, 1]} : vector<8x128xbf16> to vector<8x116xbf16>
    %c8 = arith.constant 8 : index
    %c0_9 = arith.constant 0 : index
    %10 = vector.load %arg22[%c8, %c0_9] : memref<104x512xbf16, #tpu.memory_space<vmem>>, vector<8x116xbf16>
    tpu.vector_store %arg22[%c8, %c0_9], %9 {strides = array<i32>} : memref<104x512xbf16, #tpu.memory_space<vmem>>, vector<8x116xbf16>,
    %11 = vector.extract_strided_slice %6 {offsets = [0, 2], sizes = [8, 116], strides = [1, 1]} : vector<8x128xbf16> to vector<8x116xbf16>
    %c16 = arith.constant 16 : index
    %c0_10 = arith.constant 0 : index
    %12 = vector.load %arg22[%c16, %c0_10] : memref<104x512xbf16, #tpu.memory_space<vmem>>, vector<8x116xbf16>
    tpu.vector_store %arg22[%c16, %c0_10], %11 {strides = array<i32>} : memref<104x512xbf16, #tpu.memory_space<vmem>>, vector<8x116xbf16>,
    %13 = vector.extract_strided_slice %6 {offsets = [0, 3], sizes = [8, 116], strides = [1, 1]} : vector<8x128xbf16> to vector<8x116xbf16>
    %c24 = arith.constant 24 : index
    %c0_11 = arith.constant 0 : index
    %14 = vector.load %arg22[%c24, %c0_11] : memref<104x512xbf16, #tpu.memory_space<vmem>>, vector<8x116xbf16>
    tpu.vector_store %arg22[%c24, %c0_11], %13 {strides = array<i32>} : memref<104x512xbf16, #tpu.memory_space<vmem>>, vector<8x116xbf16>,
    %15 = vector.extract_strided_slice %6 {offsets = [0, 4], sizes = [8, 116], strides = [1, 1]} : vector<8x128xbf16> to vector<8x116xbf16>
    %c32 = arith.constant 32 : index
    %c0_12 = arith.constant 0 : index
    %16 = vector.load %arg22[%c32, %c0_12] : memref<104x512xbf16, #tpu.memory_space<vmem>>, vector<8x116xbf16>
    tpu.vector_store %arg22[%c32, %c0_12], %15 {strides = array<i32>} : memref<104x512xbf16, #tpu.memory_space<vmem>>, vector<8x116xbf16>,
    %17 = vector.extract_strided_slice %6 {offsets = [0, 5], sizes = [8, 116], strides = [1, 1]} : vector<8x128xbf16> to vector<8x116xbf16>
    %c40 = arith.constant 40 : index
    %c0_13 = arith.constant 0 : index
    %18 = vector.load %arg22[%c40, %c0_13] : memref<104x512xbf16, #tpu.memory_space<vmem>>, vector<8x116xbf16>
    tpu.vector_store %arg22[%c40, %c0_13], %17 {strides = array<i32>} : memref<104x512xbf16, #tpu.memory_space<vmem>>, vector<8x116xbf16>,
    %19 = vector.extract_strided_slice %6 {offsets = [0, 6], sizes = [8, 116], strides = [1, 1]} : vector<8x128xbf16> to vector<8x116xbf16>
    %c48 = arith.constant 48 : index
    %c0_14 = arith.constant 0 : index
    %20 = vector.load %arg22[%c48, %c0_14] : memref<104x512xbf16, #tpu.memory_space<vmem>>, vector<8x116xbf16>
    tpu.vector_store %arg22[%c48, %c0_14], %19 {strides = array<i32>} : memref<104x512xbf16, #tpu.memory_space<vmem>>, vector<8x116xbf16>,
    %21 = vector.extract_strided_slice %6 {offsets = [0, 7], sizes = [8, 116], strides = [1, 1]} : vector<8x128xbf16> to vector<8x116xbf16>
    %c56 = arith.constant 56 : index
    %c0_15 = arith.constant 0 : index
    %22 = vector.load %arg22[%c56, %c0_15] : memref<104x512xbf16, #tpu.memory_space<vmem>>, vector<8x116xbf16>
    tpu.vector_store %arg22[%c56, %c0_15], %21 {strides = array<i32>} : memref<104x512xbf16, #tpu.memory_space<vmem>>, vector<8x116xbf16>,
    %23 = vector.extract_strided_slice %6 {offsets = [0, 8], sizes = [8, 116], strides = [1, 1]} : vector<8x128xbf16> to vector<8x116xbf16>
    %c64 = arith.constant 64 : index
    %c0_16 = arith.constant 0 : index
    %24 = vector.load %arg22[%c64, %c0_16] : memref<104x512xbf16, #tpu.memory_space<vmem>>, vector<8x116xbf16>
    tpu.vector_store %arg22[%c64, %c0_16], %23 {strides = array<i32>} : memref<104x512xbf16, #tpu.memory_space<vmem>>, vector<8x116xbf16>,
    %25 = vector.extract_strided_slice %6 {offsets = [0, 9], sizes = [8, 116], strides = [1, 1]} : vector<8x128xbf16> to vector<8x116xbf16>
    %c72 = arith.constant 72 : index
    %c0_17 = arith.constant 0 : index
    %26 = vector.load %arg22[%c72, %c0_17] : memref<104x512xbf16, #tpu.memory_space<vmem>>, vector<8x116xbf16>
    tpu.vector_store %arg22[%c72, %c0_17], %25 {strides = array<i32>} : memref<104x512xbf16, #tpu.memory_space<vmem>>, vector<8x116xbf16>,
    %27 = vector.extract_strided_slice %6 {offsets = [0, 10], sizes = [8, 116], strides = [1, 1]} : vector<8x128xbf16> to vector<8x116xbf16>
    %c80 = arith.constant 80 : index
    %c0_18 = arith.constant 0 : index
    %28 = vector.load %arg22[%c80, %c0_18] : memref<104x512xbf16, #tpu.memory_space<vmem>>, vector<8x116xbf16>
    tpu.vector_store %arg22[%c80, %c0_18], %27 {strides = array<i32>} : memref<104x512xbf16, #tpu.memory_space<vmem>>, vector<8x116xbf16>,
    %29 = vector.extract_strided_slice %6 {offsets = [0, 11], sizes = [8, 116], strides = [1, 1]} : vector<8x128xbf16> to vector<8x116xbf16>
    %c88 = arith.constant 88 : index
    %c0_19 = arith.constant 0 : index
    %30 = vector.load %arg22[%c88, %c0_19] : memref<104x512xbf16, #tpu.memory_space<vmem>>, vector<8x116xbf16>
    tpu.vector_store %arg22[%c88, %c0_19], %29 {strides = array<i32>} : memref<104x512xbf16, #tpu.memory_space<vmem>>, vector<8x116xbf16>,
    %31 = vector.extract_strided_slice %6 {offsets = [0, 12], sizes = [8, 116], strides = [1, 1]} : vector<8x128xbf16> to vector<8x116xbf16>
    %c96 = arith.constant 96 : index
    %c0_20 = arith.constant 0 : index
    %32 = vector.load %arg22[%c96, %c0_20] : memref<104x512xbf16, #tpu.memory_space<vmem>>, vector<8x116xbf16>
    tpu.vector_store %arg22[%c96, %c0_20], %31 {strides = array<i32>} : memref<104x512xbf16, #tpu.memory_space<vmem>>, vector<8x116xbf16>,
    %c0_21 = arith.constant 0 : index
    %c116 = arith.constant 116 : index
    %33 = vector.load %arg22[%c0_21, %c116] : memref<104x512xbf16, #tpu.memory_space<vmem>>, vector<104x12xbf16>
    tpu.vector_store %arg22[%c0_21, %c116], %0 {strides = array<i32>} : memref<104x512xbf16, #tpu.memory_space<vmem>>, vector<104x12xbf16>,
    %c1 = arith.constant 1 : index
    %c0_22 = arith.constant 0 : index
    %c0_23 = arith.constant 0 : index
    %34 = vector.load %arg1[%c1, %c0_22, %c0_23] : memref<4x8x128xf32, #tpu.memory_space<vmem>>, vector<1x4x128xf32>
    %35 = vector.shape_cast %34 : vector<1x4x128xf32> to vector<4x128xf32>
    %c0_24 = arith.constant 0 : index
    %c128 = arith.constant 128 : index
    %36 = vector.load %arg29[%c0_24, %c128] : memref<4x512xf32, #tpu.memory_space<vmem>>, vector<4x128xf32>
    tpu.vector_store %arg29[%c0_24, %c128], %35 {strides = array<i32>} : memref<4x512xf32, #tpu.memory_space<vmem>>, vector<4x128xf32>,
    %c1_25 = arith.constant 1 : index
    %c0_26 = arith.constant 0 : index
    %c0_27 = arith.constant 0 : index
    %37 = vector.load %arg1[%c1_25, %c0_26, %c0_27] : memref<4x8x128xf32, #tpu.memory_space<vmem>>, vector<1x8x128xf32>
    %38 = vector.shape_cast %37 : vector<1x8x128xf32> to vector<8x128xf32>
    %39 = arith.truncf %38 : vector<8x128xf32> to vector<8x128xbf16>
    %40 = vector.extract_strided_slice %39 {offsets = [0, 0], sizes = [8, 116], strides = [1, 1]} : vector<8x128xbf16> to vector<8x116xbf16>
    %c0_28 = arith.constant 0 : index
    %c128_29 = arith.constant 128 : index
    %41 = vector.load %arg22[%c0_28, %c128_29] : memref<104x512xbf16, #tpu.memory_space<vmem>>, vector<8x116xbf16>
    tpu.vector_store %arg22[%c0_28, %c128_29], %40 {strides = array<i32>} : memref<104x512xbf16, #tpu.memory_space<vmem>>, vector<8x116xbf16>,
    %42 = vector.extract_strided_slice %39 {offsets = [0, 1], sizes = [8, 116], strides = [1, 1]} : vector<8x128xbf16> to vector<8x116xbf16>
    %c8_30 = arith.constant 8 : index
    %c128_31 = arith.constant 128 : index
    %43 = vector.load %arg22[%c8_30, %c128_31] : memref<104x512xbf16, #tpu.memory_space<vmem>>, vector<8x116xbf16>
    tpu.vector_store %arg22[%c8_30, %c128_31], %42 {strides = array<i32>} : memref<104x512xbf16, #tpu.memory_space<vmem>>, vector<8x116xbf16>,
    %44 = vector.extract_strided_slice %39 {offsets = [0, 2], sizes = [8, 116], strides = [1, 1]} : vector<8x128xbf16> to vector<8x116xbf16>
    %c16_32 = arith.constant 16 : index
    %c128_33 = arith.constant 128 : index
    %45 = vector.load %arg22[%c16_32, %c128_33] : memref<104x512xbf16, #tpu.memory_space<vmem>>, vector<8x116xbf16>
    tpu.vector_store %arg22[%c16_32, %c128_33], %44 {strides = array<i32>} : memref<104x512xbf16, #tpu.memory_space<vmem>>, vector<8x116xbf16>,
    %46 = vector.extract_strided_slice %39 {offsets = [0, 3], sizes = [8, 116], strides = [1, 1]} : vector<8x128xbf16> to vector<8x116xbf16>
    %c24_34 = arith.constant 24 : index
    %c128_35 = arith.constant 128 : index
    %47 = vector.load %arg22[%c24_34, %c128_35] : memref<104x512xbf16, #tpu.memory_space<vmem>>, vector<8x116xbf16>
    tpu.vector_store %arg22[%c24_34, %c128_35], %46 {strides = array<i32>} : memref<104x512xbf16, #tpu.memory_space<vmem>>, vector<8x116xbf16>,
    %48 = vector.extract_strided_slice %39 {offsets = [0, 4], sizes = [8, 116], strides = [1, 1]} : vector<8x128xbf16> to vector<8x116xbf16>
    %c32_36 = arith.constant 32 : index
    %c128_37 = arith.constant 128 : index
    %49 = vector.load %arg22[%c32_36, %c128_37] : memref<104x512xbf16, #tpu.memory_space<vmem>>, vector<8x116xbf16>
    tpu.vector_store %arg22[%c32_36, %c128_37], %48 {strides = array<i32>} : memref<104x512xbf16, #tpu.memory_space<vmem>>, vector<8x116xbf16>,
    %50 = vector.extract_strided_slice %39 {offsets = [0, 5], sizes = [8, 116], strides = [1, 1]} : vector<8x128xbf16> to vector<8x116xbf16>
    %c40_38 = arith.constant 40 : index
    %c128_39 = arith.constant 128 : index
    %51 = vector.load %arg22[%c40_38, %c128_39] : memref<104x512xbf16, #tpu.memory_space<vmem>>, vector<8x116xbf16>
    tpu.vector_store %arg22[%c40_38, %c128_39], %50 {strides = array<i32>} : memref<104x512xbf16, #tpu.memory_space<vmem>>, vector<8x116xbf16>,
    %52 = vector.extract_strided_slice %39 {offsets = [0, 6], sizes = [8, 116], strides = [1, 1]} : vector<8x128xbf16> to vector<8x116xbf16>
    %c48_40 = arith.constant 48 : index
    %c128_41 = arith.constant 128 : index
    %53 = vector.load %arg22[%c48_40, %c128_41] : memref<104x512xbf16, #tpu.memory_space<vmem>>, vector<8x116xbf16>
    tpu.vector_store %arg22[%c48_40, %c128_41], %52 {strides = array<i32>} : memref<104x512xbf16, #tpu.memory_space<vmem>>, vector<8x116xbf16>,
    %54 = vector.extract_strided_slice %39 {offsets = [0, 7], sizes = [8, 116], strides = [1, 1]} : vector<8x128xbf16> to vector<8x116xbf16>
    %c56_42 = arith.constant 56 : index
    %c128_43 = arith.constant 128 : index
    %55 = vector.load %arg22[%c56_42, %c128_43] : memref<104x512xbf16, #tpu.memory_space<vmem>>, vector<8x116xbf16>
    tpu.vector_store %arg22[%c56_42, %c128_43], %54 {strides = array<i32>} : memref<104x512xbf16, #tpu.memory_space<vmem>>, vector<8x116xbf16>,
    %56 = vector.extract_strided_slice %39 {offsets = [0, 8], sizes = [8, 116], strides = [1, 1]} : vector<8x128xbf16> to vector<8x116xbf16>
    %c64_44 = arith.constant 64 : index
    %c128_45 = arith.constant 128 : index
    %57 = vector.load %arg22[%c64_44, %c128_45] : memref<104x512xbf16, #tpu.memory_space<vmem>>, vector<8x116xbf16>
    tpu.vector_store %arg22[%c64_44, %c128_45], %56 {strides = array<i32>} : memref<104x512xbf16, #tpu.memory_space<vmem>>, vector<8x116xbf16>,
    %58 = vector.extract_strided_slice %39 {offsets = [0, 9], sizes = [8, 116], strides = [1, 1]} : vector<8x128xbf16> to vector<8x116xbf16>
    %c72_46 = arith.constant 72 : index
    %c128_47 = arith.constant 128 : index
    %59 = vector.load %arg22[%c72_46, %c128_47] : memref<104x512xbf16, #tpu.memory_space<vmem>>, vector<8x116xbf16>
    tpu.vector_store %arg22[%c72_46, %c128_47], %58 {strides = array<i32>} : memref<104x512xbf16, #tpu.memory_space<vmem>>, vector<8x116xbf16>,
    %60 = vector.extract_strided_slice %39 {offsets = [0, 10], sizes = [8, 116], strides = [1, 1]} : vector<8x128xbf16> to vector<8x116xbf16>
    %c80_48 = arith.constant 80 : index
    %c128_49 = arith.constant 128 : index
    %61 = vector.load %arg22[%c80_48, %c128_49] : memref<104x512xbf16, #tpu.memory_space<vmem>>, vector<8x116xbf16>
    tpu.vector_store %arg22[%c80_48, %c128_49], %60 {strides = array<i32>} : memref<104x512xbf16, #tpu.memory_space<vmem>>, vector<8x116xbf16>,
    %62 = vector.extract_strided_slice %39 {offsets = [0, 11], sizes = [8, 116], strides = [1, 1]} : vector<8x128xbf16> to vector<8x116xbf16>
    %c88_50 = arith.constant 88 : index
    %c128_51 = arith.constant 128 : index
    %63 = vector.load %arg22[%c88_50, %c128_51] : memref<104x512xbf16, #tpu.memory_space<vmem>>, vector<8x116xbf16>
    tpu.vector_store %arg22[%c88_50, %c128_51], %62 {strides = array<i32>} : memref<104x512xbf16, #tpu.memory_space<vmem>>, vector<8x116xbf16>,
    %64 = vector.extract_strided_slice %39 {offsets = [0, 12], sizes = [8, 116], strides = [1, 1]} : vector<8x128xbf16> to vector<8x116xbf16>
    %c96_52 = arith.constant 96 : index
    %c128_53 = arith.constant 128 : index
    %65 = vector.load %arg22[%c96_52, %c128_53] : memref<104x512xbf16, #tpu.memory_space<vmem>>, vector<8x116xbf16>
    tpu.vector_store %arg22[%c96_52, %c128_53], %64 {strides = array<i32>} : memref<104x512xbf16, #tpu.memory_space<vmem>>, vector<8x116xbf16>,
    %c0_54 = arith.constant 0 : index
    %c244 = arith.constant 244 : index
    %66 = vector.load %arg22[%c0_54, %c244] : memref<104x512xbf16, #tpu.memory_space<vmem>>, vector<104x12xbf16>
    tpu.vector_store %arg22[%c0_54, %c244], %0 {strides = array<i32>} : memref<104x512xbf16, #tpu.memory_space<vmem>>, vector<104x12xbf16>,
    %c2 = arith.constant 2 : index
    %c0_55 = arith.constant 0 : index
    %c0_56 = arith.constant 0 : index
    %67 = vector.load %arg1[%c2, %c0_55, %c0_56] : memref<4x8x128xf32, #tpu.memory_space<vmem>>, vector<1x4x128xf32>
    %68 = vector.shape_cast %67 : vector<1x4x128xf32> to vector<4x128xf32>
    %c0_57 = arith.constant 0 : index
    %c256 = arith.constant 256 : index
    %69 = vector.load %arg29[%c0_57, %c256] : memref<4x512xf32, #tpu.memory_space<vmem>>, vector<4x128xf32>
    tpu.vector_store %arg29[%c0_57, %c256], %68 {strides = array<i32>} : memref<4x512xf32, #tpu.memory_space<vmem>>, vector<4x128xf32>,
    %c2_58 = arith.constant 2 : index
    %c0_59 = arith.constant 0 : index
    %c0_60 = arith.constant 0 : index
    %70 = vector.load %arg1[%c2_58, %c0_59, %c0_60] : memref<4x8x128xf32, #tpu.memory_space<vmem>>, vector<1x8x128xf32>
    %71 = vector.shape_cast %70 : vector<1x8x128xf32> to vector<8x128xf32>
    %72 = arith.truncf %71 : vector<8x128xf32> to vector<8x128xbf16>
    %73 = vector.extract_strided_slice %72 {offsets = [0, 0], sizes = [8, 116], strides = [1, 1]} : vector<8x128xbf16> to vector<8x116xbf16>
    %c0_61 = arith.constant 0 : index
    %c256_62 = arith.constant 256 : index
    %74 = vector.load %arg22[%c0_61, %c256_62] : memref<104x512xbf16, #tpu.memory_space<vmem>>, vector<8x116xbf16>
    tpu.vector_store %arg22[%c0_61, %c256_62], %73 {strides = array<i32>} : memref<104x512xbf16, #tpu.memory_space<vmem>>, vector<8x116xbf16>,
    %75 = vector.extract_strided_slice %72 {offsets = [0, 1], sizes = [8, 116], strides = [1, 1]} : vector<8x128xbf16> to vector<8x116xbf16>
    %c8_63 = arith.constant 8 : index
    %c256_64 = arith.constant 256 : index
    %76 = vector.load %arg22[%c8_63, %c256_64] : memref<104x512xbf16, #tpu.memory_space<vmem>>, vector<8x116xbf16>
    tpu.vector_store %arg22[%c8_63, %c256_64], %75 {strides = array<i32>} : memref<104x512xbf16, #tpu.memory_space<vmem>>, vector<8x116xbf16>,
    %77 = vector.extract_strided_slice %72 {offsets = [0, 2], sizes = [8, 116], strides = [1, 1]} : vector<8x128xbf16> to vector<8x116xbf16>
    %c16_65 = arith.constant 16 : index
    %c256_66 = arith.constant 256 : index
    %78 = vector.load %arg22[%c16_65, %c256_66] : memref<104x512xbf16, #tpu.memory_space<vmem>>, vector<8x116xbf16>
    tpu.vector_store %arg22[%c16_65, %c256_66], %77 {strides = array<i32>} : memref<104x512xbf16, #tpu.memory_space<vmem>>, vector<8x116xbf16>,
    %79 = vector.extract_strided_slice %72 {offsets = [0, 3], sizes = [8, 116], strides = [1, 1]} : vector<8x128xbf16> to vector<8x116xbf16>
    %c24_67 = arith.constant 24 : index
    %c256_68 = arith.constant 256 : index
    %80 = vector.load %arg22[%c24_67, %c256_68] : memref<104x512xbf16, #tpu.memory_space<vmem>>, vector<8x116xbf16>
    tpu.vector_store %arg22[%c24_67, %c256_68], %79 {strides = array<i32>} : memref<104x512xbf16, #tpu.memory_space<vmem>>, vector<8x116xbf16>,
    %81 = vector.extract_strided_slice %72 {offsets = [0, 4], sizes = [8, 116], strides = [1, 1]} : vector<8x128xbf16> to vector<8x116xbf16>
    %c32_69 = arith.constant 32 : index
    %c256_70 = arith.constant 256 : index
    %82 = vector.load %arg22[%c32_69, %c256_70] : memref<104x512xbf16, #tpu.memory_space<vmem>>, vector<8x116xbf16>
    tpu.vector_store %arg22[%c32_69, %c256_70], %81 {strides = array<i32>} : memref<104x512xbf16, #tpu.memory_space<vmem>>, vector<8x116xbf16>,
    %83 = vector.extract_strided_slice %72 {offsets = [0, 5], sizes = [8, 116], strides = [1, 1]} : vector<8x128xbf16> to vector<8x116xbf16>
    %c40_71 = arith.constant 40 : index
    %c256_72 = arith.constant 256 : index
    %84 = vector.load %arg22[%c40_71, %c256_72] : memref<104x512xbf16, #tpu.memory_space<vmem>>, vector<8x116xbf16>
    tpu.vector_store %arg22[%c40_71, %c256_72], %83 {strides = array<i32>} : memref<104x512xbf16, #tpu.memory_space<vmem>>, vector<8x116xbf16>,
    %85 = vector.extract_strided_slice %72 {offsets = [0, 6], sizes = [8, 116], strides = [1, 1]} : vector<8x128xbf16> to vector<8x116xbf16>
    %c48_73 = arith.constant 48 : index
    %c256_74 = arith.constant 256 : index
    %86 = vector.load %arg22[%c48_73, %c256_74] : memref<104x512xbf16, #tpu.memory_space<vmem>>, vector<8x116xbf16>
    tpu.vector_store %arg22[%c48_73, %c256_74], %85 {strides = array<i32>} : memref<104x512xbf16, #tpu.memory_space<vmem>>, vector<8x116xbf16>,
    %87 = vector.extract_strided_slice %72 {offsets = [0, 7], sizes = [8, 116], strides = [1, 1]} : vector<8x128xbf16> to vector<8x116xbf16>
    %c56_75 = arith.constant 56 : index
    %c256_76 = arith.constant 256 : index
    %88 = vector.load %arg22[%c56_75, %c256_76] : memref<104x512xbf16, #tpu.memory_space<vmem>>, vector<8x116xbf16>
    tpu.vector_store %arg22[%c56_75, %c256_76], %87 {strides = array<i32>} : memref<104x512xbf16, #tpu.memory_space<vmem>>, vector<8x116xbf16>,
    %89 = vector.extract_strided_slice %72 {offsets = [0, 8], sizes = [8, 116], strides = [1, 1]} : vector<8x128xbf16> to vector<8x116xbf16>
    %c64_77 = arith.constant 64 : index
    %c256_78 = arith.constant 256 : index
    %90 = vector.load %arg22[%c64_77, %c256_78] : memref<104x512xbf16, #tpu.memory_space<vmem>>, vector<8x116xbf16>
    tpu.vector_store %arg22[%c64_77, %c256_78], %89 {strides = array<i32>} : memref<104x512xbf16, #tpu.memory_space<vmem>>, vector<8x116xbf16>,
    %91 = vector.extract_strided_slice %72 {offsets = [0, 9], sizes = [8, 116], strides = [1, 1]} : vector<8x128xbf16> to vector<8x116xbf16>
    %c72_79 = arith.constant 72 : index
    %c256_80 = arith.constant 256 : index
    %92 = vector.load %arg22[%c72_79, %c256_80] : memref<104x512xbf16, #tpu.memory_space<vmem>>, vector<8x116xbf16>
    tpu.vector_store %arg22[%c72_79, %c256_80], %91 {strides = array<i32>} : memref<104x512xbf16, #tpu.memory_space<vmem>>, vector<8x116xbf16>,
    %93 = vector.extract_strided_slice %72 {offsets = [0, 10], sizes = [8, 116], strides = [1, 1]} : vector<8x128xbf16> to vector<8x116xbf16>
    %c80_81 = arith.constant 80 : index
    %c256_82 = arith.constant 256 : index
    %94 = vector.load %arg22[%c80_81, %c256_82] : memref<104x512xbf16, #tpu.memory_space<vmem>>, vector<8x116xbf16>
    tpu.vector_store %arg22[%c80_81, %c256_82], %93 {strides = array<i32>} : memref<104x512xbf16, #tpu.memory_space<vmem>>, vector<8x116xbf16>,
    %95 = vector.extract_strided_slice %72 {offsets = [0, 11], sizes = [8, 116], strides = [1, 1]} : vector<8x128xbf16> to vector<8x116xbf16>
    %c88_83 = arith.constant 88 : index
    %c256_84 = arith.constant 256 : index
    %96 = vector.load %arg22[%c88_83, %c256_84] : memref<104x512xbf16, #tpu.memory_space<vmem>>, vector<8x116xbf16>
    tpu.vector_store %arg22[%c88_83, %c256_84], %95 {strides = array<i32>} : memref<104x512xbf16, #tpu.memory_space<vmem>>, vector<8x116xbf16>,
    %97 = vector.extract_strided_slice %72 {offsets = [0, 12], sizes = [8, 116], strides = [1, 1]} : vector<8x128xbf16> to vector<8x116xbf16>
    %c96_85 = arith.constant 96 : index
    %c256_86 = arith.constant 256 : index
    %98 = vector.load %arg22[%c96_85, %c256_86] : memref<104x512xbf16, #tpu.memory_space<vmem>>, vector<8x116xbf16>
    tpu.vector_store %arg22[%c96_85, %c256_86], %97 {strides = array<i32>} : memref<104x512xbf16, #tpu.memory_space<vmem>>, vector<8x116xbf16>,
    %c0_87 = arith.constant 0 : index
    %c372 = arith.constant 372 : index
    %99 = vector.load %arg22[%c0_87, %c372] : memref<104x512xbf16, #tpu.memory_space<vmem>>, vector<104x12xbf16>
    tpu.vector_store %arg22[%c0_87, %c372], %0 {strides = array<i32>} : memref<104x512xbf16, #tpu.memory_space<vmem>>, vector<104x12xbf16>,
    %c3 = arith.constant 3 : index
    %c0_88 = arith.constant 0 : index
    %c0_89 = arith.constant 0 : index
    %100 = vector.load %arg1[%c3, %c0_88, %c0_89] : memref<4x8x128xf32, #tpu.memory_space<vmem>>, vector<1x4x128xf32>
    %101 = vector.shape_cast %100 : vector<1x4x128xf32> to vector<4x128xf32>
    %c0_90 = arith.constant 0 : index
    %c384 = arith.constant 384 : index
    %102 = vector.load %arg29[%c0_90, %c384] : memref<4x512xf32, #tpu.memory_space<vmem>>, vector<4x128xf32>
    tpu.vector_store %arg29[%c0_90, %c384], %101 {strides = array<i32>} : memref<4x512xf32, #tpu.memory_space<vmem>>, vector<4x128xf32>,
    %c3_91 = arith.constant 3 : index
    %c0_92 = arith.constant 0 : index
    %c0_93 = arith.constant 0 : index
    %103 = vector.load %arg1[%c3_91, %c0_92, %c0_93] : memref<4x8x128xf32, #tpu.memory_space<vmem>>, vector<1x8x128xf32>
    %104 = vector.shape_cast %103 : vector<1x8x128xf32> to vector<8x128xf32>
    %105 = arith.truncf %104 : vector<8x128xf32> to vector<8x128xbf16>
    %106 = vector.extract_strided_slice %105 {offsets = [0, 0], sizes = [8, 116], strides = [1, 1]} : vector<8x128xbf16> to vector<8x116xbf16>
    %c0_94 = arith.constant 0 : index
    %c384_95 = arith.constant 384 : index
    %107 = vector.load %arg22[%c0_94, %c384_95] : memref<104x512xbf16, #tpu.memory_space<vmem>>, vector<8x116xbf16>
    tpu.vector_store %arg22[%c0_94, %c384_95], %106 {strides = array<i32>} : memref<104x512xbf16, #tpu.memory_space<vmem>>, vector<8x116xbf16>,
    %108 = vector.extract_strided_slice %105 {offsets = [0, 1], sizes = [8, 116], strides = [1, 1]} : vector<8x128xbf16> to vector<8x116xbf16>
    %c8_96 = arith.constant 8 : index
    %c384_97 = arith.constant 384 : index
    %109 = vector.load %arg22[%c8_96, %c384_97] : memref<104x512xbf16, #tpu.memory_space<vmem>>, vector<8x116xbf16>
    tpu.vector_store %arg22[%c8_96, %c384_97], %108 {strides = array<i32>} : memref<104x512xbf16, #tpu.memory_space<vmem>>, vector<8x116xbf16>,
    %110 = vector.extract_strided_slice %105 {offsets = [0, 2], sizes = [8, 116], strides = [1, 1]} : vector<8x128xbf16> to vector<8x116xbf16>
    %c16_98 = arith.constant 16 : index
    %c384_99 = arith.constant 384 : index
    %111 = vector.load %arg22[%c16_98, %c384_99] : memref<104x512xbf16, #tpu.memory_space<vmem>>, vector<8x116xbf16>
    tpu.vector_store %arg22[%c16_98, %c384_99], %110 {strides = array<i32>} : memref<104x512xbf16, #tpu.memory_space<vmem>>, vector<8x116xbf16>,
    %112 = vector.extract_strided_slice %105 {offsets = [0, 3], sizes = [8, 116], strides = [1, 1]} : vector<8x128xbf16> to vector<8x116xbf16>
    %c24_100 = arith.constant 24 : index
    %c384_101 = arith.constant 384 : index
    %113 = vector.load %arg22[%c24_100, %c384_101] : memref<104x512xbf16, #tpu.memory_space<vmem>>, vector<8x116xbf16>
    tpu.vector_store %arg22[%c24_100, %c384_101], %112 {strides = array<i32>} : memref<104x512xbf16, #tpu.memory_space<vmem>>, vector<8x116xbf16>,
    %114 = vector.extract_strided_slice %105 {offsets = [0, 4], sizes = [8, 116], strides = [1, 1]} : vector<8x128xbf16> to vector<8x116xbf16>
    %c32_102 = arith.constant 32 : index
    %c384_103 = arith.constant 384 : index
    %115 = vector.load %arg22[%c32_102, %c384_103] : memref<104x512xbf16, #tpu.memory_space<vmem>>, vector<8x116xbf16>
    tpu.vector_store %arg22[%c32_102, %c384_103], %114 {strides = array<i32>} : memref<104x512xbf16, #tpu.memory_space<vmem>>, vector<8x116xbf16>,
    %116 = vector.extract_strided_slice %105 {offsets = [0, 5], sizes = [8, 116], strides = [1, 1]} : vector<8x128xbf16> to vector<8x116xbf16>
    %c40_104 = arith.constant 40 : index
    %c384_105 = arith.constant 384 : index
    %117 = vector.load %arg22[%c40_104, %c384_105] : memref<104x512xbf16, #tpu.memory_space<vmem>>, vector<8x116xbf16>
    tpu.vector_store %arg22[%c40_104, %c384_105], %116 {strides = array<i32>} : memref<104x512xbf16, #tpu.memory_space<vmem>>, vector<8x116xbf16>,
    %118 = vector.extract_strided_slice %105 {offsets = [0, 6], sizes = [8, 116], strides = [1, 1]} : vector<8x128xbf16> to vector<8x116xbf16>
    %c48_106 = arith.constant 48 : index
    %c384_107 = arith.constant 384 : index
    %119 = vector.load %arg22[%c48_106, %c384_107] : memref<104x512xbf16, #tpu.memory_space<vmem>>, vector<8x116xbf16>
    tpu.vector_store %arg22[%c48_106, %c384_107], %118 {strides = array<i32>} : memref<104x512xbf16, #tpu.memory_space<vmem>>, vector<8x116xbf16>,
    %120 = vector.extract_strided_slice %105 {offsets = [0, 7], sizes = [8, 116], strides = [1, 1]} : vector<8x128xbf16> to vector<8x116xbf16>
    %c56_108 = arith.constant 56 : index
    %c384_109 = arith.constant 384 : index
    %121 = vector.load %arg22[%c56_108, %c384_109] : memref<104x512xbf16, #tpu.memory_space<vmem>>, vector<8x116xbf16>
    tpu.vector_store %arg22[%c56_108, %c384_109], %120 {strides = array<i32>} : memref<104x512xbf16, #tpu.memory_space<vmem>>, vector<8x116xbf16>,
    %122 = vector.extract_strided_slice %105 {offsets = [0, 8], sizes = [8, 116], strides = [1, 1]} : vector<8x128xbf16> to vector<8x116xbf16>
    %c64_110 = arith.constant 64 : index
    %c384_111 = arith.constant 384 : index
    %123 = vector.load %arg22[%c64_110, %c384_111] : memref<104x512xbf16, #tpu.memory_space<vmem>>, vector<8x116xbf16>
    tpu.vector_store %arg22[%c64_110, %c384_111], %122 {strides = array<i32>} : memref<104x512xbf16, #tpu.memory_space<vmem>>, vector<8x116xbf16>,
    %124 = vector.extract_strided_slice %105 {offsets = [0, 9], sizes = [8, 116], strides = [1, 1]} : vector<8x128xbf16> to vector<8x116xbf16>
    %c72_112 = arith.constant 72 : index
    %c384_113 = arith.constant 384 : index
    %125 = vector.load %arg22[%c72_112, %c384_113] : memref<104x512xbf16, #tpu.memory_space<vmem>>, vector<8x116xbf16>
    tpu.vector_store %arg22[%c72_112, %c384_113], %124 {strides = array<i32>} : memref<104x512xbf16, #tpu.memory_space<vmem>>, vector<8x116xbf16>,
    %126 = vector.extract_strided_slice %105 {offsets = [0, 10], sizes = [8, 116], strides = [1, 1]} : vector<8x128xbf16> to vector<8x116xbf16>
    %c80_114 = arith.constant 80 : index
    %c384_115 = arith.constant 384 : index
    %127 = vector.load %arg22[%c80_114, %c384_115] : memref<104x512xbf16, #tpu.memory_space<vmem>>, vector<8x116xbf16>
    tpu.vector_store %arg22[%c80_114, %c384_115], %126 {strides = array<i32>} : memref<104x512xbf16, #tpu.memory_space<vmem>>, vector<8x116xbf16>,
    %128 = vector.extract_strided_slice %105 {offsets = [0, 11], sizes = [8, 116], strides = [1, 1]} : vector<8x128xbf16> to vector<8x116xbf16>
    %c88_116 = arith.constant 88 : index
    %c384_117 = arith.constant 384 : index
    %129 = vector.load %arg22[%c88_116, %c384_117] : memref<104x512xbf16, #tpu.memory_space<vmem>>, vector<8x116xbf16>
    tpu.vector_store %arg22[%c88_116, %c384_117], %128 {strides = array<i32>} : memref<104x512xbf16, #tpu.memory_space<vmem>>, vector<8x116xbf16>,
    %130 = vector.extract_strided_slice %105 {offsets = [0, 12], sizes = [8, 116], strides = [1, 1]} : vector<8x128xbf16> to vector<8x116xbf16>
    %c96_118 = arith.constant 96 : index
    %c384_119 = arith.constant 384 : index
    %131 = vector.load %arg22[%c96_118, %c384_119] : memref<104x512xbf16, #tpu.memory_space<vmem>>, vector<8x116xbf16>
    tpu.vector_store %arg22[%c96_118, %c384_119], %130 {strides = array<i32>} : memref<104x512xbf16, #tpu.memory_space<vmem>>, vector<8x116xbf16>,
    %c0_120 = arith.constant 0 : index
    %c500 = arith.constant 500 : index
    %132 = vector.load %arg22[%c0_120, %c500] : memref<104x512xbf16, #tpu.memory_space<vmem>>, vector<104x12xbf16>
    tpu.vector_store %arg22[%c0_120, %c500], %0 {strides = array<i32>} : memref<104x512xbf16, #tpu.memory_space<vmem>>, vector<104x12xbf16>,
    %c0_121 = arith.constant 0 : index
    %c0_122 = arith.constant 0 : index
    %133 = vector.load %arg2[%c0_121, %c0_122] : memref<128x104xbf16, #tpu.memory_space<vmem>>, vector<128x104xbf16>
    %c0_123 = arith.constant 0 : index
    %c0_124 = arith.constant 0 : index
    %134 = vector.load %arg22[%c0_123, %c0_124] : memref<104x512xbf16, #tpu.memory_space<vmem>>, vector<104x512xbf16>
    %cst_125 = arith.constant dense<0.000000e+00> : vector<128x512xf32>
    %135 = tpu.matmul %133, %134, %cst_125 {dimension_numbers = #tpu.dot_dimension_numbers<[1], [0], [0], [1], [0, 0, 1, 1], [], []>} : vector<128x104xbf16>, vector<104x512xbf16>, vector<128x512xf32> -> vector<128x512xf32>
    %c0_126 = arith.constant 0 : index
    %c0_127 = arith.constant 0 : index
    %136 = vector.load %arg3[%c0_126, %c0_127] : memref<128x1xf32, #tpu.memory_space<vmem>>, vector<128x1xf32>
    %137 = vector.broadcast %136 : vector<128x1xf32> to vector<128x512xf32>
    %138 = arith.addf %135, %137 : vector<128x512xf32>
    %cst_128 = arith.constant 0.000000e+00 : f32
    %139 = vector.broadcast %cst_128 : f32 to vector<128x512xf32>
    %140 = arith.maximumf %138, %139 : vector<128x512xf32>
    %141 = vector.extract_strided_slice %140 {offsets = [0, 0], sizes = [128, 128], strides = [1, 1]} : vector<128x512xf32> to vector<128x128xf32>
    %c0_129 = arith.constant 0 : index
    %c0_130 = arith.constant 0 : index
    %c0_131 = arith.constant 0 : index
    %142 = vector.load %arg21[%c0_129, %c0_130, %c0_131] : memref<4x128x128xf32, #tpu.memory_space<vmem>>, vector<1x128x128xf32>
    %143 = vector.shape_cast %142 : vector<1x128x128xf32> to vector<128x128xf32>
    %144 = vector.shape_cast %141 : vector<128x128xf32> to vector<1x128x128xf32>
    tpu.vector_store %arg21[%c0_129, %c0_130, %c0_131], %144 {strides = array<i32>} : memref<4x128x128xf32, #tpu.memory_space<vmem>>, vector<1x128x128xf32>,
    %145 = vector.extract_strided_slice %140 {offsets = [0, 128], sizes = [128, 128], strides = [1, 1]} : vector<128x512xf32> to vector<128x128xf32>
    %c1_132 = arith.constant 1 : index
    %c0_133 = arith.constant 0 : index
    %c0_134 = arith.constant 0 : index
    %146 = vector.load %arg21[%c1_132, %c0_133, %c0_134] : memref<4x128x128xf32, #tpu.memory_space<vmem>>, vector<1x128x128xf32>
    %147 = vector.shape_cast %146 : vector<1x128x128xf32> to vector<128x128xf32>
    %148 = vector.shape_cast %145 : vector<128x128xf32> to vector<1x128x128xf32>
    tpu.vector_store %arg21[%c1_132, %c0_133, %c0_134], %148 {strides = array<i32>} : memref<4x128x128xf32, #tpu.memory_space<vmem>>, vector<1x128x128xf32>,
    %149 = vector.extract_strided_slice %140 {offsets = [0, 256], sizes = [128, 128], strides = [1, 1]} : vector<128x512xf32> to vector<128x128xf32>
    %c2_135 = arith.constant 2 : index
    %c0_136 = arith.constant 0 : index
    %c0_137 = arith.constant 0 : index
    %150 = vector.load %arg21[%c2_135, %c0_136, %c0_137] : memref<4x128x128xf32, #tpu.memory_space<vmem>>, vector<1x128x128xf32>
    %151 = vector.shape_cast %150 : vector<1x128x128xf32> to vector<128x128xf32>
    %152 = vector.shape_cast %149 : vector<128x128xf32> to vector<1x128x128xf32>
    tpu.vector_store %arg21[%c2_135, %c0_136, %c0_137], %152 {strides = array<i32>} : memref<4x128x128xf32, #tpu.memory_space<vmem>>, vector<1x128x128xf32>,
    %153 = vector.extract_strided_slice %140 {offsets = [0, 384], sizes = [128, 128], strides = [1, 1]} : vector<128x512xf32> to vector<128x128xf32>
    %c3_138 = arith.constant 3 : index
    %c0_139 = arith.constant 0 : index
    %c0_140 = arith.constant 0 : index
    %154 = vector.load %arg21[%c3_138, %c0_139, %c0_140] : memref<4x128x128xf32, #tpu.memory_space<vmem>>, vector<1x128x128xf32>
    %155 = vector.shape_cast %154 : vector<1x128x128xf32> to vector<128x128xf32>
    %156 = vector.shape_cast %153 : vector<128x128xf32> to vector<1x128x128xf32>
    tpu.vector_store %arg21[%c3_138, %c0_139, %c0_140], %156 {strides = array<i32>} : memref<4x128x128xf32, #tpu.memory_space<vmem>>, vector<1x128x128xf32>,
    %157 = vector.extract_strided_slice %140 {offsets = [0, 0], sizes = [128, 509], strides = [1, 1]} : vector<128x512xf32> to vector<128x509xf32>
    %158 = vector.extract_strided_slice %140 {offsets = [0, 1], sizes = [128, 509], strides = [1, 1]} : vector<128x512xf32> to vector<128x509xf32>
    %159 = arith.maximumf %157, %158 : vector<128x509xf32>
    %160 = vector.extract_strided_slice %140 {offsets = [0, 2], sizes = [128, 509], strides = [1, 1]} : vector<128x512xf32> to vector<128x509xf32>
    %161 = arith.maximumf %159, %160 : vector<128x509xf32>
    %162 = vector.extract_strided_slice %140 {offsets = [0, 3], sizes = [128, 509], strides = [1, 1]} : vector<128x512xf32> to vector<128x509xf32>
    %163 = arith.maximumf %161, %162 : vector<128x509xf32>
    %164 = arith.truncf %163 : vector<128x509xf32> to vector<128x509xbf16>
    %c0_141 = arith.constant 0 : index
    %c0_142 = arith.constant 0 : index
    %165 = vector.load %arg14[%c0_141, %c0_142] : memref<509x116xbf16, #tpu.memory_space<vmem>>, vector<509x116xbf16>
    %cst_143 = arith.constant dense<0.000000e+00> : vector<128x116xf32>
    %166 = tpu.matmul %164, %165, %cst_143 {dimension_numbers = #tpu.dot_dimension_numbers<[1], [0], [0], [1], [0, 0, 1, 1], [], []>} : vector<128x509xbf16>, vector<509x116xbf16>, vector<128x116xf32> -> vector<128x116xf32>
    %167 = arith.truncf %166 : vector<128x116xf32> to vector<128x116xbf16>
    %168 = vector.extract_strided_slice %167 {offsets = [0, 0], sizes = [128, 25], strides = [1, 1]} : vector<128x116xbf16> to vector<128x25xbf16>
    %c0_144 = arith.constant 0 : index
    %c0_145 = arith.constant 0 : index
    %169 = vector.load %arg23[%c0_144, %c0_145] : memref<640x100xbf16, #tpu.memory_space<vmem>>, vector<128x25xbf16>
    tpu.vector_store %arg23[%c0_144, %c0_145], %168 {strides = array<i32>} : memref<640x100xbf16, #tpu.memory_space<vmem>>, vector<128x25xbf16>,
    %170 = vector.extract_strided_slice %167 {offsets = [0, 1], sizes = [128, 25], strides = [1, 1]} : vector<128x116xbf16> to vector<128x25xbf16>
    %c128_146 = arith.constant 128 : index
    %c0_147 = arith.constant 0 : index
    %171 = vector.load %arg23[%c128_146, %c0_147] : memref<640x100xbf16, #tpu.memory_space<vmem>>, vector<128x25xbf16>
    tpu.vector_store %arg23[%c128_146, %c0_147], %170 {strides = array<i32>} : memref<640x100xbf16, #tpu.memory_space<vmem>>, vector<128x25xbf16>,
    %172 = vector.extract_strided_slice %167 {offsets = [0, 2], sizes = [128, 25], strides = [1, 1]} : vector<128x116xbf16> to vector<128x25xbf16>
    %c256_148 = arith.constant 256 : index
    %c0_149 = arith.constant 0 : index
    %173 = vector.load %arg23[%c256_148, %c0_149] : memref<640x100xbf16, #tpu.memory_space<vmem>>, vector<128x25xbf16>
    tpu.vector_store %arg23[%c256_148, %c0_149], %172 {strides = array<i32>} : memref<640x100xbf16, #tpu.memory_space<vmem>>, vector<128x25xbf16>,
    %174 = vector.extract_strided_slice %167 {offsets = [0, 3], sizes = [128, 25], strides = [1, 1]} : vector<128x116xbf16> to vector<128x25xbf16>
    %c384_150 = arith.constant 384 : index
    %c0_151 = arith.constant 0 : index
    %175 = vector.load %arg23[%c384_150, %c0_151] : memref<640x100xbf16, #tpu.memory_space<vmem>>, vector<128x25xbf16>
    tpu.vector_store %arg23[%c384_150, %c0_151], %174 {strides = array<i32>} : memref<640x100xbf16, #tpu.memory_space<vmem>>, vector<128x25xbf16>,
    %176 = vector.extract_strided_slice %167 {offsets = [0, 4], sizes = [128, 25], strides = [1, 1]} : vector<128x116xbf16> to vector<128x25xbf16>
    %c512 = arith.constant 512 : index
    %c0_152 = arith.constant 0 : index
    %177 = vector.load %arg23[%c512, %c0_152] : memref<640x100xbf16, #tpu.memory_space<vmem>>, vector<128x25xbf16>
    tpu.vector_store %arg23[%c512, %c0_152], %176 {strides = array<i32>} : memref<640x100xbf16, #tpu.memory_space<vmem>>, vector<128x25xbf16>,
    %178 = vector.extract_strided_slice %167 {offsets = [0, 29], sizes = [128, 25], strides = [1, 1]} : vector<128x116xbf16> to vector<128x25xbf16>
    %c0_153 = arith.constant 0 : index
    %c25 = arith.constant 25 : index
    %179 = vector.load %arg23[%c0_153, %c25] : memref<640x100xbf16, #tpu.memory_space<vmem>>, vector<128x25xbf16>
    tpu.vector_store %arg23[%c0_153, %c25], %178 {strides = array<i32>} : memref<640x100xbf16, #tpu.memory_space<vmem>>, vector<128x25xbf16>,
    %180 = vector.extract_strided_slice %167 {offsets = [0, 30], sizes = [128, 25], strides = [1, 1]} : vector<128x116xbf16> to vector<128x25xbf16>
    %c128_154 = arith.constant 128 : index
    %c25_155 = arith.constant 25 : index
    %181 = vector.load %arg23[%c128_154, %c25_155] : memref<640x100xbf16, #tpu.memory_space<vmem>>, vector<128x25xbf16>
    tpu.vector_store %arg23[%c128_154, %c25_155], %180 {strides = array<i32>} : memref<640x100xbf16, #tpu.memory_space<vmem>>, vector<128x25xbf16>,
    %182 = vector.extract_strided_slice %167 {offsets = [0, 31], sizes = [128, 25], strides = [1, 1]} : vector<128x116xbf16> to vector<128x25xbf16>
    %c256_156 = arith.constant 256 : index
    %c25_157 = arith.constant 25 : index
    %183 = vector.load %arg23[%c256_156, %c25_157] : memref<640x100xbf16, #tpu.memory_space<vmem>>, vector<128x25xbf16>
    tpu.vector_store %arg23[%c256_156, %c25_157], %182 {strides = array<i32>} : memref<640x100xbf16, #tpu.memory_space<vmem>>, vector<128x25xbf16>,
    %184 = vector.extract_strided_slice %167 {offsets = [0, 32], sizes = [128, 25], strides = [1, 1]} : vector<128x116xbf16> to vector<128x25xbf16>
    %c384_158 = arith.constant 384 : index
    %c25_159 = arith.constant 25 : index
    %185 = vector.load %arg23[%c384_158, %c25_159] : memref<640x100xbf16, #tpu.memory_space<vmem>>, vector<128x25xbf16>
    tpu.vector_store %arg23[%c384_158, %c25_159], %184 {strides = array<i32>} : memref<640x100xbf16, #tpu.memory_space<vmem>>, vector<128x25xbf16>,
    %186 = vector.extract_strided_slice %167 {offsets = [0, 33], sizes = [128, 25], strides = [1, 1]} : vector<128x116xbf16> to vector<128x25xbf16>
    %c512_160 = arith.constant 512 : index
    %c25_161 = arith.constant 25 : index
    %187 = vector.load %arg23[%c512_160, %c25_161] : memref<640x100xbf16, #tpu.memory_space<vmem>>, vector<128x25xbf16>
    tpu.vector_store %arg23[%c512_160, %c25_161], %186 {strides = array<i32>} : memref<640x100xbf16, #tpu.memory_space<vmem>>, vector<128x25xbf16>,
    %188 = vector.extract_strided_slice %167 {offsets = [0, 58], sizes = [128, 25], strides = [1, 1]} : vector<128x116xbf16> to vector<128x25xbf16>
    %c0_162 = arith.constant 0 : index
    %c50 = arith.constant 50 : index
    %189 = vector.load %arg23[%c0_162, %c50] : memref<640x100xbf16, #tpu.memory_space<vmem>>, vector<128x25xbf16>
    tpu.vector_store %arg23[%c0_162, %c50], %188 {strides = array<i32>} : memref<640x100xbf16, #tpu.memory_space<vmem>>, vector<128x25xbf16>,
    %190 = vector.extract_strided_slice %167 {offsets = [0, 59], sizes = [128, 25], strides = [1, 1]} : vector<128x116xbf16> to vector<128x25xbf16>
    %c128_163 = arith.constant 128 : index
    %c50_164 = arith.constant 50 : index
    %191 = vector.load %arg23[%c128_163, %c50_164] : memref<640x100xbf16, #tpu.memory_space<vmem>>, vector<128x25xbf16>
    tpu.vector_store %arg23[%c128_163, %c50_164], %190 {strides = array<i32>} : memref<640x100xbf16, #tpu.memory_space<vmem>>, vector<128x25xbf16>,
    %192 = vector.extract_strided_slice %167 {offsets = [0, 60], sizes = [128, 25], strides = [1, 1]} : vector<128x116xbf16> to vector<128x25xbf16>
    %c256_165 = arith.constant 256 : index
    %c50_166 = arith.constant 50 : index
    %193 = vector.load %arg23[%c256_165, %c50_166] : memref<640x100xbf16, #tpu.memory_space<vmem>>, vector<128x25xbf16>
    tpu.vector_store %arg23[%c256_165, %c50_166], %192 {strides = array<i32>} : memref<640x100xbf16, #tpu.memory_space<vmem>>, vector<128x25xbf16>,
    %194 = vector.extract_strided_slice %167 {offsets = [0, 61], sizes = [128, 25], strides = [1, 1]} : vector<128x116xbf16> to vector<128x25xbf16>
    %c384_167 = arith.constant 384 : index
    %c50_168 = arith.constant 50 : index
    %195 = vector.load %arg23[%c384_167, %c50_168] : memref<640x100xbf16, #tpu.memory_space<vmem>>, vector<128x25xbf16>
    tpu.vector_store %arg23[%c384_167, %c50_168], %194 {strides = array<i32>} : memref<640x100xbf16, #tpu.memory_space<vmem>>, vector<128x25xbf16>,
    %196 = vector.extract_strided_slice %167 {offsets = [0, 62], sizes = [128, 25], strides = [1, 1]} : vector<128x116xbf16> to vector<128x25xbf16>
    %c512_169 = arith.constant 512 : index
    %c50_170 = arith.constant 50 : index
    %197 = vector.load %arg23[%c512_169, %c50_170] : memref<640x100xbf16, #tpu.memory_space<vmem>>, vector<128x25xbf16>
    tpu.vector_store %arg23[%c512_169, %c50_170], %196 {strides = array<i32>} : memref<640x100xbf16, #tpu.memory_space<vmem>>, vector<128x25xbf16>,
    %198 = vector.extract_strided_slice %167 {offsets = [0, 87], sizes = [128, 25], strides = [1, 1]} : vector<128x116xbf16> to vector<128x25xbf16>
    %c0_171 = arith.constant 0 : index
    %c75 = arith.constant 75 : index
    %199 = vector.load %arg23[%c0_171, %c75] : memref<640x100xbf16, #tpu.memory_space<vmem>>, vector<128x25xbf16>
    tpu.vector_store %arg23[%c0_171, %c75], %198 {strides = array<i32>} : memref<640x100xbf16, #tpu.memory_space<vmem>>, vector<128x25xbf16>,
    %200 = vector.extract_strided_slice %167 {offsets = [0, 88], sizes = [128, 25], strides = [1, 1]} : vector<128x116xbf16> to vector<128x25xbf16>
    %c128_172 = arith.constant 128 : index
    %c75_173 = arith.constant 75 : index
    %201 = vector.load %arg23[%c128_172, %c75_173] : memref<640x100xbf16, #tpu.memory_space<vmem>>, vector<128x25xbf16>
    tpu.vector_store %arg23[%c128_172, %c75_173], %200 {strides = array<i32>} : memref<640x100xbf16, #tpu.memory_space<vmem>>, vector<128x25xbf16>,
    %202 = vector.extract_strided_slice %167 {offsets = [0, 89], sizes = [128, 25], strides = [1, 1]} : vector<128x116xbf16> to vector<128x25xbf16>
    %c256_174 = arith.constant 256 : index
    %c75_175 = arith.constant 75 : index
    %203 = vector.load %arg23[%c256_174, %c75_175] : memref<640x100xbf16, #tpu.memory_space<vmem>>, vector<128x25xbf16>
    tpu.vector_store %arg23[%c256_174, %c75_175], %202 {strides = array<i32>} : memref<640x100xbf16, #tpu.memory_space<vmem>>, vector<128x25xbf16>,
    %204 = vector.extract_strided_slice %167 {offsets = [0, 90], sizes = [128, 25], strides = [1, 1]} : vector<128x116xbf16> to vector<128x25xbf16>
    %c384_176 = arith.constant 384 : index
    %c75_177 = arith.constant 75 : index
    %205 = vector.load %arg23[%c384_176, %c75_177] : memref<640x100xbf16, #tpu.memory_space<vmem>>, vector<128x25xbf16>
    tpu.vector_store %arg23[%c384_176, %c75_177], %204 {strides = array<i32>} : memref<640x100xbf16, #tpu.memory_space<vmem>>, vector<128x25xbf16>,
    %206 = vector.extract_strided_slice %167 {offsets = [0, 91], sizes = [128, 25], strides = [1, 1]} : vector<128x116xbf16> to vector<128x25xbf16>
    %c512_178 = arith.constant 512 : index
    %c75_179 = arith.constant 75 : index
    %207 = vector.load %arg23[%c512_178, %c75_179] : memref<640x100xbf16, #tpu.memory_space<vmem>>, vector<128x25xbf16>
    tpu.vector_store %arg23[%c512_178, %c75_179], %206 {strides = array<i32>} : memref<640x100xbf16, #tpu.memory_space<vmem>>, vector<128x25xbf16>,
    %c0_180 = arith.constant 0 : index
    %c0_181 = arith.constant 0 : index
    %208 = vector.load %arg4[%c0_180, %c0_181] : memref<64x640xbf16, #tpu.memory_space<vmem>>, vector<64x640xbf16>
    %c0_182 = arith.constant 0 : index
    %c0_183 = arith.constant 0 : index
    %209 = vector.load %arg23[%c0_182, %c0_183] : memref<640x100xbf16, #tpu.memory_space<vmem>>, vector<640x100xbf16>
    %cst_184 = arith.constant dense<0.000000e+00> : vector<64x100xf32>
    %210 = tpu.matmul %208, %209, %cst_184 {dimension_numbers = #tpu.dot_dimension_numbers<[1], [0], [0], [1], [0, 0, 1, 1], [], []>} : vector<64x640xbf16>, vector<640x100xbf16>, vector<64x100xf32> -> vector<64x100xf32>
    %c0_185 = arith.constant 0 : index
    %c0_186 = arith.constant 0 : index
    %211 = vector.load %arg5[%c0_185, %c0_186] : memref<64x1xf32, #tpu.memory_space<vmem>>, vector<64x1xf32>
    %212 = vector.broadcast %211 : vector<64x1xf32> to vector<64x100xf32>
    %213 = arith.addf %210, %212 : vector<64x100xf32>
    %cst_187 = arith.constant 0.000000e+00 : f32
    %214 = vector.broadcast %cst_187 : f32 to vector<64x100xf32>
    %215 = arith.maximumf %213, %214 : vector<64x100xf32>
    %216 = vector.extract_strided_slice %215 {offsets = [0, 0], sizes = [64, 97], strides = [1, 1]} : vector<64x100xf32> to vector<64x97xf32>
    %217 = vector.extract_strided_slice %215 {offsets = [0, 1], sizes = [64, 97], strides = [1, 1]} : vector<64x100xf32> to vector<64x97xf32>
    %218 = arith.maximumf %216, %217 : vector<64x97xf32>
    %219 = vector.extract_strided_slice %215 {offsets = [0, 2], sizes = [64, 97], strides = [1, 1]} : vector<64x100xf32> to vector<64x97xf32>
    %220 = arith.maximumf %218, %219 : vector<64x97xf32>
    %221 = vector.extract_strided_slice %215 {offsets = [0, 3], sizes = [64, 97], strides = [1, 1]} : vector<64x100xf32> to vector<64x97xf32>
    %222 = arith.maximumf %220, %221 : vector<64x97xf32>
    %223 = arith.truncf %222 : vector<64x97xf32> to vector<64x97xbf16>
    %c0_188 = arith.constant 0 : index
    %c0_189 = arith.constant 0 : index
    %224 = vector.load %arg15[%c0_188, %c0_189] : memref<97x24xbf16, #tpu.memory_space<vmem>>, vector<97x24xbf16>
    %cst_190 = arith.constant dense<0.000000e+00> : vector<64x24xf32>
    %225 = tpu.matmul %223, %224, %cst_190 {dimension_numbers = #tpu.dot_dimension_numbers<[1], [0], [0], [1], [0, 0, 1, 1], [], []>} : vector<64x97xbf16>, vector<97x24xbf16>, vector<64x24xf32> -> vector<64x24xf32>
    %226 = arith.truncf %225 : vector<64x24xf32> to vector<64x24xbf16>
    %227 = vector.extract_strided_slice %226 {offsets = [0, 0], sizes = [64, 4], strides = [1, 1]} : vector<64x24xbf16> to vector<64x4xbf16>
    %c0_191 = arith.constant 0 : index
    %c0_192 = arith.constant 0 : index
    %228 = vector.load %arg24[%c0_191, %c0_192] : memref<192x16xbf16, #tpu.memory_space<vmem>>, vector<64x4xbf16>
    tpu.vector_store %arg24[%c0_191, %c0_192], %227 {strides = array<i32>} : memref<192x16xbf16, #tpu.memory_space<vmem>>, vector<64x4xbf16>,
    %229 = vector.extract_strided_slice %226 {offsets = [0, 1], sizes = [64, 4], strides = [1, 1]} : vector<64x24xbf16> to vector<64x4xbf16>
    %c64_193 = arith.constant 64 : index
    %c0_194 = arith.constant 0 : index
    %230 = vector.load %arg24[%c64_193, %c0_194] : memref<192x16xbf16, #tpu.memory_space<vmem>>, vector<64x4xbf16>
    tpu.vector_store %arg24[%c64_193, %c0_194], %229 {strides = array<i32>} : memref<192x16xbf16, #tpu.memory_space<vmem>>, vector<64x4xbf16>,
    %231 = vector.extract_strided_slice %226 {offsets = [0, 2], sizes = [64, 4], strides = [1, 1]} : vector<64x24xbf16> to vector<64x4xbf16>
    %c128_195 = arith.constant 128 : index
    %c0_196 = arith.constant 0 : index
    %232 = vector.load %arg24[%c128_195, %c0_196] : memref<192x16xbf16, #tpu.memory_space<vmem>>, vector<64x4xbf16>
    tpu.vector_store %arg24[%c128_195, %c0_196], %231 {strides = array<i32>} : memref<192x16xbf16, #tpu.memory_space<vmem>>, vector<64x4xbf16>,
    %233 = vector.extract_strided_slice %226 {offsets = [0, 6], sizes = [64, 4], strides = [1, 1]} : vector<64x24xbf16> to vector<64x4xbf16>
    %c0_197 = arith.constant 0 : index
    %c4 = arith.constant 4 : index
    %234 = vector.load %arg24[%c0_197, %c4] : memref<192x16xbf16, #tpu.memory_space<vmem>>, vector<64x4xbf16>
    tpu.vector_store %arg24[%c0_197, %c4], %233 {strides = array<i32>} : memref<192x16xbf16, #tpu.memory_space<vmem>>, vector<64x4xbf16>,
    %235 = vector.extract_strided_slice %226 {offsets = [0, 7], sizes = [64, 4], strides = [1, 1]} : vector<64x24xbf16> to vector<64x4xbf16>
    %c64_198 = arith.constant 64 : index
    %c4_199 = arith.constant 4 : index
    %236 = vector.load %arg24[%c64_198, %c4_199] : memref<192x16xbf16, #tpu.memory_space<vmem>>, vector<64x4xbf16>
    tpu.vector_store %arg24[%c64_198, %c4_199], %235 {strides = array<i32>} : memref<192x16xbf16, #tpu.memory_space<vmem>>, vector<64x4xbf16>,
    %237 = vector.extract_strided_slice %226 {offsets = [0, 8], sizes = [64, 4], strides = [1, 1]} : vector<64x24xbf16> to vector<64x4xbf16>
    %c128_200 = arith.constant 128 : index
    %c4_201 = arith.constant 4 : index
    %238 = vector.load %arg24[%c128_200, %c4_201] : memref<192x16xbf16, #tpu.memory_space<vmem>>, vector<64x4xbf16>
    tpu.vector_store %arg24[%c128_200, %c4_201], %237 {strides = array<i32>} : memref<192x16xbf16, #tpu.memory_space<vmem>>, vector<64x4xbf16>,
    %239 = vector.extract_strided_slice %226 {offsets = [0, 12], sizes = [64, 4], strides = [1, 1]} : vector<64x24xbf16> to vector<64x4xbf16>
    %c0_202 = arith.constant 0 : index
    %c8_203 = arith.constant 8 : index
    %240 = vector.load %arg24[%c0_202, %c8_203] : memref<192x16xbf16, #tpu.memory_space<vmem>>, vector<64x4xbf16>
    tpu.vector_store %arg24[%c0_202, %c8_203], %239 {strides = array<i32>} : memref<192x16xbf16, #tpu.memory_space<vmem>>, vector<64x4xbf16>,
    %241 = vector.extract_strided_slice %226 {offsets = [0, 13], sizes = [64, 4], strides = [1, 1]} : vector<64x24xbf16> to vector<64x4xbf16>
    %c64_204 = arith.constant 64 : index
    %c8_205 = arith.constant 8 : index
    %242 = vector.load %arg24[%c64_204, %c8_205] : memref<192x16xbf16, #tpu.memory_space<vmem>>, vector<64x4xbf16>
    tpu.vector_store %arg24[%c64_204, %c8_205], %241 {strides = array<i32>} : memref<192x16xbf16, #tpu.memory_space<vmem>>, vector<64x4xbf16>,
    %243 = vector.extract_strided_slice %226 {offsets = [0, 14], sizes = [64, 4], strides = [1, 1]} : vector<64x24xbf16> to vector<64x4xbf16>
    %c128_206 = arith.constant 128 : index
    %c8_207 = arith.constant 8 : index
    %244 = vector.load %arg24[%c128_206, %c8_207] : memref<192x16xbf16, #tpu.memory_space<vmem>>, vector<64x4xbf16>
    tpu.vector_store %arg24[%c128_206, %c8_207], %243 {strides = array<i32>} : memref<192x16xbf16, #tpu.memory_space<vmem>>, vector<64x4xbf16>,
    %245 = vector.extract_strided_slice %226 {offsets = [0, 18], sizes = [64, 4], strides = [1, 1]} : vector<64x24xbf16> to vector<64x4xbf16>
    %c0_208 = arith.constant 0 : index
    %c12 = arith.constant 12 : index
    %246 = vector.load %arg24[%c0_208, %c12] : memref<192x16xbf16, #tpu.memory_space<vmem>>, vector<64x4xbf16>
    tpu.vector_store %arg24[%c0_208, %c12], %245 {strides = array<i32>} : memref<192x16xbf16, #tpu.memory_space<vmem>>, vector<64x4xbf16>,
    %247 = vector.extract_strided_slice %226 {offsets = [0, 19], sizes = [64, 4], strides = [1, 1]} : vector<64x24xbf16> to vector<64x4xbf16>
    %c64_209 = arith.constant 64 : index
    %c12_210 = arith.constant 12 : index
    %248 = vector.load %arg24[%c64_209, %c12_210] : memref<192x16xbf16, #tpu.memory_space<vmem>>, vector<64x4xbf16>
    tpu.vector_store %arg24[%c64_209, %c12_210], %247 {strides = array<i32>} : memref<192x16xbf16, #tpu.memory_space<vmem>>, vector<64x4xbf16>,
    %249 = vector.extract_strided_slice %226 {offsets = [0, 20], sizes = [64, 4], strides = [1, 1]} : vector<64x24xbf16> to vector<64x4xbf16>
    %c128_211 = arith.constant 128 : index
    %c12_212 = arith.constant 12 : index
    %250 = vector.load %arg24[%c128_211, %c12_212] : memref<192x16xbf16, #tpu.memory_space<vmem>>, vector<64x4xbf16>
    tpu.vector_store %arg24[%c128_211, %c12_212], %249 {strides = array<i32>} : memref<192x16xbf16, #tpu.memory_space<vmem>>, vector<64x4xbf16>,
    %c0_213 = arith.constant 0 : index
    %c0_214 = arith.constant 0 : index
    %251 = vector.load %arg6[%c0_213, %c0_214] : memref<32x192xbf16, #tpu.memory_space<vmem>>, vector<32x192xbf16>
    %c0_215 = arith.constant 0 : index
    %c0_216 = arith.constant 0 : index
    %252 = vector.load %arg24[%c0_215, %c0_216] : memref<192x16xbf16, #tpu.memory_space<vmem>>, vector<192x16xbf16>
    %cst_217 = arith.constant dense<0.000000e+00> : vector<32x16xf32>
    %253 = tpu.matmul %251, %252, %cst_217 {dimension_numbers = #tpu.dot_dimension_numbers<[1], [0], [0], [1], [0, 0, 1, 1], [], []>} : vector<32x192xbf16>, vector<192x16xbf16>, vector<32x16xf32> -> vector<32x16xf32>
    %c0_218 = arith.constant 0 : index
    %c0_219 = arith.constant 0 : index
    %254 = vector.load %arg7[%c0_218, %c0_219] : memref<32x1xf32, #tpu.memory_space<vmem>>, vector<32x1xf32>
    %255 = vector.broadcast %254 : vector<32x1xf32> to vector<32x16xf32>
    %256 = arith.addf %253, %255 : vector<32x16xf32>
    %cst_220 = arith.constant 0.000000e+00 : f32
    %257 = vector.broadcast %cst_220 : f32 to vector<32x16xf32>
    %258 = arith.maximumf %256, %257 : vector<32x16xf32>
    %259 = vector.extract_strided_slice %258 {offsets = [0, 0], sizes = [32, 15], strides = [1, 1]} : vector<32x16xf32> to vector<32x15xf32>
    %260 = vector.extract_strided_slice %258 {offsets = [0, 1], sizes = [32, 15], strides = [1, 1]} : vector<32x16xf32> to vector<32x15xf32>
    %261 = arith.maximumf %259, %260 : vector<32x15xf32>
    %262 = arith.truncf %261 : vector<32x15xf32> to vector<32x15xbf16>
    %c0_221 = arith.constant 0 : index
    %c0_222 = arith.constant 0 : index
    %263 = vector.load %arg16[%c0_221, %c0_222] : memref<15x8xbf16, #tpu.memory_space<vmem>>, vector<15x8xbf16>
    %cst_223 = arith.constant dense<0.000000e+00> : vector<32x8xf32>
    %264 = tpu.matmul %262, %263, %cst_223 {dimension_numbers = #tpu.dot_dimension_numbers<[1], [0], [0], [1], [0, 0, 1, 1], [], []>} : vector<32x15xbf16>, vector<15x8xbf16>, vector<32x8xf32> -> vector<32x8xf32>
    %c0_224 = arith.constant 0 : index
    %c0_225 = arith.constant 0 : index
    %265 = vector.load %arg8[%c0_224, %c0_225] : memref<32x32xbf16, #tpu.memory_space<vmem>>, vector<32x32xbf16>
    %266 = arith.truncf %264 : vector<32x8xf32> to vector<32x8xbf16>
    %cst_226 = arith.constant dense<0.000000e+00> : vector<32x8xf32>
    %267 = tpu.matmul %265, %266, %cst_226 {dimension_numbers = #tpu.dot_dimension_numbers<[1], [0], [0], [1], [0, 0, 1, 1], [], []>} : vector<32x32xbf16>, vector<32x8xbf16>, vector<32x8xf32> -> vector<32x8xf32>
    %c0_227 = arith.constant 0 : index
    %c0_228 = arith.constant 0 : index
    %268 = vector.load %arg9[%c0_227, %c0_228] : memref<32x1xf32, #tpu.memory_space<vmem>>, vector<32x1xf32>
    %269 = vector.broadcast %268 : vector<32x1xf32> to vector<32x8xf32>
    %270 = arith.addf %267, %269 : vector<32x8xf32>
    %cst_229 = arith.constant 0.000000e+00 : f32
    %271 = vector.broadcast %cst_229 : f32 to vector<32x8xf32>
    %272 = arith.maximumf %270, %271 : vector<32x8xf32>
    %273 = arith.addf %272, %264 : vector<32x8xf32>
    %cst_230 = arith.constant 0.000000e+00 : f32
    %274 = vector.broadcast %cst_230 : f32 to vector<32x8xf32>
    %275 = arith.maximumf %273, %274 : vector<32x8xf32>
    %276 = arith.truncf %275 : vector<32x8xf32> to vector<32x8xbf16>
    %cst_231 = arith.constant 0.000000e+00 : bf16
    %277 = vector.broadcast %cst_231 : bf16 to vector<32x1xbf16>
    %c32_232 = arith.constant 32 : index
    %c0_233 = arith.constant 0 : index
    %278 = vector.load %arg25[%c32_232, %c0_233] : memref<96x8xbf16, #tpu.memory_space<vmem>>, vector<32x8xbf16>
    tpu.vector_store %arg25[%c32_232, %c0_233], %276 {strides = array<i32>} : memref<96x8xbf16, #tpu.memory_space<vmem>>, vector<32x8xbf16>,
    %279 = vector.extract_strided_slice %276 {offsets = [0, 0], sizes = [32, 7], strides = [1, 1]} : vector<32x8xbf16> to vector<32x7xbf16>
    %c0_234 = arith.constant 0 : index
    %c1_235 = arith.constant 1 : index
    %280 = vector.load %arg25[%c0_234, %c1_235] : memref<96x8xbf16, #tpu.memory_space<vmem>>, vector<32x7xbf16>
    tpu.vector_store %arg25[%c0_234, %c1_235], %279 {strides = array<i32>} : memref<96x8xbf16, #tpu.memory_space<vmem>>, vector<32x7xbf16>,
    %281 = vector.extract_strided_slice %276 {offsets = [0, 1], sizes = [32, 7], strides = [1, 1]} : vector<32x8xbf16> to vector<32x7xbf16>
    %c64_236 = arith.constant 64 : index
    %c0_237 = arith.constant 0 : index
    %282 = vector.load %arg25[%c64_236, %c0_237] : memref<96x8xbf16, #tpu.memory_space<vmem>>, vector<32x7xbf16>
    tpu.vector_store %arg25[%c64_236, %c0_237], %281 {strides = array<i32>} : memref<96x8xbf16, #tpu.memory_space<vmem>>, vector<32x7xbf16>,
    %c0_238 = arith.constant 0 : index
    %c0_239 = arith.constant 0 : index
    %283 = vector.load %arg25[%c0_238, %c0_239] : memref<96x8xbf16, #tpu.memory_space<vmem>>, vector<32x1xbf16>
    tpu.vector_store %arg25[%c0_238, %c0_239], %277 {strides = array<i32>} : memref<96x8xbf16, #tpu.memory_space<vmem>>, vector<32x1xbf16>,
    %c64_240 = arith.constant 64 : index
    %c1_241 = arith.constant 1 : index
    %284 = vector.load %arg25[%c64_240, %c1_241] : memref<96x8xbf16, #tpu.memory_space<vmem>>, vector<32x1xbf16>
    tpu.vector_store %arg25[%c64_240, %c1_241], %277 {strides = array<i32>} : memref<96x8xbf16, #tpu.memory_space<vmem>>, vector<32x1xbf16>,
    %c0_242 = arith.constant 0 : index
    %c2_243 = arith.constant 2 : index
    %285 = vector.load %arg25[%c0_242, %c2_243] : memref<96x8xbf16, #tpu.memory_space<vmem>>, vector<32x1xbf16>
    tpu.vector_store %arg25[%c0_242, %c2_243], %277 {strides = array<i32>} : memref<96x8xbf16, #tpu.memory_space<vmem>>, vector<32x1xbf16>,
    %c64_244 = arith.constant 64 : index
    %c3_245 = arith.constant 3 : index
    %286 = vector.load %arg25[%c64_244, %c3_245] : memref<96x8xbf16, #tpu.memory_space<vmem>>, vector<32x1xbf16>
    tpu.vector_store %arg25[%c64_244, %c3_245], %277 {strides = array<i32>} : memref<96x8xbf16, #tpu.memory_space<vmem>>, vector<32x1xbf16>,
    %c0_246 = arith.constant 0 : index
    %c4_247 = arith.constant 4 : index
    %287 = vector.load %arg25[%c0_246, %c4_247] : memref<96x8xbf16, #tpu.memory_space<vmem>>, vector<32x1xbf16>
    tpu.vector_store %arg25[%c0_246, %c4_247], %277 {strides = array<i32>} : memref<96x8xbf16, #tpu.memory_space<vmem>>, vector<32x1xbf16>,
    %c64_248 = arith.constant 64 : index
    %c5 = arith.constant 5 : index
    %288 = vector.load %arg25[%c64_248, %c5] : memref<96x8xbf16, #tpu.memory_space<vmem>>, vector<32x1xbf16>
    tpu.vector_store %arg25[%c64_248, %c5], %277 {strides = array<i32>} : memref<96x8xbf16, #tpu.memory_space<vmem>>, vector<32x1xbf16>,
    %c0_249 = arith.constant 0 : index
    %c6 = arith.constant 6 : index
    %289 = vector.load %arg25[%c0_249, %c6] : memref<96x8xbf16, #tpu.memory_space<vmem>>, vector<32x1xbf16>
    tpu.vector_store %arg25[%c0_249, %c6], %277 {strides = array<i32>} : memref<96x8xbf16, #tpu.memory_space<vmem>>, vector<32x1xbf16>,
    %c64_250 = arith.constant 64 : index
    %c7 = arith.constant 7 : index
    %290 = vector.load %arg25[%c64_250, %c7] : memref<96x8xbf16, #tpu.memory_space<vmem>>, vector<32x1xbf16>
    tpu.vector_store %arg25[%c64_250, %c7], %277 {strides = array<i32>} : memref<96x8xbf16, #tpu.memory_space<vmem>>, vector<32x1xbf16>,
    %c0_251 = arith.constant 0 : index
    %c0_252 = arith.constant 0 : index
    %291 = vector.load %arg10[%c0_251, %c0_252] : memref<64x96xbf16, #tpu.memory_space<vmem>>, vector<64x96xbf16>
    %c0_253 = arith.constant 0 : index
    %c0_254 = arith.constant 0 : index
    %292 = vector.load %arg25[%c0_253, %c0_254] : memref<96x8xbf16, #tpu.memory_space<vmem>>, vector<96x8xbf16>
    %cst_255 = arith.constant dense<0.000000e+00> : vector<64x8xf32>
    %293 = tpu.matmul %291, %292, %cst_255 {dimension_numbers = #tpu.dot_dimension_numbers<[1], [0], [0], [1], [0, 0, 1, 1], [], []>} : vector<64x96xbf16>, vector<96x8xbf16>, vector<64x8xf32> -> vector<64x8xf32>
    %294 = arith.truncf %293 : vector<64x8xf32> to vector<64x8xbf16>
    %c0_256 = arith.constant 0 : index
    %c0_257 = arith.constant 0 : index
    %295 = vector.load %arg17[%c0_256, %c0_257] : memref<8x24xbf16, #tpu.memory_space<vmem>>, vector<8x24xbf16>
    %cst_258 = arith.constant dense<0.000000e+00> : vector<64x24xf32>
    %296 = tpu.matmul %294, %295, %cst_258 {dimension_numbers = #tpu.dot_dimension_numbers<[1], [0], [0], [1], [0, 0, 1, 1], [], []>} : vector<64x8xbf16>, vector<8x24xbf16>, vector<64x24xf32> -> vector<64x24xf32>
    %297 = arith.addf %296, %225 : vector<64x24xf32>
    %cst_259 = arith.constant 0.000000e+00 : f32
    %298 = vector.broadcast %cst_259 : f32 to vector<64x24xf32>
    %299 = arith.maximumf %297, %298 : vector<64x24xf32>
    %300 = arith.truncf %299 : vector<64x24xf32> to vector<64x24xbf16>
    %cst_260 = arith.constant 0.000000e+00 : bf16
    %301 = vector.broadcast %cst_260 : bf16 to vector<64x1xbf16>
    %c64_261 = arith.constant 64 : index
    %c0_262 = arith.constant 0 : index
    %302 = vector.load %arg26[%c64_261, %c0_262] : memref<192x24xbf16, #tpu.memory_space<vmem>>, vector<64x24xbf16>
    tpu.vector_store %arg26[%c64_261, %c0_262], %300 {strides = array<i32>} : memref<192x24xbf16, #tpu.memory_space<vmem>>, vector<64x24xbf16>,
    %303 = vector.extract_strided_slice %300 {offsets = [0, 0], sizes = [64, 23], strides = [1, 1]} : vector<64x24xbf16> to vector<64x23xbf16>
    %c0_263 = arith.constant 0 : index
    %c1_264 = arith.constant 1 : index
    %304 = vector.load %arg26[%c0_263, %c1_264] : memref<192x24xbf16, #tpu.memory_space<vmem>>, vector<64x23xbf16>
    tpu.vector_store %arg26[%c0_263, %c1_264], %303 {strides = array<i32>} : memref<192x24xbf16, #tpu.memory_space<vmem>>, vector<64x23xbf16>,
    %305 = vector.extract_strided_slice %300 {offsets = [0, 1], sizes = [64, 23], strides = [1, 1]} : vector<64x24xbf16> to vector<64x23xbf16>
    %c128_265 = arith.constant 128 : index
    %c0_266 = arith.constant 0 : index
    %306 = vector.load %arg26[%c128_265, %c0_266] : memref<192x24xbf16, #tpu.memory_space<vmem>>, vector<64x23xbf16>
    tpu.vector_store %arg26[%c128_265, %c0_266], %305 {strides = array<i32>} : memref<192x24xbf16, #tpu.memory_space<vmem>>, vector<64x23xbf16>,
    %c0_267 = arith.constant 0 : index
    %c0_268 = arith.constant 0 : index
    %307 = vector.load %arg26[%c0_267, %c0_268] : memref<192x24xbf16, #tpu.memory_space<vmem>>, vector<64x1xbf16>
    tpu.vector_store %arg26[%c0_267, %c0_268], %301 {strides = array<i32>} : memref<192x24xbf16, #tpu.memory_space<vmem>>, vector<64x1xbf16>,
    %c128_269 = arith.constant 128 : index
    %c5_270 = arith.constant 5 : index
    %308 = vector.load %arg26[%c128_269, %c5_270] : memref<192x24xbf16, #tpu.memory_space<vmem>>, vector<64x1xbf16>
    tpu.vector_store %arg26[%c128_269, %c5_270], %301 {strides = array<i32>} : memref<192x24xbf16, #tpu.memory_space<vmem>>, vector<64x1xbf16>,
    %c0_271 = arith.constant 0 : index
    %c6_272 = arith.constant 6 : index
    %309 = vector.load %arg26[%c0_271, %c6_272] : memref<192x24xbf16, #tpu.memory_space<vmem>>, vector<64x1xbf16>
    tpu.vector_store %arg26[%c0_271, %c6_272], %301 {strides = array<i32>} : memref<192x24xbf16, #tpu.memory_space<vmem>>, vector<64x1xbf16>,
    %c128_273 = arith.constant 128 : index
    %c11 = arith.constant 11 : index
    %310 = vector.load %arg26[%c128_273, %c11] : memref<192x24xbf16, #tpu.memory_space<vmem>>, vector<64x1xbf16>
    tpu.vector_store %arg26[%c128_273, %c11], %301 {strides = array<i32>} : memref<192x24xbf16, #tpu.memory_space<vmem>>, vector<64x1xbf16>,
    %c0_274 = arith.constant 0 : index
    %c12_275 = arith.constant 12 : index
    %311 = vector.load %arg26[%c0_274, %c12_275] : memref<192x24xbf16, #tpu.memory_space<vmem>>, vector<64x1xbf16>
    tpu.vector_store %arg26[%c0_274, %c12_275], %301 {strides = array<i32>} : memref<192x24xbf16, #tpu.memory_space<vmem>>, vector<64x1xbf16>,
    %c128_276 = arith.constant 128 : index
    %c17 = arith.constant 17 : index
    %312 = vector.load %arg26[%c128_276, %c17] : memref<192x24xbf16, #tpu.memory_space<vmem>>, vector<64x1xbf16>
    tpu.vector_store %arg26[%c128_276, %c17], %301 {strides = array<i32>} : memref<192x24xbf16, #tpu.memory_space<vmem>>, vector<64x1xbf16>,
    %c0_277 = arith.constant 0 : index
    %c18 = arith.constant 18 : index
    %313 = vector.load %arg26[%c0_277, %c18] : memref<192x24xbf16, #tpu.memory_space<vmem>>, vector<64x1xbf16>
    tpu.vector_store %arg26[%c0_277, %c18], %301 {strides = array<i32>} : memref<192x24xbf16, #tpu.memory_space<vmem>>, vector<64x1xbf16>,
    %c128_278 = arith.constant 128 : index
    %c23 = arith.constant 23 : index
    %314 = vector.load %arg26[%c128_278, %c23] : memref<192x24xbf16, #tpu.memory_space<vmem>>, vector<64x1xbf16>
    tpu.vector_store %arg26[%c128_278, %c23], %301 {strides = array<i32>} : memref<192x24xbf16, #tpu.memory_space<vmem>>, vector<64x1xbf16>,
    %c0_279 = arith.constant 0 : index
    %c0_280 = arith.constant 0 : index
    %315 = vector.load %arg11[%c0_279, %c0_280] : memref<128x192xbf16, #tpu.memory_space<vmem>>, vector<128x192xbf16>
    %c0_281 = arith.constant 0 : index
    %c0_282 = arith.constant 0 : index
    %316 = vector.load %arg26[%c0_281, %c0_282] : memref<192x24xbf16, #tpu.memory_space<vmem>>, vector<192x24xbf16>
    %cst_283 = arith.constant dense<0.000000e+00> : vector<128x24xf32>
    %317 = tpu.matmul %315, %316, %cst_283 {dimension_numbers = #tpu.dot_dimension_numbers<[1], [0], [0], [1], [0, 0, 1, 1], [], []>} : vector<128x192xbf16>, vector<192x24xbf16>, vector<128x24xf32> -> vector<128x24xf32>
    %318 = arith.truncf %317 : vector<128x24xf32> to vector<128x24xbf16>
    %c0_284 = arith.constant 0 : index
    %c0_285 = arith.constant 0 : index
    %319 = vector.load %arg18[%c0_284, %c0_285] : memref<24x116xbf16, #tpu.memory_space<vmem>>, vector<24x116xbf16>
    %cst_286 = arith.constant dense<0.000000e+00> : vector<128x116xf32>
    %320 = tpu.matmul %318, %319, %cst_286 {dimension_numbers = #tpu.dot_dimension_numbers<[1], [0], [0], [1], [0, 0, 1, 1], [], []>} : vector<128x24xbf16>, vector<24x116xbf16>, vector<128x116xf32> -> vector<128x116xf32>
    %321 = arith.addf %320, %166 : vector<128x116xf32>
    %cst_287 = arith.constant 0.000000e+00 : f32
    %322 = vector.broadcast %cst_287 : f32 to vector<128x116xf32>
    %323 = arith.maximumf %321, %322 : vector<128x116xf32>
    %324 = arith.truncf %323 : vector<128x116xf32> to vector<128x116xbf16>
    %cst_288 = arith.constant 0.000000e+00 : bf16
    %325 = vector.broadcast %cst_288 : bf16 to vector<128x1xbf16>
    %c128_289 = arith.constant 128 : index
    %c0_290 = arith.constant 0 : index
    %326 = vector.load %arg27[%c128_289, %c0_290] : memref<384x116xbf16, #tpu.memory_space<vmem>>, vector<128x116xbf16>
    tpu.vector_store %arg27[%c128_289, %c0_290], %324 {strides = array<i32>} : memref<384x116xbf16, #tpu.memory_space<vmem>>, vector<128x116xbf16>,
    %327 = vector.extract_strided_slice %324 {offsets = [0, 0], sizes = [128, 115], strides = [1, 1]} : vector<128x116xbf16> to vector<128x115xbf16>
    %c0_291 = arith.constant 0 : index
    %c1_292 = arith.constant 1 : index
    %328 = vector.load %arg27[%c0_291, %c1_292] : memref<384x116xbf16, #tpu.memory_space<vmem>>, vector<128x115xbf16>
    tpu.vector_store %arg27[%c0_291, %c1_292], %327 {strides = array<i32>} : memref<384x116xbf16, #tpu.memory_space<vmem>>, vector<128x115xbf16>,
    %329 = vector.extract_strided_slice %324 {offsets = [0, 1], sizes = [128, 115], strides = [1, 1]} : vector<128x116xbf16> to vector<128x115xbf16>
    %c256_293 = arith.constant 256 : index
    %c0_294 = arith.constant 0 : index
    %330 = vector.load %arg27[%c256_293, %c0_294] : memref<384x116xbf16, #tpu.memory_space<vmem>>, vector<128x115xbf16>
    tpu.vector_store %arg27[%c256_293, %c0_294], %329 {strides = array<i32>} : memref<384x116xbf16, #tpu.memory_space<vmem>>, vector<128x115xbf16>,
    %c0_295 = arith.constant 0 : index
    %c0_296 = arith.constant 0 : index
    %331 = vector.load %arg27[%c0_295, %c0_296] : memref<384x116xbf16, #tpu.memory_space<vmem>>, vector<128x1xbf16>
    tpu.vector_store %arg27[%c0_295, %c0_296], %325 {strides = array<i32>} : memref<384x116xbf16, #tpu.memory_space<vmem>>, vector<128x1xbf16>,
    %c256_297 = arith.constant 256 : index
    %c28 = arith.constant 28 : index
    %332 = vector.load %arg27[%c256_297, %c28] : memref<384x116xbf16, #tpu.memory_space<vmem>>, vector<128x1xbf16>
    tpu.vector_store %arg27[%c256_297, %c28], %325 {strides = array<i32>} : memref<384x116xbf16, #tpu.memory_space<vmem>>, vector<128x1xbf16>,
    %c0_298 = arith.constant 0 : index
    %c29 = arith.constant 29 : index
    %333 = vector.load %arg27[%c0_298, %c29] : memref<384x116xbf16, #tpu.memory_space<vmem>>, vector<128x1xbf16>
    tpu.vector_store %arg27[%c0_298, %c29], %325 {strides = array<i32>} : memref<384x116xbf16, #tpu.memory_space<vmem>>, vector<128x1xbf16>,
    %c256_299 = arith.constant 256 : index
    %c57 = arith.constant 57 : index
    %334 = vector.load %arg27[%c256_299, %c57] : memref<384x116xbf16, #tpu.memory_space<vmem>>, vector<128x1xbf16>
    tpu.vector_store %arg27[%c256_299, %c57], %325 {strides = array<i32>} : memref<384x116xbf16, #tpu.memory_space<vmem>>, vector<128x1xbf16>,
    %c0_300 = arith.constant 0 : index
    %c58 = arith.constant 58 : index
    %335 = vector.load %arg27[%c0_300, %c58] : memref<384x116xbf16, #tpu.memory_space<vmem>>, vector<128x1xbf16>
    tpu.vector_store %arg27[%c0_300, %c58], %325 {strides = array<i32>} : memref<384x116xbf16, #tpu.memory_space<vmem>>, vector<128x1xbf16>,
    %c256_301 = arith.constant 256 : index
    %c86 = arith.constant 86 : index
    %336 = vector.load %arg27[%c256_301, %c86] : memref<384x116xbf16, #tpu.memory_space<vmem>>, vector<128x1xbf16>
    tpu.vector_store %arg27[%c256_301, %c86], %325 {strides = array<i32>} : memref<384x116xbf16, #tpu.memory_space<vmem>>, vector<128x1xbf16>,
    %c0_302 = arith.constant 0 : index
    %c87 = arith.constant 87 : index
    %337 = vector.load %arg27[%c0_302, %c87] : memref<384x116xbf16, #tpu.memory_space<vmem>>, vector<128x1xbf16>
    tpu.vector_store %arg27[%c0_302, %c87], %325 {strides = array<i32>} : memref<384x116xbf16, #tpu.memory_space<vmem>>, vector<128x1xbf16>,
    %c256_303 = arith.constant 256 : index
    %c115 = arith.constant 115 : index
    %338 = vector.load %arg27[%c256_303, %c115] : memref<384x116xbf16, #tpu.memory_space<vmem>>, vector<128x1xbf16>
    tpu.vector_store %arg27[%c256_303, %c115], %325 {strides = array<i32>} : memref<384x116xbf16, #tpu.memory_space<vmem>>, vector<128x1xbf16>,
    %c0_304 = arith.constant 0 : index
    %c0_305 = arith.constant 0 : index
    %339 = vector.load %arg12[%c0_304, %c0_305] : memref<4x384xbf16, #tpu.memory_space<vmem>>, vector<4x384xbf16>
    %c0_306 = arith.constant 0 : index
    %c0_307 = arith.constant 0 : index
    %340 = vector.load %arg27[%c0_306, %c0_307] : memref<384x116xbf16, #tpu.memory_space<vmem>>, vector<384x116xbf16>
    %cst_308 = arith.constant dense<0.000000e+00> : vector<4x116xf32>
    %341 = tpu.matmul %339, %340, %cst_308 {dimension_numbers = #tpu.dot_dimension_numbers<[1], [0], [0], [1], [0, 0, 1, 1], [], []>} : vector<4x384xbf16>, vector<384x116xbf16>, vector<4x116xf32> -> vector<4x116xf32>
    %342 = arith.truncf %341 : vector<4x116xf32> to vector<4x116xbf16>
    %c0_309 = arith.constant 0 : index
    %c0_310 = arith.constant 0 : index
    %343 = vector.load %arg19[%c0_309, %c0_310] : memref<116x512xbf16, #tpu.memory_space<vmem>>, vector<116x512xbf16>
    %cst_311 = arith.constant dense<0.000000e+00> : vector<4x512xf32>
    %344 = tpu.matmul %342, %343, %cst_311 {dimension_numbers = #tpu.dot_dimension_numbers<[1], [0], [0], [1], [0, 0, 1, 1], [], []>} : vector<4x116xbf16>, vector<116x512xbf16>, vector<4x512xf32> -> vector<4x512xf32>
    %c0_312 = arith.constant 0 : index
    %c0_313 = arith.constant 0 : index
    %345 = vector.load %arg29[%c0_312, %c0_313] : memref<4x512xf32, #tpu.memory_space<vmem>>, vector<4x512xf32>
    %346 = arith.addf %344, %345 : vector<4x512xf32>
    %cst_314 = arith.constant 0.000000e+00 : f32
    %347 = vector.broadcast %cst_314 : f32 to vector<4x512xf32>
    %348 = arith.maximumf %346, %347 : vector<4x512xf32>
    %349 = arith.truncf %348 : vector<4x512xf32> to vector<4x512xbf16>
    %cst_315 = arith.constant 0.000000e+00 : bf16
    %350 = vector.broadcast %cst_315 : bf16 to vector<4x1xbf16>
    %c4_316 = arith.constant 4 : index
    %c0_317 = arith.constant 0 : index
    %351 = vector.load %arg28[%c4_316, %c0_317] : memref<12x512xbf16, #tpu.memory_space<vmem>>, vector<4x512xbf16>
    tpu.vector_store %arg28[%c4_316, %c0_317], %349 {strides = array<i32>} : memref<12x512xbf16, #tpu.memory_space<vmem>>, vector<4x512xbf16>,
    %352 = vector.extract_strided_slice %349 {offsets = [0, 0], sizes = [4, 511], strides = [1, 1]} : vector<4x512xbf16> to vector<4x511xbf16>
    %c0_318 = arith.constant 0 : index
    %c1_319 = arith.constant 1 : index
    %353 = vector.load %arg28[%c0_318, %c1_319] : memref<12x512xbf16, #tpu.memory_space<vmem>>, vector<4x511xbf16>
    tpu.vector_store %arg28[%c0_318, %c1_319], %352 {strides = array<i32>} : memref<12x512xbf16, #tpu.memory_space<vmem>>, vector<4x511xbf16>,
    %354 = vector.extract_strided_slice %349 {offsets = [0, 1], sizes = [4, 511], strides = [1, 1]} : vector<4x512xbf16> to vector<4x511xbf16>
    %c8_320 = arith.constant 8 : index
    %c0_321 = arith.constant 0 : index
    %355 = vector.load %arg28[%c8_320, %c0_321] : memref<12x512xbf16, #tpu.memory_space<vmem>>, vector<4x511xbf16>
    tpu.vector_store %arg28[%c8_320, %c0_321], %354 {strides = array<i32>} : memref<12x512xbf16, #tpu.memory_space<vmem>>, vector<4x511xbf16>,
    %c0_322 = arith.constant 0 : index
    %c0_323 = arith.constant 0 : index
    %356 = vector.load %arg28[%c0_322, %c0_323] : memref<12x512xbf16, #tpu.memory_space<vmem>>, vector<4x1xbf16>
    tpu.vector_store %arg28[%c0_322, %c0_323], %350 {strides = array<i32>} : memref<12x512xbf16, #tpu.memory_space<vmem>>, vector<4x1xbf16>,
    %c8_324 = arith.constant 8 : index
    %c127 = arith.constant 127 : index
    %357 = vector.load %arg28[%c8_324, %c127] : memref<12x512xbf16, #tpu.memory_space<vmem>>, vector<4x1xbf16>
    tpu.vector_store %arg28[%c8_324, %c127], %350 {strides = array<i32>} : memref<12x512xbf16, #tpu.memory_space<vmem>>, vector<4x1xbf16>,
    %c0_325 = arith.constant 0 : index
    %c128_326 = arith.constant 128 : index
    %358 = vector.load %arg28[%c0_325, %c128_326] : memref<12x512xbf16, #tpu.memory_space<vmem>>, vector<4x1xbf16>
    tpu.vector_store %arg28[%c0_325, %c128_326], %350 {strides = array<i32>} : memref<12x512xbf16, #tpu.memory_space<vmem>>, vector<4x1xbf16>,
    %c8_327 = arith.constant 8 : index
    %c255 = arith.constant 255 : index
    %359 = vector.load %arg28[%c8_327, %c255] : memref<12x512xbf16, #tpu.memory_space<vmem>>, vector<4x1xbf16>
    tpu.vector_store %arg28[%c8_327, %c255], %350 {strides = array<i32>} : memref<12x512xbf16, #tpu.memory_space<vmem>>, vector<4x1xbf16>,
    %c0_328 = arith.constant 0 : index
    %c256_329 = arith.constant 256 : index
    %360 = vector.load %arg28[%c0_328, %c256_329] : memref<12x512xbf16, #tpu.memory_space<vmem>>, vector<4x1xbf16>
    tpu.vector_store %arg28[%c0_328, %c256_329], %350 {strides = array<i32>} : memref<12x512xbf16, #tpu.memory_space<vmem>>, vector<4x1xbf16>,
    %c8_330 = arith.constant 8 : index
    %c383 = arith.constant 383 : index
    %361 = vector.load %arg28[%c8_330, %c383] : memref<12x512xbf16, #tpu.memory_space<vmem>>, vector<4x1xbf16>
    tpu.vector_store %arg28[%c8_330, %c383], %350 {strides = array<i32>} : memref<12x512xbf16, #tpu.memory_space<vmem>>, vector<4x1xbf16>,
    %c0_331 = arith.constant 0 : index
    %c384_332 = arith.constant 384 : index
    %362 = vector.load %arg28[%c0_331, %c384_332] : memref<12x512xbf16, #tpu.memory_space<vmem>>, vector<4x1xbf16>
    tpu.vector_store %arg28[%c0_331, %c384_332], %350 {strides = array<i32>} : memref<12x512xbf16, #tpu.memory_space<vmem>>, vector<4x1xbf16>,
    %c8_333 = arith.constant 8 : index
    %c511 = arith.constant 511 : index
    %363 = vector.load %arg28[%c8_333, %c511] : memref<12x512xbf16, #tpu.memory_space<vmem>>, vector<4x1xbf16>
    tpu.vector_store %arg28[%c8_333, %c511], %350 {strides = array<i32>} : memref<12x512xbf16, #tpu.memory_space<vmem>>, vector<4x1xbf16>,
    %c0_334 = arith.constant 0 : index
    %c0_335 = arith.constant 0 : index
    %364 = vector.load %arg13[%c0_334, %c0_335] : memref<1x12xbf16, #tpu.memory_space<vmem>>, vector<1x12xbf16>
    %c0_336 = arith.constant 0 : index
    %c0_337 = arith.constant 0 : index
    %365 = vector.load %arg28[%c0_336, %c0_337] : memref<12x512xbf16, #tpu.memory_space<vmem>>, vector<12x512xbf16>
    %cst_338 = arith.constant dense<0.000000e+00> : vector<1x512xf32>
    %366 = tpu.matmul %364, %365, %cst_338 {dimension_numbers = #tpu.dot_dimension_numbers<[1], [0], [0], [1], [0, 0, 1, 1], [], []>} : vector<1x12xbf16>, vector<12x512xbf16>, vector<1x512xf32> -> vector<1x512xf32>
    %367 = arith.negf %366 : vector<1x512xf32>
    %368 = math.exp %367 : vector<1x512xf32>
    %cst_339 = arith.constant 1.000000e+00 : f32
    %369 = vector.broadcast %cst_339 : f32 to vector<1x512xf32>
    %370 = arith.addf %369, %368 : vector<1x512xf32>
    %371 = arith.divf %369, %370 : vector<1x512xf32>
    %372 = vector.extract_strided_slice %371 {offsets = [0, 0], sizes = [1, 128], strides = [1, 1]} : vector<1x512xf32> to vector<1x128xf32>
    %c0_340 = arith.constant 0 : index
    %c0_341 = arith.constant 0 : index
    %c0_342 = arith.constant 0 : index
    %373 = vector.load %arg20[%c0_340, %c0_341, %c0_342] : memref<4x1x128xf32, #tpu.memory_space<vmem>>, vector<1x1x128xf32>
    %374 = vector.shape_cast %373 : vector<1x1x128xf32> to vector<1x128xf32>
    %375 = vector.shape_cast %372 : vector<1x128xf32> to vector<1x1x128xf32>
    tpu.vector_store %arg20[%c0_340, %c0_341, %c0_342], %375 {strides = array<i32>} : memref<4x1x128xf32, #tpu.memory_space<vmem>>, vector<1x1x128xf32>,
    %376 = vector.extract_strided_slice %371 {offsets = [0, 128], sizes = [1, 128], strides = [1, 1]} : vector<1x512xf32> to vector<1x128xf32>
    %c1_343 = arith.constant 1 : index
    %c0_344 = arith.constant 0 : index
    %c0_345 = arith.constant 0 : index
    %377 = vector.load %arg20[%c1_343, %c0_344, %c0_345] : memref<4x1x128xf32, #tpu.memory_space<vmem>>, vector<1x1x128xf32>
    %378 = vector.shape_cast %377 : vector<1x1x128xf32> to vector<1x128xf32>
    %379 = vector.shape_cast %376 : vector<1x128xf32> to vector<1x1x128xf32>
    tpu.vector_store %arg20[%c1_343, %c0_344, %c0_345], %379 {strides = array<i32>} : memref<4x1x128xf32, #tpu.memory_space<vmem>>, vector<1x1x128xf32>,
    %380 = vector.extract_strided_slice %371 {offsets = [0, 256], sizes = [1, 128], strides = [1, 1]} : vector<1x512xf32> to vector<1x128xf32>
    %c2_346 = arith.constant 2 : index
    %c0_347 = arith.constant 0 : index
    %c0_348 = arith.constant 0 : index
    %381 = vector.load %arg20[%c2_346, %c0_347, %c0_348] : memref<4x1x128xf32, #tpu.memory_space<vmem>>, vector<1x1x128xf32>
    %382 = vector.shape_cast %381 : vector<1x1x128xf32> to vector<1x128xf32>
    %383 = vector.shape_cast %380 : vector<1x128xf32> to vector<1x1x128xf32>
    tpu.vector_store %arg20[%c2_346, %c0_347, %c0_348], %383 {strides = array<i32>} : memref<4x1x128xf32, #tpu.memory_space<vmem>>, vector<1x1x128xf32>,
    %384 = vector.extract_strided_slice %371 {offsets = [0, 384], sizes = [1, 128], strides = [1, 1]} : vector<1x512xf32> to vector<1x128xf32>
    %c3_349 = arith.constant 3 : index
    %c0_350 = arith.constant 0 : index
    %c0_351 = arith.constant 0 : index
    %385 = vector.load %arg20[%c3_349, %c0_350, %c0_351] : memref<4x1x128xf32, #tpu.memory_space<vmem>>, vector<1x1x128xf32>
    %386 = vector.shape_cast %385 : vector<1x1x128xf32> to vector<1x128xf32>
    %387 = vector.shape_cast %384 : vector<1x128xf32> to vector<1x1x128xf32>
    tpu.vector_store %arg20[%c3_349, %c0_350, %c0_351], %387 {strides = array<i32>} : memref<4x1x128xf32, #tpu.memory_space<vmem>>, vector<1x1x128xf32>,
    return
  }
  func.func @transform_0(%arg0: i32) -> (i32, i32, i32) {
    %c0_i32 = arith.constant 0 : i32
    %c0_i32_0 = arith.constant 0 : i32
    %c0_i32_1 = arith.constant 0 : i32
    return %arg0, %c0_i32, %c0_i32_0 : i32, i32, i32
  }
  func.func @transform_1(%arg0: i32) -> (i32, i32) {
    %c0_i32 = arith.constant 0 : i32
    %c0_i32_0 = arith.constant 0 : i32
    %c0_i32_1 = arith.constant 0 : i32
    return %c0_i32, %c0_i32_0 : i32, i32
  }
  func.func @transform_2(%arg0: i32) -> (i32, i32) {
    %c0_i32 = arith.constant 0 : i32
    %c0_i32_0 = arith.constant 0 : i32
    %c0_i32_1 = arith.constant 0 : i32
    return %c0_i32, %c0_i32_0 : i32, i32
  }
  func.func @transform_3(%arg0: i32) -> (i32, i32) {
    %c0_i32 = arith.constant 0 : i32
    %c0_i32_0 = arith.constant 0 : i32
    %c0_i32_1 = arith.constant 0 : i32
    return %c0_i32, %c0_i32_0 : i32, i32
  }
  func.func @transform_4(%arg0: i32) -> (i32, i32) {
    %c0_i32 = arith.constant 0 : i32
    %c0_i32_0 = arith.constant 0 : i32
    %c0_i32_1 = arith.constant 0 : i32
    return %c0_i32, %c0_i32_0 : i32, i32
  }
  func.func @transform_5(%arg0: i32) -> (i32, i32) {
    %c0_i32 = arith.constant 0 : i32
    %c0_i32_0 = arith.constant 0 : i32
    %c0_i32_1 = arith.constant 0 : i32
    return %c0_i32, %c0_i32_0 : i32, i32
  }
  func.func @transform_6(%arg0: i32) -> (i32, i32) {
    %c0_i32 = arith.constant 0 : i32
    %c0_i32_0 = arith.constant 0 : i32
    %c0_i32_1 = arith.constant 0 : i32
    return %c0_i32, %c0_i32_0 : i32, i32
  }
  func.func @transform_7(%arg0: i32) -> (i32, i32) {
    %c0_i32 = arith.constant 0 : i32
    %c0_i32_0 = arith.constant 0 : i32
    %c0_i32_1 = arith.constant 0 : i32
    return %c0_i32, %c0_i32_0 : i32, i32
  }
  func.func @transform_8(%arg0: i32) -> (i32, i32) {
    %c0_i32 = arith.constant 0 : i32
    %c0_i32_0 = arith.constant 0 : i32
    %c0_i32_1 = arith.constant 0 : i32
    return %c0_i32, %c0_i32_0 : i32, i32
  }
  func.func @transform_9(%arg0: i32) -> (i32, i32) {
    %c0_i32 = arith.constant 0 : i32
    %c0_i32_0 = arith.constant 0 : i32
    %c0_i32_1 = arith.constant 0 : i32
    return %c0_i32, %c0_i32_0 : i32, i32
  }
  func.func @transform_10(%arg0: i32) -> (i32, i32) {
    %c0_i32 = arith.constant 0 : i32
    %c0_i32_0 = arith.constant 0 : i32
    %c0_i32_1 = arith.constant 0 : i32
    return %c0_i32, %c0_i32_0 : i32, i32
  }
  func.func @transform_11(%arg0: i32) -> (i32, i32) {
    %c0_i32 = arith.constant 0 : i32
    %c0_i32_0 = arith.constant 0 : i32
    %c0_i32_1 = arith.constant 0 : i32
    return %c0_i32, %c0_i32_0 : i32, i32
  }
  func.func @transform_12(%arg0: i32) -> (i32, i32) {
    %c0_i32 = arith.constant 0 : i32
    %c0_i32_0 = arith.constant 0 : i32
    %c0_i32_1 = arith.constant 0 : i32
    return %c0_i32, %c0_i32_0 : i32, i32
  }
  func.func @transform_13(%arg0: i32) -> (i32, i32) {
    %c0_i32 = arith.constant 0 : i32
    %c0_i32_0 = arith.constant 0 : i32
    %c0_i32_1 = arith.constant 0 : i32
    return %c0_i32, %c0_i32_0 : i32, i32
  }
  func.func @transform_14(%arg0: i32) -> (i32, i32) {
    %c0_i32 = arith.constant 0 : i32
    %c0_i32_0 = arith.constant 0 : i32
    %c0_i32_1 = arith.constant 0 : i32
    return %c0_i32, %c0_i32_0 : i32, i32
  }
  func.func @transform_15(%arg0: i32) -> (i32, i32) {
    %c0_i32 = arith.constant 0 : i32
    %c0_i32_0 = arith.constant 0 : i32
    %c0_i32_1 = arith.constant 0 : i32
    return %c0_i32, %c0_i32_0 : i32, i32
  }
  func.func @transform_16(%arg0: i32) -> (i32, i32) {
    %c0_i32 = arith.constant 0 : i32
    %c0_i32_0 = arith.constant 0 : i32
    %c0_i32_1 = arith.constant 0 : i32
    return %c0_i32, %c0_i32_0 : i32, i32
  }
  func.func @transform_17(%arg0: i32) -> (i32, i32) {
    %c0_i32 = arith.constant 0 : i32
    %c0_i32_0 = arith.constant 0 : i32
    %c0_i32_1 = arith.constant 0 : i32
    return %c0_i32, %c0_i32_0 : i32, i32
  }
  func.func @transform_18(%arg0: i32) -> (i32, i32) {
    %c0_i32 = arith.constant 0 : i32
    %c0_i32_0 = arith.constant 0 : i32
    %c0_i32_1 = arith.constant 0 : i32
    return %c0_i32, %c0_i32_0 : i32, i32
  }
  func.func @transform_19(%arg0: i32) -> (i32, i32, i32) {
    %c0_i32 = arith.constant 0 : i32
    %c0_i32_0 = arith.constant 0 : i32
    %c0_i32_1 = arith.constant 0 : i32
    return %arg0, %c0_i32, %c0_i32_0 : i32, i32, i32
  }
  func.func @transform_20(%arg0: i32) -> (i32, i32, i32) {
    %c0_i32 = arith.constant 0 : i32
    %c0_i32_0 = arith.constant 0 : i32
    %c0_i32_1 = arith.constant 0 : i32
    return %arg0, %c0_i32, %c0_i32_0 : i32, i32, i32
  }
}

</mosaic_0001>

<llo_original>
// kernel: fcnp_forward.1
$region0: #{fcnp_forward.1}
  #allocation0 [shape = 'u32[]', space=smem, size = 0x4, offset = 0x4, fixed_abs, tag = 'smem constant byte address 0x4 - core index']
  #allocation1 [shape = 'u32[144,128]{1,0:T(1,128)}', space=vmem, size = 0x12000, scoped, tag = 'internal scratch']
  #allocation2 [shape = 'bf16[104,512]{1,0:T(8,128)(2,1)}', space=vmem, size = 0x1a000, scoped, tag = 'scratch operand']
  #allocation3 [shape = 'bf16[640,100]{1,0:T(8,128)(2,1)}', space=vmem, size = 0x28000, scoped, tag = 'scratch operand']
  #allocation4 [shape = 'bf16[192,16]{1,0:T(8,128)(2,1)}', space=vmem, size = 0xc000, scoped, tag = 'scratch operand']
  #allocation5 [shape = 'bf16[96,8]{1,0:T(8,128)(2,1)}', space=vmem, size = 0x6000, scoped, tag = 'scratch operand']
  #allocation6 [shape = 'bf16[192,24]{1,0:T(8,128)(2,1)}', space=vmem, size = 0xc000, scoped, tag = 'scratch operand']
  #allocation7 [shape = 'bf16[384,116]{1,0:T(8,128)(2,1)}', space=vmem, size = 0x18000, scoped, tag = 'scratch operand']
  #allocation8 [shape = 'bf16[12,512]{1,0:T(8,128)(2,1)}', space=vmem, size = 0x4000, scoped, tag = 'scratch operand']
  #allocation9 [shape = 'f32[4,512]{1,0:T(4,128)}', space=vmem, size = 0x2000, scoped, tag = 'scratch operand']
  %s0 = inlined_call_operand.vmem [shape: f32[8,8,128], index: 0, kind: input, shape index: {}]
  %s1 = inlined_call_operand.vmem [shape: bf16[128,104], index: 1, kind: input, shape index: {}]
  %s2 = inlined_call_operand.vmem [shape: f32[128,1], index: 2, kind: input, shape index: {}]
  %s3 = inlined_call_operand.vmem [shape: bf16[64,640], index: 3, kind: input, shape index: {}]
  %s4 = inlined_call_operand.vmem [shape: f32[64,1], index: 4, kind: input, shape index: {}]
  %s5 = inlined_call_operand.hbm [shape: bf16[32,192], index: 5, kind: input, shape index: {}]
  %s6 = inlined_call_operand.vmem [shape: f32[32,1], index: 6, kind: input, shape index: {}]
  %s7 = inlined_call_operand.hbm [shape: bf16[32,32], index: 7, kind: input, shape index: {}]
  %s8 = inlined_call_operand.vmem [shape: f32[32,1], index: 8, kind: input, shape index: {}]
  %s9 = inlined_call_operand.hbm [shape: bf16[64,96], index: 9, kind: input, shape index: {}]
  %s10 = inlined_call_operand.vmem [shape: bf16[128,192], index: 10, kind: input, shape index: {}]
  %s11 = inlined_call_operand.hbm [shape: bf16[4,384], index: 11, kind: input, shape index: {}]
  %s12 = inlined_call_operand.vmem [shape: bf16[1,12], index: 12, kind: input, shape index: {}]
  %s13 = inlined_call_operand.vmem [shape: bf16[509,116], index: 13, kind: input, shape index: {}]
  %s14 = inlined_call_operand.vmem [shape: bf16[97,24], index: 14, kind: input, shape index: {}]
  %s15 = inlined_call_operand.vmem [shape: bf16[15,8], index: 15, kind: input, shape index: {}]
  %s16 = inlined_call_operand.vmem [shape: bf16[8,24], index: 16, kind: input, shape index: {}]
  %s17 = inlined_call_operand.hbm [shape: bf16[24,116], index: 17, kind: input, shape index: {}]
  %s18 = inlined_call_operand.vmem [shape: bf16[116,512], index: 18, kind: input, shape index: {}]
  %s19 = inlined_call_operand.hbm [shape: f32[8,1,128], index: 19, kind: output, shape index: {0}]
  %s20 = inlined_call_operand.vmem [shape: f32[8,128,128], index: 20, kind: output, shape index: {1}]
  %21 = xla_tuple %s19, %s20
  %s22 = sld [smem:[#allocation0]]
  $region137: #{fcnp_forward.1} parent=0
    _
  %s24 = ssub.s32 1, %s22
  %s25 = scalar_select 0, %s24, %s22
  $region1: #{fcnp_forward.1} parent=0
    #allocation10 [shape = 'u8[16384]{0}', space=vmem, size = 0x4000, scoped, tag = 'input window, operand 5, single buffered']
    #allocation11 [shape = 's32[2]{0}', space=sflag, size = 0x8, scoped, tag = 'scoped memory for fcnp_forward.1']
    #allocation12 [shape = 's32[2]{0}', space=sflag, size = 0x8, scoped, tag = 'scoped memory for fcnp_forward.1']
    #allocation13 [shape = 'u8[8192]{0}', space=vmem, size = 0x2000, scoped, tag = 'input window, operand 7, single buffered']
    #allocation14 [shape = 's32[1]{0}', space=sflag, size = 0x4, scoped, tag = 'scoped memory for fcnp_forward.1']
    #allocation15 [shape = 'u8[16384]{0}', space=vmem, size = 0x4000, scoped, tag = 'input window, operand 9, single buffered']
    #allocation16 [shape = 'u8[3072]{0}', space=vmem, size = 0xc00, scoped, tag = 'input window, operand 11, single buffered']
    #allocation17 [shape = 's32[1]{0}', space=sflag, size = 0x4, scoped, tag = 'scoped memory for fcnp_forward.1']
    #allocation18 [shape = 'u8[6144]{0}', space=vmem, size = 0x1800, scoped, tag = 'input window, operand 17, single buffered']
    #allocation19 [shape = 'u8[4096]{0}', space=vmem, size = 0x1000, scoped, tag = 'output window, operand 0']
    %26 = vsyncpa [#allocation11], 0
    %27 = vsyncpa [#allocation14], 0
    %28 = vsyncpa [#allocation17], 0
    %29 = vsyncpa [#allocation12], 0
    %s30 = scalar_lea.sflag [#allocation12], 1
    %31 = vsyncpa %s30, 0
    loop: start=0, step=1, limit=4
    $region2: #{fcnp_forward.1} parent=1 // loop_pre_header
      _
    $region3: #{fcnp_forward.1} parent=1 // loop_header
      %s33 = sphi 0, %s37
      %p34 = scmp.ge.s32.totalorder %s33, 4
      %s43 = sphi 0, %s45
      %s46 = sphi 0, %s43
      %s47 = sphi 0, %s46
      %s63 = sphi 0, %s47
      %s67 = sphi 0, %s67
      %s69 = sphi 0, %s67
      %s70 = sphi 0, %s69
      %s84 = sphi 0, %s70
      %s88 = sphi 0, %s88
      %s90 = sphi 0, %s88
      %s91 = sphi 0, %s90
      %s105 = sphi 0, %s91
      %s109 = sphi 0, %s109
      %s111 = sphi 0, %s109
      %s112 = sphi 0, %s111
      %s126 = sphi 0, %s112
      %s130 = sphi 0, %s130
      %s132 = sphi 0, %s130
      %s133 = sphi 0, %s132
      %s147 = sphi 0, %s133
      %s151 = sphi 0, %s151
      %s153 = sphi 0, %s151
      %s154 = sphi 0, %s153
      %s168 = sphi 0, %s154
      %s172 = sphi 0, %s172
      %s174 = sphi 0, %s172
      %s175 = sphi 0, %s174
      %s189 = sphi 0, %s175
      %s193 = sphi 0, %s193
      %s195 = sphi 0, %s193
      %s196 = sphi 0, %s195
      %s210 = sphi 0, %s196
      %s214 = sphi 0, %s214
      %s216 = sphi 0, %s214
      %s217 = sphi 0, %s216
      %s231 = sphi 0, %s217
      %s235 = sphi 0, %s235
      %s237 = sphi 0, %s235
      %s238 = sphi 0, %s237
      %s252 = sphi 0, %s238
      %s256 = sphi 0, %s256
      %s258 = sphi 0, %s256
      %s259 = sphi 0, %s258
      %s273 = sphi 0, %s259
      %s277 = sphi 0, %s277
      %s279 = sphi 0, %s277
      %s280 = sphi 0, %s279
      %s294 = sphi 0, %s280
      %s298 = sphi 0, %s298
      %s300 = sphi 0, %s298
      %s301 = sphi 0, %s300
      %s315 = sphi 0, %s301
      %s319 = sphi 0, %s319
      %s321 = sphi 0, %s319
      %s322 = sphi 0, %s321
      %s336 = sphi 0, %s322
      %s340 = sphi 0, %s340
      %s342 = sphi 0, %s340
      %s343 = sphi 0, %s342
      %s357 = sphi 0, %s343
      %s361 = sphi 0, %s361
      %s363 = sphi 0, %s361
      %s364 = sphi 0, %s363
      %s378 = sphi 0, %s364
      %s382 = sphi 0, %s382
      %s384 = sphi 0, %s382
      %s385 = sphi 0, %s384
      %s399 = sphi 0, %s385
      %s403 = sphi 0, %s403
      %s405 = sphi 0, %s403
      %s406 = sphi 0, %s405
      %s420 = sphi 0, %s406
      %s424 = sphi 0, %s424
      %s426 = sphi 0, %s424
      %s427 = sphi 0, %s426
      %s441 = sphi 0, %s427
      %s447 = sphi 0, %s449
      %s450 = sphi 0, %s447
      %s451 = sphi 0, %s450
      %s467 = sphi 0, %s451
      %s473 = sphi 0, %s475
      %s476 = sphi 0, %s473
      %s477 = sphi 0, %s476
      %s493 = sphi 0, %s477
    $region4: #{fcnp_forward.1} parent=1 // loop_header_branch
      %36 = sbr.rel (%p34) target = $region8
    $region5: #{fcnp_forward.1} parent=1 // loop_body
      %s38 = ssub.s32 %s33, 1
      %s39 = ssub.s32 %s33, 2
      %s40 = sadd.s32 %s33, 1
      %s41 = ssub.s32 %s33, %s40
      %p42 = scmp.eq.s32.totalorder %s41, 0
      %s44 = sadd.s32 %s43, 1
      %s45 = scalar_select %p42, %s43, %s44
      %p48 = pneg %p42
      %p49 = scmp.eq.s32.totalorder %s33, 1
      %p50 = por %p48, %p49
      %p51 = scmp.ne.s32.totalorder %s43, %s46
      %p52 = scmp.eq.s32.totalorder %s33, 0
      %p53 = por %p51, %p52
      %p54 = scmp.ne.s32.totalorder %s43, %s46
      %p55 = scmp.eq.s32.totalorder %s38, 1
      %p56 = por %p54, %p55
      %p57 = scmp.ne.s32.totalorder %s46, %s47
      %p58 = scmp.eq.s32.totalorder %s38, 0
      %p59 = por %p57, %p58
      %p60 = scmp.ne.s32.totalorder %s46, %s47
      %p61 = scmp.eq.s32.totalorder %s39, 1
      %p62 = por %p60, %p61
      %p64 = scmp.ne.s32.totalorder %s47, %s63
      %p65 = scmp.eq.s32.totalorder %s39, 0
      %p66 = por %p64, %p65
      %s68 = sadd.s32 %s67, 1
      %p71 = scmp.eq.s32.totalorder %s33, 1
      %p72 = scmp.ne.s32.totalorder %s67, %s69
      %p73 = scmp.eq.s32.totalorder %s33, 0
      %p74 = por %p72, %p73
      %p75 = scmp.ne.s32.totalorder %s67, %s69
      %p76 = scmp.eq.s32.totalorder %s38, 1
      %p77 = por %p75, %p76
      %p78 = scmp.ne.s32.totalorder %s69, %s70
      %p79 = scmp.eq.s32.totalorder %s38, 0
      %p80 = por %p78, %p79
      %p81 = scmp.ne.s32.totalorder %s69, %s70
      %p82 = scmp.eq.s32.totalorder %s39, 1
      %p83 = por %p81, %p82
      %p85 = scmp.ne.s32.totalorder %s70, %s84
      %p86 = scmp.eq.s32.totalorder %s39, 0
      %p87 = por %p85, %p86
      %s89 = sadd.s32 %s88, 1
      %p92 = scmp.eq.s32.totalorder %s33, 1
      %p93 = scmp.ne.s32.totalorder %s88, %s90
      %p94 = scmp.eq.s32.totalorder %s33, 0
      %p95 = por %p93, %p94
      %p96 = scmp.ne.s32.totalorder %s88, %s90
      %p97 = scmp.eq.s32.totalorder %s38, 1
      %p98 = por %p96, %p97
      %p99 = scmp.ne.s32.totalorder %s90, %s91
      %p100 = scmp.eq.s32.totalorder %s38, 0
      %p101 = por %p99, %p100
      %p102 = scmp.ne.s32.totalorder %s90, %s91
      %p103 = scmp.eq.s32.totalorder %s39, 1
      %p104 = por %p102, %p103
      %p106 = scmp.ne.s32.totalorder %s91, %s105
      %p107 = scmp.eq.s32.totalorder %s39, 0
      %p108 = por %p106, %p107
      %s110 = sadd.s32 %s109, 1
      %p113 = scmp.eq.s32.totalorder %s33, 1
      %p114 = scmp.ne.s32.totalorder %s109, %s111
      %p115 = scmp.eq.s32.totalorder %s33, 0
      %p116 = por %p114, %p115
      %p117 = scmp.ne.s32.totalorder %s109, %s111
      %p118 = scmp.eq.s32.totalorder %s38, 1
      %p119 = por %p117, %p118
      %p120 = scmp.ne.s32.totalorder %s111, %s112
      %p121 = scmp.eq.s32.totalorder %s38, 0
      %p122 = por %p120, %p121
      %p123 = scmp.ne.s32.totalorder %s111, %s112
      %p124 = scmp.eq.s32.totalorder %s39, 1
      %p125 = por %p123, %p124
      %p127 = scmp.ne.s32.totalorder %s112, %s126
      %p128 = scmp.eq.s32.totalorder %s39, 0
      %p129 = por %p127, %p128
      %s131 = sadd.s32 %s130, 1
      %p134 = scmp.eq.s32.totalorder %s33, 1
      %p135 = scmp.ne.s32.totalorder %s130, %s132
      %p136 = scmp.eq.s32.totalorder %s33, 0
      %p137 = por %p135, %p136
      %p138 = scmp.ne.s32.totalorder %s130, %s132
      %p139 = scmp.eq.s32.totalorder %s38, 1
      %p140 = por %p138, %p139
      %p141 = scmp.ne.s32.totalorder %s132, %s133
      %p142 = scmp.eq.s32.totalorder %s38, 0
      %p143 = por %p141, %p142
      %p144 = scmp.ne.s32.totalorder %s132, %s133
      %p145 = scmp.eq.s32.totalorder %s39, 1
      %p146 = por %p144, %p145
      %p148 = scmp.ne.s32.totalorder %s133, %s147
      %p149 = scmp.eq.s32.totalorder %s39, 0
      %p150 = por %p148, %p149
      %s152 = sadd.s32 %s151, 1
      %p155 = scmp.eq.s32.totalorder %s33, 1
      %p156 = scmp.ne.s32.totalorder %s151, %s153
      %p157 = scmp.eq.s32.totalorder %s33, 0
      %p158 = por %p156, %p157
      %p159 = scmp.ne.s32.totalorder %s151, %s153
      %p160 = scmp.eq.s32.totalorder %s38, 1
      %p161 = por %p159, %p160
      %p162 = scmp.ne.s32.totalorder %s153, %s154
      %p163 = scmp.eq.s32.totalorder %s38, 0
      %p164 = por %p162, %p163
      %p165 = scmp.ne.s32.totalorder %s153, %s154
      %p166 = scmp.eq.s32.totalorder %s39, 1
      %p167 = por %p165, %p166
      %p169 = scmp.ne.s32.totalorder %s154, %s168
      %p170 = scmp.eq.s32.totalorder %s39, 0
      %p171 = por %p169, %p170
      %s173 = sadd.s32 %s172, 1
      %p176 = scmp.eq.s32.totalorder %s33, 1
      %p177 = scmp.ne.s32.totalorder %s172, %s174
      %p178 = scmp.eq.s32.totalorder %s33, 0
      %p179 = por %p177, %p178
      %p180 = scmp.ne.s32.totalorder %s172, %s174
      %p181 = scmp.eq.s32.totalorder %s38, 1
      %p182 = por %p180, %p181
      %p183 = scmp.ne.s32.totalorder %s174, %s175
      %p184 = scmp.eq.s32.totalorder %s38, 0
      %p185 = por %p183, %p184
      %p186 = scmp.ne.s32.totalorder %s174, %s175
      %p187 = scmp.eq.s32.totalorder %s39, 1
      %p188 = por %p186, %p187
      %p190 = scmp.ne.s32.totalorder %s175, %s189
      %p191 = scmp.eq.s32.totalorder %s39, 0
      %p192 = por %p190, %p191
      %s194 = sadd.s32 %s193, 1
      %p197 = scmp.eq.s32.totalorder %s33, 1
      %p198 = scmp.ne.s32.totalorder %s193, %s195
      %p199 = scmp.eq.s32.totalorder %s33, 0
      %p200 = por %p198, %p199
      %p201 = scmp.ne.s32.totalorder %s193, %s195
      %p202 = scmp.eq.s32.totalorder %s38, 1
      %p203 = por %p201, %p202
      %p204 = scmp.ne.s32.totalorder %s195, %s196
      %p205 = scmp.eq.s32.totalorder %s38, 0
      %p206 = por %p204, %p205
      %p207 = scmp.ne.s32.totalorder %s195, %s196
      %p208 = scmp.eq.s32.totalorder %s39, 1
      %p209 = por %p207, %p208
      %p211 = scmp.ne.s32.totalorder %s196, %s210
      %p212 = scmp.eq.s32.totalorder %s39, 0
      %p213 = por %p211, %p212
      %s215 = sadd.s32 %s214, 1
      %p218 = scmp.eq.s32.totalorder %s33, 1
      %p219 = scmp.ne.s32.totalorder %s214, %s216
      %p220 = scmp.eq.s32.totalorder %s33, 0
      %p221 = por %p219, %p220
      %p222 = scmp.ne.s32.totalorder %s214, %s216
      %p223 = scmp.eq.s32.totalorder %s38, 1
      %p224 = por %p222, %p223
      %p225 = scmp.ne.s32.totalorder %s216, %s217
      %p226 = scmp.eq.s32.totalorder %s38, 0
      %p227 = por %p225, %p226
      %p228 = scmp.ne.s32.totalorder %s216, %s217
      %p229 = scmp.eq.s32.totalorder %s39, 1
      %p230 = por %p228, %p229
      %p232 = scmp.ne.s32.totalorder %s217, %s231
      %p233 = scmp.eq.s32.totalorder %s39, 0
      %p234 = por %p232, %p233
      %s236 = sadd.s32 %s235, 1
      %p239 = scmp.eq.s32.totalorder %s33, 1
      %p240 = scmp.ne.s32.totalorder %s235, %s237
      %p241 = scmp.eq.s32.totalorder %s33, 0
      %p242 = por %p240, %p241
      %p243 = scmp.ne.s32.totalorder %s235, %s237
      %p244 = scmp.eq.s32.totalorder %s38, 1
      %p245 = por %p243, %p244
      %p246 = scmp.ne.s32.totalorder %s237, %s238
      %p247 = scmp.eq.s32.totalorder %s38, 0
      %p248 = por %p246, %p247
      %p249 = scmp.ne.s32.totalorder %s237, %s238
      %p250 = scmp.eq.s32.totalorder %s39, 1
      %p251 = por %p249, %p250
      %p253 = scmp.ne.s32.totalorder %s238, %s252
      %p254 = scmp.eq.s32.totalorder %s39, 0
      %p255 = por %p253, %p254
      %s257 = sadd.s32 %s256, 1
      %p260 = scmp.eq.s32.totalorder %s33, 1
      %p261 = scmp.ne.s32.totalorder %s256, %s258
      %p262 = scmp.eq.s32.totalorder %s33, 0
      %p263 = por %p261, %p262
      %p264 = scmp.ne.s32.totalorder %s256, %s258
      %p265 = scmp.eq.s32.totalorder %s38, 1
      %p266 = por %p264, %p265
      %p267 = scmp.ne.s32.totalorder %s258, %s259
      %p268 = scmp.eq.s32.totalorder %s38, 0
      %p269 = por %p267, %p268
      %p270 = scmp.ne.s32.totalorder %s258, %s259
      %p271 = scmp.eq.s32.totalorder %s39, 1
      %p272 = por %p270, %p271
      %p274 = scmp.ne.s32.totalorder %s259, %s273
      %p275 = scmp.eq.s32.totalorder %s39, 0
      %p276 = por %p274, %p275
      %s278 = sadd.s32 %s277, 1
      %p281 = scmp.eq.s32.totalorder %s33, 1
      %p282 = scmp.ne.s32.totalorder %s277, %s279
      %p283 = scmp.eq.s32.totalorder %s33, 0
      %p284 = por %p282, %p283
      %p285 = scmp.ne.s32.totalorder %s277, %s279
      %p286 = scmp.eq.s32.totalorder %s38, 1
      %p287 = por %p285, %p286
      %p288 = scmp.ne.s32.totalorder %s279, %s280
      %p289 = scmp.eq.s32.totalorder %s38, 0
      %p290 = por %p288, %p289
      %p291 = scmp.ne.s32.totalorder %s279, %s280
      %p292 = scmp.eq.s32.totalorder %s39, 1
      %p293 = por %p291, %p292
      %p295 = scmp.ne.s32.totalorder %s280, %s294
      %p296 = scmp.eq.s32.totalorder %s39, 0
      %p297 = por %p295, %p296
      %s299 = sadd.s32 %s298, 1
      %p302 = scmp.eq.s32.totalorder %s33, 1
      %p303 = scmp.ne.s32.totalorder %s298, %s300
      %p304 = scmp.eq.s32.totalorder %s33, 0
      %p305 = por %p303, %p304
      %p306 = scmp.ne.s32.totalorder %s298, %s300
      %p307 = scmp.eq.s32.totalorder %s38, 1
      %p308 = por %p306, %p307
      %p309 = scmp.ne.s32.totalorder %s300, %s301
      %p310 = scmp.eq.s32.totalorder %s38, 0
      %p311 = por %p309, %p310
      %p312 = scmp.ne.s32.totalorder %s300, %s301
      %p313 = scmp.eq.s32.totalorder %s39, 1
      %p314 = por %p312, %p313
      %p316 = scmp.ne.s32.totalorder %s301, %s315
      %p317 = scmp.eq.s32.totalorder %s39, 0
      %p318 = por %p316, %p317
      %s320 = sadd.s32 %s319, 1
      %p323 = scmp.eq.s32.totalorder %s33, 1
      %p324 = scmp.ne.s32.totalorder %s319, %s321
      %p325 = scmp.eq.s32.totalorder %s33, 0
      %p326 = por %p324, %p325
      %p327 = scmp.ne.s32.totalorder %s319, %s321
      %p328 = scmp.eq.s32.totalorder %s38, 1
      %p329 = por %p327, %p328
      %p330 = scmp.ne.s32.totalorder %s321, %s322
      %p331 = scmp.eq.s32.totalorder %s38, 0
      %p332 = por %p330, %p331
      %p333 = scmp.ne.s32.totalorder %s321, %s322
      %p334 = scmp.eq.s32.totalorder %s39, 1
      %p335 = por %p333, %p334
      %p337 = scmp.ne.s32.totalorder %s322, %s336
      %p338 = scmp.eq.s32.totalorder %s39, 0
      %p339 = por %p337, %p338
      %s341 = sadd.s32 %s340, 1
      %p344 = scmp.eq.s32.totalorder %s33, 1
      %p345 = scmp.ne.s32.totalorder %s340, %s342
      %p346 = scmp.eq.s32.totalorder %s33, 0
      %p347 = por %p345, %p346
      %p348 = scmp.ne.s32.totalorder %s340, %s342
      %p349 = scmp.eq.s32.totalorder %s38, 1
      %p350 = por %p348, %p349
      %p351 = scmp.ne.s32.totalorder %s342, %s343
      %p352 = scmp.eq.s32.totalorder %s38, 0
      %p353 = por %p351, %p352
      %p354 = scmp.ne.s32.totalorder %s342, %s343
      %p355 = scmp.eq.s32.totalorder %s39, 1
      %p356 = por %p354, %p355
      %p358 = scmp.ne.s32.totalorder %s343, %s357
      %p359 = scmp.eq.s32.totalorder %s39, 0
      %p360 = por %p358, %p359
      %s362 = sadd.s32 %s361, 1
      %p365 = scmp.eq.s32.totalorder %s33, 1
      %p366 = scmp.ne.s32.totalorder %s361, %s363
      %p367 = scmp.eq.s32.totalorder %s33, 0
      %p368 = por %p366, %p367
      %p369 = scmp.ne.s32.totalorder %s361, %s363
      %p370 = scmp.eq.s32.totalorder %s38, 1
      %p371 = por %p369, %p370
      %p372 = scmp.ne.s32.totalorder %s363, %s364
      %p373 = scmp.eq.s32.totalorder %s38, 0
      %p374 = por %p372, %p373
      %p375 = scmp.ne.s32.totalorder %s363, %s364
      %p376 = scmp.eq.s32.totalorder %s39, 1
      %p377 = por %p375, %p376
      %p379 = scmp.ne.s32.totalorder %s364, %s378
      %p380 = scmp.eq.s32.totalorder %s39, 0
      %p381 = por %p379, %p380
      %s383 = sadd.s32 %s382, 1
      %p386 = scmp.eq.s32.totalorder %s33, 1
      %p387 = scmp.ne.s32.totalorder %s382, %s384
      %p388 = scmp.eq.s32.totalorder %s33, 0
      %p389 = por %p387, %p388
      %p390 = scmp.ne.s32.totalorder %s382, %s384
      %p391 = scmp.eq.s32.totalorder %s38, 1
      %p392 = por %p390, %p391
      %p393 = scmp.ne.s32.totalorder %s384, %s385
      %p394 = scmp.eq.s32.totalorder %s38, 0
      %p395 = por %p393, %p394
      %p396 = scmp.ne.s32.totalorder %s384, %s385
      %p397 = scmp.eq.s32.totalorder %s39, 1
      %p398 = por %p396, %p397
      %p400 = scmp.ne.s32.totalorder %s385, %s399
      %p401 = scmp.eq.s32.totalorder %s39, 0
      %p402 = por %p400, %p401
      %s404 = sadd.s32 %s403, 1
      %p407 = scmp.eq.s32.totalorder %s33, 1
      %p408 = scmp.ne.s32.totalorder %s403, %s405
      %p409 = scmp.eq.s32.totalorder %s33, 0
      %p410 = por %p408, %p409
      %p411 = scmp.ne.s32.totalorder %s403, %s405
      %p412 = scmp.eq.s32.totalorder %s38, 1
      %p413 = por %p411, %p412
      %p414 = scmp.ne.s32.totalorder %s405, %s406
      %p415 = scmp.eq.s32.totalorder %s38, 0
      %p416 = por %p414, %p415
      %p417 = scmp.ne.s32.totalorder %s405, %s406
      %p418 = scmp.eq.s32.totalorder %s39, 1
      %p419 = por %p417, %p418
      %p421 = scmp.ne.s32.totalorder %s406, %s420
      %p422 = scmp.eq.s32.totalorder %s39, 0
      %p423 = por %p421, %p422
      %s425 = sadd.s32 %s424, 1
      %p428 = scmp.eq.s32.totalorder %s33, 1
      %p429 = scmp.ne.s32.totalorder %s424, %s426
      %p430 = scmp.eq.s32.totalorder %s33, 0
      %p431 = por %p429, %p430
      %p432 = scmp.ne.s32.totalorder %s424, %s426
      %p433 = scmp.eq.s32.totalorder %s38, 1
      %p434 = por %p432, %p433
      %p435 = scmp.ne.s32.totalorder %s426, %s427
      %p436 = scmp.eq.s32.totalorder %s38, 0
      %p437 = por %p435, %p436
      %p438 = scmp.ne.s32.totalorder %s426, %s427
      %p439 = scmp.eq.s32.totalorder %s39, 1
      %p440 = por %p438, %p439
      %p442 = scmp.ne.s32.totalorder %s427, %s441
      %p443 = scmp.eq.s32.totalorder %s39, 0
      %p444 = por %p442, %p443
      %s445 = ssub.s32 %s33, %s40
      %p446 = scmp.eq.s32.totalorder %s445, 0
      %s448 = sadd.s32 %s447, 1
      %s449 = scalar_select %p446, %s447, %s448
      %p452 = pneg %p446
      %p453 = scmp.eq.s32.totalorder %s33, 1
      %p454 = por %p452, %p453
      %p455 = scmp.ne.s32.totalorder %s447, %s450
      %p456 = scmp.eq.s32.totalorder %s33, 0
      %p457 = por %p455, %p456
      %p458 = scmp.ne.s32.totalorder %s447, %s450
      %p459 = scmp.eq.s32.totalorder %s38, 1
      %p460 = por %p458, %p459
      %p461 = scmp.ne.s32.totalorder %s450, %s451
      %p462 = scmp.eq.s32.totalorder %s38, 0
      %p463 = por %p461, %p462
      %p464 = scmp.ne.s32.totalorder %s450, %s451
      %p465 = scmp.eq.s32.totalorder %s39, 1
      %p466 = por %p464, %p465
      %p468 = scmp.ne.s32.totalorder %s451, %s467
      %p469 = scmp.eq.s32.totalorder %s39, 0
      %p470 = por %p468, %p469
      %s471 = ssub.s32 %s33, %s40
      %p472 = scmp.eq.s32.totalorder %s471, 0
      %s474 = sadd.s32 %s473, 1
      %s475 = scalar_select %p472, %s473, %s474
      %p478 = pneg %p472
      %p479 = scmp.eq.s32.totalorder %s33, 1
      %p480 = por %p478, %p479
      %p481 = scmp.ne.s32.totalorder %s473, %s476
      %p482 = scmp.eq.s32.totalorder %s33, 0
      %p483 = por %p481, %p482
      %p484 = scmp.ne.s32.totalorder %s473, %s476
      %p485 = scmp.eq.s32.totalorder %s38, 1
      %p486 = por %p484, %p485
      %p487 = scmp.ne.s32.totalorder %s476, %s477
      %p488 = scmp.eq.s32.totalorder %s38, 0
      %p489 = por %p487, %p488
      %p490 = scmp.ne.s32.totalorder %s476, %s477
      %p491 = scmp.eq.s32.totalorder %s39, 1
      %p492 = por %p490, %p491
      %p494 = scmp.ne.s32.totalorder %s477, %s493
      %p495 = scmp.eq.s32.totalorder %s39, 0
      %p496 = por %p494, %p495
      %p497 = scmp.le.s32.totalorder 1, %s33
      %p498 = scmp.lt.s32.totalorder %s33, 3
      %p499 = pnand %p497, %p498
      %p500 = pneg %p499
      // Predicated region
      $region9: #{fcnp_forward.1} parent=5 // pred_check
        _
      $region10: #{fcnp_forward.1} parent=5 // pred_check_branch
        %502 = sbr.rel (%p499) target = $region12
      $region11: #{fcnp_forward.1} parent=5 // pred_region
        %s503 = ssub.s32 %s33, 1
        // Predicated region
        $region13: #{fcnp_forward.1} parent=11 // pred_check
          %p504 = pneg %p80
        $region14: #{fcnp_forward.1} parent=11 // pred_check_branch
          %506 = sbr.rel (%p504) target = $region16
        $region15: #{fcnp_forward.1} parent=11 // pred_region
          _
        $region16: #{fcnp_forward.1} parent=11 // pred_fallthru
          _
        // Predicated region
        $region17: #{fcnp_forward.1} parent=11 // pred_check
          %p507 = pneg %p101
        $region18: #{fcnp_forward.1} parent=11 // pred_check_branch
          %509 = sbr.rel (%p507) target = $region20
        $region19: #{fcnp_forward.1} parent=11 // pred_region
          _
        $region20: #{fcnp_forward.1} parent=11 // pred_fallthru
          _
        // Predicated region
        $region21: #{fcnp_forward.1} parent=11 // pred_check
          %p510 = pneg %p122
        $region22: #{fcnp_forward.1} parent=11 // pred_check_branch
          %512 = sbr.rel (%p510) target = $region24
        $region23: #{fcnp_forward.1} parent=11 // pred_region
          _
        $region24: #{fcnp_forward.1} parent=11 // pred_fallthru
          _
        // Predicated region
        $region25: #{fcnp_forward.1} parent=11 // pred_check
          %p513 = pneg %p143
        $region26: #{fcnp_forward.1} parent=11 // pred_check_branch
          %515 = sbr.rel (%p513) target = $region28
        $region27: #{fcnp_forward.1} parent=11 // pred_region
          _
        $region28: #{fcnp_forward.1} parent=11 // pred_fallthru
          _
        // Predicated region
        $region29: #{fcnp_forward.1} parent=11 // pred_check
          %p516 = pneg %p164
        $region30: #{fcnp_forward.1} parent=11 // pred_check_branch
          %518 = sbr.rel (%p516) target = $region32
        $region31: #{fcnp_forward.1} parent=11 // pred_region
          %s520 = ssub.s32 512, 512
          %521 = vsyncadd [#allocation11], %s520
          %s522 = sshll.u32 [#allocation10], 4
          %s523 = int_to_ptr.vmem [resolvable:$true] %s522
          %528 = dma.hbm_to_vmem [thread:$0]  %s5, 512, %s523, [#allocation11], 128, 128, 8
        $region32: #{fcnp_forward.1} parent=11 // pred_fallthru
          _
        // Predicated region
        $region33: #{fcnp_forward.1} parent=11 // pred_check
          %p529 = pneg %p185
        $region34: #{fcnp_forward.1} parent=11 // pred_check_branch
          %531 = sbr.rel (%p529) target = $region36
        $region35: #{fcnp_forward.1} parent=11 // pred_region
          _
        $region36: #{fcnp_forward.1} parent=11 // pred_fallthru
          _
        // Predicated region
        $region37: #{fcnp_forward.1} parent=11 // pred_check
          %p532 = pneg %p206
        $region38: #{fcnp_forward.1} parent=11 // pred_check_branch
          %534 = sbr.rel (%p532) target = $region40
        $region39: #{fcnp_forward.1} parent=11 // pred_region
          %s536 = ssub.s32 256, 256
          %537 = vsyncadd [#allocation14], %s536
          %s538 = sshll.u32 [#allocation13], 4
          %s539 = int_to_ptr.vmem [resolvable:$true] %s538
          %544 = dma.hbm_to_vmem [thread:$0]  %s7, 256, %s539, [#allocation14], 64, 64, 4
        $region40: #{fcnp_forward.1} parent=11 // pred_fallthru
          _
        // Predicated region
        $region41: #{fcnp_forward.1} parent=11 // pred_check
          %p545 = pneg %p227
        $region42: #{fcnp_forward.1} parent=11 // pred_check_branch
          %547 = sbr.rel (%p545) target = $region44
        $region43: #{fcnp_forward.1} parent=11 // pred_region
          _
        $region44: #{fcnp_forward.1} parent=11 // pred_fallthru
          _
        // Predicated region
        $region45: #{fcnp_forward.1} parent=11 // pred_check
          %p548 = pneg %p248
        $region46: #{fcnp_forward.1} parent=11 // pred_check_branch
          %550 = sbr.rel (%p548) target = $region48
        $region47: #{fcnp_forward.1} parent=11 // pred_region
          %s552 = ssub.s32 512, 512
          %553 = vsyncadd [#allocation14], %s552
          %s554 = sshll.u32 [#allocation15], 4
          %s555 = int_to_ptr.vmem [resolvable:$true] %s554
          %560 = dma.hbm_to_vmem [thread:$0]  %s9, 512, %s555, [#allocation14], 64, 64, 4
        $region48: #{fcnp_forward.1} parent=11 // pred_fallthru
          _
        // Predicated region
        $region49: #{fcnp_forward.1} parent=11 // pred_check
          %p561 = pneg %p269
        $region50: #{fcnp_forward.1} parent=11 // pred_check_branch
          %563 = sbr.rel (%p561) target = $region52
        $region51: #{fcnp_forward.1} parent=11 // pred_region
          _
        $region52: #{fcnp_forward.1} parent=11 // pred_fallthru
          _
        // Predicated region
        $region53: #{fcnp_forward.1} parent=11 // pred_check
          %p564 = pneg %p290
        $region54: #{fcnp_forward.1} parent=11 // pred_check_branch
          %566 = sbr.rel (%p564) target = $region56
        $region55: #{fcnp_forward.1} parent=11 // pred_region
          %s568 = ssub.s32 96, 96
          %569 = vsyncadd [#allocation17], %s568
          %s571 = sshll.u32 [#allocation16], 4
          %s572 = int_to_ptr.vmem [resolvable:$true] %s571
          %574 = dma.hbm_to_vmem [thread:$0]  %s11, 96, %s572, [#allocation17]
        $region56: #{fcnp_forward.1} parent=11 // pred_fallthru
          _
        // Predicated region
        $region57: #{fcnp_forward.1} parent=11 // pred_check
          %p575 = pneg %p311
        $region58: #{fcnp_forward.1} parent=11 // pred_check_branch
          %577 = sbr.rel (%p575) target = $region60
        $region59: #{fcnp_forward.1} parent=11 // pred_region
          _
        $region60: #{fcnp_forward.1} parent=11 // pred_fallthru
          _
        // Predicated region
        $region61: #{fcnp_forward.1} parent=11 // pred_check
          %p578 = pneg %p332
        $region62: #{fcnp_forward.1} parent=11 // pred_check_branch
          %580 = sbr.rel (%p578) target = $region64
        $region63: #{fcnp_forward.1} parent=11 // pred_region
          _
        $region64: #{fcnp_forward.1} parent=11 // pred_fallthru
          _
        // Predicated region
        $region65: #{fcnp_forward.1} parent=11 // pred_check
          %p581 = pneg %p353
        $region66: #{fcnp_forward.1} parent=11 // pred_check_branch
          %583 = sbr.rel (%p581) target = $region68
        $region67: #{fcnp_forward.1} parent=11 // pred_region
          _
        $region68: #{fcnp_forward.1} parent=11 // pred_fallthru
          _
        // Predicated region
        $region69: #{fcnp_forward.1} parent=11 // pred_check
          %p584 = pneg %p374
        $region70: #{fcnp_forward.1} parent=11 // pred_check_branch
          %586 = sbr.rel (%p584) target = $region72
        $region71: #{fcnp_forward.1} parent=11 // pred_region
          _
        $region72: #{fcnp_forward.1} parent=11 // pred_fallthru
          _
        // Predicated region
        $region73: #{fcnp_forward.1} parent=11 // pred_check
          %p587 = pneg %p395
        $region74: #{fcnp_forward.1} parent=11 // pred_check_branch
          %589 = sbr.rel (%p587) target = $region76
        $region75: #{fcnp_forward.1} parent=11 // pred_region
          _
        $region76: #{fcnp_forward.1} parent=11 // pred_fallthru
          _
        // Predicated region
        $region77: #{fcnp_forward.1} parent=11 // pred_check
          %p590 = pneg %p416
        $region78: #{fcnp_forward.1} parent=11 // pred_check_branch
          %592 = sbr.rel (%p590) target = $region80
        $region79: #{fcnp_forward.1} parent=11 // pred_region
          %s594 = ssub.s32 192, 192
          %595 = vsyncadd [#allocation17], %s594
          %s596 = sshll.u32 [#allocation18], 4
          %s597 = int_to_ptr.vmem [resolvable:$true] %s596
          %602 = dma.hbm_to_vmem [thread:$0]  %s17, 192, %s597, [#allocation17], 64, 64, 4
        $region80: #{fcnp_forward.1} parent=11 // pred_fallthru
          _
        // Predicated region
        $region81: #{fcnp_forward.1} parent=11 // pred_check
          %p603 = pneg %p437
        $region82: #{fcnp_forward.1} parent=11 // pred_check_branch
          %605 = sbr.rel (%p603) target = $region84
        $region83: #{fcnp_forward.1} parent=11 // pred_region
          _
        $region84: #{fcnp_forward.1} parent=11 // pred_fallthru
          _
      $region12: #{fcnp_forward.1} parent=5 // pred_fallthru
        _
      %p606 = scmp.lt.s32.totalorder %s33, 2
      // Predicated region
      $region85: #{fcnp_forward.1} parent=5 // pred_check
        %p607 = pneg %p606
      $region86: #{fcnp_forward.1} parent=5 // pred_check_branch
        %609 = sbr.rel (%p607) target = $region88
      $region87: #{fcnp_forward.1} parent=5 // pred_region
        // Predicated region
        $region89: #{fcnp_forward.1} parent=87 // pred_check
          %p610 = pneg %p53
        $region90: #{fcnp_forward.1} parent=87 // pred_check_branch
          %612 = sbr.rel (%p610) target = $region92
        $region91: #{fcnp_forward.1} parent=87 // pred_region
          %s613 = smul.u32 4, %s33
          %p614 = scmp.lt.s32.totalorder %s613, 7
          %s615 = scalar_select %p614, %s613, 7
          %s616 = smul.addr %s615, 8
          %s617 = scalar_lea.vmem %s0, %s616
          %s618 = smul.u32 4, %s33
        $region92: #{fcnp_forward.1} parent=87 // pred_fallthru
          _
      $region88: #{fcnp_forward.1} parent=5 // pred_fallthru
        _
      %p619 = scmp.le.s32.totalorder 1, %s33
      %p620 = scmp.lt.s32.totalorder %s33, 3
      %p621 = pnand %p619, %p620
      %p622 = pneg %p621
      // Predicated region
      $region93: #{fcnp_forward.1} parent=5 // pred_check
        _
      $region94: #{fcnp_forward.1} parent=5 // pred_check_branch
        %624 = sbr.rel (%p621) target = $region96
      $region95: #{fcnp_forward.1} parent=5 // pred_region
        %s625 = ssub.s32 %s33, 1
        // Predicated region
        $region97: #{fcnp_forward.1} parent=95 // pred_check
          %p626 = pneg %p164
        $region98: #{fcnp_forward.1} parent=95 // pred_check_branch
          %628 = sbr.rel (%p626) target = $region100
        $region99: #{fcnp_forward.1} parent=95 // pred_region
          %629 = dma.done [#allocation11], 512
        $region100: #{fcnp_forward.1} parent=95 // pred_fallthru
          _
        // Predicated region
        $region101: #{fcnp_forward.1} parent=95 // pred_check
          %p630 = pneg %p206
        $region102: #{fcnp_forward.1} parent=95 // pred_check_branch
          %632 = sbr.rel (%p630) target = $region104
        $region103: #{fcnp_forward.1} parent=95 // pred_region
          %633 = dma.done [#allocation14], 256
        $region104: #{fcnp_forward.1} parent=95 // pred_fallthru
          _
        // Predicated region
        $region105: #{fcnp_forward.1} parent=95 // pred_check
          %p634 = pneg %p248
        $region106: #{fcnp_forward.1} parent=95 // pred_check_branch
          %636 = sbr.rel (%p634) target = $region108
        $region107: #{fcnp_forward.1} parent=95 // pred_region
          %637 = dma.done [#allocation14], 512
        $region108: #{fcnp_forward.1} parent=95 // pred_fallthru
          _
        // Predicated region
        $region109: #{fcnp_forward.1} parent=95 // pred_check
          %p638 = pneg %p290
        $region110: #{fcnp_forward.1} parent=95 // pred_check_branch
          %640 = sbr.rel (%p638) target = $region112
        $region111: #{fcnp_forward.1} parent=95 // pred_region
          %641 = dma.done [#allocation17], 96
        $region112: #{fcnp_forward.1} parent=95 // pred_fallthru
          _
        // Predicated region
        $region113: #{fcnp_forward.1} parent=95 // pred_check
          %p642 = pneg %p416
        $region114: #{fcnp_forward.1} parent=95 // pred_check_branch
          %644 = sbr.rel (%p642) target = $region116
        $region115: #{fcnp_forward.1} parent=95 // pred_region
          %645 = dma.done [#allocation17], 192
        $region116: #{fcnp_forward.1} parent=95 // pred_fallthru
          _
        %s646 = smul.u32 4, %s38
        %p647 = scmp.lt.s32.totalorder %s646, 7
        %s648 = scalar_select %p647, %s646, 7
        %s649 = smul.addr %s648, 8
        %s650 = scalar_lea.vmem %s0, %s649
        %p651 = pneg %p59
        %p652 = pneg %p56
        %p653 = pneg %p80
        %p654 = pneg %p77
        %p655 = pneg %p101
        %p656 = pneg %p98
        %p657 = pneg %p122
        %p658 = pneg %p119
        %p659 = pneg %p143
        %p660 = pneg %p140
        %p661 = pneg %p164
        %p662 = pneg %p161
        %p663 = pneg %p185
        %p664 = pneg %p182
        %p665 = pneg %p206
        %p666 = pneg %p203
        %p667 = pneg %p227
        %p668 = pneg %p224
        %p669 = pneg %p248
        %p670 = pneg %p245
        %p671 = pneg %p269
        %p672 = pneg %p266
        %p673 = pneg %p290
        %p674 = pneg %p287
        %p675 = pneg %p311
        %p676 = pneg %p308
        %p677 = pneg %p332
        %p678 = pneg %p329
        %p679 = pneg %p353
        %p680 = pneg %p350
        %p681 = pneg %p374
        %p682 = pneg %p371
        %p683 = pneg %p395
        %p684 = pneg %p392
        %p685 = pneg %p416
        %p686 = pneg %p413
        %p687 = pneg %p437
        %p688 = pneg %p434
        %p689 = pneg %p463
        %p690 = pneg %p460
        %s691 = sand.u32 %s450, 1
        %s692 = scalar_lea.sflag [#allocation12], %s691
        %s693 = sand.u32 %s450, 1
        %s694 = smul.addr %s693, 4
        %s695 = scalar_lea.vmem [#allocation19], %s694
        %p696 = pneg %p489
        %p697 = pneg %p486
        %s698 = smul.u32 4, %s38
        %p699 = scmp.lt.s32.totalorder %s698, 7
        %s700 = scalar_select %p699, %s698, 7
        %s701 = smul.addr %s700, 16
        %s702 = smul.addr %s701, 8
        %s703 = scalar_lea.vmem %s20, %s702
        %s704 = smul.u32 4, %s38
        %p705 = scmp.lt.s32.totalorder %s704, 7
        %s706 = scalar_select %p705, %s704, 7
        %s707 = smul.addr %s706, 8
        %s708 = scalar_lea.vmem %s0, %s707
        %s709 = smul.u32 4, %s38
        %s710 = smul.u32 4, %s38
        %s711 = smul.u32 4, %s38
        %p712 = scmp.lt.s32.totalorder %s711, 7
        %s713 = scalar_select %p712, %s711, 7
        %s714 = smul.addr %s713, 16
        %s715 = smul.addr %s714, 8
        %s716 = scalar_lea.vmem %s20, %s715
        %s717 = smul.u32 4, %s38
        %v719 = vld [vmem:[%s708] sm:$0xf]
        %720 = vst [vmem:[#allocation9] sm:$0xf] %v719
        %v721 = vld [vmem:[%s708] sm:$0xff]
        %v722 = vpack.c.bf16 %v721, %v721
        %vm723 = vcmask 945152
        %724 = vst.msk [vmem:[#allocation2] sm:$0xf] %vm723, %v722
        %v726 = vunpack.c.l.b16 %v722
        %v727 = vpack.c.b16 %v726, %v726
        %728 = vrot.lane.b32.xlu0 %v727, 127
        %v729 = vpop.permute.xlu0 %728
        %731 = vst.msk [vmem:[#allocation2 + $0x10] sm:$0xf] %vm723, %v729
        %732 = vrot.lane.b32.xlu0 %v727, 126
        %v733 = vpop.permute.xlu0 %732
        %735 = vst.msk [vmem:[#allocation2 + $0x20] sm:$0xf] %vm723, %v733
        %736 = vrot.lane.b32.xlu0 %v727, 125
        %v737 = vpop.permute.xlu0 %736
        %739 = vst.msk [vmem:[#allocation2 + $0x30] sm:$0xf] %vm723, %v737
        %740 = vrot.lane.b32.xlu0 %v727, 124
        %v741 = vpop.permute.xlu0 %740
        %743 = vst.msk [vmem:[#allocation2 + $0x40] sm:$0xf] %vm723, %v741
        %744 = vrot.lane.b32.xlu0 %v727, 123
        %v745 = vpop.permute.xlu0 %744
        %747 = vst.msk [vmem:[#allocation2 + $0x50] sm:$0xf] %vm723, %v745
        %748 = vrot.lane.b32.xlu0 %v727, 122
        %v749 = vpop.permute.xlu0 %748
        %751 = vst.msk [vmem:[#allocation2 + $0x60] sm:$0xf] %vm723, %v749
        %752 = vrot.lane.b32.xlu0 %v727, 121
        %v753 = vpop.permute.xlu0 %752
        %755 = vst.msk [vmem:[#allocation2 + $0x70] sm:$0xf] %vm723, %v753
        %756 = vrot.lane.b32.xlu0 %v727, 120
        %v757 = vpop.permute.xlu0 %756
        %759 = vst.msk [vmem:[#allocation2 + $0x80] sm:$0xf] %vm723, %v757
        %760 = vrot.lane.b32.xlu0 %v727, 119
        %v761 = vpop.permute.xlu0 %760
        %763 = vst.msk [vmem:[#allocation2 + $0x90] sm:$0xf] %vm723, %v761
        %764 = vrot.lane.b32.xlu0 %v727, 118
        %v765 = vpop.permute.xlu0 %764
        %767 = vst.msk [vmem:[#allocation2 + $0xa0] sm:$0xf] %vm723, %v765
        %768 = vrot.lane.b32.xlu0 %v727, 117
        %v769 = vpop.permute.xlu0 %768
        %771 = vst.msk [vmem:[#allocation2 + $0xb0] sm:$0xf] %vm723, %v769
        %772 = vrot.lane.b32.xlu0 %v727, 116
        %v773 = vpop.permute.xlu0 %772
        %775 = vst.msk [vmem:[#allocation2 + $0xc0] sm:$0xf] %vm723, %v773
        %vm776 = vcmask 1044384
        %777 = vst.msk [vmem:[#allocation2] sm:$0xf] %vm776, 0
        %778 = vst.msk [vmem:[#allocation2 + $0x10] sm:$0xf] %vm776, 0
        %779 = vst.msk [vmem:[#allocation2 + $0x20] sm:$0xf] %vm776, 0
        %780 = vst.msk [vmem:[#allocation2 + $0x30] sm:$0xf] %vm776, 0
        %781 = vst.msk [vmem:[#allocation2 + $0x40] sm:$0xf] %vm776, 0
        %782 = vst.msk [vmem:[#allocation2 + $0x50] sm:$0xf] %vm776, 0
        %783 = vst.msk [vmem:[#allocation2 + $0x60] sm:$0xf] %vm776, 0
        %784 = vst.msk [vmem:[#allocation2 + $0x70] sm:$0xf] %vm776, 0
        %785 = vst.msk [vmem:[#allocation2 + $0x80] sm:$0xf] %vm776, 0
        %786 = vst.msk [vmem:[#allocation2 + $0x90] sm:$0xf] %vm776, 0
        %787 = vst.msk [vmem:[#allocation2 + $0xa0] sm:$0xf] %vm776, 0
        %788 = vst.msk [vmem:[#allocation2 + $0xb0] sm:$0xf] %vm776, 0
        %789 = vst.msk [vmem:[#allocation2 + $0xc0] sm:$0xf] %vm776, 0
        %s790 = scalar_lea.vmem %s708, 8
        %v791 = vld [vmem:[%s790] sm:$0xf]
        %792 = vst [vmem:[#allocation9 + $0x4] sm:$0xf] %v791
        %v793 = vld [vmem:[%s790] sm:$0xff]
        %v794 = vpack.c.bf16 %v793, %v793
        %795 = vst.msk [vmem:[#allocation2 + $0x4] sm:$0xf] %vm723, %v794
        %v797 = vunpack.c.l.b16 %v794
        %v798 = vpack.c.b16 %v797, %v797
        %799 = vrot.lane.b32.xlu0 %v798, 127
        %v800 = vpop.permute.xlu0 %799
        %802 = vst.msk [vmem:[#allocation2 + $0x14] sm:$0xf] %vm723, %v800
        %803 = vrot.lane.b32.xlu0 %v798, 126
        %v804 = vpop.permute.xlu0 %803
        %806 = vst.msk [vmem:[#allocation2 + $0x24] sm:$0xf] %vm723, %v804
        %807 = vrot.lane.b32.xlu0 %v798, 125
        %v808 = vpop.permute.xlu0 %807
        %810 = vst.msk [vmem:[#allocation2 + $0x34] sm:$0xf] %vm723, %v808
        %811 = vrot.lane.b32.xlu0 %v798, 124
        %v812 = vpop.permute.xlu0 %811
        %814 = vst.msk [vmem:[#allocation2 + $0x44] sm:$0xf] %vm723, %v812
        %815 = vrot.lane.b32.xlu0 %v798, 123
        %v816 = vpop.permute.xlu0 %815
        %818 = vst.msk [vmem:[#allocation2 + $0x54] sm:$0xf] %vm723, %v816
        %819 = vrot.lane.b32.xlu0 %v798, 122
        %v820 = vpop.permute.xlu0 %819
        %822 = vst.msk [vmem:[#allocation2 + $0x64] sm:$0xf] %vm723, %v820
        %823 = vrot.lane.b32.xlu0 %v798, 121
        %v824 = vpop.permute.xlu0 %823
        %826 = vst.msk [vmem:[#allocation2 + $0x74] sm:$0xf] %vm723, %v824
        %827 = vrot.lane.b32.xlu0 %v798, 120
        %v828 = vpop.permute.xlu0 %827
        %830 = vst.msk [vmem:[#allocation2 + $0x84] sm:$0xf] %vm723, %v828
        %831 = vrot.lane.b32.xlu0 %v798, 119
        %v832 = vpop.permute.xlu0 %831
        %834 = vst.msk [vmem:[#allocation2 + $0x94] sm:$0xf] %vm723, %v832
        %835 = vrot.lane.b32.xlu0 %v798, 118
        %v836 = vpop.permute.xlu0 %835
        %838 = vst.msk [vmem:[#allocation2 + $0xa4] sm:$0xf] %vm723, %v836
        %839 = vrot.lane.b32.xlu0 %v798, 117
        %v840 = vpop.permute.xlu0 %839
        %842 = vst.msk [vmem:[#allocation2 + $0xb4] sm:$0xf] %vm723, %v840
        %843 = vrot.lane.b32.xlu0 %v798, 116
        %v844 = vpop.permute.xlu0 %843
        %846 = vst.msk [vmem:[#allocation2 + $0xc4] sm:$0xf] %vm723, %v844
        %847 = vst.msk [vmem:[#allocation2 + $0x4] sm:$0xf] %vm776, 0
        %848 = vst.msk [vmem:[#allocation2 + $0x14] sm:$0xf] %vm776, 0
        %849 = vst.msk [vmem:[#allocation2 + $0x24] sm:$0xf] %vm776, 0
        %850 = vst.msk [vmem:[#allocation2 + $0x34] sm:$0xf] %vm776, 0
        %851 = vst.msk [vmem:[#allocation2 + $0x44] sm:$0xf] %vm776, 0
        %852 = vst.msk [vmem:[#allocation2 + $0x54] sm:$0xf] %vm776, 0
        %853 = vst.msk [vmem:[#allocation2 + $0x64] sm:$0xf] %vm776, 0
        %854 = vst.msk [vmem:[#allocation2 + $0x74] sm:$0xf] %vm776, 0
        %855 = vst.msk [vmem:[#allocation2 + $0x84] sm:$0xf] %vm776, 0
        %856 = vst.msk [vmem:[#allocation2 + $0x94] sm:$0xf] %vm776, 0
        %857 = vst.msk [vmem:[#allocation2 + $0xa4] sm:$0xf] %vm776, 0
        %858 = vst.msk [vmem:[#allocation2 + $0xb4] sm:$0xf] %vm776, 0
        %859 = vst.msk [vmem:[#allocation2 + $0xc4] sm:$0xf] %vm776, 0
        %s860 = scalar_lea.vmem %s708, 16
        %v861 = vld [vmem:[%s860] sm:$0xf]
        %862 = vst [vmem:[#allocation9 + $0x8] sm:$0xf] %v861
        %v863 = vld [vmem:[%s860] sm:$0xff]
        %v864 = vpack.c.bf16 %v863, %v863
        %865 = vst.msk [vmem:[#allocation2 + $0x8] sm:$0xf] %vm723, %v864
        %v867 = vunpack.c.l.b16 %v864
        %v868 = vpack.c.b16 %v867, %v867
        %869 = vrot.lane.b32.xlu0 %v868, 127
        %v870 = vpop.permute.xlu0 %869
        %872 = vst.msk [vmem:[#allocation2 + $0x18] sm:$0xf] %vm723, %v870
        %873 = vrot.lane.b32.xlu0 %v868, 126
        %v874 = vpop.permute.xlu0 %873
        %876 = vst.msk [vmem:[#allocation2 + $0x28] sm:$0xf] %vm723, %v874
        %877 = vrot.lane.b32.xlu0 %v868, 125
        %v878 = vpop.permute.xlu0 %877
        %880 = vst.msk [vmem:[#allocation2 + $0x38] sm:$0xf] %vm723, %v878
        %881 = vrot.lane.b32.xlu0 %v868, 124
        %v882 = vpop.permute.xlu0 %881
        %884 = vst.msk [vmem:[#allocation2 + $0x48] sm:$0xf] %vm723, %v882
        %885 = vrot.lane.b32.xlu0 %v868, 123
        %v886 = vpop.permute.xlu0 %885
        %888 = vst.msk [vmem:[#allocation2 + $0x58] sm:$0xf] %vm723, %v886
        %889 = vrot.lane.b32.xlu0 %v868, 122
        %v890 = vpop.permute.xlu0 %889
        %892 = vst.msk [vmem:[#allocation2 + $0x68] sm:$0xf] %vm723, %v890
        %893 = vrot.lane.b32.xlu0 %v868, 121
        %v894 = vpop.permute.xlu0 %893
        %896 = vst.msk [vmem:[#allocation2 + $0x78] sm:$0xf] %vm723, %v894
        %897 = vrot.lane.b32.xlu0 %v868, 120
        %v898 = vpop.permute.xlu0 %897
        %900 = vst.msk [vmem:[#allocation2 + $0x88] sm:$0xf] %vm723, %v898
        %901 = vrot.lane.b32.xlu0 %v868, 119
        %v902 = vpop.permute.xlu0 %901
        %904 = vst.msk [vmem:[#allocation2 + $0x98] sm:$0xf] %vm723, %v902
        %905 = vrot.lane.b32.xlu0 %v868, 118
        %v906 = vpop.permute.xlu0 %905
        %908 = vst.msk [vmem:[#allocation2 + $0xa8] sm:$0xf] %vm723, %v906
        %909 = vrot.lane.b32.xlu0 %v868, 117
        %v910 = vpop.permute.xlu0 %909
        %912 = vst.msk [vmem:[#allocation2 + $0xb8] sm:$0xf] %vm723, %v910
        %913 = vrot.lane.b32.xlu0 %v868, 116
        %v914 = vpop.permute.xlu0 %913
        %916 = vst.msk [vmem:[#allocation2 + $0xc8] sm:$0xf] %vm723, %v914
        %917 = vst.msk [vmem:[#allocation2 + $0x8] sm:$0xf] %vm776, 0
        %918 = vst.msk [vmem:[#allocation2 + $0x18] sm:$0xf] %vm776, 0
        %919 = vst.msk [vmem:[#allocation2 + $0x28] sm:$0xf] %vm776, 0
        %920 = vst.msk [vmem:[#allocation2 + $0x38] sm:$0xf] %vm776, 0
        %921 = vst.msk [vmem:[#allocation2 + $0x48] sm:$0xf] %vm776, 0
        %922 = vst.msk [vmem:[#allocation2 + $0x58] sm:$0xf] %vm776, 0
        %923 = vst.msk [vmem:[#allocation2 + $0x68] sm:$0xf] %vm776, 0
        %924 = vst.msk [vmem:[#allocation2 + $0x78] sm:$0xf] %vm776, 0
        %925 = vst.msk [vmem:[#allocation2 + $0x88] sm:$0xf] %vm776, 0
        %926 = vst.msk [vmem:[#allocation2 + $0x98] sm:$0xf] %vm776, 0
        %927 = vst.msk [vmem:[#allocation2 + $0xa8] sm:$0xf] %vm776, 0
        %928 = vst.msk [vmem:[#allocation2 + $0xb8] sm:$0xf] %vm776, 0
        %929 = vst.msk [vmem:[#allocation2 + $0xc8] sm:$0xf] %vm776, 0
        %s930 = scalar_lea.vmem %s708, 24
        %v931 = vld [vmem:[%s930] sm:$0xf]
        %932 = vst [vmem:[#allocation9 + $0xc] sm:$0xf] %v931
        %v933 = vld [vmem:[%s930] sm:$0xff]
        %v934 = vpack.c.bf16 %v933, %v933
        %935 = vst.msk [vmem:[#allocation2 + $0xc] sm:$0xf] %vm723, %v934
        %v937 = vunpack.c.l.b16 %v934
        %v938 = vpack.c.b16 %v937, %v937
        %939 = vrot.lane.b32.xlu0 %v938, 127
        %v940 = vpop.permute.xlu0 %939
        %942 = vst.msk [vmem:[#allocation2 + $0x1c] sm:$0xf] %vm723, %v940
        %943 = vrot.lane.b32.xlu0 %v938, 126
        %v944 = vpop.permute.xlu0 %943
        %946 = vst.msk [vmem:[#allocation2 + $0x2c] sm:$0xf] %vm723, %v944
        %947 = vrot.lane.b32.xlu0 %v938, 125
        %v948 = vpop.permute.xlu0 %947
        %950 = vst.msk [vmem:[#allocation2 + $0x3c] sm:$0xf] %vm723, %v948
        %951 = vrot.lane.b32.xlu0 %v938, 124
        %v952 = vpop.permute.xlu0 %951
        %954 = vst.msk [vmem:[#allocation2 + $0x4c] sm:$0xf] %vm723, %v952
        %955 = vrot.lane.b32.xlu0 %v938, 123
        %v956 = vpop.permute.xlu0 %955
        %958 = vst.msk [vmem:[#allocation2 + $0x5c] sm:$0xf] %vm723, %v956
        %959 = vrot.lane.b32.xlu0 %v938, 122
        %v960 = vpop.permute.xlu0 %959
        %962 = vst.msk [vmem:[#allocation2 + $0x6c] sm:$0xf] %vm723, %v960
        %963 = vrot.lane.b32.xlu0 %v938, 121
        %v964 = vpop.permute.xlu0 %963
        %966 = vst.msk [vmem:[#allocation2 + $0x7c] sm:$0xf] %vm723, %v964
        %967 = vrot.lane.b32.xlu0 %v938, 120
        %v968 = vpop.permute.xlu0 %967
        %970 = vst.msk [vmem:[#allocation2 + $0x8c] sm:$0xf] %vm723, %v968
        %971 = vrot.lane.b32.xlu0 %v938, 119
        %v972 = vpop.permute.xlu0 %971
        %974 = vst.msk [vmem:[#allocation2 + $0x9c] sm:$0xf] %vm723, %v972
        %975 = vrot.lane.b32.xlu0 %v938, 118
        %v976 = vpop.permute.xlu0 %975
        %978 = vst.msk [vmem:[#allocation2 + $0xac] sm:$0xf] %vm723, %v976
        %979 = vrot.lane.b32.xlu0 %v938, 117
        %v980 = vpop.permute.xlu0 %979
        %982 = vst.msk [vmem:[#allocation2 + $0xbc] sm:$0xf] %vm723, %v980
        %983 = vrot.lane.b32.xlu0 %v938, 116
        %v984 = vpop.permute.xlu0 %983
        %986 = vst.msk [vmem:[#allocation2 + $0xcc] sm:$0xf] %vm723, %v984
        %987 = vst.msk [vmem:[#allocation2 + $0xc] sm:$0xf] %vm776, 0
        %988 = vst.msk [vmem:[#allocation2 + $0x1c] sm:$0xf] %vm776, 0
        %989 = vst.msk [vmem:[#allocation2 + $0x2c] sm:$0xf] %vm776, 0
        %990 = vst.msk [vmem:[#allocation2 + $0x3c] sm:$0xf] %vm776, 0
        %991 = vst.msk [vmem:[#allocation2 + $0x4c] sm:$0xf] %vm776, 0
        %992 = vst.msk [vmem:[#allocation2 + $0x5c] sm:$0xf] %vm776, 0
        %993 = vst.msk [vmem:[#allocation2 + $0x6c] sm:$0xf] %vm776, 0
        %994 = vst.msk [vmem:[#allocation2 + $0x7c] sm:$0xf] %vm776, 0
        %995 = vst.msk [vmem:[#allocation2 + $0x8c] sm:$0xf] %vm776, 0
        %996 = vst.msk [vmem:[#allocation2 + $0x9c] sm:$0xf] %vm776, 0
        %997 = vst.msk [vmem:[#allocation2 + $0xac] sm:$0xf] %vm776, 0
        %998 = vst.msk [vmem:[#allocation2 + $0xbc] sm:$0xf] %vm776, 0
        %999 = vst.msk [vmem:[#allocation2 + $0xcc] sm:$0xf] %vm776, 0
        %v1000 = vld [vmem:[%s1] sm:$0xf]
        %v1001 = vld [vmem:[%s1 + $0x4] sm:$0xf]
        %v1002 = vld [vmem:[%s1 + $0x8] sm:$0xf]
        %v1003 = vld [vmem:[%s1 + $0xc] sm:$0xf]
        %v1004 = vld [vmem:[%s1 + $0x10] sm:$0xf]
        %v1005 = vld [vmem:[%s1 + $0x14] sm:$0xf]
        %v1006 = vld [vmem:[%s1 + $0x18] sm:$0xf]
        %v1007 = vld [vmem:[%s1 + $0x1c] sm:$0xf]
        %v1008 = vld [vmem:[%s1 + $0x20] sm:$0xf]
        %v1009 = vld [vmem:[%s1 + $0x24] sm:$0xf]
        %v1010 = vld [vmem:[%s1 + $0x28] sm:$0xf]
        %v1011 = vld [vmem:[%s1 + $0x2c] sm:$0xf]
        %v1012 = vld [vmem:[%s1 + $0x30] sm:$0xf]
        %v1013 = vld [vmem:[%s1 + $0x34] sm:$0xf]
        %v1014 = vld [vmem:[%s1 + $0x38] sm:$0xf]
        %v1015 = vld [vmem:[%s1 + $0x3c] sm:$0xf]
        %v1016 = vld [vmem:[#allocation2] sm:$0xff]
        %v1017 = vld [vmem:[#allocation2 + $0x8] sm:$0xff]
        %v1018 = vld [vmem:[#allocation2 + $0x10] sm:$0xff]
        %v1019 = vld [vmem:[#allocation2 + $0x18] sm:$0xff]
        %v1020 = vld [vmem:[#allocation2 + $0x20] sm:$0xff]
        %v1021 = vld [vmem:[#allocation2 + $0x28] sm:$0xff]
        %v1022 = vld [vmem:[#allocation2 + $0x30] sm:$0xff]
        %v1023 = vld [vmem:[#allocation2 + $0x38] sm:$0xff]
        %v1024 = vld [vmem:[#allocation2 + $0x40] sm:$0xff]
        %v1025 = vld [vmem:[#allocation2 + $0x48] sm:$0xff]
        %v1026 = vld [vmem:[#allocation2 + $0x50] sm:$0xff]
        %v1027 = vld [vmem:[#allocation2 + $0x58] sm:$0xff]
        %v1028 = vld [vmem:[#allocation2 + $0x60] sm:$0xff]
        %v1029 = vld [vmem:[#allocation2 + $0x68] sm:$0xff]
        %v1030 = vld [vmem:[#allocation2 + $0x70] sm:$0xff]
        %v1031 = vld [vmem:[#allocation2 + $0x78] sm:$0xff]
        %v1032 = vld [vmem:[#allocation2 + $0x80] sm:$0xff]
        %v1033 = vld [vmem:[#allocation2 + $0x88] sm:$0xff]
        %v1034 = vld [vmem:[#allocation2 + $0x90] sm:$0xff]
        %v1035 = vld [vmem:[#allocation2 + $0x98] sm:$0xff]
        %v1036 = vld [vmem:[#allocation2 + $0xa0] sm:$0xff]
        %v1037 = vld [vmem:[#allocation2 + $0xa8] sm:$0xff]
        %v1038 = vld [vmem:[#allocation2 + $0xb0] sm:$0xff]
        %v1039 = vld [vmem:[#allocation2 + $0xb8] sm:$0xff]
        %v1040 = vld [vmem:[#allocation2 + $0xc0] sm:$0xff]
        %v1041 = vld [vmem:[#allocation2 + $0xc8] sm:$0xff]
        %v1042 = vld [vmem:[%s2] sm:$0xff]
        %v1043 = vld [vmem:[%s2 + $0x8] sm:$0xff]
        %v1044 = vld [vmem:[%s2 + $0x10] sm:$0xff]
        %v1045 = vld [vmem:[%s2 + $0x18] sm:$0xff]
        %v1046 = vld [vmem:[%s2 + $0x20] sm:$0xff]
        %v1047 = vld [vmem:[%s2 + $0x28] sm:$0xff]
        %v1048 = vld [vmem:[%s2 + $0x30] sm:$0xff]
        %v1049 = vld [vmem:[%s2 + $0x38] sm:$0xff]
        %v1050 = vld [vmem:[%s2 + $0x40] sm:$0xff]
        %v1051 = vld [vmem:[%s2 + $0x48] sm:$0xff]
        %v1052 = vld [vmem:[%s2 + $0x50] sm:$0xff]
        %v1053 = vld [vmem:[%s2 + $0x58] sm:$0xff]
        %v1054 = vld [vmem:[%s2 + $0x60] sm:$0xff]
        %v1055 = vld [vmem:[%s2 + $0x68] sm:$0xff]
        %v1056 = vld [vmem:[%s2 + $0x70] sm:$0xff]
        %v1057 = vld [vmem:[%s2 + $0x78] sm:$0xff]
        %1059 = vset.pattern.permute.xlu0 0
        %1060 = vperm.xlu0 %1059, %v1042
        %v1061 = vpop.permute.xlu0 %1060
        %1064 = vset.pattern.permute.xlu0 0
        %1065 = vperm.xlu0 %1064, %v1043
        %v1066 = vpop.permute.xlu0 %1065
        %1069 = vset.pattern.permute.xlu0 0
        %1070 = vperm.xlu0 %1069, %v1044
        %v1071 = vpop.permute.xlu0 %1070
        %1074 = vset.pattern.permute.xlu0 0
        %1075 = vperm.xlu0 %1074, %v1045
        %v1076 = vpop.permute.xlu0 %1075
        %1079 = vset.pattern.permute.xlu0 0
        %1080 = vperm.xlu0 %1079, %v1046
        %v1081 = vpop.permute.xlu0 %1080
        %1084 = vset.pattern.permute.xlu0 0
        %1085 = vperm.xlu0 %1084, %v1047
        %v1086 = vpop.permute.xlu0 %1085
        %1089 = vset.pattern.permute.xlu0 0
        %1090 = vperm.xlu0 %1089, %v1048
        %v1091 = vpop.permute.xlu0 %1090
        %1094 = vset.pattern.permute.xlu0 0
        %1095 = vperm.xlu0 %1094, %v1049
        %v1096 = vpop.permute.xlu0 %1095
        %1099 = vset.pattern.permute.xlu0 0
        %1100 = vperm.xlu0 %1099, %v1050
        %v1101 = vpop.permute.xlu0 %1100
        %1104 = vset.pattern.permute.xlu0 0
        %1105 = vperm.xlu0 %1104, %v1051
        %v1106 = vpop.permute.xlu0 %1105
        %1109 = vset.pattern.permute.xlu0 0
        %1110 = vperm.xlu0 %1109, %v1052
        %v1111 = vpop.permute.xlu0 %1110
        %1114 = vset.pattern.permute.xlu0 0
        %1115 = vperm.xlu0 %1114, %v1053
        %v1116 = vpop.permute.xlu0 %1115
        %1119 = vset.pattern.permute.xlu0 0
        %1120 = vperm.xlu0 %1119, %v1054
        %v1121 = vpop.permute.xlu0 %1120
        %1124 = vset.pattern.permute.xlu0 0
        %1125 = vperm.xlu0 %1124, %v1055
        %v1126 = vpop.permute.xlu0 %1125
        %1129 = vset.pattern.permute.xlu0 0
        %1130 = vperm.xlu0 %1129, %v1056
        %v1131 = vpop.permute.xlu0 %1130
        %1134 = vset.pattern.permute.xlu0 0
        %1135 = vperm.xlu0 %1134, %v1057
        %v1136 = vpop.permute.xlu0 %1135
        %v1154 = vunpack.c.l.b16 %v1000
        %v1155 = vunpack.c.l.b16 %v1001
        %v1156 = vunpack.c.l.b16 %v1002
        %v1157 = vunpack.c.l.b16 %v1003
        %v1158 = vunpack.c.l.b16 %v1004
        %v1159 = vunpack.c.l.b16 %v1005
        %v1160 = vunpack.c.l.b16 %v1006
        %v1161 = vunpack.c.l.b16 %v1007
        %v1162 = vunpack.c.l.b16 %v1008
        %v1163 = vunpack.c.l.b16 %v1009
        %v1164 = vunpack.c.l.b16 %v1010
        %v1165 = vunpack.c.l.b16 %v1011
        %v1166 = vunpack.c.l.b16 %v1012
        %v1167 = vunpack.c.l.b16 %v1013
        %v1168 = vunpack.c.l.b16 %v1014
        %v1169 = vunpack.c.l.b16 %v1015
        %v1170 = vpack.c.b16 %v1155, %v1154
        %v1171 = vpack.c.b16 %v1157, %v1156
        %v1172 = vpack.c.b16 %v1159, %v1158
        %v1173 = vpack.c.b16 %v1161, %v1160
        %v1174 = vpack.c.b16 %v1163, %v1162
        %v1175 = vpack.c.b16 %v1165, %v1164
        %v1176 = vpack.c.b16 %v1167, %v1166
        %v1177 = vpack.c.b16 %v1169, %v1168
        %v1204 = vunpack.c.l.b16 %v1016
        %v1205 = vunpack.c.h.b16 %v1016
        %v1206 = vunpack.c.l.b16 %v1017
        %v1207 = vunpack.c.h.b16 %v1017
        %v1208 = vunpack.c.l.b16 %v1018
        %v1209 = vunpack.c.h.b16 %v1018
        %v1210 = vunpack.c.l.b16 %v1019
        %v1211 = vunpack.c.h.b16 %v1019
        %v1212 = vunpack.c.l.b16 %v1020
        %v1213 = vunpack.c.h.b16 %v1020
        %v1214 = vunpack.c.l.b16 %v1021
        %v1215 = vunpack.c.h.b16 %v1021
        %v1216 = vunpack.c.l.b16 %v1022
        %v1217 = vunpack.c.h.b16 %v1022
        %v1218 = vunpack.c.l.b16 %v1023
        %v1219 = vunpack.c.h.b16 %v1023
        %v1220 = vunpack.c.l.b16 %v1024
        %v1221 = vunpack.c.h.b16 %v1024
        %v1222 = vunpack.c.l.b16 %v1025
        %v1223 = vunpack.c.h.b16 %v1025
        %v1224 = vunpack.c.l.b16 %v1026
        %v1225 = vunpack.c.h.b16 %v1026
        %v1226 = vunpack.c.l.b16 %v1027
        %v1227 = vunpack.c.h.b16 %v1027
        %v1228 = vunpack.c.l.b16 %v1028
        %v1229 = vunpack.c.h.b16 %v1028
        %v1230 = vunpack.c.l.b16 %v1029
        %v1231 = vunpack.c.h.b16 %v1029
        %v1232 = vunpack.c.l.b16 %v1030
        %v1233 = vunpack.c.h.b16 %v1030
        %v1234 = vunpack.c.l.b16 %v1031
        %v1235 = vunpack.c.h.b16 %v1031
        %v1236 = vunpack.c.l.b16 %v1032
        %v1237 = vunpack.c.h.b16 %v1032
        %v1238 = vunpack.c.l.b16 %v1033
        %v1239 = vunpack.c.h.b16 %v1033
        %v1240 = vunpack.c.l.b16 %v1034
        %v1241 = vunpack.c.h.b16 %v1034
        %v1242 = vunpack.c.l.b16 %v1035
        %v1243 = vunpack.c.h.b16 %v1035
        %v1244 = vunpack.c.l.b16 %v1036
        %v1245 = vunpack.c.h.b16 %v1036
        %v1246 = vunpack.c.l.b16 %v1037
        %v1247 = vunpack.c.h.b16 %v1037
        %v1248 = vunpack.c.l.b16 %v1038
        %v1249 = vunpack.c.h.b16 %v1038
        %v1250 = vunpack.c.l.b16 %v1039
        %v1251 = vunpack.c.h.b16 %v1039
        %v1252 = vunpack.c.l.b16 %v1040
        %v1253 = vunpack.c.h.b16 %v1040
        %v1254 = vunpack.c.l.b16 %v1041
        %v1255 = vunpack.c.h.b16 %v1041
        %v1256 = vpack.c.b16 %v1208, %v1204
        %v1257 = vpack.c.b16 %v1209, %v1205
        %v1258 = vpack.c.b16 %v1210, %v1206
        %v1259 = vpack.c.b16 %v1211, %v1207
        %v1260 = vpack.c.b16 %v1216, %v1212
        %v1261 = vpack.c.b16 %v1217, %v1213
        %v1262 = vpack.c.b16 %v1218, %v1214
        %v1263 = vpack.c.b16 %v1219, %v1215
        %v1264 = vpack.c.b16 %v1224, %v1220
        %v1265 = vpack.c.b16 %v1225, %v1221
        %v1266 = vpack.c.b16 %v1226, %v1222
        %v1267 = vpack.c.b16 %v1227, %v1223
        %v1268 = vpack.c.b16 %v1232, %v1228
        %v1269 = vpack.c.b16 %v1233, %v1229
        %v1270 = vpack.c.b16 %v1234, %v1230
        %v1271 = vpack.c.b16 %v1235, %v1231
        %v1272 = vpack.c.b16 %v1240, %v1236
        %v1273 = vpack.c.b16 %v1241, %v1237
        %v1274 = vpack.c.b16 %v1242, %v1238
        %v1275 = vpack.c.b16 %v1243, %v1239
        %v1276 = vpack.c.b16 %v1248, %v1244
        %v1277 = vpack.c.b16 %v1249, %v1245
        %v1278 = vpack.c.b16 %v1250, %v1246
        %v1279 = vpack.c.b16 %v1251, %v1247
        %v1280 = vpack.c.b16 %v1252, %v1252
        %v1281 = vpack.c.b16 %v1253, %v1253
        %v1282 = vpack.c.b16 %v1254, %v1254
        %v1283 = vpack.c.b16 %v1255, %v1255
        %vm1308 = vcmask 850944
        %v1310 = vsel %vm1308, %v1170, 0
        %v1313 = vsel %vm1308, %v1171, 0
        %v1316 = vsel %vm1308, %v1172, 0
        %v1319 = vsel %vm1308, %v1173, 0
        %v1322 = vsel %vm1308, %v1174, 0
        %v1325 = vsel %vm1308, %v1175, 0
        %v1328 = vsel %vm1308, %v1176, 0
        %v1331 = vsel %vm1308, %v1177, 0
        %vm1333 = vcmask 1043456
        %v1335 = vsel %vm1333, %v1280, 0
        %v1338 = vsel %vm1333, %v1281, 0
        %v1341 = vsel %vm1333, %v1282, 0
        %v1344 = vsel %vm1333, %v1283, 0
        %1346 = vmatprep.subr.bf16.mxu0 0
        %1347 = vmatpush1.bf16.msra.mxu0 0
        %1348 = vmatprep.subr.bf16.mxu0 %v1338
        %1349 = vmatpush1.bf16.msra.mxu0 %v1335
        %1350 = vmatprep.subr.bf16.mxu0 %v1277
        %1351 = vmatpush1.bf16.msra.mxu0 %v1276
        %1352 = vmatprep.subr.bf16.mxu0 %v1273
        %1353 = vmatpush1.bf16.msra.mxu0 %v1272
        %1354 = vmatprep.subr.bf16.mxu0 %v1269
        %1355 = vmatpush1.bf16.msra.mxu0 %v1268
        %1356 = vmatprep.subr.bf16.mxu0 %v1265
        %1357 = vmatpush1.bf16.msra.mxu0 %v1264
        %1358 = vmatprep.subr.bf16.mxu0 %v1261
        %1359 = vmatpush1.bf16.msra.mxu0 %v1260
        %1360 = vmatprep.subr.bf16.mxu0 %v1257
        %1361 = vmatpush1.bf16.msra.mxu0 %v1256
        %1362 = vmatprep.subr.bf16.mxu0 0
        %1363 = vmatpush2.bf16.msra.mxu0 0
        %1364 = vmatprep.subr.bf16.mxu0 0
        %1365 = vmatpush2.bf16.msra.mxu0 0
        %1366 = vmatprep.subr.bf16.mxu0 0
        %1367 = vmatpush2.bf16.msra.mxu0 0
        %1368 = vmatprep.subr.bf16.mxu0 0
        %1369 = vmatpush2.bf16.msra.mxu0 0
        %1370 = vmatprep.subr.bf16.mxu0 0
        %1371 = vmatpush2.bf16.msra.mxu0 0
        %1372 = vmatprep.subr.bf16.mxu0 0
        %1373 = vmatpush2.bf16.msra.mxu0 0
        %1374 = vmatprep.subr.bf16.mxu0 0
        %1375 = vmatpush2.bf16.msra.mxu0 0
        %1376 = vmatprep.subr.bf16.mxu0 0
        %1377 = vmatpush2.bf16.msra.mxu0 0
        %1378 = vmatprep.mubr.bf16.mxu0 0
        %1379 = vmatmul.mubr.bf16.gmra.mxu0 %v1310
        %v1380 = vpop.f32.mrf.mxu0
        %v1381 = vadd.f32 %v1061, %v1380
        %v1382 = vpop.f32.mrf.mxu0
        %v1383 = vadd.f32 %v1061, %v1382
        %v1384 = vpop.f32.mrf.mxu0
        %v1385 = vadd.f32 %v1066, %v1384
        %v1386 = vpop.f32.mrf.mxu0
        %v1387 = vadd.f32 %v1066, %v1386
        %1388 = vmatprep.mubr.bf16.mxu0 0
        %1389 = vmatmul.mubr.bf16.gmra.mxu0 %v1313
        %v1390 = vpop.f32.mrf.mxu0
        %v1391 = vadd.f32 %v1071, %v1390
        %v1392 = vpop.f32.mrf.mxu0
        %v1393 = vadd.f32 %v1071, %v1392
        %v1394 = vpop.f32.mrf.mxu0
        %v1395 = vadd.f32 %v1076, %v1394
        %v1396 = vpop.f32.mrf.mxu0
        %v1397 = vadd.f32 %v1076, %v1396
        %1398 = vmatprep.mubr.bf16.mxu0 0
        %1399 = vmatmul.mubr.bf16.gmra.mxu0 %v1316
        %v1400 = vpop.f32.mrf.mxu0
        %v1401 = vadd.f32 %v1081, %v1400
        %v1402 = vpop.f32.mrf.mxu0
        %v1403 = vadd.f32 %v1081, %v1402
        %v1404 = vpop.f32.mrf.mxu0
        %v1405 = vadd.f32 %v1086, %v1404
        %v1406 = vpop.f32.mrf.mxu0
        %v1407 = vadd.f32 %v1086, %v1406
        %1408 = vmatprep.mubr.bf16.mxu0 0
        %1409 = vmatmul.mubr.bf16.gmra.mxu0 %v1319
        %v1410 = vpop.f32.mrf.mxu0
        %v1411 = vadd.f32 %v1091, %v1410
        %v1412 = vpop.f32.mrf.mxu0
        %v1413 = vadd.f32 %v1091, %v1412
        %v1414 = vpop.f32.mrf.mxu0
        %v1415 = vadd.f32 %v1096, %v1414
        %v1416 = vpop.f32.mrf.mxu0
        %v1417 = vadd.f32 %v1096, %v1416
        %1418 = vmatprep.mubr.bf16.mxu0 0
        %1419 = vmatmul.mubr.bf16.gmra.mxu0 %v1322
        %v1420 = vpop.f32.mrf.mxu0
        %v1421 = vadd.f32 %v1101, %v1420
        %v1422 = vpop.f32.mrf.mxu0
        %v1423 = vadd.f32 %v1101, %v1422
        %v1424 = vpop.f32.mrf.mxu0
        %v1425 = vadd.f32 %v1106, %v1424
        %v1426 = vpop.f32.mrf.mxu0
        %v1427 = vadd.f32 %v1106, %v1426
        %1428 = vmatprep.mubr.bf16.mxu0 0
        %1429 = vmatmul.mubr.bf16.gmra.mxu0 %v1325
        %v1430 = vpop.f32.mrf.mxu0
        %v1431 = vadd.f32 %v1111, %v1430
        %v1432 = vpop.f32.mrf.mxu0
        %v1433 = vadd.f32 %v1111, %v1432
        %v1434 = vpop.f32.mrf.mxu0
        %v1435 = vadd.f32 %v1116, %v1434
        %v1436 = vpop.f32.mrf.mxu0
        %v1437 = vadd.f32 %v1116, %v1436
        %1438 = vmatprep.mubr.bf16.mxu0 0
        %1439 = vmatmul.mubr.bf16.gmra.mxu0 %v1328
        %v1440 = vpop.f32.mrf.mxu0
        %v1441 = vadd.f32 %v1121, %v1440
        %v1442 = vpop.f32.mrf.mxu0
        %v1443 = vadd.f32 %v1121, %v1442
        %v1444 = vpop.f32.mrf.mxu0
        %v1445 = vadd.f32 %v1126, %v1444
        %v1446 = vpop.f32.mrf.mxu0
        %v1447 = vadd.f32 %v1126, %v1446
        %1448 = vmatprep.mubr.bf16.mxu0 0
        %1449 = vmatmul.mubr.bf16.gmra.mxu0 %v1331
        %v1450 = vpop.f32.mrf.mxu0
        %v1451 = vadd.f32 %v1131, %v1450
        %v1452 = vpop.f32.mrf.mxu0
        %v1453 = vadd.f32 %v1131, %v1452
        %v1454 = vpop.f32.mrf.mxu0
        %v1455 = vadd.f32 %v1136, %v1454
        %v1456 = vpop.f32.mrf.mxu0
        %v1457 = vadd.f32 %v1136, %v1456
        %1458 = vdwg.mxu0
        %1459 = vmatprep.subr.bf16.mxu0 0
        %1460 = vmatpush1.bf16.msra.mxu0 0
        %1461 = vmatprep.subr.bf16.mxu0 %v1344
        %1462 = vmatpush1.bf16.msra.mxu0 %v1341
        %1463 = vmatprep.subr.bf16.mxu0 %v1279
        %1464 = vmatpush1.bf16.msra.mxu0 %v1278
        %1465 = vmatprep.subr.bf16.mxu0 %v1275
        %1466 = vmatpush1.bf16.msra.mxu0 %v1274
        %1467 = vmatprep.subr.bf16.mxu0 %v1271
        %1468 = vmatpush1.bf16.msra.mxu0 %v1270
        %1469 = vmatprep.subr.bf16.mxu0 %v1267
        %1470 = vmatpush1.bf16.msra.mxu0 %v1266
        %1471 = vmatprep.subr.bf16.mxu0 %v1263
        %1472 = vmatpush1.bf16.msra.mxu0 %v1262
        %1473 = vmatprep.subr.bf16.mxu0 %v1259
        %1474 = vmatpush1.bf16.msra.mxu0 %v1258
        %1475 = vmatprep.subr.bf16.mxu0 0
        %1476 = vmatpush2.bf16.msra.mxu0 0
        %1477 = vmatprep.subr.bf16.mxu0 0
        %1478 = vmatpush2.bf16.msra.mxu0 0
        %1479 = vmatprep.subr.bf16.mxu0 0
        %1480 = vmatpush2.bf16.msra.mxu0 0
        %1481 = vmatprep.subr.bf16.mxu0 0
        %1482 = vmatpush2.bf16.msra.mxu0 0
        %1483 = vmatprep.subr.bf16.mxu0 0
        %1484 = vmatpush2.bf16.msra.mxu0 0
        %1485 = vmatprep.subr.bf16.mxu0 0
        %1486 = vmatpush2.bf16.msra.mxu0 0
        %1487 = vmatprep.subr.bf16.mxu0 0
        %1488 = vmatpush2.bf16.msra.mxu0 0
        %1489 = vmatprep.subr.bf16.mxu0 0
        %1490 = vmatpush2.bf16.msra.mxu0 0
        %1491 = vmatprep.mubr.bf16.mxu0 0
        %1492 = vmatmul.mubr.bf16.gmra.mxu0 %v1310
        %v1493 = vpop.f32.mrf.mxu0
        %v1494 = vadd.f32 %v1061, %v1493
        %v1495 = vpop.f32.mrf.mxu0
        %v1496 = vadd.f32 %v1061, %v1495
        %v1497 = vpop.f32.mrf.mxu0
        %v1498 = vadd.f32 %v1066, %v1497
        %v1499 = vpop.f32.mrf.mxu0
        %v1500 = vadd.f32 %v1066, %v1499
        %1501 = vmatprep.mubr.bf16.mxu0 0
        %1502 = vmatmul.mubr.bf16.gmra.mxu0 %v1313
        %v1503 = vpop.f32.mrf.mxu0
        %v1504 = vadd.f32 %v1071, %v1503
        %v1505 = vpop.f32.mrf.mxu0
        %v1506 = vadd.f32 %v1071, %v1505
        %v1507 = vpop.f32.mrf.mxu0
        %v1508 = vadd.f32 %v1076, %v1507
        %v1509 = vpop.f32.mrf.mxu0
        %v1510 = vadd.f32 %v1076, %v1509
        %1511 = vmatprep.mubr.bf16.mxu0 0
        %1512 = vmatmul.mubr.bf16.gmra.mxu0 %v1316
        %v1513 = vpop.f32.mrf.mxu0
        %v1514 = vadd.f32 %v1081, %v1513
        %v1515 = vpop.f32.mrf.mxu0
        %v1516 = vadd.f32 %v1081, %v1515
        %v1517 = vpop.f32.mrf.mxu0
        %v1518 = vadd.f32 %v1086, %v1517
        %v1519 = vpop.f32.mrf.mxu0
        %v1520 = vadd.f32 %v1086, %v1519
        %1521 = vmatprep.mubr.bf16.mxu0 0
        %1522 = vmatmul.mubr.bf16.gmra.mxu0 %v1319
        %v1523 = vpop.f32.mrf.mxu0
        %v1524 = vadd.f32 %v1091, %v1523
        %v1525 = vpop.f32.mrf.mxu0
        %v1526 = vadd.f32 %v1091, %v1525
        %v1527 = vpop.f32.mrf.mxu0
        %v1528 = vadd.f32 %v1096, %v1527
        %v1529 = vpop.f32.mrf.mxu0
        %v1530 = vadd.f32 %v1096, %v1529
        %1531 = vmatprep.mubr.bf16.mxu0 0
        %1532 = vmatmul.mubr.bf16.gmra.mxu0 %v1322
        %v1533 = vpop.f32.mrf.mxu0
        %v1534 = vadd.f32 %v1101, %v1533
        %v1535 = vpop.f32.mrf.mxu0
        %v1536 = vadd.f32 %v1101, %v1535
        %v1537 = vpop.f32.mrf.mxu0
        %v1538 = vadd.f32 %v1106, %v1537
        %v1539 = vpop.f32.mrf.mxu0
        %v1540 = vadd.f32 %v1106, %v1539
        %1541 = vmatprep.mubr.bf16.mxu0 0
        %1542 = vmatmul.mubr.bf16.gmra.mxu0 %v1325
        %v1543 = vpop.f32.mrf.mxu0
        %v1544 = vadd.f32 %v1111, %v1543
        %v1545 = vpop.f32.mrf.mxu0
        %v1546 = vadd.f32 %v1111, %v1545
        %v1547 = vpop.f32.mrf.mxu0
        %v1548 = vadd.f32 %v1116, %v1547
        %v1549 = vpop.f32.mrf.mxu0
        %v1550 = vadd.f32 %v1116, %v1549
        %1551 = vmatprep.mubr.bf16.mxu0 0
        %1552 = vmatmul.mubr.bf16.gmra.mxu0 %v1328
        %v1553 = vpop.f32.mrf.mxu0
        %v1554 = vadd.f32 %v1121, %v1553
        %v1555 = vpop.f32.mrf.mxu0
        %v1556 = vadd.f32 %v1121, %v1555
        %v1557 = vpop.f32.mrf.mxu0
        %v1558 = vadd.f32 %v1126, %v1557
        %v1559 = vpop.f32.mrf.mxu0
        %v1560 = vadd.f32 %v1126, %v1559
        %1561 = vmatprep.mubr.bf16.mxu0 0
        %1562 = vmatmul.mubr.bf16.gmra.mxu0 %v1331
        %v1563 = vpop.f32.mrf.mxu0
        %v1564 = vadd.f32 %v1131, %v1563
        %v1565 = vpop.f32.mrf.mxu0
        %v1566 = vadd.f32 %v1131, %v1565
        %v1567 = vpop.f32.mrf.mxu0
        %v1568 = vadd.f32 %v1136, %v1567
        %v1569 = vpop.f32.mrf.mxu0
        %v1570 = vadd.f32 %v1136, %v1569
        %1571 = vdwg.mxu0
        %v1572 = vmax.f32 %v1381, 0.0
        %v1573 = vmax.f32 %v1383, 0.0
        %v1574 = vmax.f32 %v1494, 0.0
        %v1575 = vmax.f32 %v1496, 0.0
        %v1576 = vmax.f32 %v1385, 0.0
        %v1577 = vmax.f32 %v1387, 0.0
        %v1578 = vmax.f32 %v1498, 0.0
        %v1579 = vmax.f32 %v1500, 0.0
        %v1580 = vmax.f32 %v1391, 0.0
        %v1581 = vmax.f32 %v1393, 0.0
        %v1582 = vmax.f32 %v1504, 0.0
        %v1583 = vmax.f32 %v1506, 0.0
        %v1584 = vmax.f32 %v1395, 0.0
        %v1585 = vmax.f32 %v1397, 0.0
        %v1586 = vmax.f32 %v1508, 0.0
        %v1587 = vmax.f32 %v1510, 0.0
        %v1588 = vmax.f32 %v1401, 0.0
        %v1589 = vmax.f32 %v1403, 0.0
        %v1590 = vmax.f32 %v1514, 0.0
        %v1591 = vmax.f32 %v1516, 0.0
        %v1592 = vmax.f32 %v1405, 0.0
        %v1593 = vmax.f32 %v1407, 0.0
        %v1594 = vmax.f32 %v1518, 0.0
        %v1595 = vmax.f32 %v1520, 0.0
        %v1596 = vmax.f32 %v1411, 0.0
        %v1597 = vmax.f32 %v1413, 0.0
        %v1598 = vmax.f32 %v1524, 0.0
        %v1599 = vmax.f32 %v1526, 0.0
        %v1600 = vmax.f32 %v1415, 0.0
        %v1601 = vmax.f32 %v1417, 0.0
        %v1602 = vmax.f32 %v1528, 0.0
        %v1603 = vmax.f32 %v1530, 0.0
        %v1604 = vmax.f32 %v1421, 0.0
        %v1605 = vmax.f32 %v1423, 0.0
        %v1606 = vmax.f32 %v1534, 0.0
        %v1607 = vmax.f32 %v1536, 0.0
        %v1608 = vmax.f32 %v1425, 0.0
        %v1609 = vmax.f32 %v1427, 0.0
        %v1610 = vmax.f32 %v1538, 0.0
        %v1611 = vmax.f32 %v1540, 0.0
        %v1612 = vmax.f32 %v1431, 0.0
        %v1613 = vmax.f32 %v1433, 0.0
        %v1614 = vmax.f32 %v1544, 0.0
        %v1615 = vmax.f32 %v1546, 0.0
        %v1616 = vmax.f32 %v1435, 0.0
        %v1617 = vmax.f32 %v1437, 0.0
        %v1618 = vmax.f32 %v1548, 0.0
        %v1619 = vmax.f32 %v1550, 0.0
        %v1620 = vmax.f32 %v1441, 0.0
        %v1621 = vmax.f32 %v1443, 0.0
        %v1622 = vmax.f32 %v1554, 0.0
        %v1623 = vmax.f32 %v1556, 0.0
        %v1624 = vmax.f32 %v1445, 0.0
        %v1625 = vmax.f32 %v1447, 0.0
        %v1626 = vmax.f32 %v1558, 0.0
        %v1627 = vmax.f32 %v1560, 0.0
        %v1628 = vmax.f32 %v1451, 0.0
        %v1629 = vmax.f32 %v1453, 0.0
        %v1630 = vmax.f32 %v1564, 0.0
        %v1631 = vmax.f32 %v1566, 0.0
        %v1632 = vmax.f32 %v1455, 0.0
        %v1633 = vmax.f32 %v1457, 0.0
        %v1634 = vmax.f32 %v1568, 0.0
        %v1635 = vmax.f32 %v1570, 0.0
        %1636 = vst [vmem:[%s716] sm:$0xff] %v1572
        %1637 = vst [vmem:[%s716 + $0x8] sm:$0xff] %v1576
        %1638 = vst [vmem:[%s716 + $0x10] sm:$0xff] %v1580
        %1639 = vst [vmem:[%s716 + $0x18] sm:$0xff] %v1584
        %1640 = vst [vmem:[%s716 + $0x20] sm:$0xff] %v1588
        %1641 = vst [vmem:[%s716 + $0x28] sm:$0xff] %v1592
        %1642 = vst [vmem:[%s716 + $0x30] sm:$0xff] %v1596
        %1643 = vst [vmem:[%s716 + $0x38] sm:$0xff] %v1600
        %1644 = vst [vmem:[%s716 + $0x40] sm:$0xff] %v1604
        %1645 = vst [vmem:[%s716 + $0x48] sm:$0xff] %v1608
        %1646 = vst [vmem:[%s716 + $0x50] sm:$0xff] %v1612
        %1647 = vst [vmem:[%s716 + $0x58] sm:$0xff] %v1616
        %1648 = vst [vmem:[%s716 + $0x60] sm:$0xff] %v1620
        %1649 = vst [vmem:[%s716 + $0x68] sm:$0xff] %v1624
        %1650 = vst [vmem:[%s716 + $0x70] sm:$0xff] %v1628
        %1651 = vst [vmem:[%s716 + $0x78] sm:$0xff] %v1632
        %s1652 = scalar_lea.vmem %s716, 128
        %1653 = vst [vmem:[%s1652] sm:$0xff] %v1573
        %1654 = vst [vmem:[%s1652 + $0x8] sm:$0xff] %v1577
        %1655 = vst [vmem:[%s1652 + $0x10] sm:$0xff] %v1581
        %1656 = vst [vmem:[%s1652 + $0x18] sm:$0xff] %v1585
        %1657 = vst [vmem:[%s1652 + $0x20] sm:$0xff] %v1589
        %1658 = vst [vmem:[%s1652 + $0x28] sm:$0xff] %v1593
        %1659 = vst [vmem:[%s1652 + $0x30] sm:$0xff] %v1597
        %1660 = vst [vmem:[%s1652 + $0x38] sm:$0xff] %v1601
        %1661 = vst [vmem:[%s1652 + $0x40] sm:$0xff] %v1605
        %1662 = vst [vmem:[%s1652 + $0x48] sm:$0xff] %v1609
        %1663 = vst [vmem:[%s1652 + $0x50] sm:$0xff] %v1613
        %1664 = vst [vmem:[%s1652 + $0x58] sm:$0xff] %v1617
        %1665 = vst [vmem:[%s1652 + $0x60] sm:$0xff] %v1621
        %1666 = vst [vmem:[%s1652 + $0x68] sm:$0xff] %v1625
        %1667 = vst [vmem:[%s1652 + $0x70] sm:$0xff] %v1629
        %1668 = vst [vmem:[%s1652 + $0x78] sm:$0xff] %v1633
        %s1669 = scalar_lea.vmem %s716, 256
        %1670 = vst [vmem:[%s1669] sm:$0xff] %v1574
        %1671 = vst [vmem:[%s1669 + $0x8] sm:$0xff] %v1578
        %1672 = vst [vmem:[%s1669 + $0x10] sm:$0xff] %v1582
        %1673 = vst [vmem:[%s1669 + $0x18] sm:$0xff] %v1586
        %1674 = vst [vmem:[%s1669 + $0x20] sm:$0xff] %v1590
        %1675 = vst [vmem:[%s1669 + $0x28] sm:$0xff] %v1594
        %1676 = vst [vmem:[%s1669 + $0x30] sm:$0xff] %v1598
        %1677 = vst [vmem:[%s1669 + $0x38] sm:$0xff] %v1602
        %1678 = vst [vmem:[%s1669 + $0x40] sm:$0xff] %v1606
        %1679 = vst [vmem:[%s1669 + $0x48] sm:$0xff] %v1610
        %1680 = vst [vmem:[%s1669 + $0x50] sm:$0xff] %v1614
        %1681 = vst [vmem:[%s1669 + $0x58] sm:$0xff] %v1618
        %1682 = vst [vmem:[%s1669 + $0x60] sm:$0xff] %v1622
        %1683 = vst [vmem:[%s1669 + $0x68] sm:$0xff] %v1626
        %1684 = vst [vmem:[%s1669 + $0x70] sm:$0xff] %v1630
        %1685 = vst [vmem:[%s1669 + $0x78] sm:$0xff] %v1634
        %s1686 = scalar_lea.vmem %s716, 384
        %1687 = vst [vmem:[%s1686] sm:$0xff] %v1575
        %1688 = vst [vmem:[%s1686 + $0x8] sm:$0xff] %v1579
        %1689 = vst [vmem:[%s1686 + $0x10] sm:$0xff] %v1583
        %1690 = vst [vmem:[%s1686 + $0x18] sm:$0xff] %v1587
        %1691 = vst [vmem:[%s1686 + $0x20] sm:$0xff] %v1591
        %1692 = vst [vmem:[%s1686 + $0x28] sm:$0xff] %v1595
        %1693 = vst [vmem:[%s1686 + $0x30] sm:$0xff] %v1599
        %1694 = vst [vmem:[%s1686 + $0x38] sm:$0xff] %v1603
        %1695 = vst [vmem:[%s1686 + $0x40] sm:$0xff] %v1607
        %1696 = vst [vmem:[%s1686 + $0x48] sm:$0xff] %v1611
        %1697 = vst [vmem:[%s1686 + $0x50] sm:$0xff] %v1615
        %1698 = vst [vmem:[%s1686 + $0x58] sm:$0xff] %v1619
        %1699 = vst [vmem:[%s1686 + $0x60] sm:$0xff] %v1623
        %1700 = vst [vmem:[%s1686 + $0x68] sm:$0xff] %v1627
        %1701 = vst [vmem:[%s1686 + $0x70] sm:$0xff] %v1631
        %1702 = vst [vmem:[%s1686 + $0x78] sm:$0xff] %v1635
        %1767 = vrot.lane.b32.xlu0 %v1572, 127
        %v1768 = vpop.permute.xlu0 %1767
        %1769 = vrot.lane.b32.xlu0 %v1573, 127
        %v1770 = vpop.permute.xlu0 %1769
        %1771 = vrot.lane.b32.xlu0 %v1574, 127
        %v1772 = vpop.permute.xlu0 %1771
        %1773 = vrot.lane.b32.xlu0 %v1575, 127
        %v1774 = vpop.permute.xlu0 %1773
        %1775 = vrot.lane.b32.xlu0 %v1576, 127
        %v1776 = vpop.permute.xlu0 %1775
        %1777 = vrot.lane.b32.xlu0 %v1577, 127
        %v1778 = vpop.permute.xlu0 %1777
        %1779 = vrot.lane.b32.xlu0 %v1578, 127
        %v1780 = vpop.permute.xlu0 %1779
        %1781 = vrot.lane.b32.xlu0 %v1579, 127
        %v1782 = vpop.permute.xlu0 %1781
        %1783 = vrot.lane.b32.xlu0 %v1580, 127
        %v1784 = vpop.permute.xlu0 %1783
        %1785 = vrot.lane.b32.xlu0 %v1581, 127
        %v1786 = vpop.permute.xlu0 %1785
        %1787 = vrot.lane.b32.xlu0 %v1582, 127
        %v1788 = vpop.permute.xlu0 %1787
        %1789 = vrot.lane.b32.xlu0 %v1583, 127
        %v1790 = vpop.permute.xlu0 %1789
        %1791 = vrot.lane.b32.xlu0 %v1584, 127
        %v1792 = vpop.permute.xlu0 %1791
        %1793 = vrot.lane.b32.xlu0 %v1585, 127
        %v1794 = vpop.permute.xlu0 %1793
        %1795 = vrot.lane.b32.xlu0 %v1586, 127
        %v1796 = vpop.permute.xlu0 %1795
        %1797 = vrot.lane.b32.xlu0 %v1587, 127
        %v1798 = vpop.permute.xlu0 %1797
        %1799 = vrot.lane.b32.xlu0 %v1588, 127
        %v1800 = vpop.permute.xlu0 %1799
        %1801 = vrot.lane.b32.xlu0 %v1589, 127
        %v1802 = vpop.permute.xlu0 %1801
        %1803 = vrot.lane.b32.xlu0 %v1590, 127
        %v1804 = vpop.permute.xlu0 %1803
        %1805 = vrot.lane.b32.xlu0 %v1591, 127
        %v1806 = vpop.permute.xlu0 %1805
        %1807 = vrot.lane.b32.xlu0 %v1592, 127
        %v1808 = vpop.permute.xlu0 %1807
        %1809 = vrot.lane.b32.xlu0 %v1593, 127
        %v1810 = vpop.permute.xlu0 %1809
        %1811 = vrot.lane.b32.xlu0 %v1594, 127
        %v1812 = vpop.permute.xlu0 %1811
        %1813 = vrot.lane.b32.xlu0 %v1595, 127
        %v1814 = vpop.permute.xlu0 %1813
        %1815 = vrot.lane.b32.xlu0 %v1596, 127
        %v1816 = vpop.permute.xlu0 %1815
        %1817 = vrot.lane.b32.xlu0 %v1597, 127
        %v1818 = vpop.permute.xlu0 %1817
        %1819 = vrot.lane.b32.xlu0 %v1598, 127
        %v1820 = vpop.permute.xlu0 %1819
        %1821 = vrot.lane.b32.xlu0 %v1599, 127
        %v1822 = vpop.permute.xlu0 %1821
        %1823 = vrot.lane.b32.xlu0 %v1600, 127
        %v1824 = vpop.permute.xlu0 %1823
        %1825 = vrot.lane.b32.xlu0 %v1601, 127
        %v1826 = vpop.permute.xlu0 %1825
        %1827 = vrot.lane.b32.xlu0 %v1602, 127
        %v1828 = vpop.permute.xlu0 %1827
        %1829 = vrot.lane.b32.xlu0 %v1603, 127
        %v1830 = vpop.permute.xlu0 %1829
        %1831 = vrot.lane.b32.xlu0 %v1604, 127
        %v1832 = vpop.permute.xlu0 %1831
        %1833 = vrot.lane.b32.xlu0 %v1605, 127
        %v1834 = vpop.permute.xlu0 %1833
        %1835 = vrot.lane.b32.xlu0 %v1606, 127
        %v1836 = vpop.permute.xlu0 %1835
        %1837 = vrot.lane.b32.xlu0 %v1607, 127
        %v1838 = vpop.permute.xlu0 %1837
        %1839 = vrot.lane.b32.xlu0 %v1608, 127
        %v1840 = vpop.permute.xlu0 %1839
        %1841 = vrot.lane.b32.xlu0 %v1609, 127
        %v1842 = vpop.permute.xlu0 %1841
        %1843 = vrot.lane.b32.xlu0 %v1610, 127
        %v1844 = vpop.permute.xlu0 %1843
        %1845 = vrot.lane.b32.xlu0 %v1611, 127
        %v1846 = vpop.permute.xlu0 %1845
        %1847 = vrot.lane.b32.xlu0 %v1612, 127
        %v1848 = vpop.permute.xlu0 %1847
        %1849 = vrot.lane.b32.xlu0 %v1613, 127
        %v1850 = vpop.permute.xlu0 %1849
        %1851 = vrot.lane.b32.xlu0 %v1614, 127
        %v1852 = vpop.permute.xlu0 %1851
        %1853 = vrot.lane.b32.xlu0 %v1615, 127
        %v1854 = vpop.permute.xlu0 %1853
        %1855 = vrot.lane.b32.xlu0 %v1616, 127
        %v1856 = vpop.permute.xlu0 %1855
        %1857 = vrot.lane.b32.xlu0 %v1617, 127
        %v1858 = vpop.permute.xlu0 %1857
        %1859 = vrot.lane.b32.xlu0 %v1618, 127
        %v1860 = vpop.permute.xlu0 %1859
        %1861 = vrot.lane.b32.xlu0 %v1619, 127
        %v1862 = vpop.permute.xlu0 %1861
        %1863 = vrot.lane.b32.xlu0 %v1620, 127
        %v1864 = vpop.permute.xlu0 %1863
        %1865 = vrot.lane.b32.xlu0 %v1621, 127
        %v1866 = vpop.permute.xlu0 %1865
        %1867 = vrot.lane.b32.xlu0 %v1622, 127
        %v1868 = vpop.permute.xlu0 %1867
        %1869 = vrot.lane.b32.xlu0 %v1623, 127
        %v1870 = vpop.permute.xlu0 %1869
        %1871 = vrot.lane.b32.xlu0 %v1624, 127
        %v1872 = vpop.permute.xlu0 %1871
        %1873 = vrot.lane.b32.xlu0 %v1625, 127
        %v1874 = vpop.permute.xlu0 %1873
        %1875 = vrot.lane.b32.xlu0 %v1626, 127
        %v1876 = vpop.permute.xlu0 %1875
        %1877 = vrot.lane.b32.xlu0 %v1627, 127
        %v1878 = vpop.permute.xlu0 %1877
        %1879 = vrot.lane.b32.xlu0 %v1628, 127
        %v1880 = vpop.permute.xlu0 %1879
        %1881 = vrot.lane.b32.xlu0 %v1629, 127
        %v1882 = vpop.permute.xlu0 %1881
        %1883 = vrot.lane.b32.xlu0 %v1630, 127
        %v1884 = vpop.permute.xlu0 %1883
        %1885 = vrot.lane.b32.xlu0 %v1631, 127
        %v1886 = vpop.permute.xlu0 %1885
        %1887 = vrot.lane.b32.xlu0 %v1632, 127
        %v1888 = vpop.permute.xlu0 %1887
        %1889 = vrot.lane.b32.xlu0 %v1633, 127
        %v1890 = vpop.permute.xlu0 %1889
        %1891 = vrot.lane.b32.xlu0 %v1634, 127
        %v1892 = vpop.permute.xlu0 %1891
        %1893 = vrot.lane.b32.xlu0 %v1635, 127
        %v1894 = vpop.permute.xlu0 %1893
        %vm1895 = vcmask 1039360
        %v1896 = vsel %vm1895, %v1768, %v1770
        %v1897 = vsel %vm1895, %v1770, %v1772
        %v1898 = vsel %vm1895, %v1772, %v1774
        %v1899 = vsel %vm1895, %v1776, %v1778
        %v1900 = vsel %vm1895, %v1778, %v1780
        %v1901 = vsel %vm1895, %v1780, %v1782
        %v1902 = vsel %vm1895, %v1784, %v1786
        %v1903 = vsel %vm1895, %v1786, %v1788
        %v1904 = vsel %vm1895, %v1788, %v1790
        %v1905 = vsel %vm1895, %v1792, %v1794
        %v1906 = vsel %vm1895, %v1794, %v1796
        %v1907 = vsel %vm1895, %v1796, %v1798
        %v1908 = vsel %vm1895, %v1800, %v1802
        %v1909 = vsel %vm1895, %v1802, %v1804
        %v1910 = vsel %vm1895, %v1804, %v1806
        %v1911 = vsel %vm1895, %v1808, %v1810
        %v1912 = vsel %vm1895, %v1810, %v1812
        %v1913 = vsel %vm1895, %v1812, %v1814
        %v1914 = vsel %vm1895, %v1816, %v1818
        %v1915 = vsel %vm1895, %v1818, %v1820
        %v1916 = vsel %vm1895, %v1820, %v1822
        %v1917 = vsel %vm1895, %v1824, %v1826
        %v1918 = vsel %vm1895, %v1826, %v1828
        %v1919 = vsel %vm1895, %v1828, %v1830
        %v1920 = vsel %vm1895, %v1832, %v1834
        %v1921 = vsel %vm1895, %v1834, %v1836
        %v1922 = vsel %vm1895, %v1836, %v1838
        %v1923 = vsel %vm1895, %v1840, %v1842
        %v1924 = vsel %vm1895, %v1842, %v1844
        %v1925 = vsel %vm1895, %v1844, %v1846
        %v1926 = vsel %vm1895, %v1848, %v1850
        %v1927 = vsel %vm1895, %v1850, %v1852
        %v1928 = vsel %vm1895, %v1852, %v1854
        %v1929 = vsel %vm1895, %v1856, %v1858
        %v1930 = vsel %vm1895, %v1858, %v1860
        %v1931 = vsel %vm1895, %v1860, %v1862
        %v1932 = vsel %vm1895, %v1864, %v1866
        %v1933 = vsel %vm1895, %v1866, %v1868
        %v1934 = vsel %vm1895, %v1868, %v1870
        %v1935 = vsel %vm1895, %v1872, %v1874
        %v1936 = vsel %vm1895, %v1874, %v1876
        %v1937 = vsel %vm1895, %v1876, %v1878
        %v1938 = vsel %vm1895, %v1880, %v1882
        %v1939 = vsel %vm1895, %v1882, %v1884
        %v1940 = vsel %vm1895, %v1884, %v1886
        %v1941 = vsel %vm1895, %v1888, %v1890
        %v1942 = vsel %vm1895, %v1890, %v1892
        %v1943 = vsel %vm1895, %v1892, %v1894
        %v2008 = vmax.f32 %v1572, %v1896
        %v2009 = vmax.f32 %v1573, %v1897
        %v2010 = vmax.f32 %v1574, %v1898
        %v2011 = vmax.f32 %v1575, %v1774
        %v2012 = vmax.f32 %v1576, %v1899
        %v2013 = vmax.f32 %v1577, %v1900
        %v2014 = vmax.f32 %v1578, %v1901
        %v2015 = vmax.f32 %v1579, %v1782
        %v2016 = vmax.f32 %v1580, %v1902
        %v2017 = vmax.f32 %v1581, %v1903
        %v2018 = vmax.f32 %v1582, %v1904
        %v2019 = vmax.f32 %v1583, %v1790
        %v2020 = vmax.f32 %v1584, %v1905
        %v2021 = vmax.f32 %v1585, %v1906
        %v2022 = vmax.f32 %v1586, %v1907
        %v2023 = vmax.f32 %v1587, %v1798
        %v2024 = vmax.f32 %v1588, %v1908
        %v2025 = vmax.f32 %v1589, %v1909
        %v2026 = vmax.f32 %v1590, %v1910
        %v2027 = vmax.f32 %v1591, %v1806
        %v2028 = vmax.f32 %v1592, %v1911
        %v2029 = vmax.f32 %v1593, %v1912
        %v2030 = vmax.f32 %v1594, %v1913
        %v2031 = vmax.f32 %v1595, %v1814
        %v2032 = vmax.f32 %v1596, %v1914
        %v2033 = vmax.f32 %v1597, %v1915
        %v2034 = vmax.f32 %v1598, %v1916
        %v2035 = vmax.f32 %v1599, %v1822
        %v2036 = vmax.f32 %v1600, %v1917
        %v2037 = vmax.f32 %v1601, %v1918
        %v2038 = vmax.f32 %v1602, %v1919
        %v2039 = vmax.f32 %v1603, %v1830
        %v2040 = vmax.f32 %v1604, %v1920
        %v2041 = vmax.f32 %v1605, %v1921
        %v2042 = vmax.f32 %v1606, %v1922
        %v2043 = vmax.f32 %v1607, %v1838
        %v2044 = vmax.f32 %v1608, %v1923
        %v2045 = vmax.f32 %v1609, %v1924
        %v2046 = vmax.f32 %v1610, %v1925
        %v2047 = vmax.f32 %v1611, %v1846
        %v2048 = vmax.f32 %v1612, %v1926
        %v2049 = vmax.f32 %v1613, %v1927
        %v2050 = vmax.f32 %v1614, %v1928
        %v2051 = vmax.f32 %v1615, %v1854
        %v2052 = vmax.f32 %v1616, %v1929
        %v2053 = vmax.f32 %v1617, %v1930
        %v2054 = vmax.f32 %v1618, %v1931
        %v2055 = vmax.f32 %v1619, %v1862
        %v2056 = vmax.f32 %v1620, %v1932
        %v2057 = vmax.f32 %v1621, %v1933
        %v2058 = vmax.f32 %v1622, %v1934
        %v2059 = vmax.f32 %v1623, %v1870
        %v2060 = vmax.f32 %v1624, %v1935
        %v2061 = vmax.f32 %v1625, %v1936
        %v2062 = vmax.f32 %v1626, %v1937
        %v2063 = vmax.f32 %v1627, %v1878
        %v2064 = vmax.f32 %v1628, %v1938
        %v2065 = vmax.f32 %v1629, %v1939
        %v2066 = vmax.f32 %v1630, %v1940
        %v2067 = vmax.f32 %v1631, %v1886
        %v2068 = vmax.f32 %v1632, %v1941
        %v2069 = vmax.f32 %v1633, %v1942
        %v2070 = vmax.f32 %v1634, %v1943
        %v2071 = vmax.f32 %v1635, %v1894
        %2072 = vrot.lane.b32.xlu0 %v1572, 126
        %v2073 = vpop.permute.xlu0 %2072
        %2074 = vrot.lane.b32.xlu0 %v1573, 126
        %v2075 = vpop.permute.xlu0 %2074
        %2076 = vrot.lane.b32.xlu0 %v1574, 126
        %v2077 = vpop.permute.xlu0 %2076
        %2078 = vrot.lane.b32.xlu0 %v1575, 126
        %v2079 = vpop.permute.xlu0 %2078
        %2080 = vrot.lane.b32.xlu0 %v1576, 126
        %v2081 = vpop.permute.xlu0 %2080
        %2082 = vrot.lane.b32.xlu0 %v1577, 126
        %v2083 = vpop.permute.xlu0 %2082
        %2084 = vrot.lane.b32.xlu0 %v1578, 126
        %v2085 = vpop.permute.xlu0 %2084
        %2086 = vrot.lane.b32.xlu0 %v1579, 126
        %v2087 = vpop.permute.xlu0 %2086
        %2088 = vrot.lane.b32.xlu0 %v1580, 126
        %v2089 = vpop.permute.xlu0 %2088
        %2090 = vrot.lane.b32.xlu0 %v1581, 126
        %v2091 = vpop.permute.xlu0 %2090
        %2092 = vrot.lane.b32.xlu0 %v1582, 126
        %v2093 = vpop.permute.xlu0 %2092
        %2094 = vrot.lane.b32.xlu0 %v1583, 126
        %v2095 = vpop.permute.xlu0 %2094
        %2096 = vrot.lane.b32.xlu0 %v1584, 126
        %v2097 = vpop.permute.xlu0 %2096
        %2098 = vrot.lane.b32.xlu0 %v1585, 126
        %v2099 = vpop.permute.xlu0 %2098
        %2100 = vrot.lane.b32.xlu0 %v1586, 126
        %v2101 = vpop.permute.xlu0 %2100
        %2102 = vrot.lane.b32.xlu0 %v1587, 126
        %v2103 = vpop.permute.xlu0 %2102
        %2104 = vrot.lane.b32.xlu0 %v1588, 126
        %v2105 = vpop.permute.xlu0 %2104
        %2106 = vrot.lane.b32.xlu0 %v1589, 126
        %v2107 = vpop.permute.xlu0 %2106
        %2108 = vrot.lane.b32.xlu0 %v1590, 126
        %v2109 = vpop.permute.xlu0 %2108
        %2110 = vrot.lane.b32.xlu0 %v1591, 126
        %v2111 = vpop.permute.xlu0 %2110
        %2112 = vrot.lane.b32.xlu0 %v1592, 126
        %v2113 = vpop.permute.xlu0 %2112
        %2114 = vrot.lane.b32.xlu0 %v1593, 126
        %v2115 = vpop.permute.xlu0 %2114
        %2116 = vrot.lane.b32.xlu0 %v1594, 126
        %v2117 = vpop.permute.xlu0 %2116
        %2118 = vrot.lane.b32.xlu0 %v1595, 126
        %v2119 = vpop.permute.xlu0 %2118
        %2120 = vrot.lane.b32.xlu0 %v1596, 126
        %v2121 = vpop.permute.xlu0 %2120
        %2122 = vrot.lane.b32.xlu0 %v1597, 126
        %v2123 = vpop.permute.xlu0 %2122
        %2124 = vrot.lane.b32.xlu0 %v1598, 126
        %v2125 = vpop.permute.xlu0 %2124
        %2126 = vrot.lane.b32.xlu0 %v1599, 126
        %v2127 = vpop.permute.xlu0 %2126
        %2128 = vrot.lane.b32.xlu0 %v1600, 126
        %v2129 = vpop.permute.xlu0 %2128
        %2130 = vrot.lane.b32.xlu0 %v1601, 126
        %v2131 = vpop.permute.xlu0 %2130
        %2132 = vrot.lane.b32.xlu0 %v1602, 126
        %v2133 = vpop.permute.xlu0 %2132
        %2134 = vrot.lane.b32.xlu0 %v1603, 126
        %v2135 = vpop.permute.xlu0 %2134
        %2136 = vrot.lane.b32.xlu0 %v1604, 126
        %v2137 = vpop.permute.xlu0 %2136
        %2138 = vrot.lane.b32.xlu0 %v1605, 126
        %v2139 = vpop.permute.xlu0 %2138
        %2140 = vrot.lane.b32.xlu0 %v1606, 126
        %v2141 = vpop.permute.xlu0 %2140
        %2142 = vrot.lane.b32.xlu0 %v1607, 126
        %v2143 = vpop.permute.xlu0 %2142
        %2144 = vrot.lane.b32.xlu0 %v1608, 126
        %v2145 = vpop.permute.xlu0 %2144
        %2146 = vrot.lane.b32.xlu0 %v1609, 126
        %v2147 = vpop.permute.xlu0 %2146
        %2148 = vrot.lane.b32.xlu0 %v1610, 126
        %v2149 = vpop.permute.xlu0 %2148
        %2150 = vrot.lane.b32.xlu0 %v1611, 126
        %v2151 = vpop.permute.xlu0 %2150
        %2152 = vrot.lane.b32.xlu0 %v1612, 126
        %v2153 = vpop.permute.xlu0 %2152
        %2154 = vrot.lane.b32.xlu0 %v1613, 126
        %v2155 = vpop.permute.xlu0 %2154
        %2156 = vrot.lane.b32.xlu0 %v1614, 126
        %v2157 = vpop.permute.xlu0 %2156
        %2158 = vrot.lane.b32.xlu0 %v1615, 126
        %v2159 = vpop.permute.xlu0 %2158
        %2160 = vrot.lane.b32.xlu0 %v1616, 126
        %v2161 = vpop.permute.xlu0 %2160
        %2162 = vrot.lane.b32.xlu0 %v1617, 126
        %v2163 = vpop.permute.xlu0 %2162
        %2164 = vrot.lane.b32.xlu0 %v1618, 126
        %v2165 = vpop.permute.xlu0 %2164
        %2166 = vrot.lane.b32.xlu0 %v1619, 126
        %v2167 = vpop.permute.xlu0 %2166
        %2168 = vrot.lane.b32.xlu0 %v1620, 126
        %v2169 = vpop.permute.xlu0 %2168
        %2170 = vrot.lane.b32.xlu0 %v1621, 126
        %v2171 = vpop.permute.xlu0 %2170
        %2172 = vrot.lane.b32.xlu0 %v1622, 126
        %v2173 = vpop.permute.xlu0 %2172
        %2174 = vrot.lane.b32.xlu0 %v1623, 126
        %v2175 = vpop.permute.xlu0 %2174
        %2176 = vrot.lane.b32.xlu0 %v1624, 126
        %v2177 = vpop.permute.xlu0 %2176
        %2178 = vrot.lane.b32.xlu0 %v1625, 126
        %v2179 = vpop.permute.xlu0 %2178
        %2180 = vrot.lane.b32.xlu0 %v1626, 126
        %v2181 = vpop.permute.xlu0 %2180
        %2182 = vrot.lane.b32.xlu0 %v1627, 126
        %v2183 = vpop.permute.xlu0 %2182
        %2184 = vrot.lane.b32.xlu0 %v1628, 126
        %v2185 = vpop.permute.xlu0 %2184
        %2186 = vrot.lane.b32.xlu0 %v1629, 126
        %v2187 = vpop.permute.xlu0 %2186
        %2188 = vrot.lane.b32.xlu0 %v1630, 126
        %v2189 = vpop.permute.xlu0 %2188
        %2190 = vrot.lane.b32.xlu0 %v1631, 126
        %v2191 = vpop.permute.xlu0 %2190
        %2192 = vrot.lane.b32.xlu0 %v1632, 126
        %v2193 = vpop.permute.xlu0 %2192
        %2194 = vrot.lane.b32.xlu0 %v1633, 126
        %v2195 = vpop.permute.xlu0 %2194
        %2196 = vrot.lane.b32.xlu0 %v1634, 126
        %v2197 = vpop.permute.xlu0 %2196
        %2198 = vrot.lane.b32.xlu0 %v1635, 126
        %v2199 = vpop.permute.xlu0 %2198
        %vm2200 = vcmask 1031168
        %v2201 = vsel %vm2200, %v2073, %v2075
        %v2202 = vsel %vm2200, %v2075, %v2077
        %v2203 = vsel %vm2200, %v2077, %v2079
        %v2204 = vsel %vm2200, %v2081, %v2083
        %v2205 = vsel %vm2200, %v2083, %v2085
        %v2206 = vsel %vm2200, %v2085, %v2087
        %v2207 = vsel %vm2200, %v2089, %v2091
        %v2208 = vsel %vm2200, %v2091, %v2093
        %v2209 = vsel %vm2200, %v2093, %v2095
        %v2210 = vsel %vm2200, %v2097, %v2099
        %v2211 = vsel %vm2200, %v2099, %v2101
        %v2212 = vsel %vm2200, %v2101, %v2103
        %v2213 = vsel %vm2200, %v2105, %v2107
        %v2214 = vsel %vm2200, %v2107, %v2109
        %v2215 = vsel %vm2200, %v2109, %v2111
        %v2216 = vsel %vm2200, %v2113, %v2115
        %v2217 = vsel %vm2200, %v2115, %v2117
        %v2218 = vsel %vm2200, %v2117, %v2119
        %v2219 = vsel %vm2200, %v2121, %v2123
        %v2220 = vsel %vm2200, %v2123, %v2125
        %v2221 = vsel %vm2200, %v2125, %v2127
        %v2222 = vsel %vm2200, %v2129, %v2131
        %v2223 = vsel %vm2200, %v2131, %v2133
        %v2224 = vsel %vm2200, %v2133, %v2135
        %v2225 = vsel %vm2200, %v2137, %v2139
        %v2226 = vsel %vm2200, %v2139, %v2141
        %v2227 = vsel %vm2200, %v2141, %v2143
        %v2228 = vsel %vm2200, %v2145, %v2147
        %v2229 = vsel %vm2200, %v2147, %v2149
        %v2230 = vsel %vm2200, %v2149, %v2151
        %v2231 = vsel %vm2200, %v2153, %v2155
        %v2232 = vsel %vm2200, %v2155, %v2157
        %v2233 = vsel %vm2200, %v2157, %v2159
        %v2234 = vsel %vm2200, %v2161, %v2163
        %v2235 = vsel %vm2200, %v2163, %v2165
        %v2236 = vsel %vm2200, %v2165, %v2167
        %v2237 = vsel %vm2200, %v2169, %v2171
        %v2238 = vsel %vm2200, %v2171, %v2173
        %v2239 = vsel %vm2200, %v2173, %v2175
        %v2240 = vsel %vm2200, %v2177, %v2179
        %v2241 = vsel %vm2200, %v2179, %v2181
        %v2242 = vsel %vm2200, %v2181, %v2183
        %v2243 = vsel %vm2200, %v2185, %v2187
        %v2244 = vsel %vm2200, %v2187, %v2189
        %v2245 = vsel %vm2200, %v2189, %v2191
        %v2246 = vsel %vm2200, %v2193, %v2195
        %v2247 = vsel %vm2200, %v2195, %v2197
        %v2248 = vsel %vm2200, %v2197, %v2199
        %v2313 = vmax.f32 %v2008, %v2201
        %v2314 = vmax.f32 %v2009, %v2202
        %v2315 = vmax.f32 %v2010, %v2203
        %v2316 = vmax.f32 %v2011, %v2079
        %v2317 = vmax.f32 %v2012, %v2204
        %v2318 = vmax.f32 %v2013, %v2205
        %v2319 = vmax.f32 %v2014, %v2206
        %v2320 = vmax.f32 %v2015, %v2087
        %v2321 = vmax.f32 %v2016, %v2207
        %v2322 = vmax.f32 %v2017, %v2208
        %v2323 = vmax.f32 %v2018, %v2209
        %v2324 = vmax.f32 %v2019, %v2095
        %v2325 = vmax.f32 %v2020, %v2210
        %v2326 = vmax.f32 %v2021, %v2211
        %v2327 = vmax.f32 %v2022, %v2212
        %v2328 = vmax.f32 %v2023, %v2103
        %v2329 = vmax.f32 %v2024, %v2213
        %v2330 = vmax.f32 %v2025, %v2214
        %v2331 = vmax.f32 %v2026, %v2215
        %v2332 = vmax.f32 %v2027, %v2111
        %v2333 = vmax.f32 %v2028, %v2216
        %v2334 = vmax.f32 %v2029, %v2217
        %v2335 = vmax.f32 %v2030, %v2218
        %v2336 = vmax.f32 %v2031, %v2119
        %v2337 = vmax.f32 %v2032, %v2219
        %v2338 = vmax.f32 %v2033, %v2220
        %v2339 = vmax.f32 %v2034, %v2221
        %v2340 = vmax.f32 %v2035, %v2127
        %v2341 = vmax.f32 %v2036, %v2222
        %v2342 = vmax.f32 %v2037, %v2223
        %v2343 = vmax.f32 %v2038, %v2224
        %v2344 = vmax.f32 %v2039, %v2135
        %v2345 = vmax.f32 %v2040, %v2225
        %v2346 = vmax.f32 %v2041, %v2226
        %v2347 = vmax.f32 %v2042, %v2227
        %v2348 = vmax.f32 %v2043, %v2143
        %v2349 = vmax.f32 %v2044, %v2228
        %v2350 = vmax.f32 %v2045, %v2229
        %v2351 = vmax.f32 %v2046, %v2230
        %v2352 = vmax.f32 %v2047, %v2151
        %v2353 = vmax.f32 %v2048, %v2231
        %v2354 = vmax.f32 %v2049, %v2232
        %v2355 = vmax.f32 %v2050, %v2233
        %v2356 = vmax.f32 %v2051, %v2159
        %v2357 = vmax.f32 %v2052, %v2234
        %v2358 = vmax.f32 %v2053, %v2235
        %v2359 = vmax.f32 %v2054, %v2236
        %v2360 = vmax.f32 %v2055, %v2167
        %v2361 = vmax.f32 %v2056, %v2237
        %v2362 = vmax.f32 %v2057, %v2238
        %v2363 = vmax.f32 %v2058, %v2239
        %v2364 = vmax.f32 %v2059, %v2175
        %v2365 = vmax.f32 %v2060, %v2240
        %v2366 = vmax.f32 %v2061, %v2241
        %v2367 = vmax.f32 %v2062, %v2242
        %v2368 = vmax.f32 %v2063, %v2183
        %v2369 = vmax.f32 %v2064, %v2243
        %v2370 = vmax.f32 %v2065, %v2244
        %v2371 = vmax.f32 %v2066, %v2245
        %v2372 = vmax.f32 %v2067, %v2191
        %v2373 = vmax.f32 %v2068, %v2246
        %v2374 = vmax.f32 %v2069, %v2247
        %v2375 = vmax.f32 %v2070, %v2248
        %v2376 = vmax.f32 %v2071, %v2199
        %2377 = vrot.lane.b32.xlu0 %v1572, 125
        %v2378 = vpop.permute.xlu0 %2377
        %2379 = vrot.lane.b32.xlu0 %v1573, 125
        %v2380 = vpop.permute.xlu0 %2379
        %2381 = vrot.lane.b32.xlu0 %v1574, 125
        %v2382 = vpop.permute.xlu0 %2381
        %2383 = vrot.lane.b32.xlu0 %v1575, 125
        %v2384 = vpop.permute.xlu0 %2383
        %2385 = vrot.lane.b32.xlu0 %v1576, 125
        %v2386 = vpop.permute.xlu0 %2385
        %2387 = vrot.lane.b32.xlu0 %v1577, 125
        %v2388 = vpop.permute.xlu0 %2387
        %2389 = vrot.lane.b32.xlu0 %v1578, 125
        %v2390 = vpop.permute.xlu0 %2389
        %2391 = vrot.lane.b32.xlu0 %v1579, 125
        %v2392 = vpop.permute.xlu0 %2391
        %2393 = vrot.lane.b32.xlu0 %v1580, 125
        %v2394 = vpop.permute.xlu0 %2393
        %2395 = vrot.lane.b32.xlu0 %v1581, 125
        %v2396 = vpop.permute.xlu0 %2395
        %2397 = vrot.lane.b32.xlu0 %v1582, 125
        %v2398 = vpop.permute.xlu0 %2397
        %2399 = vrot.lane.b32.xlu0 %v1583, 125
        %v2400 = vpop.permute.xlu0 %2399
        %2401 = vrot.lane.b32.xlu0 %v1584, 125
        %v2402 = vpop.permute.xlu0 %2401
        %2403 = vrot.lane.b32.xlu0 %v1585, 125
        %v2404 = vpop.permute.xlu0 %2403
        %2405 = vrot.lane.b32.xlu0 %v1586, 125
        %v2406 = vpop.permute.xlu0 %2405
        %2407 = vrot.lane.b32.xlu0 %v1587, 125
        %v2408 = vpop.permute.xlu0 %2407
        %2409 = vrot.lane.b32.xlu0 %v1588, 125
        %v2410 = vpop.permute.xlu0 %2409
        %2411 = vrot.lane.b32.xlu0 %v1589, 125
        %v2412 = vpop.permute.xlu0 %2411
        %2413 = vrot.lane.b32.xlu0 %v1590, 125
        %v2414 = vpop.permute.xlu0 %2413
        %2415 = vrot.lane.b32.xlu0 %v1591, 125
        %v2416 = vpop.permute.xlu0 %2415
        %2417 = vrot.lane.b32.xlu0 %v1592, 125
        %v2418 = vpop.permute.xlu0 %2417
        %2419 = vrot.lane.b32.xlu0 %v1593, 125
        %v2420 = vpop.permute.xlu0 %2419
        %2421 = vrot.lane.b32.xlu0 %v1594, 125
        %v2422 = vpop.permute.xlu0 %2421
        %2423 = vrot.lane.b32.xlu0 %v1595, 125
        %v2424 = vpop.permute.xlu0 %2423
        %2425 = vrot.lane.b32.xlu0 %v1596, 125
        %v2426 = vpop.permute.xlu0 %2425
        %2427 = vrot.lane.b32.xlu0 %v1597, 125
        %v2428 = vpop.permute.xlu0 %2427
        %2429 = vrot.lane.b32.xlu0 %v1598, 125
        %v2430 = vpop.permute.xlu0 %2429
        %2431 = vrot.lane.b32.xlu0 %v1599, 125
        %v2432 = vpop.permute.xlu0 %2431
        %2433 = vrot.lane.b32.xlu0 %v1600, 125
        %v2434 = vpop.permute.xlu0 %2433
        %2435 = vrot.lane.b32.xlu0 %v1601, 125
        %v2436 = vpop.permute.xlu0 %2435
        %2437 = vrot.lane.b32.xlu0 %v1602, 125
        %v2438 = vpop.permute.xlu0 %2437
        %2439 = vrot.lane.b32.xlu0 %v1603, 125
        %v2440 = vpop.permute.xlu0 %2439
        %2441 = vrot.lane.b32.xlu0 %v1604, 125
        %v2442 = vpop.permute.xlu0 %2441
        %2443 = vrot.lane.b32.xlu0 %v1605, 125
        %v2444 = vpop.permute.xlu0 %2443
        %2445 = vrot.lane.b32.xlu0 %v1606, 125
        %v2446 = vpop.permute.xlu0 %2445
        %2447 = vrot.lane.b32.xlu0 %v1607, 125
        %v2448 = vpop.permute.xlu0 %2447
        %2449 = vrot.lane.b32.xlu0 %v1608, 125
        %v2450 = vpop.permute.xlu0 %2449
        %2451 = vrot.lane.b32.xlu0 %v1609, 125
        %v2452 = vpop.permute.xlu0 %2451
        %2453 = vrot.lane.b32.xlu0 %v1610, 125
        %v2454 = vpop.permute.xlu0 %2453
        %2455 = vrot.lane.b32.xlu0 %v1611, 125
        %v2456 = vpop.permute.xlu0 %2455
        %2457 = vrot.lane.b32.xlu0 %v1612, 125
        %v2458 = vpop.permute.xlu0 %2457
        %2459 = vrot.lane.b32.xlu0 %v1613, 125
        %v2460 = vpop.permute.xlu0 %2459
        %2461 = vrot.lane.b32.xlu0 %v1614, 125
        %v2462 = vpop.permute.xlu0 %2461
        %2463 = vrot.lane.b32.xlu0 %v1615, 125
        %v2464 = vpop.permute.xlu0 %2463
        %2465 = vrot.lane.b32.xlu0 %v1616, 125
        %v2466 = vpop.permute.xlu0 %2465
        %2467 = vrot.lane.b32.xlu0 %v1617, 125
        %v2468 = vpop.permute.xlu0 %2467
        %2469 = vrot.lane.b32.xlu0 %v1618, 125
        %v2470 = vpop.permute.xlu0 %2469
        %2471 = vrot.lane.b32.xlu0 %v1619, 125
        %v2472 = vpop.permute.xlu0 %2471
        %2473 = vrot.lane.b32.xlu0 %v1620, 125
        %v2474 = vpop.permute.xlu0 %2473
        %2475 = vrot.lane.b32.xlu0 %v1621, 125
        %v2476 = vpop.permute.xlu0 %2475
        %2477 = vrot.lane.b32.xlu0 %v1622, 125
        %v2478 = vpop.permute.xlu0 %2477
        %2479 = vrot.lane.b32.xlu0 %v1623, 125
        %v2480 = vpop.permute.xlu0 %2479
        %2481 = vrot.lane.b32.xlu0 %v1624, 125
        %v2482 = vpop.permute.xlu0 %2481
        %2483 = vrot.lane.b32.xlu0 %v1625, 125
        %v2484 = vpop.permute.xlu0 %2483
        %2485 = vrot.lane.b32.xlu0 %v1626, 125
        %v2486 = vpop.permute.xlu0 %2485
        %2487 = vrot.lane.b32.xlu0 %v1627, 125
        %v2488 = vpop.permute.xlu0 %2487
        %2489 = vrot.lane.b32.xlu0 %v1628, 125
        %v2490 = vpop.permute.xlu0 %2489
        %2491 = vrot.lane.b32.xlu0 %v1629, 125
        %v2492 = vpop.permute.xlu0 %2491
        %2493 = vrot.lane.b32.xlu0 %v1630, 125
        %v2494 = vpop.permute.xlu0 %2493
        %2495 = vrot.lane.b32.xlu0 %v1631, 125
        %v2496 = vpop.permute.xlu0 %2495
        %2497 = vrot.lane.b32.xlu0 %v1632, 125
        %v2498 = vpop.permute.xlu0 %2497
        %2499 = vrot.lane.b32.xlu0 %v1633, 125
        %v2500 = vpop.permute.xlu0 %2499
        %2501 = vrot.lane.b32.xlu0 %v1634, 125
        %v2502 = vpop.permute.xlu0 %2501
        %2503 = vrot.lane.b32.xlu0 %v1635, 125
        %v2504 = vpop.permute.xlu0 %2503
        %vm2505 = vcmask 1022976
        %v2506 = vsel %vm2505, %v2378, %v2380
        %v2507 = vsel %vm2505, %v2380, %v2382
        %v2508 = vsel %vm2505, %v2382, %v2384
        %v2509 = vsel %vm2505, %v2386, %v2388
        %v2510 = vsel %vm2505, %v2388, %v2390
        %v2511 = vsel %vm2505, %v2390, %v2392
        %v2512 = vsel %vm2505, %v2394, %v2396
        %v2513 = vsel %vm2505, %v2396, %v2398
        %v2514 = vsel %vm2505, %v2398, %v2400
        %v2515 = vsel %vm2505, %v2402, %v2404
        %v2516 = vsel %vm2505, %v2404, %v2406
        %v2517 = vsel %vm2505, %v2406, %v2408
        %v2518 = vsel %vm2505, %v2410, %v2412
        %v2519 = vsel %vm2505, %v2412, %v2414
        %v2520 = vsel %vm2505, %v2414, %v2416
        %v2521 = vsel %vm2505, %v2418, %v2420
        %v2522 = vsel %vm2505, %v2420, %v2422
        %v2523 = vsel %vm2505, %v2422, %v2424
        %v2524 = vsel %vm2505, %v2426, %v2428
        %v2525 = vsel %vm2505, %v2428, %v2430
        %v2526 = vsel %vm2505, %v2430, %v2432
        %v2527 = vsel %vm2505, %v2434, %v2436
        %v2528 = vsel %vm2505, %v2436, %v2438
        %v2529 = vsel %vm2505, %v2438, %v2440
        %v2530 = vsel %vm2505, %v2442, %v2444
        %v2531 = vsel %vm2505, %v2444, %v2446
        %v2532 = vsel %vm2505, %v2446, %v2448
        %v2533 = vsel %vm2505, %v2450, %v2452
        %v2534 = vsel %vm2505, %v2452, %v2454
        %v2535 = vsel %vm2505, %v2454, %v2456
        %v2536 = vsel %vm2505, %v2458, %v2460
        %v2537 = vsel %vm2505, %v2460, %v2462
        %v2538 = vsel %vm2505, %v2462, %v2464
        %v2539 = vsel %vm2505, %v2466, %v2468
        %v2540 = vsel %vm2505, %v2468, %v2470
        %v2541 = vsel %vm2505, %v2470, %v2472
        %v2542 = vsel %vm2505, %v2474, %v2476
        %v2543 = vsel %vm2505, %v2476, %v2478
        %v2544 = vsel %vm2505, %v2478, %v2480
        %v2545 = vsel %vm2505, %v2482, %v2484
        %v2546 = vsel %vm2505, %v2484, %v2486
        %v2547 = vsel %vm2505, %v2486, %v2488
        %v2548 = vsel %vm2505, %v2490, %v2492
        %v2549 = vsel %vm2505, %v2492, %v2494
        %v2550 = vsel %vm2505, %v2494, %v2496
        %v2551 = vsel %vm2505, %v2498, %v2500
        %v2552 = vsel %vm2505, %v2500, %v2502
        %v2553 = vsel %vm2505, %v2502, %v2504
        %v2618 = vmax.f32 %v2313, %v2506
        %v2619 = vmax.f32 %v2314, %v2507
        %v2620 = vmax.f32 %v2315, %v2508
        %v2621 = vmax.f32 %v2316, %v2384
        %v2622 = vmax.f32 %v2317, %v2509
        %v2623 = vmax.f32 %v2318, %v2510
        %v2624 = vmax.f32 %v2319, %v2511
        %v2625 = vmax.f32 %v2320, %v2392
        %v2626 = vmax.f32 %v2321, %v2512
        %v2627 = vmax.f32 %v2322, %v2513
        %v2628 = vmax.f32 %v2323, %v2514
        %v2629 = vmax.f32 %v2324, %v2400
        %v2630 = vmax.f32 %v2325, %v2515
        %v2631 = vmax.f32 %v2326, %v2516
        %v2632 = vmax.f32 %v2327, %v2517
        %v2633 = vmax.f32 %v2328, %v2408
        %v2634 = vmax.f32 %v2329, %v2518
        %v2635 = vmax.f32 %v2330, %v2519
        %v2636 = vmax.f32 %v2331, %v2520
        %v2637 = vmax.f32 %v2332, %v2416
        %v2638 = vmax.f32 %v2333, %v2521
        %v2639 = vmax.f32 %v2334, %v2522
        %v2640 = vmax.f32 %v2335, %v2523
        %v2641 = vmax.f32 %v2336, %v2424
        %v2642 = vmax.f32 %v2337, %v2524
        %v2643 = vmax.f32 %v2338, %v2525
        %v2644 = vmax.f32 %v2339, %v2526
        %v2645 = vmax.f32 %v2340, %v2432
        %v2646 = vmax.f32 %v2341, %v2527
        %v2647 = vmax.f32 %v2342, %v2528
        %v2648 = vmax.f32 %v2343, %v2529
        %v2649 = vmax.f32 %v2344, %v2440
        %v2650 = vmax.f32 %v2345, %v2530
        %v2651 = vmax.f32 %v2346, %v2531
        %v2652 = vmax.f32 %v2347, %v2532
        %v2653 = vmax.f32 %v2348, %v2448
        %v2654 = vmax.f32 %v2349, %v2533
        %v2655 = vmax.f32 %v2350, %v2534
        %v2656 = vmax.f32 %v2351, %v2535
        %v2657 = vmax.f32 %v2352, %v2456
        %v2658 = vmax.f32 %v2353, %v2536
        %v2659 = vmax.f32 %v2354, %v2537
        %v2660 = vmax.f32 %v2355, %v2538
        %v2661 = vmax.f32 %v2356, %v2464
        %v2662 = vmax.f32 %v2357, %v2539
        %v2663 = vmax.f32 %v2358, %v2540
        %v2664 = vmax.f32 %v2359, %v2541
        %v2665 = vmax.f32 %v2360, %v2472
        %v2666 = vmax.f32 %v2361, %v2542
        %v2667 = vmax.f32 %v2362, %v2543
        %v2668 = vmax.f32 %v2363, %v2544
        %v2669 = vmax.f32 %v2364, %v2480
        %v2670 = vmax.f32 %v2365, %v2545
        %v2671 = vmax.f32 %v2366, %v2546
        %v2672 = vmax.f32 %v2367, %v2547
        %v2673 = vmax.f32 %v2368, %v2488
        %v2674 = vmax.f32 %v2369, %v2548
        %v2675 = vmax.f32 %v2370, %v2549
        %v2676 = vmax.f32 %v2371, %v2550
        %v2677 = vmax.f32 %v2372, %v2496
        %v2678 = vmax.f32 %v2373, %v2551
        %v2679 = vmax.f32 %v2374, %v2552
        %v2680 = vmax.f32 %v2375, %v2553
        %v2681 = vmax.f32 %v2376, %v2504
        %v2682 = vpack.c.bf16 %v2622, %v2618
        %v2683 = vpack.c.bf16 %v2623, %v2619
        %v2684 = vpack.c.bf16 %v2624, %v2620
        %v2685 = vpack.c.bf16 %v2625, %v2621
        %v2686 = vpack.c.bf16 %v2630, %v2626
        %v2687 = vpack.c.bf16 %v2631, %v2627
        %v2688 = vpack.c.bf16 %v2632, %v2628
        %v2689 = vpack.c.bf16 %v2633, %v2629
        %v2690 = vpack.c.bf16 %v2638, %v2634
        %v2691 = vpack.c.bf16 %v2639, %v2635
        %v2692 = vpack.c.bf16 %v2640, %v2636
        %v2693 = vpack.c.bf16 %v2641, %v2637
        %v2694 = vpack.c.bf16 %v2646, %v2642
        %v2695 = vpack.c.bf16 %v2647, %v2643
        %v2696 = vpack.c.bf16 %v2648, %v2644
        %v2697 = vpack.c.bf16 %v2649, %v2645
        %v2698 = vpack.c.bf16 %v2654, %v2650
        %v2699 = vpack.c.bf16 %v2655, %v2651
        %v2700 = vpack.c.bf16 %v2656, %v2652
        %v2701 = vpack.c.bf16 %v2657, %v2653
        %v2702 = vpack.c.bf16 %v2662, %v2658
        %v2703 = vpack.c.bf16 %v2663, %v2659
        %v2704 = vpack.c.bf16 %v2664, %v2660
        %v2705 = vpack.c.bf16 %v2665, %v2661
        %v2706 = vpack.c.bf16 %v2670, %v2666
        %v2707 = vpack.c.bf16 %v2671, %v2667
        %v2708 = vpack.c.bf16 %v2672, %v2668
        %v2709 = vpack.c.bf16 %v2673, %v2669
        %v2710 = vpack.c.bf16 %v2678, %v2674
        %v2711 = vpack.c.bf16 %v2679, %v2675
        %v2712 = vpack.c.bf16 %v2680, %v2676
        %v2713 = vpack.c.bf16 %v2681, %v2677
        %v2714 = vld [vmem:[%s13] sm:$0xf]
        %v2715 = vld [vmem:[%s13 + $0x4] sm:$0xf]
        %v2716 = vld [vmem:[%s13 + $0x8] sm:$0xf]
        %v2717 = vld [vmem:[%s13 + $0xc] sm:$0xf]
        %v2718 = vld [vmem:[%s13 + $0x10] sm:$0xf]
        %v2719 = vld [vmem:[%s13 + $0x14] sm:$0xf]
        %v2720 = vld [vmem:[%s13 + $0x18] sm:$0xf]
        %v2721 = vld [vmem:[%s13 + $0x1c] sm:$0xf]
        %v2722 = vld [vmem:[%s13 + $0x20] sm:$0xf]
        %v2723 = vld [vmem:[%s13 + $0x24] sm:$0xf]
        %v2724 = vld [vmem:[%s13 + $0x28] sm:$0xf]
        %v2725 = vld [vmem:[%s13 + $0x2c] sm:$0xf]
        %v2726 = vld [vmem:[%s13 + $0x30] sm:$0xf]
        %v2727 = vld [vmem:[%s13 + $0x34] sm:$0xf]
        %v2728 = vld [vmem:[%s13 + $0x38] sm:$0xf]
        %v2729 = vld [vmem:[%s13 + $0x3c] sm:$0xf]
        %v2730 = vld [vmem:[%s13 + $0x40] sm:$0xf]
        %v2731 = vld [vmem:[%s13 + $0x44] sm:$0xf]
        %v2732 = vld [vmem:[%s13 + $0x48] sm:$0xf]
        %v2733 = vld [vmem:[%s13 + $0x4c] sm:$0xf]
        %v2734 = vld [vmem:[%s13 + $0x50] sm:$0xf]
        %v2735 = vld [vmem:[%s13 + $0x54] sm:$0xf]
        %v2736 = vld [vmem:[%s13 + $0x58] sm:$0xf]
        %v2737 = vld [vmem:[%s13 + $0x5c] sm:$0xf]
        %v2738 = vld [vmem:[%s13 + $0x60] sm:$0xf]
        %v2739 = vld [vmem:[%s13 + $0x64] sm:$0xf]
        %v2740 = vld [vmem:[%s13 + $0x68] sm:$0xf]
        %v2741 = vld [vmem:[%s13 + $0x6c] sm:$0xf]
        %v2742 = vld [vmem:[%s13 + $0x70] sm:$0xf]
        %v2743 = vld [vmem:[%s13 + $0x74] sm:$0xf]
        %v2744 = vld [vmem:[%s13 + $0x78] sm:$0xf]
        %v2745 = vld [vmem:[%s13 + $0x7c] sm:$0xf]
        %v2746 = vld [vmem:[%s13 + $0x80] sm:$0xf]
        %v2747 = vld [vmem:[%s13 + $0x84] sm:$0xf]
        %v2748 = vld [vmem:[%s13 + $0x88] sm:$0xf]
        %v2749 = vld [vmem:[%s13 + $0x8c] sm:$0xf]
        %v2750 = vld [vmem:[%s13 + $0x90] sm:$0xf]
        %v2751 = vld [vmem:[%s13 + $0x94] sm:$0xf]
        %v2752 = vld [vmem:[%s13 + $0x98] sm:$0xf]
        %v2753 = vld [vmem:[%s13 + $0x9c] sm:$0xf]
        %v2754 = vld [vmem:[%s13 + $0xa0] sm:$0xf]
        %v2755 = vld [vmem:[%s13 + $0xa4] sm:$0xf]
        %v2756 = vld [vmem:[%s13 + $0xa8] sm:$0xf]
        %v2757 = vld [vmem:[%s13 + $0xac] sm:$0xf]
        %v2758 = vld [vmem:[%s13 + $0xb0] sm:$0xf]
        %v2759 = vld [vmem:[%s13 + $0xb4] sm:$0xf]
        %v2760 = vld [vmem:[%s13 + $0xb8] sm:$0xf]
        %v2761 = vld [vmem:[%s13 + $0xbc] sm:$0xf]
        %v2762 = vld [vmem:[%s13 + $0xc0] sm:$0xf]
        %v2763 = vld [vmem:[%s13 + $0xc4] sm:$0xf]
        %v2764 = vld [vmem:[%s13 + $0xc8] sm:$0xf]
        %v2765 = vld [vmem:[%s13 + $0xcc] sm:$0xf]
        %v2766 = vld [vmem:[%s13 + $0xd0] sm:$0xf]
        %v2767 = vld [vmem:[%s13 + $0xd4] sm:$0xf]
        %v2768 = vld [vmem:[%s13 + $0xd8] sm:$0xf]
        %v2769 = vld [vmem:[%s13 + $0xdc] sm:$0xf]
        %v2770 = vld [vmem:[%s13 + $0xe0] sm:$0xf]
        %v2771 = vld [vmem:[%s13 + $0xe4] sm:$0xf]
        %v2772 = vld [vmem:[%s13 + $0xe8] sm:$0xf]
        %v2773 = vld [vmem:[%s13 + $0xec] sm:$0xf]
        %v2774 = vld [vmem:[%s13 + $0xf0] sm:$0xf]
        %v2775 = vld [vmem:[%s13 + $0xf4] sm:$0xf]
        %v2776 = vld [vmem:[%s13 + $0xf8] sm:$0xf]
        %v2777 = vld [vmem:[%s13 + $0xfc] sm:$0x7]
        %v2842 = vunpack.c.l.b16 %v2714
        %v2843 = vunpack.c.l.b16 %v2715
        %v2844 = vunpack.c.l.b16 %v2716
        %v2845 = vunpack.c.l.b16 %v2717
        %v2846 = vunpack.c.l.b16 %v2718
        %v2847 = vunpack.c.l.b16 %v2719
        %v2848 = vunpack.c.l.b16 %v2720
        %v2849 = vunpack.c.l.b16 %v2721
        %v2850 = vunpack.c.l.b16 %v2722
        %v2851 = vunpack.c.l.b16 %v2723
        %v2852 = vunpack.c.l.b16 %v2724
        %v2853 = vunpack.c.l.b16 %v2725
        %v2854 = vunpack.c.l.b16 %v2726
        %v2855 = vunpack.c.l.b16 %v2727
        %v2856 = vunpack.c.l.b16 %v2728
        %v2857 = vunpack.c.l.b16 %v2729
        %v2858 = vunpack.c.l.b16 %v2730
        %v2859 = vunpack.c.l.b16 %v2731
        %v2860 = vunpack.c.l.b16 %v2732
        %v2861 = vunpack.c.l.b16 %v2733
        %v2862 = vunpack.c.l.b16 %v2734
        %v2863 = vunpack.c.l.b16 %v2735
        %v2864 = vunpack.c.l.b16 %v2736
        %v2865 = vunpack.c.l.b16 %v2737
        %v2866 = vunpack.c.l.b16 %v2738
        %v2867 = vunpack.c.l.b16 %v2739
        %v2868 = vunpack.c.l.b16 %v2740
        %v2869 = vunpack.c.l.b16 %v2741
        %v2870 = vunpack.c.l.b16 %v2742
        %v2871 = vunpack.c.l.b16 %v2743
        %v2872 = vunpack.c.l.b16 %v2744
        %v2873 = vunpack.c.l.b16 %v2745
        %v2874 = vunpack.c.l.b16 %v2746
        %v2875 = vunpack.c.l.b16 %v2747
        %v2876 = vunpack.c.l.b16 %v2748
        %v2877 = vunpack.c.l.b16 %v2749
        %v2878 = vunpack.c.l.b16 %v2750
        %v2879 = vunpack.c.l.b16 %v2751
        %v2880 = vunpack.c.l.b16 %v2752
        %v2881 = vunpack.c.l.b16 %v2753
        %v2882 = vunpack.c.l.b16 %v2754
        %v2883 = vunpack.c.l.b16 %v2755
        %v2884 = vunpack.c.l.b16 %v2756
        %v2885 = vunpack.c.l.b16 %v2757
        %v2886 = vunpack.c.l.b16 %v2758
        %v2887 = vunpack.c.l.b16 %v2759
        %v2888 = vunpack.c.l.b16 %v2760
        %v2889 = vunpack.c.l.b16 %v2761
        %v2890 = vunpack.c.l.b16 %v2762
        %v2891 = vunpack.c.l.b16 %v2763
        %v2892 = vunpack.c.l.b16 %v2764
        %v2893 = vunpack.c.l.b16 %v2765
        %v2894 = vunpack.c.l.b16 %v2766
        %v2895 = vunpack.c.l.b16 %v2767
        %v2896 = vunpack.c.l.b16 %v2768
        %v2897 = vunpack.c.l.b16 %v2769
        %v2898 = vunpack.c.l.b16 %v2770
        %v2899 = vunpack.c.l.b16 %v2771
        %v2900 = vunpack.c.l.b16 %v2772
        %v2901 = vunpack.c.l.b16 %v2773
        %v2902 = vunpack.c.l.b16 %v2774
        %v2903 = vunpack.c.l.b16 %v2775
        %v2904 = vunpack.c.l.b16 %v2776
        %v2905 = vunpack.c.l.b16 %v2777
        %v2906 = vpack.c.b16 %v2843, %v2842
        %v2907 = vpack.c.b16 %v2845, %v2844
        %v2908 = vpack.c.b16 %v2847, %v2846
        %v2909 = vpack.c.b16 %v2849, %v2848
        %v2910 = vpack.c.b16 %v2851, %v2850
        %v2911 = vpack.c.b16 %v2853, %v2852
        %v2912 = vpack.c.b16 %v2855, %v2854
        %v2913 = vpack.c.b16 %v2857, %v2856
        %v2914 = vpack.c.b16 %v2859, %v2858
        %v2915 = vpack.c.b16 %v2861, %v2860
        %v2916 = vpack.c.b16 %v2863, %v2862
        %v2917 = vpack.c.b16 %v2865, %v2864
        %v2918 = vpack.c.b16 %v2867, %v2866
        %v2919 = vpack.c.b16 %v2869, %v2868
        %v2920 = vpack.c.b16 %v2871, %v2870
        %v2921 = vpack.c.b16 %v2873, %v2872
        %v2922 = vpack.c.b16 %v2875, %v2874
        %v2923 = vpack.c.b16 %v2877, %v2876
        %v2924 = vpack.c.b16 %v2879, %v2878
        %v2925 = vpack.c.b16 %v2881, %v2880
        %v2926 = vpack.c.b16 %v2883, %v2882
        %v2927 = vpack.c.b16 %v2885, %v2884
        %v2928 = vpack.c.b16 %v2887, %v2886
        %v2929 = vpack.c.b16 %v2889, %v2888
        %v2930 = vpack.c.b16 %v2891, %v2890
        %v2931 = vpack.c.b16 %v2893, %v2892
        %v2932 = vpack.c.b16 %v2895, %v2894
        %v2933 = vpack.c.b16 %v2897, %v2896
        %v2934 = vpack.c.b16 %v2899, %v2898
        %v2935 = vpack.c.b16 %v2901, %v2900
        %v2936 = vpack.c.b16 %v2903, %v2902
        %v2937 = vpack.c.b16 %v2905, %v2904
        %v2970 = vsel %vm2505, %v2685, 0
        %v2973 = vsel %vm2505, %v2689, 0
        %v2976 = vsel %vm2505, %v2693, 0
        %v2979 = vsel %vm2505, %v2697, 0
        %v2982 = vsel %vm2505, %v2701, 0
        %v2985 = vsel %vm2505, %v2705, 0
        %v2988 = vsel %vm2505, %v2709, 0
        %v2991 = vsel %vm2505, %v2713, 0
        %vm2993 = vcmask 1045504
        %vm2994 = vcmask 1046528
        %v2995 = vsel %vm2993, 4294967295, 65535
        %v2996 = vsel %vm2994, %v2995, 0
        %v2998 = vand.u32 %v2937, %v2996
        %3000 = vmatprep.subr.bf16.mxu0 0
        %3001 = vmatpush1.bf16.msra.mxu0 %v2913
        %3002 = vmatprep.subr.bf16.mxu0 0
        %3003 = vmatpush1.bf16.msra.mxu0 %v2912
        %3004 = vmatprep.subr.bf16.mxu0 0
        %3005 = vmatpush1.bf16.msra.mxu0 %v2911
        %3006 = vmatprep.subr.bf16.mxu0 0
        %3007 = vmatpush1.bf16.msra.mxu0 %v2910
        %3008 = vmatprep.subr.bf16.mxu0 0
        %3009 = vmatpush1.bf16.msra.mxu0 %v2909
        %3010 = vmatprep.subr.bf16.mxu0 0
        %3011 = vmatpush1.bf16.msra.mxu0 %v2908
        %3012 = vmatprep.subr.bf16.mxu0 0
        %3013 = vmatpush1.bf16.msra.mxu0 %v2907
        %3014 = vmatprep.subr.bf16.mxu0 0
        %3015 = vmatpush1.bf16.msra.mxu0 %v2906
        %3016 = vmatprep.subr.bf16.mxu0 0
        %3017 = vmatpush2.bf16.msra.mxu0 %v2921
        %3018 = vmatprep.subr.bf16.mxu0 0
        %3019 = vmatpush2.bf16.msra.mxu0 %v2920
        %3020 = vmatprep.subr.bf16.mxu0 0
        %3021 = vmatpush2.bf16.msra.mxu0 %v2919
        %3022 = vmatprep.subr.bf16.mxu0 0
        %3023 = vmatpush2.bf16.msra.mxu0 %v2918
        %3024 = vmatprep.subr.bf16.mxu0 0
        %3025 = vmatpush2.bf16.msra.mxu0 %v2917
        %3026 = vmatprep.subr.bf16.mxu0 0
        %3027 = vmatpush2.bf16.msra.mxu0 %v2916
        %3028 = vmatprep.subr.bf16.mxu0 0
        %3029 = vmatpush2.bf16.msra.mxu0 %v2915
        %3030 = vmatprep.subr.bf16.mxu0 0
        %3031 = vmatpush2.bf16.msra.mxu0 %v2914
        %3032 = vmatprep.mubr.bf16.mxu0 %v2683
        %3033 = vmatmul.mubr.bf16.gmra.mxu0 %v2682
        %v3034 = vpop.f32.mrf.mxu0
        %v3035 = vadd.f32 0.0, %v3034
        %v3036 = vpop.f32.mrf.mxu0
        %v3037 = vpop.f32.mrf.mxu0
        %v3038 = vadd.f32 0.0, %v3037
        %v3039 = vpop.f32.mrf.mxu0
        %3040 = vmatprep.mubr.bf16.mxu0 %v2687
        %3041 = vmatmul.mubr.bf16.gmra.mxu0 %v2686
        %v3042 = vpop.f32.mrf.mxu0
        %v3043 = vadd.f32 0.0, %v3042
        %v3044 = vpop.f32.mrf.mxu0
        %v3045 = vpop.f32.mrf.mxu0
        %v3046 = vadd.f32 0.0, %v3045
        %v3047 = vpop.f32.mrf.mxu0
        %3048 = vmatprep.mubr.bf16.mxu0 %v2691
        %3049 = vmatmul.mubr.bf16.gmra.mxu0 %v2690
        %v3050 = vpop.f32.mrf.mxu0
        %v3051 = vadd.f32 0.0, %v3050
        %v3052 = vpop.f32.mrf.mxu0
        %v3053 = vpop.f32.mrf.mxu0
        %v3054 = vadd.f32 0.0, %v3053
        %v3055 = vpop.f32.mrf.mxu0
        %3056 = vmatprep.mubr.bf16.mxu0 %v2695
        %3057 = vmatmul.mubr.bf16.gmra.mxu0 %v2694
        %v3058 = vpop.f32.mrf.mxu0
        %v3059 = vadd.f32 0.0, %v3058
        %v3060 = vpop.f32.mrf.mxu0
        %v3061 = vpop.f32.mrf.mxu0
        %v3062 = vadd.f32 0.0, %v3061
        %v3063 = vpop.f32.mrf.mxu0
        %3064 = vmatprep.mubr.bf16.mxu0 %v2699
        %3065 = vmatmul.mubr.bf16.gmra.mxu0 %v2698
        %v3066 = vpop.f32.mrf.mxu0
        %v3067 = vadd.f32 0.0, %v3066
        %v3068 = vpop.f32.mrf.mxu0
        %v3069 = vpop.f32.mrf.mxu0
        %v3070 = vadd.f32 0.0, %v3069
        %v3071 = vpop.f32.mrf.mxu0
        %3072 = vmatprep.mubr.bf16.mxu0 %v2703
        %3073 = vmatmul.mubr.bf16.gmra.mxu0 %v2702
        %v3074 = vpop.f32.mrf.mxu0
        %v3075 = vadd.f32 0.0, %v3074
        %v3076 = vpop.f32.mrf.mxu0
        %v3077 = vpop.f32.mrf.mxu0
        %v3078 = vadd.f32 0.0, %v3077
        %v3079 = vpop.f32.mrf.mxu0
        %3080 = vmatprep.mubr.bf16.mxu0 %v2707
        %3081 = vmatmul.mubr.bf16.gmra.mxu0 %v2706
        %v3082 = vpop.f32.mrf.mxu0
        %v3083 = vadd.f32 0.0, %v3082
        %v3084 = vpop.f32.mrf.mxu0
        %v3085 = vpop.f32.mrf.mxu0
        %v3086 = vadd.f32 0.0, %v3085
        %v3087 = vpop.f32.mrf.mxu0
        %3088 = vmatprep.mubr.bf16.mxu0 %v2711
        %3089 = vmatmul.mubr.bf16.gmra.mxu0 %v2710
        %v3090 = vpop.f32.mrf.mxu0
        %v3091 = vadd.f32 0.0, %v3090
        %v3092 = vpop.f32.mrf.mxu0
        %v3093 = vpop.f32.mrf.mxu0
        %v3094 = vadd.f32 0.0, %v3093
        %v3095 = vpop.f32.mrf.mxu0
        %3096 = vdwg.mxu0
        %3097 = vmatprep.subr.bf16.mxu0 0
        %3098 = vmatpush1.bf16.msra.mxu0 %v2929
        %3099 = vmatprep.subr.bf16.mxu0 0
        %3100 = vmatpush1.bf16.msra.mxu0 %v2928
        %3101 = vmatprep.subr.bf16.mxu0 0
        %3102 = vmatpush1.bf16.msra.mxu0 %v2927
        %3103 = vmatprep.subr.bf16.mxu0 0
        %3104 = vmatpush1.bf16.msra.mxu0 %v2926
        %3105 = vmatprep.subr.bf16.mxu0 0
        %3106 = vmatpush1.bf16.msra.mxu0 %v2925
        %3107 = vmatprep.subr.bf16.mxu0 0
        %3108 = vmatpush1.bf16.msra.mxu0 %v2924
        %3109 = vmatprep.subr.bf16.mxu0 0
        %3110 = vmatpush1.bf16.msra.mxu0 %v2923
        %3111 = vmatprep.subr.bf16.mxu0 0
        %3112 = vmatpush1.bf16.msra.mxu0 %v2922
        %3113 = vmatprep.subr.bf16.mxu0 0
        %3114 = vmatpush2.bf16.msra.mxu0 %v2998
        %3115 = vmatprep.subr.bf16.mxu0 0
        %3116 = vmatpush2.bf16.msra.mxu0 %v2936
        %3117 = vmatprep.subr.bf16.mxu0 0
        %3118 = vmatpush2.bf16.msra.mxu0 %v2935
        %3119 = vmatprep.subr.bf16.mxu0 0
        %3120 = vmatpush2.bf16.msra.mxu0 %v2934
        %3121 = vmatprep.subr.bf16.mxu0 0
        %3122 = vmatpush2.bf16.msra.mxu0 %v2933
        %3123 = vmatprep.subr.bf16.mxu0 0
        %3124 = vmatpush2.bf16.msra.mxu0 %v2932
        %3125 = vmatprep.subr.bf16.mxu0 0
        %3126 = vmatpush2.bf16.msra.mxu0 %v2931
        %3127 = vmatprep.subr.bf16.mxu0 0
        %3128 = vmatpush2.bf16.msra.mxu0 %v2930
        %3129 = vmatprep.mubr.bf16.mxu0 %v2970
        %3130 = vmatmul.mubr.bf16.gmra.mxu0 %v2684
        %v3131 = vpop.f32.mrf.mxu0
        %v3132 = vadd.f32 %v3035, %v3131
        %v3133 = vpop.f32.mrf.mxu0
        %v3134 = vpop.f32.mrf.mxu0
        %v3135 = vadd.f32 %v3038, %v3134
        %v3136 = vpop.f32.mrf.mxu0
        %3137 = vmatprep.mubr.bf16.mxu0 %v2973
        %3138 = vmatmul.mubr.bf16.gmra.mxu0 %v2688
        %v3139 = vpop.f32.mrf.mxu0
        %v3140 = vadd.f32 %v3043, %v3139
        %v3141 = vpop.f32.mrf.mxu0
        %v3142 = vpop.f32.mrf.mxu0
        %v3143 = vadd.f32 %v3046, %v3142
        %v3144 = vpop.f32.mrf.mxu0
        %3145 = vmatprep.mubr.bf16.mxu0 %v2976
        %3146 = vmatmul.mubr.bf16.gmra.mxu0 %v2692
        %v3147 = vpop.f32.mrf.mxu0
        %v3148 = vadd.f32 %v3051, %v3147
        %v3149 = vpop.f32.mrf.mxu0
        %v3150 = vpop.f32.mrf.mxu0
        %v3151 = vadd.f32 %v3054, %v3150
        %v3152 = vpop.f32.mrf.mxu0
        %3153 = vmatprep.mubr.bf16.mxu0 %v2979
        %3154 = vmatmul.mubr.bf16.gmra.mxu0 %v2696
        %v3155 = vpop.f32.mrf.mxu0
        %v3156 = vadd.f32 %v3059, %v3155
        %v3157 = vpop.f32.mrf.mxu0
        %v3158 = vpop.f32.mrf.mxu0
        %v3159 = vadd.f32 %v3062, %v3158
        %v3160 = vpop.f32.mrf.mxu0
        %3161 = vmatprep.mubr.bf16.mxu0 %v2982
        %3162 = vmatmul.mubr.bf16.gmra.mxu0 %v2700
        %v3163 = vpop.f32.mrf.mxu0
        %v3164 = vadd.f32 %v3067, %v3163
        %v3165 = vpop.f32.mrf.mxu0
        %v3166 = vpop.f32.mrf.mxu0
        %v3167 = vadd.f32 %v3070, %v3166
        %v3168 = vpop.f32.mrf.mxu0
        %3169 = vmatprep.mubr.bf16.mxu0 %v2985
        %3170 = vmatmul.mubr.bf16.gmra.mxu0 %v2704
        %v3171 = vpop.f32.mrf.mxu0
        %v3172 = vadd.f32 %v3075, %v3171
        %v3173 = vpop.f32.mrf.mxu0
        %v3174 = vpop.f32.mrf.mxu0
        %v3175 = vadd.f32 %v3078, %v3174
        %v3176 = vpop.f32.mrf.mxu0
        %3177 = vmatprep.mubr.bf16.mxu0 %v2988
        %3178 = vmatmul.mubr.bf16.gmra.mxu0 %v2708
        %v3179 = vpop.f32.mrf.mxu0
        %v3180 = vadd.f32 %v3083, %v3179
        %v3181 = vpop.f32.mrf.mxu0
        %v3182 = vpop.f32.mrf.mxu0
        %v3183 = vadd.f32 %v3086, %v3182
        %v3184 = vpop.f32.mrf.mxu0
        %3185 = vmatprep.mubr.bf16.mxu0 %v2991
        %3186 = vmatmul.mubr.bf16.gmra.mxu0 %v2712
        %v3187 = vpop.f32.mrf.mxu0
        %v3188 = vadd.f32 %v3091, %v3187
        %v3189 = vpop.f32.mrf.mxu0
        %v3190 = vpop.f32.mrf.mxu0
        %v3191 = vadd.f32 %v3094, %v3190
        %v3192 = vpop.f32.mrf.mxu0
        %3193 = vdwg.mxu0
        %v3194 = vpack.c.bf16 %v3135, %v3132
        %v3195 = vpack.c.bf16 %v3143, %v3140
        %v3196 = vpack.c.bf16 %v3151, %v3148
        %v3197 = vpack.c.bf16 %v3159, %v3156
        %v3198 = vpack.c.bf16 %v3167, %v3164
        %v3199 = vpack.c.bf16 %v3175, %v3172
        %v3200 = vpack.c.bf16 %v3183, %v3180
        %v3201 = vpack.c.bf16 %v3191, %v3188
        %v3210 = vunpack.c.l.b16 %v3194
        %v3211 = vunpack.c.h.b16 %v3194
        %v3212 = vunpack.c.l.b16 %v3195
        %v3213 = vunpack.c.h.b16 %v3195
        %v3214 = vunpack.c.l.b16 %v3196
        %v3215 = vunpack.c.h.b16 %v3196
        %v3216 = vunpack.c.l.b16 %v3197
        %v3217 = vunpack.c.h.b16 %v3197
        %v3218 = vunpack.c.l.b16 %v3198
        %v3219 = vunpack.c.h.b16 %v3198
        %v3220 = vunpack.c.l.b16 %v3199
        %v3221 = vunpack.c.h.b16 %v3199
        %v3222 = vunpack.c.l.b16 %v3200
        %v3223 = vunpack.c.h.b16 %v3200
        %v3224 = vunpack.c.l.b16 %v3201
        %v3225 = vunpack.c.h.b16 %v3201
        %v3226 = vpack.c.b16 %v3210, %v3210
        %v3227 = vpack.c.b16 %v3211, %v3211
        %v3228 = vpack.c.b16 %v3212, %v3212
        %v3229 = vpack.c.b16 %v3213, %v3213
        %v3230 = vpack.c.b16 %v3214, %v3214
        %v3231 = vpack.c.b16 %v3215, %v3215
        %v3232 = vpack.c.b16 %v3216, %v3216
        %v3233 = vpack.c.b16 %v3217, %v3217
        %v3234 = vpack.c.b16 %v3218, %v3218
        %v3235 = vpack.c.b16 %v3219, %v3219
        %v3236 = vpack.c.b16 %v3220, %v3220
        %v3237 = vpack.c.b16 %v3221, %v3221
        %v3238 = vpack.c.b16 %v3222, %v3222
        %v3239 = vpack.c.b16 %v3223, %v3223
        %v3240 = vpack.c.b16 %v3224, %v3224
        %v3241 = vpack.c.b16 %v3225, %v3225
        %vm3258 = vcmask 199680
        %3259 = vst.msk [vmem:[#allocation3] sm:$0xf] %vm3258, %v3226
        %3260 = vst.msk [vmem:[#allocation3 + $0x4] sm:$0xf] %vm3258, %v3227
        %3261 = vst.msk [vmem:[#allocation3 + $0x8] sm:$0xf] %vm3258, %v3228
        %3262 = vst.msk [vmem:[#allocation3 + $0xc] sm:$0xf] %vm3258, %v3229
        %3263 = vst.msk [vmem:[#allocation3 + $0x10] sm:$0xf] %vm3258, %v3230
        %3264 = vst.msk [vmem:[#allocation3 + $0x14] sm:$0xf] %vm3258, %v3231
        %3265 = vst.msk [vmem:[#allocation3 + $0x18] sm:$0xf] %vm3258, %v3232
        %3266 = vst.msk [vmem:[#allocation3 + $0x1c] sm:$0xf] %vm3258, %v3233
        %3267 = vst.msk [vmem:[#allocation3 + $0x20] sm:$0xf] %vm3258, %v3234
        %3268 = vst.msk [vmem:[#allocation3 + $0x24] sm:$0xf] %vm3258, %v3235
        %3269 = vst.msk [vmem:[#allocation3 + $0x28] sm:$0xf] %vm3258, %v3236
        %3270 = vst.msk [vmem:[#allocation3 + $0x2c] sm:$0xf] %vm3258, %v3237
        %3271 = vst.msk [vmem:[#allocation3 + $0x30] sm:$0xf] %vm3258, %v3238
        %3272 = vst.msk [vmem:[#allocation3 + $0x34] sm:$0xf] %vm3258, %v3239
        %3273 = vst.msk [vmem:[#allocation3 + $0x38] sm:$0xf] %vm3258, %v3240
        %3274 = vst.msk [vmem:[#allocation3 + $0x3c] sm:$0xf] %vm3258, %v3241
        %3275 = vrot.lane.b32.xlu0 %v3226, 127
        %v3276 = vpop.permute.xlu0 %3275
        %3277 = vrot.lane.b32.xlu0 %v3227, 127
        %v3278 = vpop.permute.xlu0 %3277
        %3279 = vrot.lane.b32.xlu0 %v3228, 127
        %v3280 = vpop.permute.xlu0 %3279
        %3281 = vrot.lane.b32.xlu0 %v3229, 127
        %v3282 = vpop.permute.xlu0 %3281
        %3283 = vrot.lane.b32.xlu0 %v3230, 127
        %v3284 = vpop.permute.xlu0 %3283
        %3285 = vrot.lane.b32.xlu0 %v3231, 127
        %v3286 = vpop.permute.xlu0 %3285
        %3287 = vrot.lane.b32.xlu0 %v3232, 127
        %v3288 = vpop.permute.xlu0 %3287
        %3289 = vrot.lane.b32.xlu0 %v3233, 127
        %v3290 = vpop.permute.xlu0 %3289
        %3291 = vrot.lane.b32.xlu0 %v3234, 127
        %v3292 = vpop.permute.xlu0 %3291
        %3293 = vrot.lane.b32.xlu0 %v3235, 127
        %v3294 = vpop.permute.xlu0 %3293
        %3295 = vrot.lane.b32.xlu0 %v3236, 127
        %v3296 = vpop.permute.xlu0 %3295
        %3297 = vrot.lane.b32.xlu0 %v3237, 127
        %v3298 = vpop.permute.xlu0 %3297
        %3299 = vrot.lane.b32.xlu0 %v3238, 127
        %v3300 = vpop.permute.xlu0 %3299
        %3301 = vrot.lane.b32.xlu0 %v3239, 127
        %v3302 = vpop.permute.xlu0 %3301
        %3303 = vrot.lane.b32.xlu0 %v3240, 127
        %v3304 = vpop.permute.xlu0 %3303
        %3305 = vrot.lane.b32.xlu0 %v3241, 127
        %v3306 = vpop.permute.xlu0 %3305
        %3323 = vst.msk [vmem:[#allocation3 + $0x40] sm:$0xf] %vm3258, %v3276
        %3324 = vst.msk [vmem:[#allocation3 + $0x44] sm:$0xf] %vm3258, %v3278
        %3325 = vst.msk [vmem:[#allocation3 + $0x48] sm:$0xf] %vm3258, %v3280
        %3326 = vst.msk [vmem:[#allocation3 + $0x4c] sm:$0xf] %vm3258, %v3282
        %3327 = vst.msk [vmem:[#allocation3 + $0x50] sm:$0xf] %vm3258, %v3284
        %3328 = vst.msk [vmem:[#allocation3 + $0x54] sm:$0xf] %vm3258, %v3286
        %3329 = vst.msk [vmem:[#allocation3 + $0x58] sm:$0xf] %vm3258, %v3288
        %3330 = vst.msk [vmem:[#allocation3 + $0x5c] sm:$0xf] %vm3258, %v3290
        %3331 = vst.msk [vmem:[#allocation3 + $0x60] sm:$0xf] %vm3258, %v3292
        %3332 = vst.msk [vmem:[#allocation3 + $0x64] sm:$0xf] %vm3258, %v3294
        %3333 = vst.msk [vmem:[#allocation3 + $0x68] sm:$0xf] %vm3258, %v3296
        %3334 = vst.msk [vmem:[#allocation3 + $0x6c] sm:$0xf] %vm3258, %v3298
        %3335 = vst.msk [vmem:[#allocation3 + $0x70] sm:$0xf] %vm3258, %v3300
        %3336 = vst.msk [vmem:[#allocation3 + $0x74] sm:$0xf] %vm3258, %v3302
        %3337 = vst.msk [vmem:[#allocation3 + $0x78] sm:$0xf] %vm3258, %v3304
        %3338 = vst.msk [vmem:[#allocation3 + $0x7c] sm:$0xf] %vm3258, %v3306
        %3339 = vrot.lane.b32.xlu0 %v3226, 126
        %v3340 = vpop.permute.xlu0 %3339
        %3341 = vrot.lane.b32.xlu0 %v3227, 126
        %v3342 = vpop.permute.xlu0 %3341
        %3343 = vrot.lane.b32.xlu0 %v3228, 126
        %v3344 = vpop.permute.xlu0 %3343
        %3345 = vrot.lane.b32.xlu0 %v3229, 126
        %v3346 = vpop.permute.xlu0 %3345
        %3347 = vrot.lane.b32.xlu0 %v3230, 126
        %v3348 = vpop.permute.xlu0 %3347
        %3349 = vrot.lane.b32.xlu0 %v3231, 126
        %v3350 = vpop.permute.xlu0 %3349
        %3351 = vrot.lane.b32.xlu0 %v3232, 126
        %v3352 = vpop.permute.xlu0 %3351
        %3353 = vrot.lane.b32.xlu0 %v3233, 126
        %v3354 = vpop.permute.xlu0 %3353
        %3355 = vrot.lane.b32.xlu0 %v3234, 126
        %v3356 = vpop.permute.xlu0 %3355
        %3357 = vrot.lane.b32.xlu0 %v3235, 126
        %v3358 = vpop.permute.xlu0 %3357
        %3359 = vrot.lane.b32.xlu0 %v3236, 126
        %v3360 = vpop.permute.xlu0 %3359
        %3361 = vrot.lane.b32.xlu0 %v3237, 126
        %v3362 = vpop.permute.xlu0 %3361
        %3363 = vrot.lane.b32.xlu0 %v3238, 126
        %v3364 = vpop.permute.xlu0 %3363
        %3365 = vrot.lane.b32.xlu0 %v3239, 126
        %v3366 = vpop.permute.xlu0 %3365
        %3367 = vrot.lane.b32.xlu0 %v3240, 126
        %v3368 = vpop.permute.xlu0 %3367
        %3369 = vrot.lane.b32.xlu0 %v3241, 126
        %v3370 = vpop.permute.xlu0 %3369
        %3387 = vst.msk [vmem:[#allocation3 + $0x80] sm:$0xf] %vm3258, %v3340
        %3388 = vst.msk [vmem:[#allocation3 + $0x84] sm:$0xf] %vm3258, %v3342
        %3389 = vst.msk [vmem:[#allocation3 + $0x88] sm:$0xf] %vm3258, %v3344
        %3390 = vst.msk [vmem:[#allocation3 + $0x8c] sm:$0xf] %vm3258, %v3346
        %3391 = vst.msk [vmem:[#allocation3 + $0x90] sm:$0xf] %vm3258, %v3348
        %3392 = vst.msk [vmem:[#allocation3 + $0x94] sm:$0xf] %vm3258, %v3350
        %3393 = vst.msk [vmem:[#allocation3 + $0x98] sm:$0xf] %vm3258, %v3352
        %3394 = vst.msk [vmem:[#allocation3 + $0x9c] sm:$0xf] %vm3258, %v3354
        %3395 = vst.msk [vmem:[#allocation3 + $0xa0] sm:$0xf] %vm3258, %v3356
        %3396 = vst.msk [vmem:[#allocation3 + $0xa4] sm:$0xf] %vm3258, %v3358
        %3397 = vst.msk [vmem:[#allocation3 + $0xa8] sm:$0xf] %vm3258, %v3360
        %3398 = vst.msk [vmem:[#allocation3 + $0xac] sm:$0xf] %vm3258, %v3362
        %3399 = vst.msk [vmem:[#allocation3 + $0xb0] sm:$0xf] %vm3258, %v3364
        %3400 = vst.msk [vmem:[#allocation3 + $0xb4] sm:$0xf] %vm3258, %v3366
        %3401 = vst.msk [vmem:[#allocation3 + $0xb8] sm:$0xf] %vm3258, %v3368
        %3402 = vst.msk [vmem:[#allocation3 + $0xbc] sm:$0xf] %vm3258, %v3370
        %3403 = vrot.lane.b32.xlu0 %v3226, 125
        %v3404 = vpop.permute.xlu0 %3403
        %3405 = vrot.lane.b32.xlu0 %v3227, 125
        %v3406 = vpop.permute.xlu0 %3405
        %3407 = vrot.lane.b32.xlu0 %v3228, 125
        %v3408 = vpop.permute.xlu0 %3407
        %3409 = vrot.lane.b32.xlu0 %v3229, 125
        %v3410 = vpop.permute.xlu0 %3409
        %3411 = vrot.lane.b32.xlu0 %v3230, 125
        %v3412 = vpop.permute.xlu0 %3411
        %3413 = vrot.lane.b32.xlu0 %v3231, 125
        %v3414 = vpop.permute.xlu0 %3413
        %3415 = vrot.lane.b32.xlu0 %v3232, 125
        %v3416 = vpop.permute.xlu0 %3415
        %3417 = vrot.lane.b32.xlu0 %v3233, 125
        %v3418 = vpop.permute.xlu0 %3417
        %3419 = vrot.lane.b32.xlu0 %v3234, 125
        %v3420 = vpop.permute.xlu0 %3419
        %3421 = vrot.lane.b32.xlu0 %v3235, 125
        %v3422 = vpop.permute.xlu0 %3421
        %3423 = vrot.lane.b32.xlu0 %v3236, 125
        %v3424 = vpop.permute.xlu0 %3423
        %3425 = vrot.lane.b32.xlu0 %v3237, 125
        %v3426 = vpop.permute.xlu0 %3425
        %3427 = vrot.lane.b32.xlu0 %v3238, 125
        %v3428 = vpop.permute.xlu0 %3427
        %3429 = vrot.lane.b32.xlu0 %v3239, 125
        %v3430 = vpop.permute.xlu0 %3429
        %3431 = vrot.lane.b32.xlu0 %v3240, 125
        %v3432 = vpop.permute.xlu0 %3431
        %3433 = vrot.lane.b32.xlu0 %v3241, 125
        %v3434 = vpop.permute.xlu0 %3433
        %3451 = vst.msk [vmem:[#allocation3 + $0xc0] sm:$0xf] %vm3258, %v3404
        %3452 = vst.msk [vmem:[#allocation3 + $0xc4] sm:$0xf] %vm3258, %v3406
        %3453 = vst.msk [vmem:[#allocation3 + $0xc8] sm:$0xf] %vm3258, %v3408
        %3454 = vst.msk [vmem:[#allocation3 + $0xcc] sm:$0xf] %vm3258, %v3410
        %3455 = vst.msk [vmem:[#allocation3 + $0xd0] sm:$0xf] %vm3258, %v3412
        %3456 = vst.msk [vmem:[#allocation3 + $0xd4] sm:$0xf] %vm3258, %v3414
        %3457 = vst.msk [vmem:[#allocation3 + $0xd8] sm:$0xf] %vm3258, %v3416
        %3458 = vst.msk [vmem:[#allocation3 + $0xdc] sm:$0xf] %vm3258, %v3418
        %3459 = vst.msk [vmem:[#allocation3 + $0xe0] sm:$0xf] %vm3258, %v3420
        %3460 = vst.msk [vmem:[#allocation3 + $0xe4] sm:$0xf] %vm3258, %v3422
        %3461 = vst.msk [vmem:[#allocation3 + $0xe8] sm:$0xf] %vm3258, %v3424
        %3462 = vst.msk [vmem:[#allocation3 + $0xec] sm:$0xf] %vm3258, %v3426
        %3463 = vst.msk [vmem:[#allocation3 + $0xf0] sm:$0xf] %vm3258, %v3428
        %3464 = vst.msk [vmem:[#allocation3 + $0xf4] sm:$0xf] %vm3258, %v3430
        %3465 = vst.msk [vmem:[#allocation3 + $0xf8] sm:$0xf] %vm3258, %v3432
        %3466 = vst.msk [vmem:[#allocation3 + $0xfc] sm:$0xf] %vm3258, %v3434
        %3467 = vrot.lane.b32.xlu0 %v3226, 124
        %v3468 = vpop.permute.xlu0 %3467
        %3469 = vrot.lane.b32.xlu0 %v3227, 124
        %v3470 = vpop.permute.xlu0 %3469
        %3471 = vrot.lane.b32.xlu0 %v3228, 124
        %v3472 = vpop.permute.xlu0 %3471
        %3473 = vrot.lane.b32.xlu0 %v3229, 124
        %v3474 = vpop.permute.xlu0 %3473
        %3475 = vrot.lane.b32.xlu0 %v3230, 124
        %v3476 = vpop.permute.xlu0 %3475
        %3477 = vrot.lane.b32.xlu0 %v3231, 124
        %v3478 = vpop.permute.xlu0 %3477
        %3479 = vrot.lane.b32.xlu0 %v3232, 124
        %v3480 = vpop.permute.xlu0 %3479
        %3481 = vrot.lane.b32.xlu0 %v3233, 124
        %v3482 = vpop.permute.xlu0 %3481
        %3483 = vrot.lane.b32.xlu0 %v3234, 124
        %v3484 = vpop.permute.xlu0 %3483
        %3485 = vrot.lane.b32.xlu0 %v3235, 124
        %v3486 = vpop.permute.xlu0 %3485
        %3487 = vrot.lane.b32.xlu0 %v3236, 124
        %v3488 = vpop.permute.xlu0 %3487
        %3489 = vrot.lane.b32.xlu0 %v3237, 124
        %v3490 = vpop.permute.xlu0 %3489
        %3491 = vrot.lane.b32.xlu0 %v3238, 124
        %v3492 = vpop.permute.xlu0 %3491
        %3493 = vrot.lane.b32.xlu0 %v3239, 124
        %v3494 = vpop.permute.xlu0 %3493
        %3495 = vrot.lane.b32.xlu0 %v3240, 124
        %v3496 = vpop.permute.xlu0 %3495
        %3497 = vrot.lane.b32.xlu0 %v3241, 124
        %v3498 = vpop.permute.xlu0 %3497
        %3515 = vst.msk [vmem:[#allocation3 + $0x100] sm:$0xf] %vm3258, %v3468
        %3516 = vst.msk [vmem:[#allocation3 + $0x104] sm:$0xf] %vm3258, %v3470
        %3517 = vst.msk [vmem:[#allocation3 + $0x108] sm:$0xf] %vm3258, %v3472
        %3518 = vst.msk [vmem:[#allocation3 + $0x10c] sm:$0xf] %vm3258, %v3474
        %3519 = vst.msk [vmem:[#allocation3 + $0x110] sm:$0xf] %vm3258, %v3476
        %3520 = vst.msk [vmem:[#allocation3 + $0x114] sm:$0xf] %vm3258, %v3478
        %3521 = vst.msk [vmem:[#allocation3 + $0x118] sm:$0xf] %vm3258, %v3480
        %3522 = vst.msk [vmem:[#allocation3 + $0x11c] sm:$0xf] %vm3258, %v3482
        %3523 = vst.msk [vmem:[#allocation3 + $0x120] sm:$0xf] %vm3258, %v3484
        %3524 = vst.msk [vmem:[#allocation3 + $0x124] sm:$0xf] %vm3258, %v3486
        %3525 = vst.msk [vmem:[#allocation3 + $0x128] sm:$0xf] %vm3258, %v3488
        %3526 = vst.msk [vmem:[#allocation3 + $0x12c] sm:$0xf] %vm3258, %v3490
        %3527 = vst.msk [vmem:[#allocation3 + $0x130] sm:$0xf] %vm3258, %v3492
        %3528 = vst.msk [vmem:[#allocation3 + $0x134] sm:$0xf] %vm3258, %v3494
        %3529 = vst.msk [vmem:[#allocation3 + $0x138] sm:$0xf] %vm3258, %v3496
        %3530 = vst.msk [vmem:[#allocation3 + $0x13c] sm:$0xf] %vm3258, %v3498
        %vm3531 = vcmask 404680
        %3532 = vst.msk [vmem:[#allocation3] sm:$0xf] %vm3531, %v3468
        %3533 = vst.msk [vmem:[#allocation3 + $0x4] sm:$0xf] %vm3531, %v3470
        %3534 = vst.msk [vmem:[#allocation3 + $0x8] sm:$0xf] %vm3531, %v3472
        %3535 = vst.msk [vmem:[#allocation3 + $0xc] sm:$0xf] %vm3531, %v3474
        %3536 = vst.msk [vmem:[#allocation3 + $0x10] sm:$0xf] %vm3531, %v3476
        %3537 = vst.msk [vmem:[#allocation3 + $0x14] sm:$0xf] %vm3531, %v3478
        %3538 = vst.msk [vmem:[#allocation3 + $0x18] sm:$0xf] %vm3531, %v3480
        %3539 = vst.msk [vmem:[#allocation3 + $0x1c] sm:$0xf] %vm3531, %v3482
        %3540 = vst.msk [vmem:[#allocation3 + $0x20] sm:$0xf] %vm3531, %v3484
        %3541 = vst.msk [vmem:[#allocation3 + $0x24] sm:$0xf] %vm3531, %v3486
        %3542 = vst.msk [vmem:[#allocation3 + $0x28] sm:$0xf] %vm3531, %v3488
        %3543 = vst.msk [vmem:[#allocation3 + $0x2c] sm:$0xf] %vm3531, %v3490
        %3544 = vst.msk [vmem:[#allocation3 + $0x30] sm:$0xf] %vm3531, %v3492
        %3545 = vst.msk [vmem:[#allocation3 + $0x34] sm:$0xf] %vm3531, %v3494
        %3546 = vst.msk [vmem:[#allocation3 + $0x38] sm:$0xf] %vm3531, %v3496
        %3547 = vst.msk [vmem:[#allocation3 + $0x3c] sm:$0xf] %vm3531, %v3498
        %3548 = vrot.lane.b32.xlu0 %v3226, 123
        %v3549 = vpop.permute.xlu0 %3548
        %3550 = vrot.lane.b32.xlu0 %v3227, 123
        %v3551 = vpop.permute.xlu0 %3550
        %3552 = vrot.lane.b32.xlu0 %v3228, 123
        %v3553 = vpop.permute.xlu0 %3552
        %3554 = vrot.lane.b32.xlu0 %v3229, 123
        %v3555 = vpop.permute.xlu0 %3554
        %3556 = vrot.lane.b32.xlu0 %v3230, 123
        %v3557 = vpop.permute.xlu0 %3556
        %3558 = vrot.lane.b32.xlu0 %v3231, 123
        %v3559 = vpop.permute.xlu0 %3558
        %3560 = vrot.lane.b32.xlu0 %v3232, 123
        %v3561 = vpop.permute.xlu0 %3560
        %3562 = vrot.lane.b32.xlu0 %v3233, 123
        %v3563 = vpop.permute.xlu0 %3562
        %3564 = vrot.lane.b32.xlu0 %v3234, 123
        %v3565 = vpop.permute.xlu0 %3564
        %3566 = vrot.lane.b32.xlu0 %v3235, 123
        %v3567 = vpop.permute.xlu0 %3566
        %3568 = vrot.lane.b32.xlu0 %v3236, 123
        %v3569 = vpop.permute.xlu0 %3568
        %3570 = vrot.lane.b32.xlu0 %v3237, 123
        %v3571 = vpop.permute.xlu0 %3570
        %3572 = vrot.lane.b32.xlu0 %v3238, 123
        %v3573 = vpop.permute.xlu0 %3572
        %3574 = vrot.lane.b32.xlu0 %v3239, 123
        %v3575 = vpop.permute.xlu0 %3574
        %3576 = vrot.lane.b32.xlu0 %v3240, 123
        %v3577 = vpop.permute.xlu0 %3576
        %3578 = vrot.lane.b32.xlu0 %v3241, 123
        %v3579 = vpop.permute.xlu0 %3578
        %3596 = vst.msk [vmem:[#allocation3 + $0x40] sm:$0xf] %vm3531, %v3549
        %3597 = vst.msk [vmem:[#allocation3 + $0x44] sm:$0xf] %vm3531, %v3551
        %3598 = vst.msk [vmem:[#allocation3 + $0x48] sm:$0xf] %vm3531, %v3553
        %3599 = vst.msk [vmem:[#allocation3 + $0x4c] sm:$0xf] %vm3531, %v3555
        %3600 = vst.msk [vmem:[#allocation3 + $0x50] sm:$0xf] %vm3531, %v3557
        %3601 = vst.msk [vmem:[#allocation3 + $0x54] sm:$0xf] %vm3531, %v3559
        %3602 = vst.msk [vmem:[#allocation3 + $0x58] sm:$0xf] %vm3531, %v3561
        %3603 = vst.msk [vmem:[#allocation3 + $0x5c] sm:$0xf] %vm3531, %v3563
        %3604 = vst.msk [vmem:[#allocation3 + $0x60] sm:$0xf] %vm3531, %v3565
        %3605 = vst.msk [vmem:[#allocation3 + $0x64] sm:$0xf] %vm3531, %v3567
        %3606 = vst.msk [vmem:[#allocation3 + $0x68] sm:$0xf] %vm3531, %v3569
        %3607 = vst.msk [vmem:[#allocation3 + $0x6c] sm:$0xf] %vm3531, %v3571
        %3608 = vst.msk [vmem:[#allocation3 + $0x70] sm:$0xf] %vm3531, %v3573
        %3609 = vst.msk [vmem:[#allocation3 + $0x74] sm:$0xf] %vm3531, %v3575
        %3610 = vst.msk [vmem:[#allocation3 + $0x78] sm:$0xf] %vm3531, %v3577
        %3611 = vst.msk [vmem:[#allocation3 + $0x7c] sm:$0xf] %vm3531, %v3579
        %3612 = vrot.lane.b32.xlu0 %v3226, 122
        %v3613 = vpop.permute.xlu0 %3612
        %3614 = vrot.lane.b32.xlu0 %v3227, 122
        %v3615 = vpop.permute.xlu0 %3614
        %3616 = vrot.lane.b32.xlu0 %v3228, 122
        %v3617 = vpop.permute.xlu0 %3616
        %3618 = vrot.lane.b32.xlu0 %v3229, 122
        %v3619 = vpop.permute.xlu0 %3618
        %3620 = vrot.lane.b32.xlu0 %v3230, 122
        %v3621 = vpop.permute.xlu0 %3620
        %3622 = vrot.lane.b32.xlu0 %v3231, 122
        %v3623 = vpop.permute.xlu0 %3622
        %3624 = vrot.lane.b32.xlu0 %v3232, 122
        %v3625 = vpop.permute.xlu0 %3624
        %3626 = vrot.lane.b32.xlu0 %v3233, 122
        %v3627 = vpop.permute.xlu0 %3626
        %3628 = vrot.lane.b32.xlu0 %v3234, 122
        %v3629 = vpop.permute.xlu0 %3628
        %3630 = vrot.lane.b32.xlu0 %v3235, 122
        %v3631 = vpop.permute.xlu0 %3630
        %3632 = vrot.lane.b32.xlu0 %v3236, 122
        %v3633 = vpop.permute.xlu0 %3632
        %3634 = vrot.lane.b32.xlu0 %v3237, 122
        %v3635 = vpop.permute.xlu0 %3634
        %3636 = vrot.lane.b32.xlu0 %v3238, 122
        %v3637 = vpop.permute.xlu0 %3636
        %3638 = vrot.lane.b32.xlu0 %v3239, 122
        %v3639 = vpop.permute.xlu0 %3638
        %3640 = vrot.lane.b32.xlu0 %v3240, 122
        %v3641 = vpop.permute.xlu0 %3640
        %3642 = vrot.lane.b32.xlu0 %v3241, 122
        %v3643 = vpop.permute.xlu0 %3642
        %3660 = vst.msk [vmem:[#allocation3 + $0x80] sm:$0xf] %vm3531, %v3613
        %3661 = vst.msk [vmem:[#allocation3 + $0x84] sm:$0xf] %vm3531, %v3615
        %3662 = vst.msk [vmem:[#allocation3 + $0x88] sm:$0xf] %vm3531, %v3617
        %3663 = vst.msk [vmem:[#allocation3 + $0x8c] sm:$0xf] %vm3531, %v3619
        %3664 = vst.msk [vmem:[#allocation3 + $0x90] sm:$0xf] %vm3531, %v3621
        %3665 = vst.msk [vmem:[#allocation3 + $0x94] sm:$0xf] %vm3531, %v3623
        %3666 = vst.msk [vmem:[#allocation3 + $0x98] sm:$0xf] %vm3531, %v3625
        %3667 = vst.msk [vmem:[#allocation3 + $0x9c] sm:$0xf] %vm3531, %v3627
        %3668 = vst.msk [vmem:[#allocation3 + $0xa0] sm:$0xf] %vm3531, %v3629
        %3669 = vst.msk [vmem:[#allocation3 + $0xa4] sm:$0xf] %vm3531, %v3631
        %3670 = vst.msk [vmem:[#allocation3 + $0xa8] sm:$0xf] %vm3531, %v3633
        %3671 = vst.msk [vmem:[#allocation3 + $0xac] sm:$0xf] %vm3531, %v3635
        %3672 = vst.msk [vmem:[#allocation3 + $0xb0] sm:$0xf] %vm3531, %v3637
        %3673 = vst.msk [vmem:[#allocation3 + $0xb4] sm:$0xf] %vm3531, %v3639
        %3674 = vst.msk [vmem:[#allocation3 + $0xb8] sm:$0xf] %vm3531, %v3641
        %3675 = vst.msk [vmem:[#allocation3 + $0xbc] sm:$0xf] %vm3531, %v3643
        %3676 = vrot.lane.b32.xlu0 %v3226, 121
        %v3677 = vpop.permute.xlu0 %3676
        %3678 = vrot.lane.b32.xlu0 %v3227, 121
        %v3679 = vpop.permute.xlu0 %3678
        %3680 = vrot.lane.b32.xlu0 %v3228, 121
        %v3681 = vpop.permute.xlu0 %3680
        %3682 = vrot.lane.b32.xlu0 %v3229, 121
        %v3683 = vpop.permute.xlu0 %3682
        %3684 = vrot.lane.b32.xlu0 %v3230, 121
        %v3685 = vpop.permute.xlu0 %3684
        %3686 = vrot.lane.b32.xlu0 %v3231, 121
        %v3687 = vpop.permute.xlu0 %3686
        %3688 = vrot.lane.b32.xlu0 %v3232, 121
        %v3689 = vpop.permute.xlu0 %3688
        %3690 = vrot.lane.b32.xlu0 %v3233, 121
        %v3691 = vpop.permute.xlu0 %3690
        %3692 = vrot.lane.b32.xlu0 %v3234, 121
        %v3693 = vpop.permute.xlu0 %3692
        %3694 = vrot.lane.b32.xlu0 %v3235, 121
        %v3695 = vpop.permute.xlu0 %3694
        %3696 = vrot.lane.b32.xlu0 %v3236, 121
        %v3697 = vpop.permute.xlu0 %3696
        %3698 = vrot.lane.b32.xlu0 %v3237, 121
        %v3699 = vpop.permute.xlu0 %3698
        %3700 = vrot.lane.b32.xlu0 %v3238, 121
        %v3701 = vpop.permute.xlu0 %3700
        %3702 = vrot.lane.b32.xlu0 %v3239, 121
        %v3703 = vpop.permute.xlu0 %3702
        %3704 = vrot.lane.b32.xlu0 %v3240, 121
        %v3705 = vpop.permute.xlu0 %3704
        %3706 = vrot.lane.b32.xlu0 %v3241, 121
        %v3707 = vpop.permute.xlu0 %3706
        %3724 = vst.msk [vmem:[#allocation3 + $0xc0] sm:$0xf] %vm3531, %v3677
        %3725 = vst.msk [vmem:[#allocation3 + $0xc4] sm:$0xf] %vm3531, %v3679
        %3726 = vst.msk [vmem:[#allocation3 + $0xc8] sm:$0xf] %vm3531, %v3681
        %3727 = vst.msk [vmem:[#allocation3 + $0xcc] sm:$0xf] %vm3531, %v3683
        %3728 = vst.msk [vmem:[#allocation3 + $0xd0] sm:$0xf] %vm3531, %v3685
        %3729 = vst.msk [vmem:[#allocation3 + $0xd4] sm:$0xf] %vm3531, %v3687
        %3730 = vst.msk [vmem:[#allocation3 + $0xd8] sm:$0xf] %vm3531, %v3689
        %3731 = vst.msk [vmem:[#allocation3 + $0xdc] sm:$0xf] %vm3531, %v3691
        %3732 = vst.msk [vmem:[#allocation3 + $0xe0] sm:$0xf] %vm3531, %v3693
        %3733 = vst.msk [vmem:[#allocation3 + $0xe4] sm:$0xf] %vm3531, %v3695
        %3734 = vst.msk [vmem:[#allocation3 + $0xe8] sm:$0xf] %vm3531, %v3697
        %3735 = vst.msk [vmem:[#allocation3 + $0xec] sm:$0xf] %vm3531, %v3699
        %3736 = vst.msk [vmem:[#allocation3 + $0xf0] sm:$0xf] %vm3531, %v3701
        %3737 = vst.msk [vmem:[#allocation3 + $0xf4] sm:$0xf] %vm3531, %v3703
        %3738 = vst.msk [vmem:[#allocation3 + $0xf8] sm:$0xf] %vm3531, %v3705
        %3739 = vst.msk [vmem:[#allocation3 + $0xfc] sm:$0xf] %vm3531, %v3707
        %3740 = vrot.lane.b32.xlu0 %v3226, 120
        %v3741 = vpop.permute.xlu0 %3740
        %3742 = vrot.lane.b32.xlu0 %v3227, 120
        %v3743 = vpop.permute.xlu0 %3742
        %3744 = vrot.lane.b32.xlu0 %v3228, 120
        %v3745 = vpop.permute.xlu0 %3744
        %3746 = vrot.lane.b32.xlu0 %v3229, 120
        %v3747 = vpop.permute.xlu0 %3746
        %3748 = vrot.lane.b32.xlu0 %v3230, 120
        %v3749 = vpop.permute.xlu0 %3748
        %3750 = vrot.lane.b32.xlu0 %v3231, 120
        %v3751 = vpop.permute.xlu0 %3750
        %3752 = vrot.lane.b32.xlu0 %v3232, 120
        %v3753 = vpop.permute.xlu0 %3752
        %3754 = vrot.lane.b32.xlu0 %v3233, 120
        %v3755 = vpop.permute.xlu0 %3754
        %3756 = vrot.lane.b32.xlu0 %v3234, 120
        %v3757 = vpop.permute.xlu0 %3756
        %3758 = vrot.lane.b32.xlu0 %v3235, 120
        %v3759 = vpop.permute.xlu0 %3758
        %3760 = vrot.lane.b32.xlu0 %v3236, 120
        %v3761 = vpop.permute.xlu0 %3760
        %3762 = vrot.lane.b32.xlu0 %v3237, 120
        %v3763 = vpop.permute.xlu0 %3762
        %3764 = vrot.lane.b32.xlu0 %v3238, 120
        %v3765 = vpop.permute.xlu0 %3764
        %3766 = vrot.lane.b32.xlu0 %v3239, 120
        %v3767 = vpop.permute.xlu0 %3766
        %3768 = vrot.lane.b32.xlu0 %v3240, 120
        %v3769 = vpop.permute.xlu0 %3768
        %3770 = vrot.lane.b32.xlu0 %v3241, 120
        %v3771 = vpop.permute.xlu0 %3770
        %3788 = vst.msk [vmem:[#allocation3 + $0x100] sm:$0xf] %vm3531, %v3741
        %3789 = vst.msk [vmem:[#allocation3 + $0x104] sm:$0xf] %vm3531, %v3743
        %3790 = vst.msk [vmem:[#allocation3 + $0x108] sm:$0xf] %vm3531, %v3745
        %3791 = vst.msk [vmem:[#allocation3 + $0x10c] sm:$0xf] %vm3531, %v3747
        %3792 = vst.msk [vmem:[#allocation3 + $0x110] sm:$0xf] %vm3531, %v3749
        %3793 = vst.msk [vmem:[#allocation3 + $0x114] sm:$0xf] %vm3531, %v3751
        %3794 = vst.msk [vmem:[#allocation3 + $0x118] sm:$0xf] %vm3531, %v3753
        %3795 = vst.msk [vmem:[#allocation3 + $0x11c] sm:$0xf] %vm3531, %v3755
        %3796 = vst.msk [vmem:[#allocation3 + $0x120] sm:$0xf] %vm3531, %v3757
        %3797 = vst.msk [vmem:[#allocation3 + $0x124] sm:$0xf] %vm3531, %v3759
        %3798 = vst.msk [vmem:[#allocation3 + $0x128] sm:$0xf] %vm3531, %v3761
        %3799 = vst.msk [vmem:[#allocation3 + $0x12c] sm:$0xf] %vm3531, %v3763
        %3800 = vst.msk [vmem:[#allocation3 + $0x130] sm:$0xf] %vm3531, %v3765
        %3801 = vst.msk [vmem:[#allocation3 + $0x134] sm:$0xf] %vm3531, %v3767
        %3802 = vst.msk [vmem:[#allocation3 + $0x138] sm:$0xf] %vm3531, %v3769
        %3803 = vst.msk [vmem:[#allocation3 + $0x13c] sm:$0xf] %vm3531, %v3771
        %vm3804 = vcmask 609680
        %3805 = vst.msk [vmem:[#allocation3] sm:$0xf] %vm3804, %v3741
        %3806 = vst.msk [vmem:[#allocation3 + $0x4] sm:$0xf] %vm3804, %v3743
        %3807 = vst.msk [vmem:[#allocation3 + $0x8] sm:$0xf] %vm3804, %v3745
        %3808 = vst.msk [vmem:[#allocation3 + $0xc] sm:$0xf] %vm3804, %v3747
        %3809 = vst.msk [vmem:[#allocation3 + $0x10] sm:$0xf] %vm3804, %v3749
        %3810 = vst.msk [vmem:[#allocation3 + $0x14] sm:$0xf] %vm3804, %v3751
        %3811 = vst.msk [vmem:[#allocation3 + $0x18] sm:$0xf] %vm3804, %v3753
        %3812 = vst.msk [vmem:[#allocation3 + $0x1c] sm:$0xf] %vm3804, %v3755
        %3813 = vst.msk [vmem:[#allocation3 + $0x20] sm:$0xf] %vm3804, %v3757
        %3814 = vst.msk [vmem:[#allocation3 + $0x24] sm:$0xf] %vm3804, %v3759
        %3815 = vst.msk [vmem:[#allocation3 + $0x28] sm:$0xf] %vm3804, %v3761
        %3816 = vst.msk [vmem:[#allocation3 + $0x2c] sm:$0xf] %vm3804, %v3763
        %3817 = vst.msk [vmem:[#allocation3 + $0x30] sm:$0xf] %vm3804, %v3765
        %3818 = vst.msk [vmem:[#allocation3 + $0x34] sm:$0xf] %vm3804, %v3767
        %3819 = vst.msk [vmem:[#allocation3 + $0x38] sm:$0xf] %vm3804, %v3769
        %3820 = vst.msk [vmem:[#allocation3 + $0x3c] sm:$0xf] %vm3804, %v3771
        %3821 = vrot.lane.b32.xlu0 %v3226, 119
        %v3822 = vpop.permute.xlu0 %3821
        %3823 = vrot.lane.b32.xlu0 %v3227, 119
        %v3824 = vpop.permute.xlu0 %3823
        %3825 = vrot.lane.b32.xlu0 %v3228, 119
        %v3826 = vpop.permute.xlu0 %3825
        %3827 = vrot.lane.b32.xlu0 %v3229, 119
        %v3828 = vpop.permute.xlu0 %3827
        %3829 = vrot.lane.b32.xlu0 %v3230, 119
        %v3830 = vpop.permute.xlu0 %3829
        %3831 = vrot.lane.b32.xlu0 %v3231, 119
        %v3832 = vpop.permute.xlu0 %3831
        %3833 = vrot.lane.b32.xlu0 %v3232, 119
        %v3834 = vpop.permute.xlu0 %3833
        %3835 = vrot.lane.b32.xlu0 %v3233, 119
        %v3836 = vpop.permute.xlu0 %3835
        %3837 = vrot.lane.b32.xlu0 %v3234, 119
        %v3838 = vpop.permute.xlu0 %3837
        %3839 = vrot.lane.b32.xlu0 %v3235, 119
        %v3840 = vpop.permute.xlu0 %3839
        %3841 = vrot.lane.b32.xlu0 %v3236, 119
        %v3842 = vpop.permute.xlu0 %3841
        %3843 = vrot.lane.b32.xlu0 %v3237, 119
        %v3844 = vpop.permute.xlu0 %3843
        %3845 = vrot.lane.b32.xlu0 %v3238, 119
        %v3846 = vpop.permute.xlu0 %3845
        %3847 = vrot.lane.b32.xlu0 %v3239, 119
        %v3848 = vpop.permute.xlu0 %3847
        %3849 = vrot.lane.b32.xlu0 %v3240, 119
        %v3850 = vpop.permute.xlu0 %3849
        %3851 = vrot.lane.b32.xlu0 %v3241, 119
        %v3852 = vpop.permute.xlu0 %3851
        %3869 = vst.msk [vmem:[#allocation3 + $0x40] sm:$0xf] %vm3804, %v3822
        %3870 = vst.msk [vmem:[#allocation3 + $0x44] sm:$0xf] %vm3804, %v3824
        %3871 = vst.msk [vmem:[#allocation3 + $0x48] sm:$0xf] %vm3804, %v3826
        %3872 = vst.msk [vmem:[#allocation3 + $0x4c] sm:$0xf] %vm3804, %v3828
        %3873 = vst.msk [vmem:[#allocation3 + $0x50] sm:$0xf] %vm3804, %v3830
        %3874 = vst.msk [vmem:[#allocation3 + $0x54] sm:$0xf] %vm3804, %v3832
        %3875 = vst.msk [vmem:[#allocation3 + $0x58] sm:$0xf] %vm3804, %v3834
        %3876 = vst.msk [vmem:[#allocation3 + $0x5c] sm:$0xf] %vm3804, %v3836
        %3877 = vst.msk [vmem:[#allocation3 + $0x60] sm:$0xf] %vm3804, %v3838
        %3878 = vst.msk [vmem:[#allocation3 + $0x64] sm:$0xf] %vm3804, %v3840
        %3879 = vst.msk [vmem:[#allocation3 + $0x68] sm:$0xf] %vm3804, %v3842
        %3880 = vst.msk [vmem:[#allocation3 + $0x6c] sm:$0xf] %vm3804, %v3844
        %3881 = vst.msk [vmem:[#allocation3 + $0x70] sm:$0xf] %vm3804, %v3846
        %3882 = vst.msk [vmem:[#allocation3 + $0x74] sm:$0xf] %vm3804, %v3848
        %3883 = vst.msk [vmem:[#allocation3 + $0x78] sm:$0xf] %vm3804, %v3850
        %3884 = vst.msk [vmem:[#allocation3 + $0x7c] sm:$0xf] %vm3804, %v3852
        %3885 = vrot.lane.b32.xlu0 %v3226, 118
        %v3886 = vpop.permute.xlu0 %3885
        %3887 = vrot.lane.b32.xlu0 %v3227, 118
        %v3888 = vpop.permute.xlu0 %3887
        %3889 = vrot.lane.b32.xlu0 %v3228, 118
        %v3890 = vpop.permute.xlu0 %3889
        %3891 = vrot.lane.b32.xlu0 %v3229, 118
        %v3892 = vpop.permute.xlu0 %3891
        %3893 = vrot.lane.b32.xlu0 %v3230, 118
        %v3894 = vpop.permute.xlu0 %3893
        %3895 = vrot.lane.b32.xlu0 %v3231, 118
        %v3896 = vpop.permute.xlu0 %3895
        %3897 = vrot.lane.b32.xlu0 %v3232, 118
        %v3898 = vpop.permute.xlu0 %3897
        %3899 = vrot.lane.b32.xlu0 %v3233, 118
        %v3900 = vpop.permute.xlu0 %3899
        %3901 = vrot.lane.b32.xlu0 %v3234, 118
        %v3902 = vpop.permute.xlu0 %3901
        %3903 = vrot.lane.b32.xlu0 %v3235, 118
        %v3904 = vpop.permute.xlu0 %3903
        %3905 = vrot.lane.b32.xlu0 %v3236, 118
        %v3906 = vpop.permute.xlu0 %3905
        %3907 = vrot.lane.b32.xlu0 %v3237, 118
        %v3908 = vpop.permute.xlu0 %3907
        %3909 = vrot.lane.b32.xlu0 %v3238, 118
        %v3910 = vpop.permute.xlu0 %3909
        %3911 = vrot.lane.b32.xlu0 %v3239, 118
        %v3912 = vpop.permute.xlu0 %3911
        %3913 = vrot.lane.b32.xlu0 %v3240, 118
        %v3914 = vpop.permute.xlu0 %3913
        %3915 = vrot.lane.b32.xlu0 %v3241, 118
        %v3916 = vpop.permute.xlu0 %3915
        %3933 = vst.msk [vmem:[#allocation3 + $0x80] sm:$0xf] %vm3804, %v3886
        %3934 = vst.msk [vmem:[#allocation3 + $0x84] sm:$0xf] %vm3804, %v3888
        %3935 = vst.msk [vmem:[#allocation3 + $0x88] sm:$0xf] %vm3804, %v3890
        %3936 = vst.msk [vmem:[#allocation3 + $0x8c] sm:$0xf] %vm3804, %v3892
        %3937 = vst.msk [vmem:[#allocation3 + $0x90] sm:$0xf] %vm3804, %v3894
        %3938 = vst.msk [vmem:[#allocation3 + $0x94] sm:$0xf] %vm3804, %v3896
        %3939 = vst.msk [vmem:[#allocation3 + $0x98] sm:$0xf] %vm3804, %v3898
        %3940 = vst.msk [vmem:[#allocation3 + $0x9c] sm:$0xf] %vm3804, %v3900
        %3941 = vst.msk [vmem:[#allocation3 + $0xa0] sm:$0xf] %vm3804, %v3902
        %3942 = vst.msk [vmem:[#allocation3 + $0xa4] sm:$0xf] %vm3804, %v3904
        %3943 = vst.msk [vmem:[#allocation3 + $0xa8] sm:$0xf] %vm3804, %v3906
        %3944 = vst.msk [vmem:[#allocation3 + $0xac] sm:$0xf] %vm3804, %v3908
        %3945 = vst.msk [vmem:[#allocation3 + $0xb0] sm:$0xf] %vm3804, %v3910
        %3946 = vst.msk [vmem:[#allocation3 + $0xb4] sm:$0xf] %vm3804, %v3912
        %3947 = vst.msk [vmem:[#allocation3 + $0xb8] sm:$0xf] %vm3804, %v3914
        %3948 = vst.msk [vmem:[#allocation3 + $0xbc] sm:$0xf] %vm3804, %v3916
        %3949 = vrot.lane.b32.xlu0 %v3226, 117
        %v3950 = vpop.permute.xlu0 %3949
        %3951 = vrot.lane.b32.xlu0 %v3227, 117
        %v3952 = vpop.permute.xlu0 %3951
        %3953 = vrot.lane.b32.xlu0 %v3228, 117
        %v3954 = vpop.permute.xlu0 %3953
        %3955 = vrot.lane.b32.xlu0 %v3229, 117
        %v3956 = vpop.permute.xlu0 %3955
        %3957 = vrot.lane.b32.xlu0 %v3230, 117
        %v3958 = vpop.permute.xlu0 %3957
        %3959 = vrot.lane.b32.xlu0 %v3231, 117
        %v3960 = vpop.permute.xlu0 %3959
        %3961 = vrot.lane.b32.xlu0 %v3232, 117
        %v3962 = vpop.permute.xlu0 %3961
        %3963 = vrot.lane.b32.xlu0 %v3233, 117
        %v3964 = vpop.permute.xlu0 %3963
        %3965 = vrot.lane.b32.xlu0 %v3234, 117
        %v3966 = vpop.permute.xlu0 %3965
        %3967 = vrot.lane.b32.xlu0 %v3235, 117
        %v3968 = vpop.permute.xlu0 %3967
        %3969 = vrot.lane.b32.xlu0 %v3236, 117
        %v3970 = vpop.permute.xlu0 %3969
        %3971 = vrot.lane.b32.xlu0 %v3237, 117
        %v3972 = vpop.permute.xlu0 %3971
        %3973 = vrot.lane.b32.xlu0 %v3238, 117
        %v3974 = vpop.permute.xlu0 %3973
        %3975 = vrot.lane.b32.xlu0 %v3239, 117
        %v3976 = vpop.permute.xlu0 %3975
        %3977 = vrot.lane.b32.xlu0 %v3240, 117
        %v3978 = vpop.permute.xlu0 %3977
        %3979 = vrot.lane.b32.xlu0 %v3241, 117
        %v3980 = vpop.permute.xlu0 %3979
        %3997 = vst.msk [vmem:[#allocation3 + $0xc0] sm:$0xf] %vm3804, %v3950
        %3998 = vst.msk [vmem:[#allocation3 + $0xc4] sm:$0xf] %vm3804, %v3952
        %3999 = vst.msk [vmem:[#allocation3 + $0xc8] sm:$0xf] %vm3804, %v3954
        %4000 = vst.msk [vmem:[#allocation3 + $0xcc] sm:$0xf] %vm3804, %v3956
        %4001 = vst.msk [vmem:[#allocation3 + $0xd0] sm:$0xf] %vm3804, %v3958
        %4002 = vst.msk [vmem:[#allocation3 + $0xd4] sm:$0xf] %vm3804, %v3960
        %4003 = vst.msk [vmem:[#allocation3 + $0xd8] sm:$0xf] %vm3804, %v3962
        %4004 = vst.msk [vmem:[#allocation3 + $0xdc] sm:$0xf] %vm3804, %v3964
        %4005 = vst.msk [vmem:[#allocation3 + $0xe0] sm:$0xf] %vm3804, %v3966
        %4006 = vst.msk [vmem:[#allocation3 + $0xe4] sm:$0xf] %vm3804, %v3968
        %4007 = vst.msk [vmem:[#allocation3 + $0xe8] sm:$0xf] %vm3804, %v3970
        %4008 = vst.msk [vmem:[#allocation3 + $0xec] sm:$0xf] %vm3804, %v3972
        %4009 = vst.msk [vmem:[#allocation3 + $0xf0] sm:$0xf] %vm3804, %v3974
        %4010 = vst.msk [vmem:[#allocation3 + $0xf4] sm:$0xf] %vm3804, %v3976
        %4011 = vst.msk [vmem:[#allocation3 + $0xf8] sm:$0xf] %vm3804, %v3978
        %4012 = vst.msk [vmem:[#allocation3 + $0xfc] sm:$0xf] %vm3804, %v3980
        %4013 = vrot.lane.b32.xlu0 %v3226, 116
        %v4014 = vpop.permute.xlu0 %4013
        %4015 = vrot.lane.b32.xlu0 %v3227, 116
        %v4016 = vpop.permute.xlu0 %4015
        %4017 = vrot.lane.b32.xlu0 %v3228, 116
        %v4018 = vpop.permute.xlu0 %4017
        %4019 = vrot.lane.b32.xlu0 %v3229, 116
        %v4020 = vpop.permute.xlu0 %4019
        %4021 = vrot.lane.b32.xlu0 %v3230, 116
        %v4022 = vpop.permute.xlu0 %4021
        %4023 = vrot.lane.b32.xlu0 %v3231, 116
        %v4024 = vpop.permute.xlu0 %4023
        %4025 = vrot.lane.b32.xlu0 %v3232, 116
        %v4026 = vpop.permute.xlu0 %4025
        %4027 = vrot.lane.b32.xlu0 %v3233, 116
        %v4028 = vpop.permute.xlu0 %4027
        %4029 = vrot.lane.b32.xlu0 %v3234, 116
        %v4030 = vpop.permute.xlu0 %4029
        %4031 = vrot.lane.b32.xlu0 %v3235, 116
        %v4032 = vpop.permute.xlu0 %4031
        %4033 = vrot.lane.b32.xlu0 %v3236, 116
        %v4034 = vpop.permute.xlu0 %4033
        %4035 = vrot.lane.b32.xlu0 %v3237, 116
        %v4036 = vpop.permute.xlu0 %4035
        %4037 = vrot.lane.b32.xlu0 %v3238, 116
        %v4038 = vpop.permute.xlu0 %4037
        %4039 = vrot.lane.b32.xlu0 %v3239, 116
        %v4040 = vpop.permute.xlu0 %4039
        %4041 = vrot.lane.b32.xlu0 %v3240, 116
        %v4042 = vpop.permute.xlu0 %4041
        %4043 = vrot.lane.b32.xlu0 %v3241, 116
        %v4044 = vpop.permute.xlu0 %4043
        %4061 = vst.msk [vmem:[#allocation3 + $0x100] sm:$0xf] %vm3804, %v4014
        %4062 = vst.msk [vmem:[#allocation3 + $0x104] sm:$0xf] %vm3804, %v4016
        %4063 = vst.msk [vmem:[#allocation3 + $0x108] sm:$0xf] %vm3804, %v4018
        %4064 = vst.msk [vmem:[#allocation3 + $0x10c] sm:$0xf] %vm3804, %v4020
        %4065 = vst.msk [vmem:[#allocation3 + $0x110] sm:$0xf] %vm3804, %v4022
        %4066 = vst.msk [vmem:[#allocation3 + $0x114] sm:$0xf] %vm3804, %v4024
        %4067 = vst.msk [vmem:[#allocation3 + $0x118] sm:$0xf] %vm3804, %v4026
        %4068 = vst.msk [vmem:[#allocation3 + $0x11c] sm:$0xf] %vm3804, %v4028
        %4069 = vst.msk [vmem:[#allocation3 + $0x120] sm:$0xf] %vm3804, %v4030
        %4070 = vst.msk [vmem:[#allocation3 + $0x124] sm:$0xf] %vm3804, %v4032
        %4071 = vst.msk [vmem:[#allocation3 + $0x128] sm:$0xf] %vm3804, %v4034
        %4072 = vst.msk [vmem:[#allocation3 + $0x12c] sm:$0xf] %vm3804, %v4036
        %4073 = vst.msk [vmem:[#allocation3 + $0x130] sm:$0xf] %vm3804, %v4038
        %4074 = vst.msk [vmem:[#allocation3 + $0x134] sm:$0xf] %vm3804, %v4040
        %4075 = vst.msk [vmem:[#allocation3 + $0x138] sm:$0xf] %vm3804, %v4042
        %4076 = vst.msk [vmem:[#allocation3 + $0x13c] sm:$0xf] %vm3804, %v4044
        %vm4077 = vcmask 814680
        %4078 = vst.msk [vmem:[#allocation3] sm:$0xf] %vm4077, %v4014
        %4079 = vst.msk [vmem:[#allocation3 + $0x4] sm:$0xf] %vm4077, %v4016
        %4080 = vst.msk [vmem:[#allocation3 + $0x8] sm:$0xf] %vm4077, %v4018
        %4081 = vst.msk [vmem:[#allocation3 + $0xc] sm:$0xf] %vm4077, %v4020
        %4082 = vst.msk [vmem:[#allocation3 + $0x10] sm:$0xf] %vm4077, %v4022
        %4083 = vst.msk [vmem:[#allocation3 + $0x14] sm:$0xf] %vm4077, %v4024
        %4084 = vst.msk [vmem:[#allocation3 + $0x18] sm:$0xf] %vm4077, %v4026
        %4085 = vst.msk [vmem:[#allocation3 + $0x1c] sm:$0xf] %vm4077, %v4028
        %4086 = vst.msk [vmem:[#allocation3 + $0x20] sm:$0xf] %vm4077, %v4030
        %4087 = vst.msk [vmem:[#allocation3 + $0x24] sm:$0xf] %vm4077, %v4032
        %4088 = vst.msk [vmem:[#allocation3 + $0x28] sm:$0xf] %vm4077, %v4034
        %4089 = vst.msk [vmem:[#allocation3 + $0x2c] sm:$0xf] %vm4077, %v4036
        %4090 = vst.msk [vmem:[#allocation3 + $0x30] sm:$0xf] %vm4077, %v4038
        %4091 = vst.msk [vmem:[#allocation3 + $0x34] sm:$0xf] %vm4077, %v4040
        %4092 = vst.msk [vmem:[#allocation3 + $0x38] sm:$0xf] %vm4077, %v4042
        %4093 = vst.msk [vmem:[#allocation3 + $0x3c] sm:$0xf] %vm4077, %v4044
        %4094 = vrot.lane.b32.xlu0 %v3226, 115
        %v4095 = vpop.permute.xlu0 %4094
        %4096 = vrot.lane.b32.xlu0 %v3227, 115
        %v4097 = vpop.permute.xlu0 %4096
        %4098 = vrot.lane.b32.xlu0 %v3228, 115
        %v4099 = vpop.permute.xlu0 %4098
        %4100 = vrot.lane.b32.xlu0 %v3229, 115
        %v4101 = vpop.permute.xlu0 %4100
        %4102 = vrot.lane.b32.xlu0 %v3230, 115
        %v4103 = vpop.permute.xlu0 %4102
        %4104 = vrot.lane.b32.xlu0 %v3231, 115
        %v4105 = vpop.permute.xlu0 %4104
        %4106 = vrot.lane.b32.xlu0 %v3232, 115
        %v4107 = vpop.permute.xlu0 %4106
        %4108 = vrot.lane.b32.xlu0 %v3233, 115
        %v4109 = vpop.permute.xlu0 %4108
        %4110 = vrot.lane.b32.xlu0 %v3234, 115
        %v4111 = vpop.permute.xlu0 %4110
        %4112 = vrot.lane.b32.xlu0 %v3235, 115
        %v4113 = vpop.permute.xlu0 %4112
        %4114 = vrot.lane.b32.xlu0 %v3236, 115
        %v4115 = vpop.permute.xlu0 %4114
        %4116 = vrot.lane.b32.xlu0 %v3237, 115
        %v4117 = vpop.permute.xlu0 %4116
        %4118 = vrot.lane.b32.xlu0 %v3238, 115
        %v4119 = vpop.permute.xlu0 %4118
        %4120 = vrot.lane.b32.xlu0 %v3239, 115
        %v4121 = vpop.permute.xlu0 %4120
        %4122 = vrot.lane.b32.xlu0 %v3240, 115
        %v4123 = vpop.permute.xlu0 %4122
        %4124 = vrot.lane.b32.xlu0 %v3241, 115
        %v4125 = vpop.permute.xlu0 %4124
        %4142 = vst.msk [vmem:[#allocation3 + $0x40] sm:$0xf] %vm4077, %v4095
        %4143 = vst.msk [vmem:[#allocation3 + $0x44] sm:$0xf] %vm4077, %v4097
        %4144 = vst.msk [vmem:[#allocation3 + $0x48] sm:$0xf] %vm4077, %v4099
        %4145 = vst.msk [vmem:[#allocation3 + $0x4c] sm:$0xf] %vm4077, %v4101
        %4146 = vst.msk [vmem:[#allocation3 + $0x50] sm:$0xf] %vm4077, %v4103
        %4147 = vst.msk [vmem:[#allocation3 + $0x54] sm:$0xf] %vm4077, %v4105
        %4148 = vst.msk [vmem:[#allocation3 + $0x58] sm:$0xf] %vm4077, %v4107
        %4149 = vst.msk [vmem:[#allocation3 + $0x5c] sm:$0xf] %vm4077, %v4109
        %4150 = vst.msk [vmem:[#allocation3 + $0x60] sm:$0xf] %vm4077, %v4111
        %4151 = vst.msk [vmem:[#allocation3 + $0x64] sm:$0xf] %vm4077, %v4113
        %4152 = vst.msk [vmem:[#allocation3 + $0x68] sm:$0xf] %vm4077, %v4115
        %4153 = vst.msk [vmem:[#allocation3 + $0x6c] sm:$0xf] %vm4077, %v4117
        %4154 = vst.msk [vmem:[#allocation3 + $0x70] sm:$0xf] %vm4077, %v4119
        %4155 = vst.msk [vmem:[#allocation3 + $0x74] sm:$0xf] %vm4077, %v4121
        %4156 = vst.msk [vmem:[#allocation3 + $0x78] sm:$0xf] %vm4077, %v4123
        %4157 = vst.msk [vmem:[#allocation3 + $0x7c] sm:$0xf] %vm4077, %v4125
        %4158 = vrot.lane.b32.xlu0 %v3226, 114
        %v4159 = vpop.permute.xlu0 %4158
        %4160 = vrot.lane.b32.xlu0 %v3227, 114
        %v4161 = vpop.permute.xlu0 %4160
        %4162 = vrot.lane.b32.xlu0 %v3228, 114
        %v4163 = vpop.permute.xlu0 %4162
        %4164 = vrot.lane.b32.xlu0 %v3229, 114
        %v4165 = vpop.permute.xlu0 %4164
        %4166 = vrot.lane.b32.xlu0 %v3230, 114
        %v4167 = vpop.permute.xlu0 %4166
        %4168 = vrot.lane.b32.xlu0 %v3231, 114
        %v4169 = vpop.permute.xlu0 %4168
        %4170 = vrot.lane.b32.xlu0 %v3232, 114
        %v4171 = vpop.permute.xlu0 %4170
        %4172 = vrot.lane.b32.xlu0 %v3233, 114
        %v4173 = vpop.permute.xlu0 %4172
        %4174 = vrot.lane.b32.xlu0 %v3234, 114
        %v4175 = vpop.permute.xlu0 %4174
        %4176 = vrot.lane.b32.xlu0 %v3235, 114
        %v4177 = vpop.permute.xlu0 %4176
        %4178 = vrot.lane.b32.xlu0 %v3236, 114
        %v4179 = vpop.permute.xlu0 %4178
        %4180 = vrot.lane.b32.xlu0 %v3237, 114
        %v4181 = vpop.permute.xlu0 %4180
        %4182 = vrot.lane.b32.xlu0 %v3238, 114
        %v4183 = vpop.permute.xlu0 %4182
        %4184 = vrot.lane.b32.xlu0 %v3239, 114
        %v4185 = vpop.permute.xlu0 %4184
        %4186 = vrot.lane.b32.xlu0 %v3240, 114
        %v4187 = vpop.permute.xlu0 %4186
        %4188 = vrot.lane.b32.xlu0 %v3241, 114
        %v4189 = vpop.permute.xlu0 %4188
        %4206 = vst.msk [vmem:[#allocation3 + $0x80] sm:$0xf] %vm4077, %v4159
        %4207 = vst.msk [vmem:[#allocation3 + $0x84] sm:$0xf] %vm4077, %v4161
        %4208 = vst.msk [vmem:[#allocation3 + $0x88] sm:$0xf] %vm4077, %v4163
        %4209 = vst.msk [vmem:[#allocation3 + $0x8c] sm:$0xf] %vm4077, %v4165
        %4210 = vst.msk [vmem:[#allocation3 + $0x90] sm:$0xf] %vm4077, %v4167
        %4211 = vst.msk [vmem:[#allocation3 + $0x94] sm:$0xf] %vm4077, %v4169
        %4212 = vst.msk [vmem:[#allocation3 + $0x98] sm:$0xf] %vm4077, %v4171
        %4213 = vst.msk [vmem:[#allocation3 + $0x9c] sm:$0xf] %vm4077, %v4173
        %4214 = vst.msk [vmem:[#allocation3 + $0xa0] sm:$0xf] %vm4077, %v4175
        %4215 = vst.msk [vmem:[#allocation3 + $0xa4] sm:$0xf] %vm4077, %v4177
        %4216 = vst.msk [vmem:[#allocation3 + $0xa8] sm:$0xf] %vm4077, %v4179
        %4217 = vst.msk [vmem:[#allocation3 + $0xac] sm:$0xf] %vm4077, %v4181
        %4218 = vst.msk [vmem:[#allocation3 + $0xb0] sm:$0xf] %vm4077, %v4183
        %4219 = vst.msk [vmem:[#allocation3 + $0xb4] sm:$0xf] %vm4077, %v4185
        %4220 = vst.msk [vmem:[#allocation3 + $0xb8] sm:$0xf] %vm4077, %v4187
        %4221 = vst.msk [vmem:[#allocation3 + $0xbc] sm:$0xf] %vm4077, %v4189
        %4222 = vrot.lane.b32.xlu0 %v3226, 113
        %v4223 = vpop.permute.xlu0 %4222
        %4224 = vrot.lane.b32.xlu0 %v3227, 113
        %v4225 = vpop.permute.xlu0 %4224
        %4226 = vrot.lane.b32.xlu0 %v3228, 113
        %v4227 = vpop.permute.xlu0 %4226
        %4228 = vrot.lane.b32.xlu0 %v3229, 113
        %v4229 = vpop.permute.xlu0 %4228
        %4230 = vrot.lane.b32.xlu0 %v3230, 113
        %v4231 = vpop.permute.xlu0 %4230
        %4232 = vrot.lane.b32.xlu0 %v3231, 113
        %v4233 = vpop.permute.xlu0 %4232
        %4234 = vrot.lane.b32.xlu0 %v3232, 113
        %v4235 = vpop.permute.xlu0 %4234
        %4236 = vrot.lane.b32.xlu0 %v3233, 113
        %v4237 = vpop.permute.xlu0 %4236
        %4238 = vrot.lane.b32.xlu0 %v3234, 113
        %v4239 = vpop.permute.xlu0 %4238
        %4240 = vrot.lane.b32.xlu0 %v3235, 113
        %v4241 = vpop.permute.xlu0 %4240
        %4242 = vrot.lane.b32.xlu0 %v3236, 113
        %v4243 = vpop.permute.xlu0 %4242
        %4244 = vrot.lane.b32.xlu0 %v3237, 113
        %v4245 = vpop.permute.xlu0 %4244
        %4246 = vrot.lane.b32.xlu0 %v3238, 113
        %v4247 = vpop.permute.xlu0 %4246
        %4248 = vrot.lane.b32.xlu0 %v3239, 113
        %v4249 = vpop.permute.xlu0 %4248
        %4250 = vrot.lane.b32.xlu0 %v3240, 113
        %v4251 = vpop.permute.xlu0 %4250
        %4252 = vrot.lane.b32.xlu0 %v3241, 113
        %v4253 = vpop.permute.xlu0 %4252
        %4270 = vst.msk [vmem:[#allocation3 + $0xc0] sm:$0xf] %vm4077, %v4223
        %4271 = vst.msk [vmem:[#allocation3 + $0xc4] sm:$0xf] %vm4077, %v4225
        %4272 = vst.msk [vmem:[#allocation3 + $0xc8] sm:$0xf] %vm4077, %v4227
        %4273 = vst.msk [vmem:[#allocation3 + $0xcc] sm:$0xf] %vm4077, %v4229
        %4274 = vst.msk [vmem:[#allocation3 + $0xd0] sm:$0xf] %vm4077, %v4231
        %4275 = vst.msk [vmem:[#allocation3 + $0xd4] sm:$0xf] %vm4077, %v4233
        %4276 = vst.msk [vmem:[#allocation3 + $0xd8] sm:$0xf] %vm4077, %v4235
        %4277 = vst.msk [vmem:[#allocation3 + $0xdc] sm:$0xf] %vm4077, %v4237
        %4278 = vst.msk [vmem:[#allocation3 + $0xe0] sm:$0xf] %vm4077, %v4239
        %4279 = vst.msk [vmem:[#allocation3 + $0xe4] sm:$0xf] %vm4077, %v4241
        %4280 = vst.msk [vmem:[#allocation3 + $0xe8] sm:$0xf] %vm4077, %v4243
        %4281 = vst.msk [vmem:[#allocation3 + $0xec] sm:$0xf] %vm4077, %v4245
        %4282 = vst.msk [vmem:[#allocation3 + $0xf0] sm:$0xf] %vm4077, %v4247
        %4283 = vst.msk [vmem:[#allocation3 + $0xf4] sm:$0xf] %vm4077, %v4249
        %4284 = vst.msk [vmem:[#allocation3 + $0xf8] sm:$0xf] %vm4077, %v4251
        %4285 = vst.msk [vmem:[#allocation3 + $0xfc] sm:$0xf] %vm4077, %v4253
        %4286 = vrot.lane.b32.xlu0 %v3226, 112
        %v4287 = vpop.permute.xlu0 %4286
        %4288 = vrot.lane.b32.xlu0 %v3227, 112
        %v4289 = vpop.permute.xlu0 %4288
        %4290 = vrot.lane.b32.xlu0 %v3228, 112
        %v4291 = vpop.permute.xlu0 %4290
        %4292 = vrot.lane.b32.xlu0 %v3229, 112
        %v4293 = vpop.permute.xlu0 %4292
        %4294 = vrot.lane.b32.xlu0 %v3230, 112
        %v4295 = vpop.permute.xlu0 %4294
        %4296 = vrot.lane.b32.xlu0 %v3231, 112
        %v4297 = vpop.permute.xlu0 %4296
        %4298 = vrot.lane.b32.xlu0 %v3232, 112
        %v4299 = vpop.permute.xlu0 %4298
        %4300 = vrot.lane.b32.xlu0 %v3233, 112
        %v4301 = vpop.permute.xlu0 %4300
        %4302 = vrot.lane.b32.xlu0 %v3234, 112
        %v4303 = vpop.permute.xlu0 %4302
        %4304 = vrot.lane.b32.xlu0 %v3235, 112
        %v4305 = vpop.permute.xlu0 %4304
        %4306 = vrot.lane.b32.xlu0 %v3236, 112
        %v4307 = vpop.permute.xlu0 %4306
        %4308 = vrot.lane.b32.xlu0 %v3237, 112
        %v4309 = vpop.permute.xlu0 %4308
        %4310 = vrot.lane.b32.xlu0 %v3238, 112
        %v4311 = vpop.permute.xlu0 %4310
        %4312 = vrot.lane.b32.xlu0 %v3239, 112
        %v4313 = vpop.permute.xlu0 %4312
        %4314 = vrot.lane.b32.xlu0 %v3240, 112
        %v4315 = vpop.permute.xlu0 %4314
        %4316 = vrot.lane.b32.xlu0 %v3241, 112
        %v4317 = vpop.permute.xlu0 %4316
        %4334 = vst.msk [vmem:[#allocation3 + $0x100] sm:$0xf] %vm4077, %v4287
        %4335 = vst.msk [vmem:[#allocation3 + $0x104] sm:$0xf] %vm4077, %v4289
        %4336 = vst.msk [vmem:[#allocation3 + $0x108] sm:$0xf] %vm4077, %v4291
        %4337 = vst.msk [vmem:[#allocation3 + $0x10c] sm:$0xf] %vm4077, %v4293
        %4338 = vst.msk [vmem:[#allocation3 + $0x110] sm:$0xf] %vm4077, %v4295
        %4339 = vst.msk [vmem:[#allocation3 + $0x114] sm:$0xf] %vm4077, %v4297
        %4340 = vst.msk [vmem:[#allocation3 + $0x118] sm:$0xf] %vm4077, %v4299
        %4341 = vst.msk [vmem:[#allocation3 + $0x11c] sm:$0xf] %vm4077, %v4301
        %4342 = vst.msk [vmem:[#allocation3 + $0x120] sm:$0xf] %vm4077, %v4303
        %4343 = vst.msk [vmem:[#allocation3 + $0x124] sm:$0xf] %vm4077, %v4305
        %4344 = vst.msk [vmem:[#allocation3 + $0x128] sm:$0xf] %vm4077, %v4307
        %4345 = vst.msk [vmem:[#allocation3 + $0x12c] sm:$0xf] %vm4077, %v4309
        %4346 = vst.msk [vmem:[#allocation3 + $0x130] sm:$0xf] %vm4077, %v4311
        %4347 = vst.msk [vmem:[#allocation3 + $0x134] sm:$0xf] %vm4077, %v4313
        %4348 = vst.msk [vmem:[#allocation3 + $0x138] sm:$0xf] %vm4077, %v4315
        %4349 = vst.msk [vmem:[#allocation3 + $0x13c] sm:$0xf] %vm4077, %v4317
        %v4350 = vld [vmem:[%s3] sm:$0xff]
        %v4351 = vld [vmem:[%s3 + $0x8] sm:$0xff]
        %v4352 = vld [vmem:[%s3 + $0x10] sm:$0xf]
        %v4353 = vld [vmem:[%s3 + $0x14] sm:$0xff]
        %v4354 = vld [vmem:[%s3 + $0x1c] sm:$0xff]
        %v4355 = vld [vmem:[%s3 + $0x24] sm:$0xf]
        %v4356 = vld [vmem:[%s3 + $0x28] sm:$0xff]
        %v4357 = vld [vmem:[%s3 + $0x30] sm:$0xff]
        %v4358 = vld [vmem:[%s3 + $0x38] sm:$0xf]
        %v4359 = vld [vmem:[%s3 + $0x3c] sm:$0xff]
        %v4360 = vld [vmem:[%s3 + $0x44] sm:$0xff]
        %v4361 = vld [vmem:[%s3 + $0x4c] sm:$0xf]
        %v4362 = vld [vmem:[%s3 + $0x50] sm:$0xff]
        %v4363 = vld [vmem:[%s3 + $0x58] sm:$0xff]
        %v4364 = vld [vmem:[%s3 + $0x60] sm:$0xf]
        %v4365 = vld [vmem:[%s3 + $0x64] sm:$0xff]
        %v4366 = vld [vmem:[%s3 + $0x6c] sm:$0xff]
        %v4367 = vld [vmem:[%s3 + $0x74] sm:$0xf]
        %v4368 = vld [vmem:[%s3 + $0x78] sm:$0xff]
        %v4369 = vld [vmem:[%s3 + $0x80] sm:$0xff]
        %v4370 = vld [vmem:[%s3 + $0x88] sm:$0xf]
        %v4371 = vld [vmem:[%s3 + $0x8c] sm:$0xff]
        %v4372 = vld [vmem:[%s3 + $0x94] sm:$0xff]
        %v4373 = vld [vmem:[%s3 + $0x9c] sm:$0xf]
        %v4374 = vld [vmem:[#allocation3] sm:$0xf]
        %v4375 = vld [vmem:[#allocation3 + $0x4] sm:$0xf]
        %v4376 = vld [vmem:[#allocation3 + $0x8] sm:$0xf]
        %v4377 = vld [vmem:[#allocation3 + $0xc] sm:$0xf]
        %v4378 = vld [vmem:[#allocation3 + $0x10] sm:$0xf]
        %v4379 = vld [vmem:[#allocation3 + $0x14] sm:$0xf]
        %v4380 = vld [vmem:[#allocation3 + $0x18] sm:$0xf]
        %v4381 = vld [vmem:[#allocation3 + $0x1c] sm:$0xf]
        %v4382 = vld [vmem:[#allocation3 + $0x20] sm:$0xf]
        %v4383 = vld [vmem:[#allocation3 + $0x24] sm:$0xf]
        %v4384 = vld [vmem:[#allocation3 + $0x28] sm:$0xf]
        %v4385 = vld [vmem:[#allocation3 + $0x2c] sm:$0xf]
        %v4386 = vld [vmem:[#allocation3 + $0x30] sm:$0xf]
        %v4387 = vld [vmem:[#allocation3 + $0x34] sm:$0xf]
        %v4388 = vld [vmem:[#allocation3 + $0x38] sm:$0xf]
        %v4389 = vld [vmem:[#allocation3 + $0x3c] sm:$0xf]
        %v4390 = vld [vmem:[#allocation3 + $0x40] sm:$0xf]
        %v4391 = vld [vmem:[#allocation3 + $0x44] sm:$0xf]
        %v4392 = vld [vmem:[#allocation3 + $0x48] sm:$0xf]
        %v4393 = vld [vmem:[#allocation3 + $0x4c] sm:$0xf]
        %v4394 = vld [vmem:[#allocation3 + $0x50] sm:$0xf]
        %v4395 = vld [vmem:[#allocation3 + $0x54] sm:$0xf]
        %v4396 = vld [vmem:[#allocation3 + $0x58] sm:$0xf]
        %v4397 = vld [vmem:[#allocation3 + $0x5c] sm:$0xf]
        %v4398 = vld [vmem:[#allocation3 + $0x60] sm:$0xf]
        %v4399 = vld [vmem:[#allocation3 + $0x64] sm:$0xf]
        %v4400 = vld [vmem:[#allocation3 + $0x68] sm:$0xf]
        %v4401 = vld [vmem:[#allocation3 + $0x6c] sm:$0xf]
        %v4402 = vld [vmem:[#allocation3 + $0x70] sm:$0xf]
        %v4403 = vld [vmem:[#allocation3 + $0x74] sm:$0xf]
        %v4404 = vld [vmem:[#allocation3 + $0x78] sm:$0xf]
        %v4405 = vld [vmem:[#allocation3 + $0x7c] sm:$0xf]
        %v4406 = vld [vmem:[#allocation3 + $0x80] sm:$0xf]
        %v4407 = vld [vmem:[#allocation3 + $0x84] sm:$0xf]
        %v4408 = vld [vmem:[#allocation3 + $0x88] sm:$0xf]
        %v4409 = vld [vmem:[#allocation3 + $0x8c] sm:$0xf]
        %v4410 = vld [vmem:[#allocation3 + $0x90] sm:$0xf]
        %v4411 = vld [vmem:[#allocation3 + $0x94] sm:$0xf]
        %v4412 = vld [vmem:[#allocation3 + $0x98] sm:$0xf]
        %v4413 = vld [vmem:[#allocation3 + $0x9c] sm:$0xf]
        %v4414 = vld [vmem:[#allocation3 + $0xa0] sm:$0xf]
        %v4415 = vld [vmem:[#allocation3 + $0xa4] sm:$0xf]
        %v4416 = vld [vmem:[#allocation3 + $0xa8] sm:$0xf]
        %v4417 = vld [vmem:[#allocation3 + $0xac] sm:$0xf]
        %v4418 = vld [vmem:[#allocation3 + $0xb0] sm:$0xf]
        %v4419 = vld [vmem:[#allocation3 + $0xb4] sm:$0xf]
        %v4420 = vld [vmem:[#allocation3 + $0xb8] sm:$0xf]
        %v4421 = vld [vmem:[#allocation3 + $0xbc] sm:$0xf]
        %v4422 = vld [vmem:[#allocation3 + $0xc0] sm:$0xf]
        %v4423 = vld [vmem:[#allocation3 + $0xc4] sm:$0xf]
        %v4424 = vld [vmem:[#allocation3 + $0xc8] sm:$0xf]
        %v4425 = vld [vmem:[#allocation3 + $0xcc] sm:$0xf]
        %v4426 = vld [vmem:[#allocation3 + $0xd0] sm:$0xf]
        %v4427 = vld [vmem:[#allocation3 + $0xd4] sm:$0xf]
        %v4428 = vld [vmem:[#allocation3 + $0xd8] sm:$0xf]
        %v4429 = vld [vmem:[#allocation3 + $0xdc] sm:$0xf]
        %v4430 = vld [vmem:[#allocation3 + $0xe0] sm:$0xf]
        %v4431 = vld [vmem:[#allocation3 + $0xe4] sm:$0xf]
        %v4432 = vld [vmem:[#allocation3 + $0xe8] sm:$0xf]
        %v4433 = vld [vmem:[#allocation3 + $0xec] sm:$0xf]
        %v4434 = vld [vmem:[#allocation3 + $0xf0] sm:$0xf]
        %v4435 = vld [vmem:[#allocation3 + $0xf4] sm:$0xf]
        %v4436 = vld [vmem:[#allocation3 + $0xf8] sm:$0xf]
        %v4437 = vld [vmem:[#allocation3 + $0xfc] sm:$0xf]
        %v4438 = vld [vmem:[#allocation3 + $0x100] sm:$0xf]
        %v4439 = vld [vmem:[#allocation3 + $0x104] sm:$0xf]
        %v4440 = vld [vmem:[#allocation3 + $0x108] sm:$0xf]
        %v4441 = vld [vmem:[#allocation3 + $0x10c] sm:$0xf]
        %v4442 = vld [vmem:[#allocation3 + $0x110] sm:$0xf]
        %v4443 = vld [vmem:[#allocation3 + $0x114] sm:$0xf]
        %v4444 = vld [vmem:[#allocation3 + $0x118] sm:$0xf]
        %v4445 = vld [vmem:[#allocation3 + $0x11c] sm:$0xf]
        %v4446 = vld [vmem:[#allocation3 + $0x120] sm:$0xf]
        %v4447 = vld [vmem:[#allocation3 + $0x124] sm:$0xf]
        %v4448 = vld [vmem:[#allocation3 + $0x128] sm:$0xf]
        %v4449 = vld [vmem:[#allocation3 + $0x12c] sm:$0xf]
        %v4450 = vld [vmem:[#allocation3 + $0x130] sm:$0xf]
        %v4451 = vld [vmem:[#allocation3 + $0x134] sm:$0xf]
        %v4452 = vld [vmem:[#allocation3 + $0x138] sm:$0xf]
        %v4453 = vld [vmem:[#allocation3 + $0x13c] sm:$0xf]
        %v4454 = vld [vmem:[%s4] sm:$0xff]
        %v4455 = vld [vmem:[%s4 + $0x8] sm:$0xff]
        %v4456 = vld [vmem:[%s4 + $0x10] sm:$0xff]
        %v4457 = vld [vmem:[%s4 + $0x18] sm:$0xff]
        %v4458 = vld [vmem:[%s4 + $0x20] sm:$0xff]
        %v4459 = vld [vmem:[%s4 + $0x28] sm:$0xff]
        %v4460 = vld [vmem:[%s4 + $0x30] sm:$0xff]
        %v4461 = vld [vmem:[%s4 + $0x38] sm:$0xff]
        %4463 = vset.pattern.permute.xlu0 0
        %4464 = vperm.xlu0 %4463, %v4454
        %v4465 = vpop.permute.xlu0 %4464
        %4468 = vset.pattern.permute.xlu0 0
        %4469 = vperm.xlu0 %4468, %v4455
        %v4470 = vpop.permute.xlu0 %4469
        %4473 = vset.pattern.permute.xlu0 0
        %4474 = vperm.xlu0 %4473, %v4456
        %v4475 = vpop.permute.xlu0 %4474
        %4478 = vset.pattern.permute.xlu0 0
        %4479 = vperm.xlu0 %4478, %v4457
        %v4480 = vpop.permute.xlu0 %4479
        %4483 = vset.pattern.permute.xlu0 0
        %4484 = vperm.xlu0 %4483, %v4458
        %v4485 = vpop.permute.xlu0 %4484
        %4488 = vset.pattern.permute.xlu0 0
        %4489 = vperm.xlu0 %4488, %v4459
        %v4490 = vpop.permute.xlu0 %4489
        %4493 = vset.pattern.permute.xlu0 0
        %4494 = vperm.xlu0 %4493, %v4460
        %v4495 = vpop.permute.xlu0 %4494
        %4498 = vset.pattern.permute.xlu0 0
        %4499 = vperm.xlu0 %4498, %v4461
        %v4500 = vpop.permute.xlu0 %4499
        %v4526 = vunpack.c.l.b16 %v4350
        %v4527 = vunpack.c.h.b16 %v4350
        %v4528 = vunpack.c.l.b16 %v4351
        %v4529 = vunpack.c.h.b16 %v4351
        %v4530 = vunpack.c.l.b16 %v4352
        %v4531 = vunpack.c.l.b16 %v4353
        %v4532 = vunpack.c.h.b16 %v4353
        %v4533 = vunpack.c.l.b16 %v4354
        %v4534 = vunpack.c.h.b16 %v4354
        %v4535 = vunpack.c.l.b16 %v4355
        %v4536 = vunpack.c.l.b16 %v4356
        %v4537 = vunpack.c.h.b16 %v4356
        %v4538 = vunpack.c.l.b16 %v4357
        %v4539 = vunpack.c.h.b16 %v4357
        %v4540 = vunpack.c.l.b16 %v4358
        %v4541 = vunpack.c.l.b16 %v4359
        %v4542 = vunpack.c.h.b16 %v4359
        %v4543 = vunpack.c.l.b16 %v4360
        %v4544 = vunpack.c.h.b16 %v4360
        %v4545 = vunpack.c.l.b16 %v4361
        %v4546 = vunpack.c.l.b16 %v4362
        %v4547 = vunpack.c.h.b16 %v4362
        %v4548 = vunpack.c.l.b16 %v4363
        %v4549 = vunpack.c.h.b16 %v4363
        %v4550 = vunpack.c.l.b16 %v4364
        %v4551 = vunpack.c.l.b16 %v4365
        %v4552 = vunpack.c.h.b16 %v4365
        %v4553 = vunpack.c.l.b16 %v4366
        %v4554 = vunpack.c.h.b16 %v4366
        %v4555 = vunpack.c.l.b16 %v4367
        %v4556 = vunpack.c.l.b16 %v4368
        %v4557 = vunpack.c.h.b16 %v4368
        %v4558 = vunpack.c.l.b16 %v4369
        %v4559 = vunpack.c.h.b16 %v4369
        %v4560 = vunpack.c.l.b16 %v4370
        %v4561 = vunpack.c.l.b16 %v4371
        %v4562 = vunpack.c.h.b16 %v4371
        %v4563 = vunpack.c.l.b16 %v4372
        %v4564 = vunpack.c.h.b16 %v4372
        %v4565 = vunpack.c.l.b16 %v4373
        %v4566 = vpack.c.b16 %v4531, %v4526
        %v4567 = vpack.c.b16 %v4532, %v4527
        %v4568 = vpack.c.b16 %v4533, %v4528
        %v4569 = vpack.c.b16 %v4534, %v4529
        %v4570 = vpack.c.b16 %v4535, %v4530
        %v4571 = vpack.c.b16 %v4541, %v4536
        %v4572 = vpack.c.b16 %v4542, %v4537
        %v4573 = vpack.c.b16 %v4543, %v4538
        %v4574 = vpack.c.b16 %v4544, %v4539
        %v4575 = vpack.c.b16 %v4545, %v4540
        %v4576 = vpack.c.b16 %v4551, %v4546
        %v4577 = vpack.c.b16 %v4552, %v4547
        %v4578 = vpack.c.b16 %v4553, %v4548
        %v4579 = vpack.c.b16 %v4554, %v4549
        %v4580 = vpack.c.b16 %v4555, %v4550
        %v4581 = vpack.c.b16 %v4561, %v4556
        %v4582 = vpack.c.b16 %v4562, %v4557
        %v4583 = vpack.c.b16 %v4563, %v4558
        %v4584 = vpack.c.b16 %v4564, %v4559
        %v4585 = vpack.c.b16 %v4565, %v4560
        %v4686 = vunpack.c.l.b16 %v4374
        %v4687 = vunpack.c.l.b16 %v4375
        %v4688 = vunpack.c.l.b16 %v4376
        %v4689 = vunpack.c.l.b16 %v4377
        %v4690 = vunpack.c.l.b16 %v4378
        %v4691 = vunpack.c.l.b16 %v4379
        %v4692 = vunpack.c.l.b16 %v4380
        %v4693 = vunpack.c.l.b16 %v4381
        %v4694 = vunpack.c.l.b16 %v4382
        %v4695 = vunpack.c.l.b16 %v4383
        %v4696 = vunpack.c.l.b16 %v4384
        %v4697 = vunpack.c.l.b16 %v4385
        %v4698 = vunpack.c.l.b16 %v4386
        %v4699 = vunpack.c.l.b16 %v4387
        %v4700 = vunpack.c.l.b16 %v4388
        %v4701 = vunpack.c.l.b16 %v4389
        %v4702 = vunpack.c.l.b16 %v4390
        %v4703 = vunpack.c.l.b16 %v4391
        %v4704 = vunpack.c.l.b16 %v4392
        %v4705 = vunpack.c.l.b16 %v4393
        %v4706 = vunpack.c.l.b16 %v4394
        %v4707 = vunpack.c.l.b16 %v4395
        %v4708 = vunpack.c.l.b16 %v4396
        %v4709 = vunpack.c.l.b16 %v4397
        %v4710 = vunpack.c.l.b16 %v4398
        %v4711 = vunpack.c.l.b16 %v4399
        %v4712 = vunpack.c.l.b16 %v4400
        %v4713 = vunpack.c.l.b16 %v4401
        %v4714 = vunpack.c.l.b16 %v4402
        %v4715 = vunpack.c.l.b16 %v4403
        %v4716 = vunpack.c.l.b16 %v4404
        %v4717 = vunpack.c.l.b16 %v4405
        %v4718 = vunpack.c.l.b16 %v4406
        %v4719 = vunpack.c.l.b16 %v4407
        %v4720 = vunpack.c.l.b16 %v4408
        %v4721 = vunpack.c.l.b16 %v4409
        %v4722 = vunpack.c.l.b16 %v4410
        %v4723 = vunpack.c.l.b16 %v4411
        %v4724 = vunpack.c.l.b16 %v4412
        %v4725 = vunpack.c.l.b16 %v4413
        %v4726 = vunpack.c.l.b16 %v4414
        %v4727 = vunpack.c.l.b16 %v4415
        %v4728 = vunpack.c.l.b16 %v4416
        %v4729 = vunpack.c.l.b16 %v4417
        %v4730 = vunpack.c.l.b16 %v4418
        %v4731 = vunpack.c.l.b16 %v4419
        %v4732 = vunpack.c.l.b16 %v4420
        %v4733 = vunpack.c.l.b16 %v4421
        %v4734 = vunpack.c.l.b16 %v4422
        %v4735 = vunpack.c.l.b16 %v4423
        %v4736 = vunpack.c.l.b16 %v4424
        %v4737 = vunpack.c.l.b16 %v4425
        %v4738 = vunpack.c.l.b16 %v4426
        %v4739 = vunpack.c.l.b16 %v4427
        %v4740 = vunpack.c.l.b16 %v4428
        %v4741 = vunpack.c.l.b16 %v4429
        %v4742 = vunpack.c.l.b16 %v4430
        %v4743 = vunpack.c.l.b16 %v4431
        %v4744 = vunpack.c.l.b16 %v4432
        %v4745 = vunpack.c.l.b16 %v4433
        %v4746 = vunpack.c.l.b16 %v4434
        %v4747 = vunpack.c.l.b16 %v4435
        %v4748 = vunpack.c.l.b16 %v4436
        %v4749 = vunpack.c.l.b16 %v4437
        %v4750 = vunpack.c.l.b16 %v4438
        %v4751 = vunpack.c.l.b16 %v4439
        %v4752 = vunpack.c.l.b16 %v4440
        %v4753 = vunpack.c.l.b16 %v4441
        %v4754 = vunpack.c.l.b16 %v4442
        %v4755 = vunpack.c.l.b16 %v4443
        %v4756 = vunpack.c.l.b16 %v4444
        %v4757 = vunpack.c.l.b16 %v4445
        %v4758 = vunpack.c.l.b16 %v4446
        %v4759 = vunpack.c.l.b16 %v4447
        %v4760 = vunpack.c.l.b16 %v4448
        %v4761 = vunpack.c.l.b16 %v4449
        %v4762 = vunpack.c.l.b16 %v4450
        %v4763 = vunpack.c.l.b16 %v4451
        %v4764 = vunpack.c.l.b16 %v4452
        %v4765 = vunpack.c.l.b16 %v4453
        %v4766 = vpack.c.b16 %v4687, %v4686
        %v4767 = vpack.c.b16 %v4689, %v4688
        %v4768 = vpack.c.b16 %v4691, %v4690
        %v4769 = vpack.c.b16 %v4693, %v4692
        %v4770 = vpack.c.b16 %v4695, %v4694
        %v4771 = vpack.c.b16 %v4697, %v4696
        %v4772 = vpack.c.b16 %v4699, %v4698
        %v4773 = vpack.c.b16 %v4701, %v4700
        %v4774 = vpack.c.b16 %v4703, %v4702
        %v4775 = vpack.c.b16 %v4705, %v4704
        %v4776 = vpack.c.b16 %v4707, %v4706
        %v4777 = vpack.c.b16 %v4709, %v4708
        %v4778 = vpack.c.b16 %v4711, %v4710
        %v4779 = vpack.c.b16 %v4713, %v4712
        %v4780 = vpack.c.b16 %v4715, %v4714
        %v4781 = vpack.c.b16 %v4717, %v4716
        %v4782 = vpack.c.b16 %v4719, %v4718
        %v4783 = vpack.c.b16 %v4721, %v4720
        %v4784 = vpack.c.b16 %v4723, %v4722
        %v4785 = vpack.c.b16 %v4725, %v4724
        %v4786 = vpack.c.b16 %v4727, %v4726
        %v4787 = vpack.c.b16 %v4729, %v4728
        %v4788 = vpack.c.b16 %v4731, %v4730
        %v4789 = vpack.c.b16 %v4733, %v4732
        %v4790 = vpack.c.b16 %v4735, %v4734
        %v4791 = vpack.c.b16 %v4737, %v4736
        %v4792 = vpack.c.b16 %v4739, %v4738
        %v4793 = vpack.c.b16 %v4741, %v4740
        %v4794 = vpack.c.b16 %v4743, %v4742
        %v4795 = vpack.c.b16 %v4745, %v4744
        %v4796 = vpack.c.b16 %v4747, %v4746
        %v4797 = vpack.c.b16 %v4749, %v4748
        %v4798 = vpack.c.b16 %v4751, %v4750
        %v4799 = vpack.c.b16 %v4753, %v4752
        %v4800 = vpack.c.b16 %v4755, %v4754
        %v4801 = vpack.c.b16 %v4757, %v4756
        %v4802 = vpack.c.b16 %v4759, %v4758
        %v4803 = vpack.c.b16 %v4761, %v4760
        %v4804 = vpack.c.b16 %v4763, %v4762
        %v4805 = vpack.c.b16 %v4765, %v4764
        %4846 = vmatprep.subr.bf16.mxu0 0
        %4847 = vmatpush1.bf16.msra.mxu0 %v4773
        %4848 = vmatprep.subr.bf16.mxu0 0
        %4849 = vmatpush1.bf16.msra.mxu0 %v4772
        %4850 = vmatprep.subr.bf16.mxu0 0
        %4851 = vmatpush1.bf16.msra.mxu0 %v4771
        %4852 = vmatprep.subr.bf16.mxu0 0
        %4853 = vmatpush1.bf16.msra.mxu0 %v4770
        %4854 = vmatprep.subr.bf16.mxu0 0
        %4855 = vmatpush1.bf16.msra.mxu0 %v4769
        %4856 = vmatprep.subr.bf16.mxu0 0
        %4857 = vmatpush1.bf16.msra.mxu0 %v4768
        %4858 = vmatprep.subr.bf16.mxu0 0
        %4859 = vmatpush1.bf16.msra.mxu0 %v4767
        %4860 = vmatprep.subr.bf16.mxu0 0
        %4861 = vmatpush1.bf16.msra.mxu0 %v4766
        %4862 = vmatprep.subr.bf16.mxu0 0
        %4863 = vmatpush2.bf16.msra.mxu0 %v4781
        %4864 = vmatprep.subr.bf16.mxu0 0
        %4865 = vmatpush2.bf16.msra.mxu0 %v4780
        %4866 = vmatprep.subr.bf16.mxu0 0
        %4867 = vmatpush2.bf16.msra.mxu0 %v4779
        %4868 = vmatprep.subr.bf16.mxu0 0
        %4869 = vmatpush2.bf16.msra.mxu0 %v4778
        %4870 = vmatprep.subr.bf16.mxu0 0
        %4871 = vmatpush2.bf16.msra.mxu0 %v4777
        %4872 = vmatprep.subr.bf16.mxu0 0
        %4873 = vmatpush2.bf16.msra.mxu0 %v4776
        %4874 = vmatprep.subr.bf16.mxu0 0
        %4875 = vmatpush2.bf16.msra.mxu0 %v4775
        %4876 = vmatprep.subr.bf16.mxu0 0
        %4877 = vmatpush2.bf16.msra.mxu0 %v4774
        %4878 = vmatprep.mubr.bf16.mxu0 %v4567
        %4879 = vmatmul.mubr.bf16.gmra.mxu0 %v4566
        %v4880 = vpop.f32.mrf.mxu0
        %v4881 = vadd.f32 %v4465, %v4880
        %v4882 = vpop.f32.mrf.mxu0
        %v4883 = vpop.f32.mrf.mxu0
        %v4884 = vadd.f32 %v4470, %v4883
        %v4885 = vpop.f32.mrf.mxu0
        %4886 = vmatprep.mubr.bf16.mxu0 %v4572
        %4887 = vmatmul.mubr.bf16.gmra.mxu0 %v4571
        %v4888 = vpop.f32.mrf.mxu0
        %v4889 = vadd.f32 %v4475, %v4888
        %v4890 = vpop.f32.mrf.mxu0
        %v4891 = vpop.f32.mrf.mxu0
        %v4892 = vadd.f32 %v4480, %v4891
        %v4893 = vpop.f32.mrf.mxu0
        %4894 = vmatprep.mubr.bf16.mxu0 %v4577
        %4895 = vmatmul.mubr.bf16.gmra.mxu0 %v4576
        %v4896 = vpop.f32.mrf.mxu0
        %v4897 = vadd.f32 %v4485, %v4896
        %v4898 = vpop.f32.mrf.mxu0
        %v4899 = vpop.f32.mrf.mxu0
        %v4900 = vadd.f32 %v4490, %v4899
        %v4901 = vpop.f32.mrf.mxu0
        %4902 = vmatprep.mubr.bf16.mxu0 %v4582
        %4903 = vmatmul.mubr.bf16.gmra.mxu0 %v4581
        %v4904 = vpop.f32.mrf.mxu0
        %v4905 = vadd.f32 %v4495, %v4904
        %v4906 = vpop.f32.mrf.mxu0
        %v4907 = vpop.f32.mrf.mxu0
        %v4908 = vadd.f32 %v4500, %v4907
        %v4909 = vpop.f32.mrf.mxu0
        %4910 = vdwg.mxu0
        %4911 = vmatprep.subr.bf16.mxu0 0
        %4912 = vmatpush1.bf16.msra.mxu0 %v4789
        %4913 = vmatprep.subr.bf16.mxu0 0
        %4914 = vmatpush1.bf16.msra.mxu0 %v4788
        %4915 = vmatprep.subr.bf16.mxu0 0
        %4916 = vmatpush1.bf16.msra.mxu0 %v4787
        %4917 = vmatprep.subr.bf16.mxu0 0
        %4918 = vmatpush1.bf16.msra.mxu0 %v4786
        %4919 = vmatprep.subr.bf16.mxu0 0
        %4920 = vmatpush1.bf16.msra.mxu0 %v4785
        %4921 = vmatprep.subr.bf16.mxu0 0
        %4922 = vmatpush1.bf16.msra.mxu0 %v4784
        %4923 = vmatprep.subr.bf16.mxu0 0
        %4924 = vmatpush1.bf16.msra.mxu0 %v4783
        %4925 = vmatprep.subr.bf16.mxu0 0
        %4926 = vmatpush1.bf16.msra.mxu0 %v4782
        %4927 = vmatprep.subr.bf16.mxu0 0
        %4928 = vmatpush2.bf16.msra.mxu0 %v4797
        %4929 = vmatprep.subr.bf16.mxu0 0
        %4930 = vmatpush2.bf16.msra.mxu0 %v4796
        %4931 = vmatprep.subr.bf16.mxu0 0
        %4932 = vmatpush2.bf16.msra.mxu0 %v4795
        %4933 = vmatprep.subr.bf16.mxu0 0
        %4934 = vmatpush2.bf16.msra.mxu0 %v4794
        %4935 = vmatprep.subr.bf16.mxu0 0
        %4936 = vmatpush2.bf16.msra.mxu0 %v4793
        %4937 = vmatprep.subr.bf16.mxu0 0
        %4938 = vmatpush2.bf16.msra.mxu0 %v4792
        %4939 = vmatprep.subr.bf16.mxu0 0
        %4940 = vmatpush2.bf16.msra.mxu0 %v4791
        %4941 = vmatprep.subr.bf16.mxu0 0
        %4942 = vmatpush2.bf16.msra.mxu0 %v4790
        %4943 = vmatprep.mubr.bf16.mxu0 %v4569
        %4944 = vmatmul.mubr.bf16.gmra.mxu0 %v4568
        %v4945 = vpop.f32.mrf.mxu0
        %v4946 = vadd.f32 %v4881, %v4945
        %v4947 = vpop.f32.mrf.mxu0
        %v4948 = vpop.f32.mrf.mxu0
        %v4949 = vadd.f32 %v4884, %v4948
        %v4950 = vpop.f32.mrf.mxu0
        %4951 = vmatprep.mubr.bf16.mxu0 %v4574
        %4952 = vmatmul.mubr.bf16.gmra.mxu0 %v4573
        %v4953 = vpop.f32.mrf.mxu0
        %v4954 = vadd.f32 %v4889, %v4953
        %v4955 = vpop.f32.mrf.mxu0
        %v4956 = vpop.f32.mrf.mxu0
        %v4957 = vadd.f32 %v4892, %v4956
        %v4958 = vpop.f32.mrf.mxu0
        %4959 = vmatprep.mubr.bf16.mxu0 %v4579
        %4960 = vmatmul.mubr.bf16.gmra.mxu0 %v4578
        %v4961 = vpop.f32.mrf.mxu0
        %v4962 = vadd.f32 %v4897, %v4961
        %v4963 = vpop.f32.mrf.mxu0
        %v4964 = vpop.f32.mrf.mxu0
        %v4965 = vadd.f32 %v4900, %v4964
        %v4966 = vpop.f32.mrf.mxu0
        %4967 = vmatprep.mubr.bf16.mxu0 %v4584
        %4968 = vmatmul.mubr.bf16.gmra.mxu0 %v4583
        %v4969 = vpop.f32.mrf.mxu0
        %v4970 = vadd.f32 %v4905, %v4969
        %v4971 = vpop.f32.mrf.mxu0
        %v4972 = vpop.f32.mrf.mxu0
        %v4973 = vadd.f32 %v4908, %v4972
        %v4974 = vpop.f32.mrf.mxu0
        %4975 = vdwg.mxu0
        %4976 = vmatprep.subr.bf16.mxu0 0
        %4977 = vmatpush1.bf16.msra.mxu0 %v4805
        %4978 = vmatprep.subr.bf16.mxu0 0
        %4979 = vmatpush1.bf16.msra.mxu0 %v4804
        %4980 = vmatprep.subr.bf16.mxu0 0
        %4981 = vmatpush1.bf16.msra.mxu0 %v4803
        %4982 = vmatprep.subr.bf16.mxu0 0
        %4983 = vmatpush1.bf16.msra.mxu0 %v4802
        %4984 = vmatprep.subr.bf16.mxu0 0
        %4985 = vmatpush1.bf16.msra.mxu0 %v4801
        %4986 = vmatprep.subr.bf16.mxu0 0
        %4987 = vmatpush1.bf16.msra.mxu0 %v4800
        %4988 = vmatprep.subr.bf16.mxu0 0
        %4989 = vmatpush1.bf16.msra.mxu0 %v4799
        %4990 = vmatprep.subr.bf16.mxu0 0
        %4991 = vmatpush1.bf16.msra.mxu0 %v4798
        %4992 = vmatprep.subr.bf16.mxu0 0
        %4993 = vmatpush2.bf16.msra.mxu0 0
        %4994 = vmatprep.subr.bf16.mxu0 0
        %4995 = vmatpush2.bf16.msra.mxu0 0
        %4996 = vmatprep.subr.bf16.mxu0 0
        %4997 = vmatpush2.bf16.msra.mxu0 0
        %4998 = vmatprep.subr.bf16.mxu0 0
        %4999 = vmatpush2.bf16.msra.mxu0 0
        %5000 = vmatprep.subr.bf16.mxu0 0
        %5001 = vmatpush2.bf16.msra.mxu0 0
        %5002 = vmatprep.subr.bf16.mxu0 0
        %5003 = vmatpush2.bf16.msra.mxu0 0
        %5004 = vmatprep.subr.bf16.mxu0 0
        %5005 = vmatpush2.bf16.msra.mxu0 0
        %5006 = vmatprep.subr.bf16.mxu0 0
        %5007 = vmatpush2.bf16.msra.mxu0 0
        %5008 = vmatprep.mubr.bf16.mxu0 0
        %5009 = vmatmul.mubr.bf16.gmra.mxu0 %v4570
        %v5010 = vpop.f32.mrf.mxu0
        %v5011 = vadd.f32 %v4946, %v5010
        %v5012 = vpop.f32.mrf.mxu0
        %v5013 = vpop.f32.mrf.mxu0
        %v5014 = vadd.f32 %v4949, %v5013
        %v5015 = vpop.f32.mrf.mxu0
        %5016 = vmatprep.mubr.bf16.mxu0 0
        %5017 = vmatmul.mubr.bf16.gmra.mxu0 %v4575
        %v5018 = vpop.f32.mrf.mxu0
        %v5019 = vadd.f32 %v4954, %v5018
        %v5020 = vpop.f32.mrf.mxu0
        %v5021 = vpop.f32.mrf.mxu0
        %v5022 = vadd.f32 %v4957, %v5021
        %v5023 = vpop.f32.mrf.mxu0
        %5024 = vmatprep.mubr.bf16.mxu0 0
        %5025 = vmatmul.mubr.bf16.gmra.mxu0 %v4580
        %v5026 = vpop.f32.mrf.mxu0
        %v5027 = vadd.f32 %v4962, %v5026
        %v5028 = vpop.f32.mrf.mxu0
        %v5029 = vpop.f32.mrf.mxu0
        %v5030 = vadd.f32 %v4965, %v5029
        %v5031 = vpop.f32.mrf.mxu0
        %5032 = vmatprep.mubr.bf16.mxu0 0
        %5033 = vmatmul.mubr.bf16.gmra.mxu0 %v4585
        %v5034 = vpop.f32.mrf.mxu0
        %v5035 = vadd.f32 %v4970, %v5034
        %v5036 = vpop.f32.mrf.mxu0
        %v5037 = vpop.f32.mrf.mxu0
        %v5038 = vadd.f32 %v4973, %v5037
        %v5039 = vpop.f32.mrf.mxu0
        %5040 = vdwg.mxu0
        %v5041 = vmax.f32 %v5011, 0.0
        %v5042 = vmax.f32 %v5014, 0.0
        %v5043 = vmax.f32 %v5019, 0.0
        %v5044 = vmax.f32 %v5022, 0.0
        %v5045 = vmax.f32 %v5027, 0.0
        %v5046 = vmax.f32 %v5030, 0.0
        %v5047 = vmax.f32 %v5035, 0.0
        %v5048 = vmax.f32 %v5038, 0.0
        %5057 = vrot.lane.b32.xlu0 %v5041, 127
        %v5058 = vpop.permute.xlu0 %5057
        %5059 = vrot.lane.b32.xlu0 %v5042, 127
        %v5060 = vpop.permute.xlu0 %5059
        %5061 = vrot.lane.b32.xlu0 %v5043, 127
        %v5062 = vpop.permute.xlu0 %5061
        %5063 = vrot.lane.b32.xlu0 %v5044, 127
        %v5064 = vpop.permute.xlu0 %5063
        %5065 = vrot.lane.b32.xlu0 %v5045, 127
        %v5066 = vpop.permute.xlu0 %5065
        %5067 = vrot.lane.b32.xlu0 %v5046, 127
        %v5068 = vpop.permute.xlu0 %5067
        %5069 = vrot.lane.b32.xlu0 %v5047, 127
        %v5070 = vpop.permute.xlu0 %5069
        %5071 = vrot.lane.b32.xlu0 %v5048, 127
        %v5072 = vpop.permute.xlu0 %5071
        %v5081 = vmax.f32 %v5041, %v5058
        %v5082 = vmax.f32 %v5042, %v5060
        %v5083 = vmax.f32 %v5043, %v5062
        %v5084 = vmax.f32 %v5044, %v5064
        %v5085 = vmax.f32 %v5045, %v5066
        %v5086 = vmax.f32 %v5046, %v5068
        %v5087 = vmax.f32 %v5047, %v5070
        %v5088 = vmax.f32 %v5048, %v5072
        %5089 = vrot.lane.b32.xlu0 %v5041, 126
        %v5090 = vpop.permute.xlu0 %5089
        %5091 = vrot.lane.b32.xlu0 %v5042, 126
        %v5092 = vpop.permute.xlu0 %5091
        %5093 = vrot.lane.b32.xlu0 %v5043, 126
        %v5094 = vpop.permute.xlu0 %5093
        %5095 = vrot.lane.b32.xlu0 %v5044, 126
        %v5096 = vpop.permute.xlu0 %5095
        %5097 = vrot.lane.b32.xlu0 %v5045, 126
        %v5098 = vpop.permute.xlu0 %5097
        %5099 = vrot.lane.b32.xlu0 %v5046, 126
        %v5100 = vpop.permute.xlu0 %5099
        %5101 = vrot.lane.b32.xlu0 %v5047, 126
        %v5102 = vpop.permute.xlu0 %5101
        %5103 = vrot.lane.b32.xlu0 %v5048, 126
        %v5104 = vpop.permute.xlu0 %5103
        %v5113 = vmax.f32 %v5081, %v5090
        %v5114 = vmax.f32 %v5082, %v5092
        %v5115 = vmax.f32 %v5083, %v5094
        %v5116 = vmax.f32 %v5084, %v5096
        %v5117 = vmax.f32 %v5085, %v5098
        %v5118 = vmax.f32 %v5086, %v5100
        %v5119 = vmax.f32 %v5087, %v5102
        %v5120 = vmax.f32 %v5088, %v5104
        %5121 = vrot.lane.b32.xlu0 %v5041, 125
        %v5122 = vpop.permute.xlu0 %5121
        %5123 = vrot.lane.b32.xlu0 %v5042, 125
        %v5124 = vpop.permute.xlu0 %5123
        %5125 = vrot.lane.b32.xlu0 %v5043, 125
        %v5126 = vpop.permute.xlu0 %5125
        %5127 = vrot.lane.b32.xlu0 %v5044, 125
        %v5128 = vpop.permute.xlu0 %5127
        %5129 = vrot.lane.b32.xlu0 %v5045, 125
        %v5130 = vpop.permute.xlu0 %5129
        %5131 = vrot.lane.b32.xlu0 %v5046, 125
        %v5132 = vpop.permute.xlu0 %5131
        %5133 = vrot.lane.b32.xlu0 %v5047, 125
        %v5134 = vpop.permute.xlu0 %5133
        %5135 = vrot.lane.b32.xlu0 %v5048, 125
        %v5136 = vpop.permute.xlu0 %5135
        %v5145 = vmax.f32 %v5113, %v5122
        %v5146 = vmax.f32 %v5114, %v5124
        %v5147 = vmax.f32 %v5115, %v5126
        %v5148 = vmax.f32 %v5116, %v5128
        %v5149 = vmax.f32 %v5117, %v5130
        %v5150 = vmax.f32 %v5118, %v5132
        %v5151 = vmax.f32 %v5119, %v5134
        %v5152 = vmax.f32 %v5120, %v5136
        %v5153 = vpack.c.bf16 %v5146, %v5145
        %v5154 = vpack.c.bf16 %v5148, %v5147
        %v5155 = vpack.c.bf16 %v5150, %v5149
        %v5156 = vpack.c.bf16 %v5152, %v5151
        %v5157 = vld [vmem:[%s14] sm:$0xf]
        %v5158 = vld [vmem:[%s14 + $0x4] sm:$0xf]
        %v5159 = vld [vmem:[%s14 + $0x8] sm:$0xf]
        %v5160 = vld [vmem:[%s14 + $0xc] sm:$0xf]
        %v5161 = vld [vmem:[%s14 + $0x10] sm:$0xf]
        %v5162 = vld [vmem:[%s14 + $0x14] sm:$0xf]
        %v5163 = vld [vmem:[%s14 + $0x18] sm:$0xf]
        %v5164 = vld [vmem:[%s14 + $0x1c] sm:$0xf]
        %v5165 = vld [vmem:[%s14 + $0x20] sm:$0xf]
        %v5166 = vld [vmem:[%s14 + $0x24] sm:$0xf]
        %v5167 = vld [vmem:[%s14 + $0x28] sm:$0xf]
        %v5168 = vld [vmem:[%s14 + $0x2c] sm:$0xf]
        %v5169 = vld [vmem:[%s14 + $0x30] sm:$0x1]
        %v5183 = vunpack.c.l.b16 %v5157
        %v5184 = vunpack.c.l.b16 %v5158
        %v5185 = vunpack.c.l.b16 %v5159
        %v5186 = vunpack.c.l.b16 %v5160
        %v5187 = vunpack.c.l.b16 %v5161
        %v5188 = vunpack.c.l.b16 %v5162
        %v5189 = vunpack.c.l.b16 %v5163
        %v5190 = vunpack.c.l.b16 %v5164
        %v5191 = vunpack.c.l.b16 %v5165
        %v5192 = vunpack.c.l.b16 %v5166
        %v5193 = vunpack.c.l.b16 %v5167
        %v5194 = vunpack.c.l.b16 %v5168
        %v5195 = vunpack.c.l.b16 %v5169
        %v5196 = vpack.c.b16 %v5184, %v5183
        %v5197 = vpack.c.b16 %v5186, %v5185
        %v5198 = vpack.c.b16 %v5188, %v5187
        %v5199 = vpack.c.b16 %v5190, %v5189
        %v5200 = vpack.c.b16 %v5192, %v5191
        %v5201 = vpack.c.b16 %v5194, %v5193
        %v5202 = vpack.c.b16 %v5195, %v5195
        %vm5209 = vcmask 793600
        %v5211 = vsel %vm5209, %v5153, 0
        %v5214 = vsel %vm5209, %v5154, 0
        %v5217 = vsel %vm5209, %v5155, 0
        %v5220 = vsel %vm5209, %v5156, 0
        %vm5222 = vcmask 1040384
        %v5223 = vsel 0, 4294967295, 65535
        %v5224 = vsel %vm5222, %v5223, 0
        %v5226 = vand.u32 %v5202, %v5224
        %5228 = vmatprep.subr.bf16.mxu0 0
        %5229 = vmatpush1.bf16.msra.mxu0 0
        %5230 = vmatprep.subr.bf16.mxu0 0
        %5231 = vmatpush1.bf16.msra.mxu0 %v5226
        %5232 = vmatprep.subr.bf16.mxu0 0
        %5233 = vmatpush1.bf16.msra.mxu0 %v5201
        %5234 = vmatprep.subr.bf16.mxu0 0
        %5235 = vmatpush1.bf16.msra.mxu0 %v5200
        %5236 = vmatprep.subr.bf16.mxu0 0
        %5237 = vmatpush1.bf16.msra.mxu0 %v5199
        %5238 = vmatprep.subr.bf16.mxu0 0
        %5239 = vmatpush1.bf16.msra.mxu0 %v5198
        %5240 = vmatprep.subr.bf16.mxu0 0
        %5241 = vmatpush1.bf16.msra.mxu0 %v5197
        %5242 = vmatprep.subr.bf16.mxu0 0
        %5243 = vmatpush1.bf16.msra.mxu0 %v5196
        %5244 = vmatprep.subr.bf16.mxu0 0
        %5245 = vmatpush2.bf16.msra.mxu0 0
        %5246 = vmatprep.subr.bf16.mxu0 0
        %5247 = vmatpush2.bf16.msra.mxu0 0
        %5248 = vmatprep.subr.bf16.mxu0 0
        %5249 = vmatpush2.bf16.msra.mxu0 0
        %5250 = vmatprep.subr.bf16.mxu0 0
        %5251 = vmatpush2.bf16.msra.mxu0 0
        %5252 = vmatprep.subr.bf16.mxu0 0
        %5253 = vmatpush2.bf16.msra.mxu0 0
        %5254 = vmatprep.subr.bf16.mxu0 0
        %5255 = vmatpush2.bf16.msra.mxu0 0
        %5256 = vmatprep.subr.bf16.mxu0 0
        %5257 = vmatpush2.bf16.msra.mxu0 0
        %5258 = vmatprep.subr.bf16.mxu0 0
        %5259 = vmatpush2.bf16.msra.mxu0 0
        %5260 = vmatprep.mubr.bf16.mxu0 0
        %5261 = vmatmul.mubr.bf16.gmra.mxu0 %v5211
        %v5262 = vpop.f32.mrf.mxu0
        %v5263 = vadd.f32 0.0, %v5262
        %v5264 = vpop.f32.mrf.mxu0
        %v5265 = vpop.f32.mrf.mxu0
        %v5266 = vadd.f32 0.0, %v5265
        %v5267 = vpop.f32.mrf.mxu0
        %5268 = vmatprep.mubr.bf16.mxu0 0
        %5269 = vmatmul.mubr.bf16.gmra.mxu0 %v5214
        %v5270 = vpop.f32.mrf.mxu0
        %v5271 = vadd.f32 0.0, %v5270
        %v5272 = vpop.f32.mrf.mxu0
        %v5273 = vpop.f32.mrf.mxu0
        %v5274 = vadd.f32 0.0, %v5273
        %v5275 = vpop.f32.mrf.mxu0
        %5276 = vmatprep.mubr.bf16.mxu0 0
        %5277 = vmatmul.mubr.bf16.gmra.mxu0 %v5217
        %v5278 = vpop.f32.mrf.mxu0
        %v5279 = vadd.f32 0.0, %v5278
        %v5280 = vpop.f32.mrf.mxu0
        %v5281 = vpop.f32.mrf.mxu0
        %v5282 = vadd.f32 0.0, %v5281
        %v5283 = vpop.f32.mrf.mxu0
        %5284 = vmatprep.mubr.bf16.mxu0 0
        %5285 = vmatmul.mubr.bf16.gmra.mxu0 %v5220
        %v5286 = vpop.f32.mrf.mxu0
        %v5287 = vadd.f32 0.0, %v5286
        %v5288 = vpop.f32.mrf.mxu0
        %v5289 = vpop.f32.mrf.mxu0
        %v5290 = vadd.f32 0.0, %v5289
        %v5291 = vpop.f32.mrf.mxu0
        %5292 = vdwg.mxu0
        %v5293 = vpack.c.bf16 %v5266, %v5263
        %v5294 = vpack.c.bf16 %v5274, %v5271
        %v5295 = vpack.c.bf16 %v5282, %v5279
        %v5296 = vpack.c.bf16 %v5290, %v5287
        %v5301 = vunpack.c.l.b16 %v5293
        %v5302 = vunpack.c.h.b16 %v5293
        %v5303 = vunpack.c.l.b16 %v5294
        %v5304 = vunpack.c.h.b16 %v5294
        %v5305 = vunpack.c.l.b16 %v5295
        %v5306 = vunpack.c.h.b16 %v5295
        %v5307 = vunpack.c.l.b16 %v5296
        %v5308 = vunpack.c.h.b16 %v5296
        %v5309 = vpack.c.b16 %v5301, %v5301
        %v5310 = vpack.c.b16 %v5302, %v5302
        %v5311 = vpack.c.b16 %v5303, %v5303
        %v5312 = vpack.c.b16 %v5304, %v5304
        %v5313 = vpack.c.b16 %v5305, %v5305
        %v5314 = vpack.c.b16 %v5306, %v5306
        %v5315 = vpack.c.b16 %v5307, %v5307
        %v5316 = vpack.c.b16 %v5308, %v5308
        %vm5325 = vcmask 27648
        %5326 = vst.msk [vmem:[#allocation4] sm:$0xf] %vm5325, %v5309
        %5327 = vst.msk [vmem:[#allocation4 + $0x4] sm:$0xf] %vm5325, %v5310
        %5328 = vst.msk [vmem:[#allocation4 + $0x8] sm:$0xf] %vm5325, %v5311
        %5329 = vst.msk [vmem:[#allocation4 + $0xc] sm:$0xf] %vm5325, %v5312
        %5330 = vst.msk [vmem:[#allocation4 + $0x10] sm:$0xf] %vm5325, %v5313
        %5331 = vst.msk [vmem:[#allocation4 + $0x14] sm:$0xf] %vm5325, %v5314
        %5332 = vst.msk [vmem:[#allocation4 + $0x18] sm:$0xf] %vm5325, %v5315
        %5333 = vst.msk [vmem:[#allocation4 + $0x1c] sm:$0xf] %vm5325, %v5316
        %5334 = vrot.lane.b32.xlu0 %v5309, 127
        %v5335 = vpop.permute.xlu0 %5334
        %5336 = vrot.lane.b32.xlu0 %v5310, 127
        %v5337 = vpop.permute.xlu0 %5336
        %5338 = vrot.lane.b32.xlu0 %v5311, 127
        %v5339 = vpop.permute.xlu0 %5338
        %5340 = vrot.lane.b32.xlu0 %v5312, 127
        %v5341 = vpop.permute.xlu0 %5340
        %5342 = vrot.lane.b32.xlu0 %v5313, 127
        %v5343 = vpop.permute.xlu0 %5342
        %5344 = vrot.lane.b32.xlu0 %v5314, 127
        %v5345 = vpop.permute.xlu0 %5344
        %5346 = vrot.lane.b32.xlu0 %v5315, 127
        %v5347 = vpop.permute.xlu0 %5346
        %5348 = vrot.lane.b32.xlu0 %v5316, 127
        %v5349 = vpop.permute.xlu0 %5348
        %5358 = vst.msk [vmem:[#allocation4 + $0x20] sm:$0xf] %vm5325, %v5335
        %5359 = vst.msk [vmem:[#allocation4 + $0x24] sm:$0xf] %vm5325, %v5337
        %5360 = vst.msk [vmem:[#allocation4 + $0x28] sm:$0xf] %vm5325, %v5339
        %5361 = vst.msk [vmem:[#allocation4 + $0x2c] sm:$0xf] %vm5325, %v5341
        %5362 = vst.msk [vmem:[#allocation4 + $0x30] sm:$0xf] %vm5325, %v5343
        %5363 = vst.msk [vmem:[#allocation4 + $0x34] sm:$0xf] %vm5325, %v5345
        %5364 = vst.msk [vmem:[#allocation4 + $0x38] sm:$0xf] %vm5325, %v5347
        %5365 = vst.msk [vmem:[#allocation4 + $0x3c] sm:$0xf] %vm5325, %v5349
        %5366 = vrot.lane.b32.xlu0 %v5309, 126
        %v5367 = vpop.permute.xlu0 %5366
        %5368 = vrot.lane.b32.xlu0 %v5310, 126
        %v5369 = vpop.permute.xlu0 %5368
        %5370 = vrot.lane.b32.xlu0 %v5311, 126
        %v5371 = vpop.permute.xlu0 %5370
        %5372 = vrot.lane.b32.xlu0 %v5312, 126
        %v5373 = vpop.permute.xlu0 %5372
        %5374 = vrot.lane.b32.xlu0 %v5313, 126
        %v5375 = vpop.permute.xlu0 %5374
        %5376 = vrot.lane.b32.xlu0 %v5314, 126
        %v5377 = vpop.permute.xlu0 %5376
        %5378 = vrot.lane.b32.xlu0 %v5315, 126
        %v5379 = vpop.permute.xlu0 %5378
        %5380 = vrot.lane.b32.xlu0 %v5316, 126
        %v5381 = vpop.permute.xlu0 %5380
        %5390 = vst.msk [vmem:[#allocation4 + $0x40] sm:$0xf] %vm5325, %v5367
        %5391 = vst.msk [vmem:[#allocation4 + $0x44] sm:$0xf] %vm5325, %v5369
        %5392 = vst.msk [vmem:[#allocation4 + $0x48] sm:$0xf] %vm5325, %v5371
        %5393 = vst.msk [vmem:[#allocation4 + $0x4c] sm:$0xf] %vm5325, %v5373
        %5394 = vst.msk [vmem:[#allocation4 + $0x50] sm:$0xf] %vm5325, %v5375
        %5395 = vst.msk [vmem:[#allocation4 + $0x54] sm:$0xf] %vm5325, %v5377
        %5396 = vst.msk [vmem:[#allocation4 + $0x58] sm:$0xf] %vm5325, %v5379
        %5397 = vst.msk [vmem:[#allocation4 + $0x5c] sm:$0xf] %vm5325, %v5381
        %vm5398 = vcmask 60448
        %5399 = vst.msk [vmem:[#allocation4] sm:$0xf] %vm5398, %v5367
        %5400 = vst.msk [vmem:[#allocation4 + $0x4] sm:$0xf] %vm5398, %v5369
        %5401 = vst.msk [vmem:[#allocation4 + $0x8] sm:$0xf] %vm5398, %v5371
        %5402 = vst.msk [vmem:[#allocation4 + $0xc] sm:$0xf] %vm5398, %v5373
        %5403 = vst.msk [vmem:[#allocation4 + $0x10] sm:$0xf] %vm5398, %v5375
        %5404 = vst.msk [vmem:[#allocation4 + $0x14] sm:$0xf] %vm5398, %v5377
        %5405 = vst.msk [vmem:[#allocation4 + $0x18] sm:$0xf] %vm5398, %v5379
        %5406 = vst.msk [vmem:[#allocation4 + $0x1c] sm:$0xf] %vm5398, %v5381
        %5407 = vrot.lane.b32.xlu0 %v5309, 125
        %v5408 = vpop.permute.xlu0 %5407
        %5409 = vrot.lane.b32.xlu0 %v5310, 125
        %v5410 = vpop.permute.xlu0 %5409
        %5411 = vrot.lane.b32.xlu0 %v5311, 125
        %v5412 = vpop.permute.xlu0 %5411
        %5413 = vrot.lane.b32.xlu0 %v5312, 125
        %v5414 = vpop.permute.xlu0 %5413
        %5415 = vrot.lane.b32.xlu0 %v5313, 125
        %v5416 = vpop.permute.xlu0 %5415
        %5417 = vrot.lane.b32.xlu0 %v5314, 125
        %v5418 = vpop.permute.xlu0 %5417
        %5419 = vrot.lane.b32.xlu0 %v5315, 125
        %v5420 = vpop.permute.xlu0 %5419
        %5421 = vrot.lane.b32.xlu0 %v5316, 125
        %v5422 = vpop.permute.xlu0 %5421
        %5431 = vst.msk [vmem:[#allocation4 + $0x20] sm:$0xf] %vm5398, %v5408
        %5432 = vst.msk [vmem:[#allocation4 + $0x24] sm:$0xf] %vm5398, %v5410
        %5433 = vst.msk [vmem:[#allocation4 + $0x28] sm:$0xf] %vm5398, %v5412
        %5434 = vst.msk [vmem:[#allocation4 + $0x2c] sm:$0xf] %vm5398, %v5414
        %5435 = vst.msk [vmem:[#allocation4 + $0x30] sm:$0xf] %vm5398, %v5416
        %5436 = vst.msk [vmem:[#allocation4 + $0x34] sm:$0xf] %vm5398, %v5418
        %5437 = vst.msk [vmem:[#allocation4 + $0x38] sm:$0xf] %vm5398, %v5420
        %5438 = vst.msk [vmem:[#allocation4 + $0x3c] sm:$0xf] %vm5398, %v5422
        %5439 = vrot.lane.b32.xlu0 %v5309, 124
        %v5440 = vpop.permute.xlu0 %5439
        %5441 = vrot.lane.b32.xlu0 %v5310, 124
        %v5442 = vpop.permute.xlu0 %5441
        %5443 = vrot.lane.b32.xlu0 %v5311, 124
        %v5444 = vpop.permute.xlu0 %5443
        %5445 = vrot.lane.b32.xlu0 %v5312, 124
        %v5446 = vpop.permute.xlu0 %5445
        %5447 = vrot.lane.b32.xlu0 %v5313, 124
        %v5448 = vpop.permute.xlu0 %5447
        %5449 = vrot.lane.b32.xlu0 %v5314, 124
        %v5450 = vpop.permute.xlu0 %5449
        %5451 = vrot.lane.b32.xlu0 %v5315, 124
        %v5452 = vpop.permute.xlu0 %5451
        %5453 = vrot.lane.b32.xlu0 %v5316, 124
        %v5454 = vpop.permute.xlu0 %5453
        %5463 = vst.msk [vmem:[#allocation4 + $0x40] sm:$0xf] %vm5398, %v5440
        %5464 = vst.msk [vmem:[#allocation4 + $0x44] sm:$0xf] %vm5398, %v5442
        %5465 = vst.msk [vmem:[#allocation4 + $0x48] sm:$0xf] %vm5398, %v5444
        %5466 = vst.msk [vmem:[#allocation4 + $0x4c] sm:$0xf] %vm5398, %v5446
        %5467 = vst.msk [vmem:[#allocation4 + $0x50] sm:$0xf] %vm5398, %v5448
        %5468 = vst.msk [vmem:[#allocation4 + $0x54] sm:$0xf] %vm5398, %v5450
        %5469 = vst.msk [vmem:[#allocation4 + $0x58] sm:$0xf] %vm5398, %v5452
        %5470 = vst.msk [vmem:[#allocation4 + $0x5c] sm:$0xf] %vm5398, %v5454
        %vm5471 = vcmask 93248
        %5472 = vst.msk [vmem:[#allocation4] sm:$0xf] %vm5471, %v5440
        %5473 = vst.msk [vmem:[#allocation4 + $0x4] sm:$0xf] %vm5471, %v5442
        %5474 = vst.msk [vmem:[#allocation4 + $0x8] sm:$0xf] %vm5471, %v5444
        %5475 = vst.msk [vmem:[#allocation4 + $0xc] sm:$0xf] %vm5471, %v5446
        %5476 = vst.msk [vmem:[#allocation4 + $0x10] sm:$0xf] %vm5471, %v5448
        %5477 = vst.msk [vmem:[#allocation4 + $0x14] sm:$0xf] %vm5471, %v5450
        %5478 = vst.msk [vmem:[#allocation4 + $0x18] sm:$0xf] %vm5471, %v5452
        %5479 = vst.msk [vmem:[#allocation4 + $0x1c] sm:$0xf] %vm5471, %v5454
        %5480 = vrot.lane.b32.xlu0 %v5309, 123
        %v5481 = vpop.permute.xlu0 %5480
        %5482 = vrot.lane.b32.xlu0 %v5310, 123
        %v5483 = vpop.permute.xlu0 %5482
        %5484 = vrot.lane.b32.xlu0 %v5311, 123
        %v5485 = vpop.permute.xlu0 %5484
        %5486 = vrot.lane.b32.xlu0 %v5312, 123
        %v5487 = vpop.permute.xlu0 %5486
        %5488 = vrot.lane.b32.xlu0 %v5313, 123
        %v5489 = vpop.permute.xlu0 %5488
        %5490 = vrot.lane.b32.xlu0 %v5314, 123
        %v5491 = vpop.permute.xlu0 %5490
        %5492 = vrot.lane.b32.xlu0 %v5315, 123
        %v5493 = vpop.permute.xlu0 %5492
        %5494 = vrot.lane.b32.xlu0 %v5316, 123
        %v5495 = vpop.permute.xlu0 %5494
        %5504 = vst.msk [vmem:[#allocation4 + $0x20] sm:$0xf] %vm5471, %v5481
        %5505 = vst.msk [vmem:[#allocation4 + $0x24] sm:$0xf] %vm5471, %v5483
        %5506 = vst.msk [vmem:[#allocation4 + $0x28] sm:$0xf] %vm5471, %v5485
        %5507 = vst.msk [vmem:[#allocation4 + $0x2c] sm:$0xf] %vm5471, %v5487
        %5508 = vst.msk [vmem:[#allocation4 + $0x30] sm:$0xf] %vm5471, %v5489
        %5509 = vst.msk [vmem:[#allocation4 + $0x34] sm:$0xf] %vm5471, %v5491
        %5510 = vst.msk [vmem:[#allocation4 + $0x38] sm:$0xf] %vm5471, %v5493
        %5511 = vst.msk [vmem:[#allocation4 + $0x3c] sm:$0xf] %vm5471, %v5495
        %5512 = vrot.lane.b32.xlu0 %v5309, 122
        %v5513 = vpop.permute.xlu0 %5512
        %5514 = vrot.lane.b32.xlu0 %v5310, 122
        %v5515 = vpop.permute.xlu0 %5514
        %5516 = vrot.lane.b32.xlu0 %v5311, 122
        %v5517 = vpop.permute.xlu0 %5516
        %5518 = vrot.lane.b32.xlu0 %v5312, 122
        %v5519 = vpop.permute.xlu0 %5518
        %5520 = vrot.lane.b32.xlu0 %v5313, 122
        %v5521 = vpop.permute.xlu0 %5520
        %5522 = vrot.lane.b32.xlu0 %v5314, 122
        %v5523 = vpop.permute.xlu0 %5522
        %5524 = vrot.lane.b32.xlu0 %v5315, 122
        %v5525 = vpop.permute.xlu0 %5524
        %5526 = vrot.lane.b32.xlu0 %v5316, 122
        %v5527 = vpop.permute.xlu0 %5526
        %5536 = vst.msk [vmem:[#allocation4 + $0x40] sm:$0xf] %vm5471, %v5513
        %5537 = vst.msk [vmem:[#allocation4 + $0x44] sm:$0xf] %vm5471, %v5515
        %5538 = vst.msk [vmem:[#allocation4 + $0x48] sm:$0xf] %vm5471, %v5517
        %5539 = vst.msk [vmem:[#allocation4 + $0x4c] sm:$0xf] %vm5471, %v5519
        %5540 = vst.msk [vmem:[#allocation4 + $0x50] sm:$0xf] %vm5471, %v5521
        %5541 = vst.msk [vmem:[#allocation4 + $0x54] sm:$0xf] %vm5471, %v5523
        %5542 = vst.msk [vmem:[#allocation4 + $0x58] sm:$0xf] %vm5471, %v5525
        %5543 = vst.msk [vmem:[#allocation4 + $0x5c] sm:$0xf] %vm5471, %v5527
        %vm5544 = vcmask 126048
        %5545 = vst.msk [vmem:[#allocation4] sm:$0xf] %vm5544, %v5513
        %5546 = vst.msk [vmem:[#allocation4 + $0x4] sm:$0xf] %vm5544, %v5515
        %5547 = vst.msk [vmem:[#allocation4 + $0x8] sm:$0xf] %vm5544, %v5517
        %5548 = vst.msk [vmem:[#allocation4 + $0xc] sm:$0xf] %vm5544, %v5519
        %5549 = vst.msk [vmem:[#allocation4 + $0x10] sm:$0xf] %vm5544, %v5521
        %5550 = vst.msk [vmem:[#allocation4 + $0x14] sm:$0xf] %vm5544, %v5523
        %5551 = vst.msk [vmem:[#allocation4 + $0x18] sm:$0xf] %vm5544, %v5525
        %5552 = vst.msk [vmem:[#allocation4 + $0x1c] sm:$0xf] %vm5544, %v5527
        %5553 = vrot.lane.b32.xlu0 %v5309, 121
        %v5554 = vpop.permute.xlu0 %5553
        %5555 = vrot.lane.b32.xlu0 %v5310, 121
        %v5556 = vpop.permute.xlu0 %5555
        %5557 = vrot.lane.b32.xlu0 %v5311, 121
        %v5558 = vpop.permute.xlu0 %5557
        %5559 = vrot.lane.b32.xlu0 %v5312, 121
        %v5560 = vpop.permute.xlu0 %5559
        %5561 = vrot.lane.b32.xlu0 %v5313, 121
        %v5562 = vpop.permute.xlu0 %5561
        %5563 = vrot.lane.b32.xlu0 %v5314, 121
        %v5564 = vpop.permute.xlu0 %5563
        %5565 = vrot.lane.b32.xlu0 %v5315, 121
        %v5566 = vpop.permute.xlu0 %5565
        %5567 = vrot.lane.b32.xlu0 %v5316, 121
        %v5568 = vpop.permute.xlu0 %5567
        %5577 = vst.msk [vmem:[#allocation4 + $0x20] sm:$0xf] %vm5544, %v5554
        %5578 = vst.msk [vmem:[#allocation4 + $0x24] sm:$0xf] %vm5544, %v5556
        %5579 = vst.msk [vmem:[#allocation4 + $0x28] sm:$0xf] %vm5544, %v5558
        %5580 = vst.msk [vmem:[#allocation4 + $0x2c] sm:$0xf] %vm5544, %v5560
        %5581 = vst.msk [vmem:[#allocation4 + $0x30] sm:$0xf] %vm5544, %v5562
        %5582 = vst.msk [vmem:[#allocation4 + $0x34] sm:$0xf] %vm5544, %v5564
        %5583 = vst.msk [vmem:[#allocation4 + $0x38] sm:$0xf] %vm5544, %v5566
        %5584 = vst.msk [vmem:[#allocation4 + $0x3c] sm:$0xf] %vm5544, %v5568
        %5585 = vrot.lane.b32.xlu0 %v5309, 120
        %v5586 = vpop.permute.xlu0 %5585
        %5587 = vrot.lane.b32.xlu0 %v5310, 120
        %v5588 = vpop.permute.xlu0 %5587
        %5589 = vrot.lane.b32.xlu0 %v5311, 120
        %v5590 = vpop.permute.xlu0 %5589
        %5591 = vrot.lane.b32.xlu0 %v5312, 120
        %v5592 = vpop.permute.xlu0 %5591
        %5593 = vrot.lane.b32.xlu0 %v5313, 120
        %v5594 = vpop.permute.xlu0 %5593
        %5595 = vrot.lane.b32.xlu0 %v5314, 120
        %v5596 = vpop.permute.xlu0 %5595
        %5597 = vrot.lane.b32.xlu0 %v5315, 120
        %v5598 = vpop.permute.xlu0 %5597
        %5599 = vrot.lane.b32.xlu0 %v5316, 120
        %v5600 = vpop.permute.xlu0 %5599
        %5609 = vst.msk [vmem:[#allocation4 + $0x40] sm:$0xf] %vm5544, %v5586
        %5610 = vst.msk [vmem:[#allocation4 + $0x44] sm:$0xf] %vm5544, %v5588
        %5611 = vst.msk [vmem:[#allocation4 + $0x48] sm:$0xf] %vm5544, %v5590
        %5612 = vst.msk [vmem:[#allocation4 + $0x4c] sm:$0xf] %vm5544, %v5592
        %5613 = vst.msk [vmem:[#allocation4 + $0x50] sm:$0xf] %vm5544, %v5594
        %5614 = vst.msk [vmem:[#allocation4 + $0x54] sm:$0xf] %vm5544, %v5596
        %5615 = vst.msk [vmem:[#allocation4 + $0x58] sm:$0xf] %vm5544, %v5598
        %5616 = vst.msk [vmem:[#allocation4 + $0x5c] sm:$0xf] %vm5544, %v5600
        %v5617 = vld [vmem:[#allocation10] sm:$0xff]
        %v5618 = vld [vmem:[#allocation10 + $0x8] sm:$0xff]
        %v5619 = vld [vmem:[#allocation10 + $0x10] sm:$0xff]
        %v5620 = vld [vmem:[#allocation10 + $0x18] sm:$0xff]
        %v5621 = vld [vmem:[#allocation4] sm:$0xf]
        %v5622 = vld [vmem:[#allocation4 + $0x4] sm:$0xf]
        %v5623 = vld [vmem:[#allocation4 + $0x8] sm:$0xf]
        %v5624 = vld [vmem:[#allocation4 + $0xc] sm:$0xf]
        %v5625 = vld [vmem:[#allocation4 + $0x10] sm:$0xf]
        %v5626 = vld [vmem:[#allocation4 + $0x14] sm:$0xf]
        %v5627 = vld [vmem:[#allocation4 + $0x18] sm:$0xf]
        %v5628 = vld [vmem:[#allocation4 + $0x1c] sm:$0xf]
        %v5629 = vld [vmem:[#allocation4 + $0x20] sm:$0xf]
        %v5630 = vld [vmem:[#allocation4 + $0x24] sm:$0xf]
        %v5631 = vld [vmem:[#allocation4 + $0x28] sm:$0xf]
        %v5632 = vld [vmem:[#allocation4 + $0x2c] sm:$0xf]
        %v5633 = vld [vmem:[#allocation4 + $0x30] sm:$0xf]
        %v5634 = vld [vmem:[#allocation4 + $0x34] sm:$0xf]
        %v5635 = vld [vmem:[#allocation4 + $0x38] sm:$0xf]
        %v5636 = vld [vmem:[#allocation4 + $0x3c] sm:$0xf]
        %v5637 = vld [vmem:[#allocation4 + $0x40] sm:$0xf]
        %v5638 = vld [vmem:[#allocation4 + $0x44] sm:$0xf]
        %v5639 = vld [vmem:[#allocation4 + $0x48] sm:$0xf]
        %v5640 = vld [vmem:[#allocation4 + $0x4c] sm:$0xf]
        %v5641 = vld [vmem:[#allocation4 + $0x50] sm:$0xf]
        %v5642 = vld [vmem:[#allocation4 + $0x54] sm:$0xf]
        %v5643 = vld [vmem:[#allocation4 + $0x58] sm:$0xf]
        %v5644 = vld [vmem:[#allocation4 + $0x5c] sm:$0xf]
        %v5645 = vld [vmem:[%s6] sm:$0xff]
        %v5646 = vld [vmem:[%s6 + $0x8] sm:$0xff]
        %v5647 = vld [vmem:[%s6 + $0x10] sm:$0xff]
        %v5648 = vld [vmem:[%s6 + $0x18] sm:$0xff]
        %5650 = vset.pattern.permute.xlu0 0
        %5651 = vperm.xlu0 %5650, %v5645
        %v5652 = vpop.permute.xlu0 %5651
        %5655 = vset.pattern.permute.xlu0 0
        %5656 = vperm.xlu0 %5655, %v5646
        %v5657 = vpop.permute.xlu0 %5656
        %5660 = vset.pattern.permute.xlu0 0
        %5661 = vperm.xlu0 %5660, %v5647
        %v5662 = vpop.permute.xlu0 %5661
        %5665 = vset.pattern.permute.xlu0 0
        %5666 = vperm.xlu0 %5665, %v5648
        %v5667 = vpop.permute.xlu0 %5666
        %v5673 = vunpack.c.l.b16 %v5617
        %v5674 = vunpack.c.h.b16 %v5617
        %v5675 = vunpack.c.l.b16 %v5618
        %v5676 = vunpack.c.h.b16 %v5618
        %v5677 = vunpack.c.l.b16 %v5619
        %v5678 = vunpack.c.h.b16 %v5619
        %v5679 = vunpack.c.l.b16 %v5620
        %v5680 = vunpack.c.h.b16 %v5620
        %v5681 = vpack.c.b16 %v5675, %v5673
        %v5682 = vpack.c.b16 %v5676, %v5674
        %v5683 = vpack.c.b16 %v5679, %v5677
        %v5684 = vpack.c.b16 %v5680, %v5678
        %v5711 = vunpack.c.l.b16 %v5621
        %v5712 = vunpack.c.l.b16 %v5622
        %v5713 = vunpack.c.l.b16 %v5623
        %v5714 = vunpack.c.l.b16 %v5624
        %v5715 = vunpack.c.l.b16 %v5625
        %v5716 = vunpack.c.l.b16 %v5626
        %v5717 = vunpack.c.l.b16 %v5627
        %v5718 = vunpack.c.l.b16 %v5628
        %v5719 = vunpack.c.l.b16 %v5629
        %v5720 = vunpack.c.l.b16 %v5630
        %v5721 = vunpack.c.l.b16 %v5631
        %v5722 = vunpack.c.l.b16 %v5632
        %v5723 = vunpack.c.l.b16 %v5633
        %v5724 = vunpack.c.l.b16 %v5634
        %v5725 = vunpack.c.l.b16 %v5635
        %v5726 = vunpack.c.l.b16 %v5636
        %v5727 = vunpack.c.l.b16 %v5637
        %v5728 = vunpack.c.l.b16 %v5638
        %v5729 = vunpack.c.l.b16 %v5639
        %v5730 = vunpack.c.l.b16 %v5640
        %v5731 = vunpack.c.l.b16 %v5641
        %v5732 = vunpack.c.l.b16 %v5642
        %v5733 = vunpack.c.l.b16 %v5643
        %v5734 = vunpack.c.l.b16 %v5644
        %v5735 = vpack.c.b16 %v5712, %v5711
        %v5736 = vpack.c.b16 %v5714, %v5713
        %v5737 = vpack.c.b16 %v5716, %v5715
        %v5738 = vpack.c.b16 %v5718, %v5717
        %v5739 = vpack.c.b16 %v5720, %v5719
        %v5740 = vpack.c.b16 %v5722, %v5721
        %v5741 = vpack.c.b16 %v5724, %v5723
        %v5742 = vpack.c.b16 %v5726, %v5725
        %v5743 = vpack.c.b16 %v5728, %v5727
        %v5744 = vpack.c.b16 %v5730, %v5729
        %v5745 = vpack.c.b16 %v5732, %v5731
        %v5746 = vpack.c.b16 %v5734, %v5733
        %vm5759 = vcmask 523264
        %v5761 = vsel %vm5759, %v5682, 0
        %v5764 = vsel %vm5759, %v5684, 0
        %5766 = vmatprep.subr.bf16.mxu0 0
        %5767 = vmatpush1.bf16.msra.mxu0 %v5742
        %5768 = vmatprep.subr.bf16.mxu0 0
        %5769 = vmatpush1.bf16.msra.mxu0 %v5741
        %5770 = vmatprep.subr.bf16.mxu0 0
        %5771 = vmatpush1.bf16.msra.mxu0 %v5740
        %5772 = vmatprep.subr.bf16.mxu0 0
        %5773 = vmatpush1.bf16.msra.mxu0 %v5739
        %5774 = vmatprep.subr.bf16.mxu0 0
        %5775 = vmatpush1.bf16.msra.mxu0 %v5738
        %5776 = vmatprep.subr.bf16.mxu0 0
        %5777 = vmatpush1.bf16.msra.mxu0 %v5737
        %5778 = vmatprep.subr.bf16.mxu0 0
        %5779 = vmatpush1.bf16.msra.mxu0 %v5736
        %5780 = vmatprep.subr.bf16.mxu0 0
        %5781 = vmatpush1.bf16.msra.mxu0 %v5735
        %5782 = vmatprep.subr.bf16.mxu0 0
        %5783 = vmatpush2.bf16.msra.mxu0 0
        %5784 = vmatprep.subr.bf16.mxu0 0
        %5785 = vmatpush2.bf16.msra.mxu0 0
        %5786 = vmatprep.subr.bf16.mxu0 0
        %5787 = vmatpush2.bf16.msra.mxu0 0
        %5788 = vmatprep.subr.bf16.mxu0 0
        %5789 = vmatpush2.bf16.msra.mxu0 0
        %5790 = vmatprep.subr.bf16.mxu0 0
        %5791 = vmatpush2.bf16.msra.mxu0 %v5746
        %5792 = vmatprep.subr.bf16.mxu0 0
        %5793 = vmatpush2.bf16.msra.mxu0 %v5745
        %5794 = vmatprep.subr.bf16.mxu0 0
        %5795 = vmatpush2.bf16.msra.mxu0 %v5744
        %5796 = vmatprep.subr.bf16.mxu0 0
        %5797 = vmatpush2.bf16.msra.mxu0 %v5743
        %5798 = vmatprep.mubr.bf16.mxu0 %v5761
        %5799 = vmatmul.mubr.bf16.gmra.mxu0 %v5681
        %v5800 = vpop.f32.mrf.mxu0
        %v5801 = vadd.f32 %v5652, %v5800
        %v5802 = vpop.f32.mrf.mxu0
        %v5803 = vpop.f32.mrf.mxu0
        %v5804 = vadd.f32 %v5657, %v5803
        %v5805 = vpop.f32.mrf.mxu0
        %5806 = vmatprep.mubr.bf16.mxu0 %v5764
        %5807 = vmatmul.mubr.bf16.gmra.mxu0 %v5683
        %v5808 = vpop.f32.mrf.mxu0
        %v5809 = vadd.f32 %v5662, %v5808
        %v5810 = vpop.f32.mrf.mxu0
        %v5811 = vpop.f32.mrf.mxu0
        %v5812 = vadd.f32 %v5667, %v5811
        %v5813 = vpop.f32.mrf.mxu0
        %5814 = vdwg.mxu0
        %v5815 = vmax.f32 %v5801, 0.0
        %v5816 = vmax.f32 %v5804, 0.0
        %v5817 = vmax.f32 %v5809, 0.0
        %v5818 = vmax.f32 %v5812, 0.0
        %5823 = vrot.lane.b32.xlu0 %v5815, 127
        %v5824 = vpop.permute.xlu0 %5823
        %5825 = vrot.lane.b32.xlu0 %v5816, 127
        %v5826 = vpop.permute.xlu0 %5825
        %5827 = vrot.lane.b32.xlu0 %v5817, 127
        %v5828 = vpop.permute.xlu0 %5827
        %5829 = vrot.lane.b32.xlu0 %v5818, 127
        %v5830 = vpop.permute.xlu0 %5829
        %v5835 = vmax.f32 %v5815, %v5824
        %v5836 = vmax.f32 %v5816, %v5826
        %v5837 = vmax.f32 %v5817, %v5828
        %v5838 = vmax.f32 %v5818, %v5830
        %v5839 = vpack.c.bf16 %v5836, %v5835
        %v5840 = vpack.c.bf16 %v5838, %v5837
        %v5841 = vld [vmem:[%s15] sm:$0xf]
        %v5842 = vld [vmem:[%s15 + $0x4] sm:$0xf]
        %v5845 = vunpack.c.l.b16 %v5841
        %v5846 = vunpack.c.l.b16 %v5842
        %v5847 = vpack.c.b16 %v5846, %v5845
        %vm5848 = vcmask 121856
        %v5850 = vsel %vm5848, %v5839, 0
        %v5853 = vsel %vm5848, %v5840, 0
        %vm5855 = vcmask 1047552
        %v5856 = vsel %vm2994, 4294967295, 65535
        %v5857 = vsel %vm5855, %v5856, 0
        %v5859 = vand.u32 %v5847, %v5857
        %5861 = vmatprep.subr.bf16.mxu0 0
        %5862 = vmatpush1.bf16.msra.mxu0 0
        %5863 = vmatprep.subr.bf16.mxu0 0
        %5864 = vmatpush1.bf16.msra.mxu0 0
        %5865 = vmatprep.subr.bf16.mxu0 0
        %5866 = vmatpush1.bf16.msra.mxu0 0
        %5867 = vmatprep.subr.bf16.mxu0 0
        %5868 = vmatpush1.bf16.msra.mxu0 0
        %5869 = vmatprep.subr.bf16.mxu0 0
        %5870 = vmatpush1.bf16.msra.mxu0 0
        %5871 = vmatprep.subr.bf16.mxu0 0
        %5872 = vmatpush1.bf16.msra.mxu0 0
        %5873 = vmatprep.subr.bf16.mxu0 0
        %5874 = vmatpush1.bf16.msra.mxu0 0
        %5875 = vmatprep.subr.bf16.mxu0 0
        %5876 = vmatpush1.bf16.msra.mxu0 %v5859
        %5877 = vmatprep.subr.bf16.mxu0 0
        %5878 = vmatpush2.bf16.msra.mxu0 0
        %5879 = vmatprep.subr.bf16.mxu0 0
        %5880 = vmatpush2.bf16.msra.mxu0 0
        %5881 = vmatprep.subr.bf16.mxu0 0
        %5882 = vmatpush2.bf16.msra.mxu0 0
        %5883 = vmatprep.subr.bf16.mxu0 0
        %5884 = vmatpush2.bf16.msra.mxu0 0
        %5885 = vmatprep.subr.bf16.mxu0 0
        %5886 = vmatpush2.bf16.msra.mxu0 0
        %5887 = vmatprep.subr.bf16.mxu0 0
        %5888 = vmatpush2.bf16.msra.mxu0 0
        %5889 = vmatprep.subr.bf16.mxu0 0
        %5890 = vmatpush2.bf16.msra.mxu0 0
        %5891 = vmatprep.subr.bf16.mxu0 0
        %5892 = vmatpush2.bf16.msra.mxu0 0
        %5893 = vmatprep.mubr.bf16.mxu0 0
        %5894 = vmatmul.mubr.bf16.gmra.mxu0 %v5850
        %v5895 = vpop.f32.mrf.mxu0
        %v5896 = vadd.f32 0.0, %v5895
        %v5897 = vpop.f32.mrf.mxu0
        %v5898 = vpop.f32.mrf.mxu0
        %v5899 = vadd.f32 0.0, %v5898
        %v5900 = vpop.f32.mrf.mxu0
        %5901 = vmatprep.mubr.bf16.mxu0 0
        %5902 = vmatmul.mubr.bf16.gmra.mxu0 %v5853
        %v5903 = vpop.f32.mrf.mxu0
        %v5904 = vadd.f32 0.0, %v5903
        %v5905 = vpop.f32.mrf.mxu0
        %v5906 = vpop.f32.mrf.mxu0
        %v5907 = vadd.f32 0.0, %v5906
        %v5908 = vpop.f32.mrf.mxu0
        %5909 = vdwg.mxu0
        %v5910 = vld [vmem:[#allocation13] sm:$0xf]
        %v5911 = vld [vmem:[#allocation13 + $0x4] sm:$0xf]
        %v5912 = vld [vmem:[#allocation13 + $0x8] sm:$0xf]
        %v5913 = vld [vmem:[#allocation13 + $0xc] sm:$0xf]
        %v5914 = vpack.c.bf16 %v5899, %v5896
        %v5915 = vpack.c.bf16 %v5907, %v5904
        %v5916 = vld [vmem:[%s8] sm:$0xff]
        %v5917 = vld [vmem:[%s8 + $0x8] sm:$0xff]
        %v5918 = vld [vmem:[%s8 + $0x10] sm:$0xff]
        %v5919 = vld [vmem:[%s8 + $0x18] sm:$0xff]
        %5921 = vset.pattern.permute.xlu0 0
        %5922 = vperm.xlu0 %5921, %v5916
        %v5923 = vpop.permute.xlu0 %5922
        %5926 = vset.pattern.permute.xlu0 0
        %5927 = vperm.xlu0 %5926, %v5917
        %v5928 = vpop.permute.xlu0 %5927
        %5931 = vset.pattern.permute.xlu0 0
        %5932 = vperm.xlu0 %5931, %v5918
        %v5933 = vpop.permute.xlu0 %5932
        %5936 = vset.pattern.permute.xlu0 0
        %5937 = vperm.xlu0 %5936, %v5919
        %v5938 = vpop.permute.xlu0 %5937
        %v5944 = vunpack.c.l.b16 %v5910
        %v5945 = vunpack.c.l.b16 %v5911
        %v5946 = vunpack.c.l.b16 %v5912
        %v5947 = vunpack.c.l.b16 %v5913
        %v5948 = vpack.c.b16 %v5945, %v5944
        %v5949 = vpack.c.b16 %v5947, %v5946
        %vm5950 = vcmask 261120
        %v5952 = vsel %vm5950, %v5948, 0
        %v5955 = vsel %vm5950, %v5949, 0
        %5957 = vmatprep.subr.bf16.mxu0 0
        %5958 = vmatpush1.bf16.msra.mxu0 0
        %5959 = vmatprep.subr.bf16.mxu0 0
        %5960 = vmatpush1.bf16.msra.mxu0 0
        %5961 = vmatprep.subr.bf16.mxu0 0
        %5962 = vmatpush1.bf16.msra.mxu0 0
        %5963 = vmatprep.subr.bf16.mxu0 0
        %5964 = vmatpush1.bf16.msra.mxu0 0
        %5965 = vmatprep.subr.bf16.mxu0 0
        %5966 = vmatpush1.bf16.msra.mxu0 0
        %5967 = vmatprep.subr.bf16.mxu0 0
        %5968 = vmatpush1.bf16.msra.mxu0 0
        %5969 = vmatprep.subr.bf16.mxu0 0
        %5970 = vmatpush1.bf16.msra.mxu0 %v5915
        %5971 = vmatprep.subr.bf16.mxu0 0
        %5972 = vmatpush1.bf16.msra.mxu0 %v5914
        %5973 = vmatprep.subr.bf16.mxu0 0
        %5974 = vmatpush2.bf16.msra.mxu0 0
        %5975 = vmatprep.subr.bf16.mxu0 0
        %5976 = vmatpush2.bf16.msra.mxu0 0
        %5977 = vmatprep.subr.bf16.mxu0 0
        %5978 = vmatpush2.bf16.msra.mxu0 0
        %5979 = vmatprep.subr.bf16.mxu0 0
        %5980 = vmatpush2.bf16.msra.mxu0 0
        %5981 = vmatprep.subr.bf16.mxu0 0
        %5982 = vmatpush2.bf16.msra.mxu0 0
        %5983 = vmatprep.subr.bf16.mxu0 0
        %5984 = vmatpush2.bf16.msra.mxu0 0
        %5985 = vmatprep.subr.bf16.mxu0 0
        %5986 = vmatpush2.bf16.msra.mxu0 0
        %5987 = vmatprep.subr.bf16.mxu0 0
        %5988 = vmatpush2.bf16.msra.mxu0 0
        %5989 = vmatprep.mubr.bf16.mxu0 0
        %5990 = vmatmul.mubr.bf16.gmra.mxu0 %v5952
        %v5991 = vpop.f32.mrf.mxu0
        %v5992 = vadd.f32 %v5923, %v5991
        %v5993 = vpop.f32.mrf.mxu0
        %v5994 = vpop.f32.mrf.mxu0
        %v5995 = vadd.f32 %v5928, %v5994
        %v5996 = vpop.f32.mrf.mxu0
        %5997 = vmatprep.mubr.bf16.mxu0 0
        %5998 = vmatmul.mubr.bf16.gmra.mxu0 %v5955
        %v5999 = vpop.f32.mrf.mxu0
        %v6000 = vadd.f32 %v5933, %v5999
        %v6001 = vpop.f32.mrf.mxu0
        %v6002 = vpop.f32.mrf.mxu0
        %v6003 = vadd.f32 %v5938, %v6002
        %v6004 = vpop.f32.mrf.mxu0
        %6005 = vdwg.mxu0
        %v6006 = vmax.f32 %v5992, 0.0
        %v6007 = vmax.f32 %v5995, 0.0
        %v6008 = vmax.f32 %v6000, 0.0
        %v6009 = vmax.f32 %v6003, 0.0
        %v6010 = vadd.f32 %v6006, %v5896
        %v6011 = vadd.f32 %v6007, %v5899
        %v6012 = vadd.f32 %v6008, %v5904
        %v6013 = vadd.f32 %v6009, %v5907
        %v6014 = vmax.f32 %v6010, 0.0
        %v6015 = vmax.f32 %v6011, 0.0
        %v6016 = vmax.f32 %v6012, 0.0
        %v6017 = vmax.f32 %v6013, 0.0
        %v6018 = vpack.c.bf16 %v6015, %v6014
        %v6019 = vpack.c.bf16 %v6017, %v6016
        %v6022 = vunpack.c.l.b16 %v6018
        %v6023 = vunpack.c.h.b16 %v6018
        %v6024 = vunpack.c.l.b16 %v6019
        %v6025 = vunpack.c.h.b16 %v6019
        %v6026 = vpack.c.b16 %v6022, %v6022
        %v6027 = vpack.c.b16 %v6023, %v6023
        %v6028 = vpack.c.b16 %v6024, %v6024
        %v6029 = vpack.c.b16 %v6025, %v6025
        %vm6034 = vcmask 60416
        %6035 = vst.msk [vmem:[#allocation5 + $0x10] sm:$0xf] %vm6034, %v6026
        %6036 = vst.msk [vmem:[#allocation5 + $0x14] sm:$0xf] %vm6034, %v6027
        %6037 = vst.msk [vmem:[#allocation5 + $0x18] sm:$0xf] %vm6034, %v6028
        %6038 = vst.msk [vmem:[#allocation5 + $0x1c] sm:$0xf] %vm6034, %v6029
        %6039 = vrot.lane.b32.xlu0 %v6026, 1
        %v6040 = vpop.permute.xlu0 %6039
        %6041 = vrot.lane.b32.xlu0 %v6027, 1
        %v6042 = vpop.permute.xlu0 %6041
        %6043 = vrot.lane.b32.xlu0 %v6028, 1
        %v6044 = vpop.permute.xlu0 %6043
        %6045 = vrot.lane.b32.xlu0 %v6029, 1
        %v6046 = vpop.permute.xlu0 %6045
        %vm6051 = vcmask 60424
        %6052 = vst.msk [vmem:[#allocation5] sm:$0xf] %vm6051, %v6040
        %6053 = vst.msk [vmem:[#allocation5 + $0x4] sm:$0xf] %vm6051, %v6042
        %6054 = vst.msk [vmem:[#allocation5 + $0x8] sm:$0xf] %vm6051, %v6044
        %6055 = vst.msk [vmem:[#allocation5 + $0xc] sm:$0xf] %vm6051, %v6046
        %6056 = vrot.lane.b32.xlu0 %v6026, 127
        %v6057 = vpop.permute.xlu0 %6056
        %6058 = vrot.lane.b32.xlu0 %v6027, 127
        %v6059 = vpop.permute.xlu0 %6058
        %6060 = vrot.lane.b32.xlu0 %v6028, 127
        %v6061 = vpop.permute.xlu0 %6060
        %6062 = vrot.lane.b32.xlu0 %v6029, 127
        %v6063 = vpop.permute.xlu0 %6062
        %vm6068 = vcmask 52224
        %6069 = vst.msk [vmem:[#allocation5 + $0x20] sm:$0xf] %vm6068, %v6057
        %6070 = vst.msk [vmem:[#allocation5 + $0x24] sm:$0xf] %vm6068, %v6059
        %6071 = vst.msk [vmem:[#allocation5 + $0x28] sm:$0xf] %vm6068, %v6061
        %6072 = vst.msk [vmem:[#allocation5 + $0x2c] sm:$0xf] %vm6068, %v6063
        %vm6073 = vcmask 3072
        %6074 = vst.msk [vmem:[#allocation5] sm:$0xf] %vm6073, 0
        %6075 = vst.msk [vmem:[#allocation5 + $0x4] sm:$0xf] %vm6073, 0
        %6076 = vst.msk [vmem:[#allocation5 + $0x8] sm:$0xf] %vm6073, 0
        %6077 = vst.msk [vmem:[#allocation5 + $0xc] sm:$0xf] %vm6073, 0
        %vm6078 = vcmask 11272
        %6079 = vst.msk [vmem:[#allocation5 + $0x20] sm:$0xf] %vm6078, 0
        %6080 = vst.msk [vmem:[#allocation5 + $0x24] sm:$0xf] %vm6078, 0
        %6081 = vst.msk [vmem:[#allocation5 + $0x28] sm:$0xf] %vm6078, 0
        %6082 = vst.msk [vmem:[#allocation5 + $0x2c] sm:$0xf] %vm6078, 0
        %vm6083 = vcmask 19472
        %6084 = vst.msk [vmem:[#allocation5] sm:$0xf] %vm6083, 0
        %6085 = vst.msk [vmem:[#allocation5 + $0x4] sm:$0xf] %vm6083, 0
        %6086 = vst.msk [vmem:[#allocation5 + $0x8] sm:$0xf] %vm6083, 0
        %6087 = vst.msk [vmem:[#allocation5 + $0xc] sm:$0xf] %vm6083, 0
        %vm6088 = vcmask 27672
        %6089 = vst.msk [vmem:[#allocation5 + $0x20] sm:$0xf] %vm6088, 0
        %6090 = vst.msk [vmem:[#allocation5 + $0x24] sm:$0xf] %vm6088, 0
        %6091 = vst.msk [vmem:[#allocation5 + $0x28] sm:$0xf] %vm6088, 0
        %6092 = vst.msk [vmem:[#allocation5 + $0x2c] sm:$0xf] %vm6088, 0
        %vm6093 = vcmask 35872
        %6094 = vst.msk [vmem:[#allocation5] sm:$0xf] %vm6093, 0
        %6095 = vst.msk [vmem:[#allocation5 + $0x4] sm:$0xf] %vm6093, 0
        %6096 = vst.msk [vmem:[#allocation5 + $0x8] sm:$0xf] %vm6093, 0
        %6097 = vst.msk [vmem:[#allocation5 + $0xc] sm:$0xf] %vm6093, 0
        %vm6098 = vcmask 44072
        %6099 = vst.msk [vmem:[#allocation5 + $0x20] sm:$0xf] %vm6098, 0
        %6100 = vst.msk [vmem:[#allocation5 + $0x24] sm:$0xf] %vm6098, 0
        %6101 = vst.msk [vmem:[#allocation5 + $0x28] sm:$0xf] %vm6098, 0
        %6102 = vst.msk [vmem:[#allocation5 + $0x2c] sm:$0xf] %vm6098, 0
        %vm6103 = vcmask 52272
        %6104 = vst.msk [vmem:[#allocation5] sm:$0xf] %vm6103, 0
        %6105 = vst.msk [vmem:[#allocation5 + $0x4] sm:$0xf] %vm6103, 0
        %6106 = vst.msk [vmem:[#allocation5 + $0x8] sm:$0xf] %vm6103, 0
        %6107 = vst.msk [vmem:[#allocation5 + $0xc] sm:$0xf] %vm6103, 0
        %vm6108 = vcmask 60472
        %6109 = vst.msk [vmem:[#allocation5 + $0x20] sm:$0xf] %vm6108, 0
        %6110 = vst.msk [vmem:[#allocation5 + $0x24] sm:$0xf] %vm6108, 0
        %6111 = vst.msk [vmem:[#allocation5 + $0x28] sm:$0xf] %vm6108, 0
        %6112 = vst.msk [vmem:[#allocation5 + $0x2c] sm:$0xf] %vm6108, 0
        %v6113 = vld [vmem:[#allocation15] sm:$0xf]
        %v6114 = vld [vmem:[#allocation15 + $0x4] sm:$0xf]
        %v6115 = vld [vmem:[#allocation15 + $0x8] sm:$0xf]
        %v6116 = vld [vmem:[#allocation15 + $0xc] sm:$0xf]
        %v6117 = vld [vmem:[#allocation15 + $0x10] sm:$0xf]
        %v6118 = vld [vmem:[#allocation15 + $0x14] sm:$0xf]
        %v6119 = vld [vmem:[#allocation15 + $0x18] sm:$0xf]
        %v6120 = vld [vmem:[#allocation15 + $0x1c] sm:$0xf]
        %v6121 = vld [vmem:[#allocation5] sm:$0xf]
        %v6122 = vld [vmem:[#allocation5 + $0x4] sm:$0xf]
        %v6123 = vld [vmem:[#allocation5 + $0x8] sm:$0xf]
        %v6124 = vld [vmem:[#allocation5 + $0xc] sm:$0xf]
        %v6125 = vld [vmem:[#allocation5 + $0x10] sm:$0xf]
        %v6126 = vld [vmem:[#allocation5 + $0x14] sm:$0xf]
        %v6127 = vld [vmem:[#allocation5 + $0x18] sm:$0xf]
        %v6128 = vld [vmem:[#allocation5 + $0x1c] sm:$0xf]
        %v6129 = vld [vmem:[#allocation5 + $0x20] sm:$0xf]
        %v6130 = vld [vmem:[#allocation5 + $0x24] sm:$0xf]
        %v6131 = vld [vmem:[#allocation5 + $0x28] sm:$0xf]
        %v6132 = vld [vmem:[#allocation5 + $0x2c] sm:$0xf]
        %v6141 = vunpack.c.l.b16 %v6113
        %v6142 = vunpack.c.l.b16 %v6114
        %v6143 = vunpack.c.l.b16 %v6115
        %v6144 = vunpack.c.l.b16 %v6116
        %v6145 = vunpack.c.l.b16 %v6117
        %v6146 = vunpack.c.l.b16 %v6118
        %v6147 = vunpack.c.l.b16 %v6119
        %v6148 = vunpack.c.l.b16 %v6120
        %v6149 = vpack.c.b16 %v6142, %v6141
        %v6150 = vpack.c.b16 %v6144, %v6143
        %v6151 = vpack.c.b16 %v6146, %v6145
        %v6152 = vpack.c.b16 %v6148, %v6147
        %v6165 = vunpack.c.l.b16 %v6121
        %v6166 = vunpack.c.l.b16 %v6122
        %v6167 = vunpack.c.l.b16 %v6123
        %v6168 = vunpack.c.l.b16 %v6124
        %v6169 = vunpack.c.l.b16 %v6125
        %v6170 = vunpack.c.l.b16 %v6126
        %v6171 = vunpack.c.l.b16 %v6127
        %v6172 = vunpack.c.l.b16 %v6128
        %v6173 = vunpack.c.l.b16 %v6129
        %v6174 = vunpack.c.l.b16 %v6130
        %v6175 = vunpack.c.l.b16 %v6131
        %v6176 = vunpack.c.l.b16 %v6132
        %v6177 = vpack.c.b16 %v6166, %v6165
        %v6178 = vpack.c.b16 %v6168, %v6167
        %v6179 = vpack.c.b16 %v6170, %v6169
        %v6180 = vpack.c.b16 %v6172, %v6171
        %v6181 = vpack.c.b16 %v6174, %v6173
        %v6182 = vpack.c.b16 %v6176, %v6175
        %vm6189 = vcmask 785408
        %v6191 = vsel %vm6189, %v6149, 0
        %v6194 = vsel %vm6189, %v6150, 0
        %v6197 = vsel %vm6189, %v6151, 0
        %v6200 = vsel %vm6189, %v6152, 0
        %6202 = vmatprep.subr.bf16.mxu0 0
        %6203 = vmatpush1.bf16.msra.mxu0 0
        %6204 = vmatprep.subr.bf16.mxu0 0
        %6205 = vmatpush1.bf16.msra.mxu0 0
        %6206 = vmatprep.subr.bf16.mxu0 0
        %6207 = vmatpush1.bf16.msra.mxu0 %v6182
        %6208 = vmatprep.subr.bf16.mxu0 0
        %6209 = vmatpush1.bf16.msra.mxu0 %v6181
        %6210 = vmatprep.subr.bf16.mxu0 0
        %6211 = vmatpush1.bf16.msra.mxu0 %v6180
        %6212 = vmatprep.subr.bf16.mxu0 0
        %6213 = vmatpush1.bf16.msra.mxu0 %v6179
        %6214 = vmatprep.subr.bf16.mxu0 0
        %6215 = vmatpush1.bf16.msra.mxu0 %v6178
        %6216 = vmatprep.subr.bf16.mxu0 0
        %6217 = vmatpush1.bf16.msra.mxu0 %v6177
        %6218 = vmatprep.subr.bf16.mxu0 0
        %6219 = vmatpush2.bf16.msra.mxu0 0
        %6220 = vmatprep.subr.bf16.mxu0 0
        %6221 = vmatpush2.bf16.msra.mxu0 0
        %6222 = vmatprep.subr.bf16.mxu0 0
        %6223 = vmatpush2.bf16.msra.mxu0 0
        %6224 = vmatprep.subr.bf16.mxu0 0
        %6225 = vmatpush2.bf16.msra.mxu0 0
        %6226 = vmatprep.subr.bf16.mxu0 0
        %6227 = vmatpush2.bf16.msra.mxu0 0
        %6228 = vmatprep.subr.bf16.mxu0 0
        %6229 = vmatpush2.bf16.msra.mxu0 0
        %6230 = vmatprep.subr.bf16.mxu0 0
        %6231 = vmatpush2.bf16.msra.mxu0 0
        %6232 = vmatprep.subr.bf16.mxu0 0
        %6233 = vmatpush2.bf16.msra.mxu0 0
        %6234 = vmatprep.mubr.bf16.mxu0 0
        %6235 = vmatmul.mubr.bf16.gmra.mxu0 %v6191
        %v6236 = vpop.f32.mrf.mxu0
        %v6237 = vadd.f32 0.0, %v6236
        %v6238 = vpop.f32.mrf.mxu0
        %v6239 = vpop.f32.mrf.mxu0
        %v6240 = vadd.f32 0.0, %v6239
        %v6241 = vpop.f32.mrf.mxu0
        %6242 = vmatprep.mubr.bf16.mxu0 0
        %6243 = vmatmul.mubr.bf16.gmra.mxu0 %v6194
        %v6244 = vpop.f32.mrf.mxu0
        %v6245 = vadd.f32 0.0, %v6244
        %v6246 = vpop.f32.mrf.mxu0
        %v6247 = vpop.f32.mrf.mxu0
        %v6248 = vadd.f32 0.0, %v6247
        %v6249 = vpop.f32.mrf.mxu0
        %6250 = vmatprep.mubr.bf16.mxu0 0
        %6251 = vmatmul.mubr.bf16.gmra.mxu0 %v6197
        %v6252 = vpop.f32.mrf.mxu0
        %v6253 = vadd.f32 0.0, %v6252
        %v6254 = vpop.f32.mrf.mxu0
        %v6255 = vpop.f32.mrf.mxu0
        %v6256 = vadd.f32 0.0, %v6255
        %v6257 = vpop.f32.mrf.mxu0
        %6258 = vmatprep.mubr.bf16.mxu0 0
        %6259 = vmatmul.mubr.bf16.gmra.mxu0 %v6200
        %v6260 = vpop.f32.mrf.mxu0
        %v6261 = vadd.f32 0.0, %v6260
        %v6262 = vpop.f32.mrf.mxu0
        %v6263 = vpop.f32.mrf.mxu0
        %v6264 = vadd.f32 0.0, %v6263
        %v6265 = vpop.f32.mrf.mxu0
        %6266 = vdwg.mxu0
        %v6267 = vpack.c.bf16 %v6240, %v6237
        %v6268 = vpack.c.bf16 %v6248, %v6245
        %v6269 = vpack.c.bf16 %v6256, %v6253
        %v6270 = vpack.c.bf16 %v6264, %v6261
        %v6271 = vld [vmem:[%s16] sm:$0xf]
        %vm6272 = vcmask 64512
        %v6274 = vsel %vm6272, %v6267, 0
        %v6277 = vsel %vm6272, %v6268, 0
        %v6280 = vsel %vm6272, %v6269, 0
        %v6283 = vsel %vm6272, %v6270, 0
        %v6286 = vsel %vm1333, %v6271, 0
        %6288 = vmatprep.subr.bf16.mxu0 0
        %6289 = vmatpush1.bf16.msra.mxu0 0
        %6290 = vmatprep.subr.bf16.mxu0 0
        %6291 = vmatpush1.bf16.msra.mxu0 0
        %6292 = vmatprep.subr.bf16.mxu0 0
        %6293 = vmatpush1.bf16.msra.mxu0 0
        %6294 = vmatprep.subr.bf16.mxu0 0
        %6295 = vmatpush1.bf16.msra.mxu0 0
        %6296 = vmatprep.subr.bf16.mxu0 0
        %6297 = vmatpush1.bf16.msra.mxu0 0
        %6298 = vmatprep.subr.bf16.mxu0 0
        %6299 = vmatpush1.bf16.msra.mxu0 0
        %6300 = vmatprep.subr.bf16.mxu0 0
        %6301 = vmatpush1.bf16.msra.mxu0 0
        %6302 = vmatprep.subr.bf16.mxu0 0
        %6303 = vmatpush1.bf16.msra.mxu0 %v6286
        %6304 = vmatprep.subr.bf16.mxu0 0
        %6305 = vmatpush2.bf16.msra.mxu0 0
        %6306 = vmatprep.subr.bf16.mxu0 0
        %6307 = vmatpush2.bf16.msra.mxu0 0
        %6308 = vmatprep.subr.bf16.mxu0 0
        %6309 = vmatpush2.bf16.msra.mxu0 0
        %6310 = vmatprep.subr.bf16.mxu0 0
        %6311 = vmatpush2.bf16.msra.mxu0 0
        %6312 = vmatprep.subr.bf16.mxu0 0
        %6313 = vmatpush2.bf16.msra.mxu0 0
        %6314 = vmatprep.subr.bf16.mxu0 0
        %6315 = vmatpush2.bf16.msra.mxu0 0
        %6316 = vmatprep.subr.bf16.mxu0 0
        %6317 = vmatpush2.bf16.msra.mxu0 0
        %6318 = vmatprep.subr.bf16.mxu0 0
        %6319 = vmatpush2.bf16.msra.mxu0 0
        %6320 = vmatprep.mubr.bf16.mxu0 0
        %6321 = vmatmul.mubr.bf16.gmra.mxu0 %v6274
        %v6322 = vpop.f32.mrf.mxu0
        %v6323 = vadd.f32 %v5263, %v6322
        %v6324 = vpop.f32.mrf.mxu0
        %v6325 = vpop.f32.mrf.mxu0
        %v6326 = vadd.f32 %v5266, %v6325
        %v6327 = vpop.f32.mrf.mxu0
        %6328 = vmatprep.mubr.bf16.mxu0 0
        %6329 = vmatmul.mubr.bf16.gmra.mxu0 %v6277
        %v6330 = vpop.f32.mrf.mxu0
        %v6331 = vadd.f32 %v5271, %v6330
        %v6332 = vpop.f32.mrf.mxu0
        %v6333 = vpop.f32.mrf.mxu0
        %v6334 = vadd.f32 %v5274, %v6333
        %v6335 = vpop.f32.mrf.mxu0
        %6336 = vmatprep.mubr.bf16.mxu0 0
        %6337 = vmatmul.mubr.bf16.gmra.mxu0 %v6280
        %v6338 = vpop.f32.mrf.mxu0
        %v6339 = vadd.f32 %v5279, %v6338
        %v6340 = vpop.f32.mrf.mxu0
        %v6341 = vpop.f32.mrf.mxu0
        %v6342 = vadd.f32 %v5282, %v6341
        %v6343 = vpop.f32.mrf.mxu0
        %6344 = vmatprep.mubr.bf16.mxu0 0
        %6345 = vmatmul.mubr.bf16.gmra.mxu0 %v6283
        %v6346 = vpop.f32.mrf.mxu0
        %v6347 = vadd.f32 %v5287, %v6346
        %v6348 = vpop.f32.mrf.mxu0
        %v6349 = vpop.f32.mrf.mxu0
        %v6350 = vadd.f32 %v5290, %v6349
        %v6351 = vpop.f32.mrf.mxu0
        %6352 = vdwg.mxu0
        %v6353 = vmax.f32 %v6323, 0.0
        %v6354 = vmax.f32 %v6326, 0.0
        %v6355 = vmax.f32 %v6331, 0.0
        %v6356 = vmax.f32 %v6334, 0.0
        %v6357 = vmax.f32 %v6339, 0.0
        %v6358 = vmax.f32 %v6342, 0.0
        %v6359 = vmax.f32 %v6347, 0.0
        %v6360 = vmax.f32 %v6350, 0.0
        %v6361 = vpack.c.bf16 %v6354, %v6353
        %v6362 = vpack.c.bf16 %v6356, %v6355
        %v6363 = vpack.c.bf16 %v6358, %v6357
        %v6364 = vpack.c.bf16 %v6360, %v6359
        %v6369 = vunpack.c.l.b16 %v6361
        %v6370 = vunpack.c.h.b16 %v6361
        %v6371 = vunpack.c.l.b16 %v6362
        %v6372 = vunpack.c.h.b16 %v6362
        %v6373 = vunpack.c.l.b16 %v6363
        %v6374 = vunpack.c.h.b16 %v6363
        %v6375 = vunpack.c.l.b16 %v6364
        %v6376 = vunpack.c.h.b16 %v6364
        %v6377 = vpack.c.b16 %v6369, %v6369
        %v6378 = vpack.c.b16 %v6370, %v6370
        %v6379 = vpack.c.b16 %v6371, %v6371
        %v6380 = vpack.c.b16 %v6372, %v6372
        %v6381 = vpack.c.b16 %v6373, %v6373
        %v6382 = vpack.c.b16 %v6374, %v6374
        %v6383 = vpack.c.b16 %v6375, %v6375
        %v6384 = vpack.c.b16 %v6376, %v6376
        %vm6393 = vcmask 191488
        %6394 = vst.msk [vmem:[#allocation6 + $0x20] sm:$0xf] %vm6393, %v6377
        %6395 = vst.msk [vmem:[#allocation6 + $0x24] sm:$0xf] %vm6393, %v6378
        %6396 = vst.msk [vmem:[#allocation6 + $0x28] sm:$0xf] %vm6393, %v6379
        %6397 = vst.msk [vmem:[#allocation6 + $0x2c] sm:$0xf] %vm6393, %v6380
        %6398 = vst.msk [vmem:[#allocation6 + $0x30] sm:$0xf] %vm6393, %v6381
        %6399 = vst.msk [vmem:[#allocation6 + $0x34] sm:$0xf] %vm6393, %v6382
        %6400 = vst.msk [vmem:[#allocation6 + $0x38] sm:$0xf] %vm6393, %v6383
        %6401 = vst.msk [vmem:[#allocation6 + $0x3c] sm:$0xf] %vm6393, %v6384
        %6402 = vrot.lane.b32.xlu0 %v6377, 1
        %v6403 = vpop.permute.xlu0 %6402
        %6404 = vrot.lane.b32.xlu0 %v6378, 1
        %v6405 = vpop.permute.xlu0 %6404
        %6406 = vrot.lane.b32.xlu0 %v6379, 1
        %v6407 = vpop.permute.xlu0 %6406
        %6408 = vrot.lane.b32.xlu0 %v6380, 1
        %v6409 = vpop.permute.xlu0 %6408
        %6410 = vrot.lane.b32.xlu0 %v6381, 1
        %v6411 = vpop.permute.xlu0 %6410
        %6412 = vrot.lane.b32.xlu0 %v6382, 1
        %v6413 = vpop.permute.xlu0 %6412
        %6414 = vrot.lane.b32.xlu0 %v6383, 1
        %v6415 = vpop.permute.xlu0 %6414
        %6416 = vrot.lane.b32.xlu0 %v6384, 1
        %v6417 = vpop.permute.xlu0 %6416
        %vm6426 = vcmask 191496
        %6427 = vst.msk [vmem:[#allocation6] sm:$0xf] %vm6426, %v6403
        %6428 = vst.msk [vmem:[#allocation6 + $0x4] sm:$0xf] %vm6426, %v6405
        %6429 = vst.msk [vmem:[#allocation6 + $0x8] sm:$0xf] %vm6426, %v6407
        %6430 = vst.msk [vmem:[#allocation6 + $0xc] sm:$0xf] %vm6426, %v6409
        %6431 = vst.msk [vmem:[#allocation6 + $0x10] sm:$0xf] %vm6426, %v6411
        %6432 = vst.msk [vmem:[#allocation6 + $0x14] sm:$0xf] %vm6426, %v6413
        %6433 = vst.msk [vmem:[#allocation6 + $0x18] sm:$0xf] %vm6426, %v6415
        %6434 = vst.msk [vmem:[#allocation6 + $0x1c] sm:$0xf] %vm6426, %v6417
        %6435 = vrot.lane.b32.xlu0 %v6377, 127
        %v6436 = vpop.permute.xlu0 %6435
        %6437 = vrot.lane.b32.xlu0 %v6378, 127
        %v6438 = vpop.permute.xlu0 %6437
        %6439 = vrot.lane.b32.xlu0 %v6379, 127
        %v6440 = vpop.permute.xlu0 %6439
        %6441 = vrot.lane.b32.xlu0 %v6380, 127
        %v6442 = vpop.permute.xlu0 %6441
        %6443 = vrot.lane.b32.xlu0 %v6381, 127
        %v6444 = vpop.permute.xlu0 %6443
        %6445 = vrot.lane.b32.xlu0 %v6382, 127
        %v6446 = vpop.permute.xlu0 %6445
        %6447 = vrot.lane.b32.xlu0 %v6383, 127
        %v6448 = vpop.permute.xlu0 %6447
        %6449 = vrot.lane.b32.xlu0 %v6384, 127
        %v6450 = vpop.permute.xlu0 %6449
        %vm6459 = vcmask 183296
        %6460 = vst.msk [vmem:[#allocation6 + $0x40] sm:$0xf] %vm6459, %v6436
        %6461 = vst.msk [vmem:[#allocation6 + $0x44] sm:$0xf] %vm6459, %v6438
        %6462 = vst.msk [vmem:[#allocation6 + $0x48] sm:$0xf] %vm6459, %v6440
        %6463 = vst.msk [vmem:[#allocation6 + $0x4c] sm:$0xf] %vm6459, %v6442
        %6464 = vst.msk [vmem:[#allocation6 + $0x50] sm:$0xf] %vm6459, %v6444
        %6465 = vst.msk [vmem:[#allocation6 + $0x54] sm:$0xf] %vm6459, %v6446
        %6466 = vst.msk [vmem:[#allocation6 + $0x58] sm:$0xf] %vm6459, %v6448
        %6467 = vst.msk [vmem:[#allocation6 + $0x5c] sm:$0xf] %vm6459, %v6450
        %6468 = vst.msk [vmem:[#allocation6] sm:$0xf] %vm6073, 0
        %6469 = vst.msk [vmem:[#allocation6 + $0x4] sm:$0xf] %vm6073, 0
        %6470 = vst.msk [vmem:[#allocation6 + $0x8] sm:$0xf] %vm6073, 0
        %6471 = vst.msk [vmem:[#allocation6 + $0xc] sm:$0xf] %vm6073, 0
        %6472 = vst.msk [vmem:[#allocation6 + $0x10] sm:$0xf] %vm6073, 0
        %6473 = vst.msk [vmem:[#allocation6 + $0x14] sm:$0xf] %vm6073, 0
        %6474 = vst.msk [vmem:[#allocation6 + $0x18] sm:$0xf] %vm6073, 0
        %6475 = vst.msk [vmem:[#allocation6 + $0x1c] sm:$0xf] %vm6073, 0
        %6476 = vst.msk [vmem:[#allocation6 + $0x40] sm:$0xf] %vm6098, 0
        %6477 = vst.msk [vmem:[#allocation6 + $0x44] sm:$0xf] %vm6098, 0
        %6478 = vst.msk [vmem:[#allocation6 + $0x48] sm:$0xf] %vm6098, 0
        %6479 = vst.msk [vmem:[#allocation6 + $0x4c] sm:$0xf] %vm6098, 0
        %6480 = vst.msk [vmem:[#allocation6 + $0x50] sm:$0xf] %vm6098, 0
        %6481 = vst.msk [vmem:[#allocation6 + $0x54] sm:$0xf] %vm6098, 0
        %6482 = vst.msk [vmem:[#allocation6 + $0x58] sm:$0xf] %vm6098, 0
        %6483 = vst.msk [vmem:[#allocation6 + $0x5c] sm:$0xf] %vm6098, 0
        %6484 = vst.msk [vmem:[#allocation6] sm:$0xf] %vm6103, 0
        %6485 = vst.msk [vmem:[#allocation6 + $0x4] sm:$0xf] %vm6103, 0
        %6486 = vst.msk [vmem:[#allocation6 + $0x8] sm:$0xf] %vm6103, 0
        %6487 = vst.msk [vmem:[#allocation6 + $0xc] sm:$0xf] %vm6103, 0
        %6488 = vst.msk [vmem:[#allocation6 + $0x10] sm:$0xf] %vm6103, 0
        %6489 = vst.msk [vmem:[#allocation6 + $0x14] sm:$0xf] %vm6103, 0
        %6490 = vst.msk [vmem:[#allocation6 + $0x18] sm:$0xf] %vm6103, 0
        %6491 = vst.msk [vmem:[#allocation6 + $0x1c] sm:$0xf] %vm6103, 0
        %vm6492 = vcmask 93272
        %6493 = vst.msk [vmem:[#allocation6 + $0x40] sm:$0xf] %vm6492, 0
        %6494 = vst.msk [vmem:[#allocation6 + $0x44] sm:$0xf] %vm6492, 0
        %6495 = vst.msk [vmem:[#allocation6 + $0x48] sm:$0xf] %vm6492, 0
        %6496 = vst.msk [vmem:[#allocation6 + $0x4c] sm:$0xf] %vm6492, 0
        %6497 = vst.msk [vmem:[#allocation6 + $0x50] sm:$0xf] %vm6492, 0
        %6498 = vst.msk [vmem:[#allocation6 + $0x54] sm:$0xf] %vm6492, 0
        %6499 = vst.msk [vmem:[#allocation6 + $0x58] sm:$0xf] %vm6492, 0
        %6500 = vst.msk [vmem:[#allocation6 + $0x5c] sm:$0xf] %vm6492, 0
        %vm6501 = vcmask 101472
        %6502 = vst.msk [vmem:[#allocation6] sm:$0xf] %vm6501, 0
        %6503 = vst.msk [vmem:[#allocation6 + $0x4] sm:$0xf] %vm6501, 0
        %6504 = vst.msk [vmem:[#allocation6 + $0x8] sm:$0xf] %vm6501, 0
        %6505 = vst.msk [vmem:[#allocation6 + $0xc] sm:$0xf] %vm6501, 0
        %6506 = vst.msk [vmem:[#allocation6 + $0x10] sm:$0xf] %vm6501, 0
        %6507 = vst.msk [vmem:[#allocation6 + $0x14] sm:$0xf] %vm6501, 0
        %6508 = vst.msk [vmem:[#allocation6 + $0x18] sm:$0xf] %vm6501, 0
        %6509 = vst.msk [vmem:[#allocation6 + $0x1c] sm:$0xf] %vm6501, 0
        %vm6510 = vcmask 142472
        %6511 = vst.msk [vmem:[#allocation6 + $0x40] sm:$0xf] %vm6510, 0
        %6512 = vst.msk [vmem:[#allocation6 + $0x44] sm:$0xf] %vm6510, 0
        %6513 = vst.msk [vmem:[#allocation6 + $0x48] sm:$0xf] %vm6510, 0
        %6514 = vst.msk [vmem:[#allocation6 + $0x4c] sm:$0xf] %vm6510, 0
        %6515 = vst.msk [vmem:[#allocation6 + $0x50] sm:$0xf] %vm6510, 0
        %6516 = vst.msk [vmem:[#allocation6 + $0x54] sm:$0xf] %vm6510, 0
        %6517 = vst.msk [vmem:[#allocation6 + $0x58] sm:$0xf] %vm6510, 0
        %6518 = vst.msk [vmem:[#allocation6 + $0x5c] sm:$0xf] %vm6510, 0
        %vm6519 = vcmask 150672
        %6520 = vst.msk [vmem:[#allocation6] sm:$0xf] %vm6519, 0
        %6521 = vst.msk [vmem:[#allocation6 + $0x4] sm:$0xf] %vm6519, 0
        %6522 = vst.msk [vmem:[#allocation6 + $0x8] sm:$0xf] %vm6519, 0
        %6523 = vst.msk [vmem:[#allocation6 + $0xc] sm:$0xf] %vm6519, 0
        %6524 = vst.msk [vmem:[#allocation6 + $0x10] sm:$0xf] %vm6519, 0
        %6525 = vst.msk [vmem:[#allocation6 + $0x14] sm:$0xf] %vm6519, 0
        %6526 = vst.msk [vmem:[#allocation6 + $0x18] sm:$0xf] %vm6519, 0
        %6527 = vst.msk [vmem:[#allocation6 + $0x1c] sm:$0xf] %vm6519, 0
        %vm6528 = vcmask 191672
        %6529 = vst.msk [vmem:[#allocation6 + $0x40] sm:$0xf] %vm6528, 0
        %6530 = vst.msk [vmem:[#allocation6 + $0x44] sm:$0xf] %vm6528, 0
        %6531 = vst.msk [vmem:[#allocation6 + $0x48] sm:$0xf] %vm6528, 0
        %6532 = vst.msk [vmem:[#allocation6 + $0x4c] sm:$0xf] %vm6528, 0
        %6533 = vst.msk [vmem:[#allocation6 + $0x50] sm:$0xf] %vm6528, 0
        %6534 = vst.msk [vmem:[#allocation6 + $0x54] sm:$0xf] %vm6528, 0
        %6535 = vst.msk [vmem:[#allocation6 + $0x58] sm:$0xf] %vm6528, 0
        %6536 = vst.msk [vmem:[#allocation6 + $0x5c] sm:$0xf] %vm6528, 0
        %v6537 = vld [vmem:[%s10] sm:$0xff]
        %v6538 = vld [vmem:[%s10 + $0x8] sm:$0xff]
        %v6539 = vld [vmem:[%s10 + $0x10] sm:$0xff]
        %v6540 = vld [vmem:[%s10 + $0x18] sm:$0xff]
        %v6541 = vld [vmem:[%s10 + $0x20] sm:$0xff]
        %v6542 = vld [vmem:[%s10 + $0x28] sm:$0xff]
        %v6543 = vld [vmem:[%s10 + $0x30] sm:$0xff]
        %v6544 = vld [vmem:[%s10 + $0x38] sm:$0xff]
        %v6545 = vld [vmem:[%s10 + $0x40] sm:$0xff]
        %v6546 = vld [vmem:[%s10 + $0x48] sm:$0xff]
        %v6547 = vld [vmem:[%s10 + $0x50] sm:$0xff]
        %v6548 = vld [vmem:[%s10 + $0x58] sm:$0xff]
        %v6549 = vld [vmem:[%s10 + $0x60] sm:$0xff]
        %v6550 = vld [vmem:[%s10 + $0x68] sm:$0xff]
        %v6551 = vld [vmem:[%s10 + $0x70] sm:$0xff]
        %v6552 = vld [vmem:[%s10 + $0x78] sm:$0xff]
        %v6553 = vld [vmem:[#allocation6] sm:$0xf]
        %v6554 = vld [vmem:[#allocation6 + $0x4] sm:$0xf]
        %v6555 = vld [vmem:[#allocation6 + $0x8] sm:$0xf]
        %v6556 = vld [vmem:[#allocation6 + $0xc] sm:$0xf]
        %v6557 = vld [vmem:[#allocation6 + $0x10] sm:$0xf]
        %v6558 = vld [vmem:[#allocation6 + $0x14] sm:$0xf]
        %v6559 = vld [vmem:[#allocation6 + $0x18] sm:$0xf]
        %v6560 = vld [vmem:[#allocation6 + $0x1c] sm:$0xf]
        %v6561 = vld [vmem:[#allocation6 + $0x20] sm:$0xf]
        %v6562 = vld [vmem:[#allocation6 + $0x24] sm:$0xf]
        %v6563 = vld [vmem:[#allocation6 + $0x28] sm:$0xf]
        %v6564 = vld [vmem:[#allocation6 + $0x2c] sm:$0xf]
        %v6565 = vld [vmem:[#allocation6 + $0x30] sm:$0xf]
        %v6566 = vld [vmem:[#allocation6 + $0x34] sm:$0xf]
        %v6567 = vld [vmem:[#allocation6 + $0x38] sm:$0xf]
        %v6568 = vld [vmem:[#allocation6 + $0x3c] sm:$0xf]
        %v6569 = vld [vmem:[#allocation6 + $0x40] sm:$0xf]
        %v6570 = vld [vmem:[#allocation6 + $0x44] sm:$0xf]
        %v6571 = vld [vmem:[#allocation6 + $0x48] sm:$0xf]
        %v6572 = vld [vmem:[#allocation6 + $0x4c] sm:$0xf]
        %v6573 = vld [vmem:[#allocation6 + $0x50] sm:$0xf]
        %v6574 = vld [vmem:[#allocation6 + $0x54] sm:$0xf]
        %v6575 = vld [vmem:[#allocation6 + $0x58] sm:$0xf]
        %v6576 = vld [vmem:[#allocation6 + $0x5c] sm:$0xf]
        %v6593 = vunpack.c.l.b16 %v6537
        %v6594 = vunpack.c.h.b16 %v6537
        %v6595 = vunpack.c.l.b16 %v6538
        %v6596 = vunpack.c.h.b16 %v6538
        %v6597 = vunpack.c.l.b16 %v6539
        %v6598 = vunpack.c.h.b16 %v6539
        %v6599 = vunpack.c.l.b16 %v6540
        %v6600 = vunpack.c.h.b16 %v6540
        %v6601 = vunpack.c.l.b16 %v6541
        %v6602 = vunpack.c.h.b16 %v6541
        %v6603 = vunpack.c.l.b16 %v6542
        %v6604 = vunpack.c.h.b16 %v6542
        %v6605 = vunpack.c.l.b16 %v6543
        %v6606 = vunpack.c.h.b16 %v6543
        %v6607 = vunpack.c.l.b16 %v6544
        %v6608 = vunpack.c.h.b16 %v6544
        %v6609 = vunpack.c.l.b16 %v6545
        %v6610 = vunpack.c.h.b16 %v6545
        %v6611 = vunpack.c.l.b16 %v6546
        %v6612 = vunpack.c.h.b16 %v6546
        %v6613 = vunpack.c.l.b16 %v6547
        %v6614 = vunpack.c.h.b16 %v6547
        %v6615 = vunpack.c.l.b16 %v6548
        %v6616 = vunpack.c.h.b16 %v6548
        %v6617 = vunpack.c.l.b16 %v6549
        %v6618 = vunpack.c.h.b16 %v6549
        %v6619 = vunpack.c.l.b16 %v6550
        %v6620 = vunpack.c.h.b16 %v6550
        %v6621 = vunpack.c.l.b16 %v6551
        %v6622 = vunpack.c.h.b16 %v6551
        %v6623 = vunpack.c.l.b16 %v6552
        %v6624 = vunpack.c.h.b16 %v6552
        %v6625 = vpack.c.b16 %v6595, %v6593
        %v6626 = vpack.c.b16 %v6596, %v6594
        %v6627 = vpack.c.b16 %v6599, %v6597
        %v6628 = vpack.c.b16 %v6600, %v6598
        %v6629 = vpack.c.b16 %v6603, %v6601
        %v6630 = vpack.c.b16 %v6604, %v6602
        %v6631 = vpack.c.b16 %v6607, %v6605
        %v6632 = vpack.c.b16 %v6608, %v6606
        %v6633 = vpack.c.b16 %v6611, %v6609
        %v6634 = vpack.c.b16 %v6612, %v6610
        %v6635 = vpack.c.b16 %v6615, %v6613
        %v6636 = vpack.c.b16 %v6616, %v6614
        %v6637 = vpack.c.b16 %v6619, %v6617
        %v6638 = vpack.c.b16 %v6620, %v6618
        %v6639 = vpack.c.b16 %v6623, %v6621
        %v6640 = vpack.c.b16 %v6624, %v6622
        %v6673 = vunpack.c.l.b16 %v6553
        %v6674 = vunpack.c.l.b16 %v6554
        %v6675 = vunpack.c.l.b16 %v6555
        %v6676 = vunpack.c.l.b16 %v6556
        %v6677 = vunpack.c.l.b16 %v6557
        %v6678 = vunpack.c.l.b16 %v6558
        %v6679 = vunpack.c.l.b16 %v6559
        %v6680 = vunpack.c.l.b16 %v6560
        %v6681 = vunpack.c.l.b16 %v6561
        %v6682 = vunpack.c.l.b16 %v6562
        %v6683 = vunpack.c.l.b16 %v6563
        %v6684 = vunpack.c.l.b16 %v6564
        %v6685 = vunpack.c.l.b16 %v6565
        %v6686 = vunpack.c.l.b16 %v6566
        %v6687 = vunpack.c.l.b16 %v6567
        %v6688 = vunpack.c.l.b16 %v6568
        %v6689 = vunpack.c.l.b16 %v6569
        %v6690 = vunpack.c.l.b16 %v6570
        %v6691 = vunpack.c.l.b16 %v6571
        %v6692 = vunpack.c.l.b16 %v6572
        %v6693 = vunpack.c.l.b16 %v6573
        %v6694 = vunpack.c.l.b16 %v6574
        %v6695 = vunpack.c.l.b16 %v6575
        %v6696 = vunpack.c.l.b16 %v6576
        %v6697 = vpack.c.b16 %v6674, %v6673
        %v6698 = vpack.c.b16 %v6676, %v6675
        %v6699 = vpack.c.b16 %v6678, %v6677
        %v6700 = vpack.c.b16 %v6680, %v6679
        %v6701 = vpack.c.b16 %v6682, %v6681
        %v6702 = vpack.c.b16 %v6684, %v6683
        %v6703 = vpack.c.b16 %v6686, %v6685
        %v6704 = vpack.c.b16 %v6688, %v6687
        %v6705 = vpack.c.b16 %v6690, %v6689
        %v6706 = vpack.c.b16 %v6692, %v6691
        %v6707 = vpack.c.b16 %v6694, %v6693
        %v6708 = vpack.c.b16 %v6696, %v6695
        %v6722 = vsel %vm5759, %v6626, 0
        %v6725 = vsel %vm5759, %v6628, 0
        %v6728 = vsel %vm5759, %v6630, 0
        %v6731 = vsel %vm5759, %v6632, 0
        %v6734 = vsel %vm5759, %v6634, 0
        %v6737 = vsel %vm5759, %v6636, 0
        %v6740 = vsel %vm5759, %v6638, 0
        %v6743 = vsel %vm5759, %v6640, 0
        %6745 = vmatprep.subr.bf16.mxu0 0
        %6746 = vmatpush1.bf16.msra.mxu0 %v6704
        %6747 = vmatprep.subr.bf16.mxu0 0
        %6748 = vmatpush1.bf16.msra.mxu0 %v6703
        %6749 = vmatprep.subr.bf16.mxu0 0
        %6750 = vmatpush1.bf16.msra.mxu0 %v6702
        %6751 = vmatprep.subr.bf16.mxu0 0
        %6752 = vmatpush1.bf16.msra.mxu0 %v6701
        %6753 = vmatprep.subr.bf16.mxu0 0
        %6754 = vmatpush1.bf16.msra.mxu0 %v6700
        %6755 = vmatprep.subr.bf16.mxu0 0
        %6756 = vmatpush1.bf16.msra.mxu0 %v6699
        %6757 = vmatprep.subr.bf16.mxu0 0
        %6758 = vmatpush1.bf16.msra.mxu0 %v6698
        %6759 = vmatprep.subr.bf16.mxu0 0
        %6760 = vmatpush1.bf16.msra.mxu0 %v6697
        %6761 = vmatprep.subr.bf16.mxu0 0
        %6762 = vmatpush2.bf16.msra.mxu0 0
        %6763 = vmatprep.subr.bf16.mxu0 0
        %6764 = vmatpush2.bf16.msra.mxu0 0
        %6765 = vmatprep.subr.bf16.mxu0 0
        %6766 = vmatpush2.bf16.msra.mxu0 0
        %6767 = vmatprep.subr.bf16.mxu0 0
        %6768 = vmatpush2.bf16.msra.mxu0 0
        %6769 = vmatprep.subr.bf16.mxu0 0
        %6770 = vmatpush2.bf16.msra.mxu0 %v6708
        %6771 = vmatprep.subr.bf16.mxu0 0
        %6772 = vmatpush2.bf16.msra.mxu0 %v6707
        %6773 = vmatprep.subr.bf16.mxu0 0
        %6774 = vmatpush2.bf16.msra.mxu0 %v6706
        %6775 = vmatprep.subr.bf16.mxu0 0
        %6776 = vmatpush2.bf16.msra.mxu0 %v6705
        %6777 = vmatprep.mubr.bf16.mxu0 %v6722
        %6778 = vmatmul.mubr.bf16.gmra.mxu0 %v6625
        %v6779 = vpop.f32.mrf.mxu0
        %v6780 = vadd.f32 0.0, %v6779
        %v6781 = vpop.f32.mrf.mxu0
        %v6782 = vpop.f32.mrf.mxu0
        %v6783 = vadd.f32 0.0, %v6782
        %v6784 = vpop.f32.mrf.mxu0
        %6785 = vmatprep.mubr.bf16.mxu0 %v6725
        %6786 = vmatmul.mubr.bf16.gmra.mxu0 %v6627
        %v6787 = vpop.f32.mrf.mxu0
        %v6788 = vadd.f32 0.0, %v6787
        %v6789 = vpop.f32.mrf.mxu0
        %v6790 = vpop.f32.mrf.mxu0
        %v6791 = vadd.f32 0.0, %v6790
        %v6792 = vpop.f32.mrf.mxu0
        %6793 = vmatprep.mubr.bf16.mxu0 %v6728
        %6794 = vmatmul.mubr.bf16.gmra.mxu0 %v6629
        %v6795 = vpop.f32.mrf.mxu0
        %v6796 = vadd.f32 0.0, %v6795
        %v6797 = vpop.f32.mrf.mxu0
        %v6798 = vpop.f32.mrf.mxu0
        %v6799 = vadd.f32 0.0, %v6798
        %v6800 = vpop.f32.mrf.mxu0
        %6801 = vmatprep.mubr.bf16.mxu0 %v6731
        %6802 = vmatmul.mubr.bf16.gmra.mxu0 %v6631
        %v6803 = vpop.f32.mrf.mxu0
        %v6804 = vadd.f32 0.0, %v6803
        %v6805 = vpop.f32.mrf.mxu0
        %v6806 = vpop.f32.mrf.mxu0
        %v6807 = vadd.f32 0.0, %v6806
        %v6808 = vpop.f32.mrf.mxu0
        %6809 = vmatprep.mubr.bf16.mxu0 %v6734
        %6810 = vmatmul.mubr.bf16.gmra.mxu0 %v6633
        %v6811 = vpop.f32.mrf.mxu0
        %v6812 = vadd.f32 0.0, %v6811
        %v6813 = vpop.f32.mrf.mxu0
        %v6814 = vpop.f32.mrf.mxu0
        %v6815 = vadd.f32 0.0, %v6814
        %v6816 = vpop.f32.mrf.mxu0
        %6817 = vmatprep.mubr.bf16.mxu0 %v6737
        %6818 = vmatmul.mubr.bf16.gmra.mxu0 %v6635
        %v6819 = vpop.f32.mrf.mxu0
        %v6820 = vadd.f32 0.0, %v6819
        %v6821 = vpop.f32.mrf.mxu0
        %v6822 = vpop.f32.mrf.mxu0
        %v6823 = vadd.f32 0.0, %v6822
        %v6824 = vpop.f32.mrf.mxu0
        %6825 = vmatprep.mubr.bf16.mxu0 %v6740
        %6826 = vmatmul.mubr.bf16.gmra.mxu0 %v6637
        %v6827 = vpop.f32.mrf.mxu0
        %v6828 = vadd.f32 0.0, %v6827
        %v6829 = vpop.f32.mrf.mxu0
        %v6830 = vpop.f32.mrf.mxu0
        %v6831 = vadd.f32 0.0, %v6830
        %v6832 = vpop.f32.mrf.mxu0
        %6833 = vmatprep.mubr.bf16.mxu0 %v6743
        %6834 = vmatmul.mubr.bf16.gmra.mxu0 %v6639
        %v6835 = vpop.f32.mrf.mxu0
        %v6836 = vadd.f32 0.0, %v6835
        %v6837 = vpop.f32.mrf.mxu0
        %v6838 = vpop.f32.mrf.mxu0
        %v6839 = vadd.f32 0.0, %v6838
        %v6840 = vpop.f32.mrf.mxu0
        %6841 = vdwg.mxu0
        %v6842 = vpack.c.bf16 %v6783, %v6780
        %v6843 = vpack.c.bf16 %v6791, %v6788
        %v6844 = vpack.c.bf16 %v6799, %v6796
        %v6845 = vpack.c.bf16 %v6807, %v6804
        %v6846 = vpack.c.bf16 %v6815, %v6812
        %v6847 = vpack.c.bf16 %v6823, %v6820
        %v6848 = vpack.c.bf16 %v6831, %v6828
        %v6849 = vpack.c.bf16 %v6839, %v6836
        %v6850 = vld [vmem:[#allocation18] sm:$0xf]
        %v6851 = vld [vmem:[#allocation18 + $0x4] sm:$0xf]
        %v6852 = vld [vmem:[#allocation18 + $0x8] sm:$0xf]
        %v6856 = vunpack.c.l.b16 %v6850
        %v6857 = vunpack.c.l.b16 %v6851
        %v6858 = vunpack.c.l.b16 %v6852
        %v6859 = vpack.c.b16 %v6857, %v6856
        %v6860 = vpack.c.b16 %v6858, %v6858
        %vm6862 = vcmask 195584
        %v6864 = vsel %vm6862, %v6842, 0
        %v6867 = vsel %vm6862, %v6843, 0
        %v6870 = vsel %vm6862, %v6844, 0
        %v6873 = vsel %vm6862, %v6845, 0
        %v6876 = vsel %vm6862, %v6846, 0
        %v6879 = vsel %vm6862, %v6847, 0
        %v6882 = vsel %vm6862, %v6848, 0
        %v6885 = vsel %vm6862, %v6849, 0
        %v6888 = vsel %vm1333, %v6860, 0
        %6890 = vmatprep.subr.bf16.mxu0 0
        %6891 = vmatpush1.bf16.msra.mxu0 0
        %6892 = vmatprep.subr.bf16.mxu0 0
        %6893 = vmatpush1.bf16.msra.mxu0 0
        %6894 = vmatprep.subr.bf16.mxu0 0
        %6895 = vmatpush1.bf16.msra.mxu0 0
        %6896 = vmatprep.subr.bf16.mxu0 0
        %6897 = vmatpush1.bf16.msra.mxu0 0
        %6898 = vmatprep.subr.bf16.mxu0 0
        %6899 = vmatpush1.bf16.msra.mxu0 0
        %6900 = vmatprep.subr.bf16.mxu0 0
        %6901 = vmatpush1.bf16.msra.mxu0 0
        %6902 = vmatprep.subr.bf16.mxu0 0
        %6903 = vmatpush1.bf16.msra.mxu0 %v6888
        %6904 = vmatprep.subr.bf16.mxu0 0
        %6905 = vmatpush1.bf16.msra.mxu0 %v6859
        %6906 = vmatprep.subr.bf16.mxu0 0
        %6907 = vmatpush2.bf16.msra.mxu0 0
        %6908 = vmatprep.subr.bf16.mxu0 0
        %6909 = vmatpush2.bf16.msra.mxu0 0
        %6910 = vmatprep.subr.bf16.mxu0 0
        %6911 = vmatpush2.bf16.msra.mxu0 0
        %6912 = vmatprep.subr.bf16.mxu0 0
        %6913 = vmatpush2.bf16.msra.mxu0 0
        %6914 = vmatprep.subr.bf16.mxu0 0
        %6915 = vmatpush2.bf16.msra.mxu0 0
        %6916 = vmatprep.subr.bf16.mxu0 0
        %6917 = vmatpush2.bf16.msra.mxu0 0
        %6918 = vmatprep.subr.bf16.mxu0 0
        %6919 = vmatpush2.bf16.msra.mxu0 0
        %6920 = vmatprep.subr.bf16.mxu0 0
        %6921 = vmatpush2.bf16.msra.mxu0 0
        %6922 = vmatprep.mubr.bf16.mxu0 0
        %6923 = vmatmul.mubr.bf16.gmra.mxu0 %v6864
        %v6924 = vpop.f32.mrf.mxu0
        %v6925 = vadd.f32 %v3132, %v6924
        %v6926 = vpop.f32.mrf.mxu0
        %v6927 = vpop.f32.mrf.mxu0
        %v6928 = vadd.f32 %v3135, %v6927
        %v6929 = vpop.f32.mrf.mxu0
        %6930 = vmatprep.mubr.bf16.mxu0 0
        %6931 = vmatmul.mubr.bf16.gmra.mxu0 %v6867
        %v6932 = vpop.f32.mrf.mxu0
        %v6933 = vadd.f32 %v3140, %v6932
        %v6934 = vpop.f32.mrf.mxu0
        %v6935 = vpop.f32.mrf.mxu0
        %v6936 = vadd.f32 %v3143, %v6935
        %v6937 = vpop.f32.mrf.mxu0
        %6938 = vmatprep.mubr.bf16.mxu0 0
        %6939 = vmatmul.mubr.bf16.gmra.mxu0 %v6870
        %v6940 = vpop.f32.mrf.mxu0
        %v6941 = vadd.f32 %v3148, %v6940
        %v6942 = vpop.f32.mrf.mxu0
        %v6943 = vpop.f32.mrf.mxu0
        %v6944 = vadd.f32 %v3151, %v6943
        %v6945 = vpop.f32.mrf.mxu0
        %6946 = vmatprep.mubr.bf16.mxu0 0
        %6947 = vmatmul.mubr.bf16.gmra.mxu0 %v6873
        %v6948 = vpop.f32.mrf.mxu0
        %v6949 = vadd.f32 %v3156, %v6948
        %v6950 = vpop.f32.mrf.mxu0
        %v6951 = vpop.f32.mrf.mxu0
        %v6952 = vadd.f32 %v3159, %v6951
        %v6953 = vpop.f32.mrf.mxu0
        %6954 = vmatprep.mubr.bf16.mxu0 0
        %6955 = vmatmul.mubr.bf16.gmra.mxu0 %v6876
        %v6956 = vpop.f32.mrf.mxu0
        %v6957 = vadd.f32 %v3164, %v6956
        %v6958 = vpop.f32.mrf.mxu0
        %v6959 = vpop.f32.mrf.mxu0
        %v6960 = vadd.f32 %v3167, %v6959
        %v6961 = vpop.f32.mrf.mxu0
        %6962 = vmatprep.mubr.bf16.mxu0 0
        %6963 = vmatmul.mubr.bf16.gmra.mxu0 %v6879
        %v6964 = vpop.f32.mrf.mxu0
        %v6965 = vadd.f32 %v3172, %v6964
        %v6966 = vpop.f32.mrf.mxu0
        %v6967 = vpop.f32.mrf.mxu0
        %v6968 = vadd.f32 %v3175, %v6967
        %v6969 = vpop.f32.mrf.mxu0
        %6970 = vmatprep.mubr.bf16.mxu0 0
        %6971 = vmatmul.mubr.bf16.gmra.mxu0 %v6882
        %v6972 = vpop.f32.mrf.mxu0
        %v6973 = vadd.f32 %v3180, %v6972
        %v6974 = vpop.f32.mrf.mxu0
        %v6975 = vpop.f32.mrf.mxu0
        %v6976 = vadd.f32 %v3183, %v6975
        %v6977 = vpop.f32.mrf.mxu0
        %6978 = vmatprep.mubr.bf16.mxu0 0
        %6979 = vmatmul.mubr.bf16.gmra.mxu0 %v6885
        %v6980 = vpop.f32.mrf.mxu0
        %v6981 = vadd.f32 %v3188, %v6980
        %v6982 = vpop.f32.mrf.mxu0
        %v6983 = vpop.f32.mrf.mxu0
        %v6984 = vadd.f32 %v3191, %v6983
        %v6985 = vpop.f32.mrf.mxu0
        %6986 = vdwg.mxu0
        %v6987 = vmax.f32 %v6925, 0.0
        %v6988 = vmax.f32 %v6928, 0.0
        %v6989 = vmax.f32 %v6933, 0.0
        %v6990 = vmax.f32 %v6936, 0.0
        %v6991 = vmax.f32 %v6941, 0.0
        %v6992 = vmax.f32 %v6944, 0.0
        %v6993 = vmax.f32 %v6949, 0.0
        %v6994 = vmax.f32 %v6952, 0.0
        %v6995 = vmax.f32 %v6957, 0.0
        %v6996 = vmax.f32 %v6960, 0.0
        %v6997 = vmax.f32 %v6965, 0.0
        %v6998 = vmax.f32 %v6968, 0.0
        %v6999 = vmax.f32 %v6973, 0.0
        %v7000 = vmax.f32 %v6976, 0.0
        %v7001 = vmax.f32 %v6981, 0.0
        %v7002 = vmax.f32 %v6984, 0.0
        %v7003 = vpack.c.bf16 %v6988, %v6987
        %v7004 = vpack.c.bf16 %v6990, %v6989
        %v7005 = vpack.c.bf16 %v6992, %v6991
        %v7006 = vpack.c.bf16 %v6994, %v6993
        %v7007 = vpack.c.bf16 %v6996, %v6995
        %v7008 = vpack.c.bf16 %v6998, %v6997
        %v7009 = vpack.c.bf16 %v7000, %v6999
        %v7010 = vpack.c.bf16 %v7002, %v7001
        %v7019 = vunpack.c.l.b16 %v7003
        %v7020 = vunpack.c.h.b16 %v7003
        %v7021 = vunpack.c.l.b16 %v7004
        %v7022 = vunpack.c.h.b16 %v7004
        %v7023 = vunpack.c.l.b16 %v7005
        %v7024 = vunpack.c.h.b16 %v7005
        %v7025 = vunpack.c.l.b16 %v7006
        %v7026 = vunpack.c.h.b16 %v7006
        %v7027 = vunpack.c.l.b16 %v7007
        %v7028 = vunpack.c.h.b16 %v7007
        %v7029 = vunpack.c.l.b16 %v7008
        %v7030 = vunpack.c.h.b16 %v7008
        %v7031 = vunpack.c.l.b16 %v7009
        %v7032 = vunpack.c.h.b16 %v7009
        %v7033 = vunpack.c.l.b16 %v7010
        %v7034 = vunpack.c.h.b16 %v7010
        %v7035 = vpack.c.b16 %v7019, %v7019
        %v7036 = vpack.c.b16 %v7020, %v7020
        %v7037 = vpack.c.b16 %v7021, %v7021
        %v7038 = vpack.c.b16 %v7022, %v7022
        %v7039 = vpack.c.b16 %v7023, %v7023
        %v7040 = vpack.c.b16 %v7024, %v7024
        %v7041 = vpack.c.b16 %v7025, %v7025
        %v7042 = vpack.c.b16 %v7026, %v7026
        %v7043 = vpack.c.b16 %v7027, %v7027
        %v7044 = vpack.c.b16 %v7028, %v7028
        %v7045 = vpack.c.b16 %v7029, %v7029
        %v7046 = vpack.c.b16 %v7030, %v7030
        %v7047 = vpack.c.b16 %v7031, %v7031
        %v7048 = vpack.c.b16 %v7032, %v7032
        %v7049 = vpack.c.b16 %v7033, %v7033
        %v7050 = vpack.c.b16 %v7034, %v7034
        %7067 = vst.msk [vmem:[#allocation7 + $0x40] sm:$0xf] %vm723, %v7035
        %7068 = vst.msk [vmem:[#allocation7 + $0x44] sm:$0xf] %vm723, %v7036
        %7069 = vst.msk [vmem:[#allocation7 + $0x48] sm:$0xf] %vm723, %v7037
        %7070 = vst.msk [vmem:[#allocation7 + $0x4c] sm:$0xf] %vm723, %v7038
        %7071 = vst.msk [vmem:[#allocation7 + $0x50] sm:$0xf] %vm723, %v7039
        %7072 = vst.msk [vmem:[#allocation7 + $0x54] sm:$0xf] %vm723, %v7040
        %7073 = vst.msk [vmem:[#allocation7 + $0x58] sm:$0xf] %vm723, %v7041
        %7074 = vst.msk [vmem:[#allocation7 + $0x5c] sm:$0xf] %vm723, %v7042
        %7075 = vst.msk [vmem:[#allocation7 + $0x60] sm:$0xf] %vm723, %v7043
        %7076 = vst.msk [vmem:[#allocation7 + $0x64] sm:$0xf] %vm723, %v7044
        %7077 = vst.msk [vmem:[#allocation7 + $0x68] sm:$0xf] %vm723, %v7045
        %7078 = vst.msk [vmem:[#allocation7 + $0x6c] sm:$0xf] %vm723, %v7046
        %7079 = vst.msk [vmem:[#allocation7 + $0x70] sm:$0xf] %vm723, %v7047
        %7080 = vst.msk [vmem:[#allocation7 + $0x74] sm:$0xf] %vm723, %v7048
        %7081 = vst.msk [vmem:[#allocation7 + $0x78] sm:$0xf] %vm723, %v7049
        %7082 = vst.msk [vmem:[#allocation7 + $0x7c] sm:$0xf] %vm723, %v7050
        %7083 = vrot.lane.b32.xlu0 %v7035, 1
        %v7084 = vpop.permute.xlu0 %7083
        %7085 = vrot.lane.b32.xlu0 %v7036, 1
        %v7086 = vpop.permute.xlu0 %7085
        %7087 = vrot.lane.b32.xlu0 %v7037, 1
        %v7088 = vpop.permute.xlu0 %7087
        %7089 = vrot.lane.b32.xlu0 %v7038, 1
        %v7090 = vpop.permute.xlu0 %7089
        %7091 = vrot.lane.b32.xlu0 %v7039, 1
        %v7092 = vpop.permute.xlu0 %7091
        %7093 = vrot.lane.b32.xlu0 %v7040, 1
        %v7094 = vpop.permute.xlu0 %7093
        %7095 = vrot.lane.b32.xlu0 %v7041, 1
        %v7096 = vpop.permute.xlu0 %7095
        %7097 = vrot.lane.b32.xlu0 %v7042, 1
        %v7098 = vpop.permute.xlu0 %7097
        %7099 = vrot.lane.b32.xlu0 %v7043, 1
        %v7100 = vpop.permute.xlu0 %7099
        %7101 = vrot.lane.b32.xlu0 %v7044, 1
        %v7102 = vpop.permute.xlu0 %7101
        %7103 = vrot.lane.b32.xlu0 %v7045, 1
        %v7104 = vpop.permute.xlu0 %7103
        %7105 = vrot.lane.b32.xlu0 %v7046, 1
        %v7106 = vpop.permute.xlu0 %7105
        %7107 = vrot.lane.b32.xlu0 %v7047, 1
        %v7108 = vpop.permute.xlu0 %7107
        %7109 = vrot.lane.b32.xlu0 %v7048, 1
        %v7110 = vpop.permute.xlu0 %7109
        %7111 = vrot.lane.b32.xlu0 %v7049, 1
        %v7112 = vpop.permute.xlu0 %7111
        %7113 = vrot.lane.b32.xlu0 %v7050, 1
        %v7114 = vpop.permute.xlu0 %7113
        %vm7131 = vcmask 945160
        %7132 = vst.msk [vmem:[#allocation7] sm:$0xf] %vm7131, %v7084
        %7133 = vst.msk [vmem:[#allocation7 + $0x4] sm:$0xf] %vm7131, %v7086
        %7134 = vst.msk [vmem:[#allocation7 + $0x8] sm:$0xf] %vm7131, %v7088
        %7135 = vst.msk [vmem:[#allocation7 + $0xc] sm:$0xf] %vm7131, %v7090
        %7136 = vst.msk [vmem:[#allocation7 + $0x10] sm:$0xf] %vm7131, %v7092
        %7137 = vst.msk [vmem:[#allocation7 + $0x14] sm:$0xf] %vm7131, %v7094
        %7138 = vst.msk [vmem:[#allocation7 + $0x18] sm:$0xf] %vm7131, %v7096
        %7139 = vst.msk [vmem:[#allocation7 + $0x1c] sm:$0xf] %vm7131, %v7098
        %7140 = vst.msk [vmem:[#allocation7 + $0x20] sm:$0xf] %vm7131, %v7100
        %7141 = vst.msk [vmem:[#allocation7 + $0x24] sm:$0xf] %vm7131, %v7102
        %7142 = vst.msk [vmem:[#allocation7 + $0x28] sm:$0xf] %vm7131, %v7104
        %7143 = vst.msk [vmem:[#allocation7 + $0x2c] sm:$0xf] %vm7131, %v7106
        %7144 = vst.msk [vmem:[#allocation7 + $0x30] sm:$0xf] %vm7131, %v7108
        %7145 = vst.msk [vmem:[#allocation7 + $0x34] sm:$0xf] %vm7131, %v7110
        %7146 = vst.msk [vmem:[#allocation7 + $0x38] sm:$0xf] %vm7131, %v7112
        %7147 = vst.msk [vmem:[#allocation7 + $0x3c] sm:$0xf] %vm7131, %v7114
        %7148 = vrot.lane.b32.xlu0 %v7035, 127
        %v7149 = vpop.permute.xlu0 %7148
        %7150 = vrot.lane.b32.xlu0 %v7036, 127
        %v7151 = vpop.permute.xlu0 %7150
        %7152 = vrot.lane.b32.xlu0 %v7037, 127
        %v7153 = vpop.permute.xlu0 %7152
        %7154 = vrot.lane.b32.xlu0 %v7038, 127
        %v7155 = vpop.permute.xlu0 %7154
        %7156 = vrot.lane.b32.xlu0 %v7039, 127
        %v7157 = vpop.permute.xlu0 %7156
        %7158 = vrot.lane.b32.xlu0 %v7040, 127
        %v7159 = vpop.permute.xlu0 %7158
        %7160 = vrot.lane.b32.xlu0 %v7041, 127
        %v7161 = vpop.permute.xlu0 %7160
        %7162 = vrot.lane.b32.xlu0 %v7042, 127
        %v7163 = vpop.permute.xlu0 %7162
        %7164 = vrot.lane.b32.xlu0 %v7043, 127
        %v7165 = vpop.permute.xlu0 %7164
        %7166 = vrot.lane.b32.xlu0 %v7044, 127
        %v7167 = vpop.permute.xlu0 %7166
        %7168 = vrot.lane.b32.xlu0 %v7045, 127
        %v7169 = vpop.permute.xlu0 %7168
        %7170 = vrot.lane.b32.xlu0 %v7046, 127
        %v7171 = vpop.permute.xlu0 %7170
        %7172 = vrot.lane.b32.xlu0 %v7047, 127
        %v7173 = vpop.permute.xlu0 %7172
        %7174 = vrot.lane.b32.xlu0 %v7048, 127
        %v7175 = vpop.permute.xlu0 %7174
        %7176 = vrot.lane.b32.xlu0 %v7049, 127
        %v7177 = vpop.permute.xlu0 %7176
        %7178 = vrot.lane.b32.xlu0 %v7050, 127
        %v7179 = vpop.permute.xlu0 %7178
        %vm7196 = vcmask 936960
        %7197 = vst.msk [vmem:[#allocation7 + $0x80] sm:$0xf] %vm7196, %v7149
        %7198 = vst.msk [vmem:[#allocation7 + $0x84] sm:$0xf] %vm7196, %v7151
        %7199 = vst.msk [vmem:[#allocation7 + $0x88] sm:$0xf] %vm7196, %v7153
        %7200 = vst.msk [vmem:[#allocation7 + $0x8c] sm:$0xf] %vm7196, %v7155
        %7201 = vst.msk [vmem:[#allocation7 + $0x90] sm:$0xf] %vm7196, %v7157
        %7202 = vst.msk [vmem:[#allocation7 + $0x94] sm:$0xf] %vm7196, %v7159
        %7203 = vst.msk [vmem:[#allocation7 + $0x98] sm:$0xf] %vm7196, %v7161
        %7204 = vst.msk [vmem:[#allocation7 + $0x9c] sm:$0xf] %vm7196, %v7163
        %7205 = vst.msk [vmem:[#allocation7 + $0xa0] sm:$0xf] %vm7196, %v7165
        %7206 = vst.msk [vmem:[#allocation7 + $0xa4] sm:$0xf] %vm7196, %v7167
        %7207 = vst.msk [vmem:[#allocation7 + $0xa8] sm:$0xf] %vm7196, %v7169
        %7208 = vst.msk [vmem:[#allocation7 + $0xac] sm:$0xf] %vm7196, %v7171
        %7209 = vst.msk [vmem:[#allocation7 + $0xb0] sm:$0xf] %vm7196, %v7173
        %7210 = vst.msk [vmem:[#allocation7 + $0xb4] sm:$0xf] %vm7196, %v7175
        %7211 = vst.msk [vmem:[#allocation7 + $0xb8] sm:$0xf] %vm7196, %v7177
        %7212 = vst.msk [vmem:[#allocation7 + $0xbc] sm:$0xf] %vm7196, %v7179
        %7213 = vst.msk [vmem:[#allocation7] sm:$0xf] %vm6073, 0
        %7214 = vst.msk [vmem:[#allocation7 + $0x4] sm:$0xf] %vm6073, 0
        %7215 = vst.msk [vmem:[#allocation7 + $0x8] sm:$0xf] %vm6073, 0
        %7216 = vst.msk [vmem:[#allocation7 + $0xc] sm:$0xf] %vm6073, 0
        %7217 = vst.msk [vmem:[#allocation7 + $0x10] sm:$0xf] %vm6073, 0
        %7218 = vst.msk [vmem:[#allocation7 + $0x14] sm:$0xf] %vm6073, 0
        %7219 = vst.msk [vmem:[#allocation7 + $0x18] sm:$0xf] %vm6073, 0
        %7220 = vst.msk [vmem:[#allocation7 + $0x1c] sm:$0xf] %vm6073, 0
        %7221 = vst.msk [vmem:[#allocation7 + $0x20] sm:$0xf] %vm6073, 0
        %7222 = vst.msk [vmem:[#allocation7 + $0x24] sm:$0xf] %vm6073, 0
        %7223 = vst.msk [vmem:[#allocation7 + $0x28] sm:$0xf] %vm6073, 0
        %7224 = vst.msk [vmem:[#allocation7 + $0x2c] sm:$0xf] %vm6073, 0
        %7225 = vst.msk [vmem:[#allocation7 + $0x30] sm:$0xf] %vm6073, 0
        %7226 = vst.msk [vmem:[#allocation7 + $0x34] sm:$0xf] %vm6073, 0
        %7227 = vst.msk [vmem:[#allocation7 + $0x38] sm:$0xf] %vm6073, 0
        %7228 = vst.msk [vmem:[#allocation7 + $0x3c] sm:$0xf] %vm6073, 0
        %vm7229 = vcmask 232672
        %7230 = vst.msk [vmem:[#allocation7 + $0x80] sm:$0xf] %vm7229, 0
        %7231 = vst.msk [vmem:[#allocation7 + $0x84] sm:$0xf] %vm7229, 0
        %7232 = vst.msk [vmem:[#allocation7 + $0x88] sm:$0xf] %vm7229, 0
        %7233 = vst.msk [vmem:[#allocation7 + $0x8c] sm:$0xf] %vm7229, 0
        %7234 = vst.msk [vmem:[#allocation7 + $0x90] sm:$0xf] %vm7229, 0
        %7235 = vst.msk [vmem:[#allocation7 + $0x94] sm:$0xf] %vm7229, 0
        %7236 = vst.msk [vmem:[#allocation7 + $0x98] sm:$0xf] %vm7229, 0
        %7237 = vst.msk [vmem:[#allocation7 + $0x9c] sm:$0xf] %vm7229, 0
        %7238 = vst.msk [vmem:[#allocation7 + $0xa0] sm:$0xf] %vm7229, 0
        %7239 = vst.msk [vmem:[#allocation7 + $0xa4] sm:$0xf] %vm7229, 0
        %7240 = vst.msk [vmem:[#allocation7 + $0xa8] sm:$0xf] %vm7229, 0
        %7241 = vst.msk [vmem:[#allocation7 + $0xac] sm:$0xf] %vm7229, 0
        %7242 = vst.msk [vmem:[#allocation7 + $0xb0] sm:$0xf] %vm7229, 0
        %7243 = vst.msk [vmem:[#allocation7 + $0xb4] sm:$0xf] %vm7229, 0
        %7244 = vst.msk [vmem:[#allocation7 + $0xb8] sm:$0xf] %vm7229, 0
        %7245 = vst.msk [vmem:[#allocation7 + $0xbc] sm:$0xf] %vm7229, 0
        %vm7246 = vcmask 240872
        %7247 = vst.msk [vmem:[#allocation7] sm:$0xf] %vm7246, 0
        %7248 = vst.msk [vmem:[#allocation7 + $0x4] sm:$0xf] %vm7246, 0
        %7249 = vst.msk [vmem:[#allocation7 + $0x8] sm:$0xf] %vm7246, 0
        %7250 = vst.msk [vmem:[#allocation7 + $0xc] sm:$0xf] %vm7246, 0
        %7251 = vst.msk [vmem:[#allocation7 + $0x10] sm:$0xf] %vm7246, 0
        %7252 = vst.msk [vmem:[#allocation7 + $0x14] sm:$0xf] %vm7246, 0
        %7253 = vst.msk [vmem:[#allocation7 + $0x18] sm:$0xf] %vm7246, 0
        %7254 = vst.msk [vmem:[#allocation7 + $0x1c] sm:$0xf] %vm7246, 0
        %7255 = vst.msk [vmem:[#allocation7 + $0x20] sm:$0xf] %vm7246, 0
        %7256 = vst.msk [vmem:[#allocation7 + $0x24] sm:$0xf] %vm7246, 0
        %7257 = vst.msk [vmem:[#allocation7 + $0x28] sm:$0xf] %vm7246, 0
        %7258 = vst.msk [vmem:[#allocation7 + $0x2c] sm:$0xf] %vm7246, 0
        %7259 = vst.msk [vmem:[#allocation7 + $0x30] sm:$0xf] %vm7246, 0
        %7260 = vst.msk [vmem:[#allocation7 + $0x34] sm:$0xf] %vm7246, 0
        %7261 = vst.msk [vmem:[#allocation7 + $0x38] sm:$0xf] %vm7246, 0
        %7262 = vst.msk [vmem:[#allocation7 + $0x3c] sm:$0xf] %vm7246, 0
        %vm7263 = vcmask 470472
        %7264 = vst.msk [vmem:[#allocation7 + $0x80] sm:$0xf] %vm7263, 0
        %7265 = vst.msk [vmem:[#allocation7 + $0x84] sm:$0xf] %vm7263, 0
        %7266 = vst.msk [vmem:[#allocation7 + $0x88] sm:$0xf] %vm7263, 0
        %7267 = vst.msk [vmem:[#allocation7 + $0x8c] sm:$0xf] %vm7263, 0
        %7268 = vst.msk [vmem:[#allocation7 + $0x90] sm:$0xf] %vm7263, 0
        %7269 = vst.msk [vmem:[#allocation7 + $0x94] sm:$0xf] %vm7263, 0
        %7270 = vst.msk [vmem:[#allocation7 + $0x98] sm:$0xf] %vm7263, 0
        %7271 = vst.msk [vmem:[#allocation7 + $0x9c] sm:$0xf] %vm7263, 0
        %7272 = vst.msk [vmem:[#allocation7 + $0xa0] sm:$0xf] %vm7263, 0
        %7273 = vst.msk [vmem:[#allocation7 + $0xa4] sm:$0xf] %vm7263, 0
        %7274 = vst.msk [vmem:[#allocation7 + $0xa8] sm:$0xf] %vm7263, 0
        %7275 = vst.msk [vmem:[#allocation7 + $0xac] sm:$0xf] %vm7263, 0
        %7276 = vst.msk [vmem:[#allocation7 + $0xb0] sm:$0xf] %vm7263, 0
        %7277 = vst.msk [vmem:[#allocation7 + $0xb4] sm:$0xf] %vm7263, 0
        %7278 = vst.msk [vmem:[#allocation7 + $0xb8] sm:$0xf] %vm7263, 0
        %7279 = vst.msk [vmem:[#allocation7 + $0xbc] sm:$0xf] %vm7263, 0
        %vm7280 = vcmask 478672
        %7281 = vst.msk [vmem:[#allocation7] sm:$0xf] %vm7280, 0
        %7282 = vst.msk [vmem:[#allocation7 + $0x4] sm:$0xf] %vm7280, 0
        %7283 = vst.msk [vmem:[#allocation7 + $0x8] sm:$0xf] %vm7280, 0
        %7284 = vst.msk [vmem:[#allocation7 + $0xc] sm:$0xf] %vm7280, 0
        %7285 = vst.msk [vmem:[#allocation7 + $0x10] sm:$0xf] %vm7280, 0
        %7286 = vst.msk [vmem:[#allocation7 + $0x14] sm:$0xf] %vm7280, 0
        %7287 = vst.msk [vmem:[#allocation7 + $0x18] sm:$0xf] %vm7280, 0
        %7288 = vst.msk [vmem:[#allocation7 + $0x1c] sm:$0xf] %vm7280, 0
        %7289 = vst.msk [vmem:[#allocation7 + $0x20] sm:$0xf] %vm7280, 0
        %7290 = vst.msk [vmem:[#allocation7 + $0x24] sm:$0xf] %vm7280, 0
        %7291 = vst.msk [vmem:[#allocation7 + $0x28] sm:$0xf] %vm7280, 0
        %7292 = vst.msk [vmem:[#allocation7 + $0x2c] sm:$0xf] %vm7280, 0
        %7293 = vst.msk [vmem:[#allocation7 + $0x30] sm:$0xf] %vm7280, 0
        %7294 = vst.msk [vmem:[#allocation7 + $0x34] sm:$0xf] %vm7280, 0
        %7295 = vst.msk [vmem:[#allocation7 + $0x38] sm:$0xf] %vm7280, 0
        %7296 = vst.msk [vmem:[#allocation7 + $0x3c] sm:$0xf] %vm7280, 0
        %vm7297 = vcmask 708272
        %7298 = vst.msk [vmem:[#allocation7 + $0x80] sm:$0xf] %vm7297, 0
        %7299 = vst.msk [vmem:[#allocation7 + $0x84] sm:$0xf] %vm7297, 0
        %7300 = vst.msk [vmem:[#allocation7 + $0x88] sm:$0xf] %vm7297, 0
        %7301 = vst.msk [vmem:[#allocation7 + $0x8c] sm:$0xf] %vm7297, 0
        %7302 = vst.msk [vmem:[#allocation7 + $0x90] sm:$0xf] %vm7297, 0
        %7303 = vst.msk [vmem:[#allocation7 + $0x94] sm:$0xf] %vm7297, 0
        %7304 = vst.msk [vmem:[#allocation7 + $0x98] sm:$0xf] %vm7297, 0
        %7305 = vst.msk [vmem:[#allocation7 + $0x9c] sm:$0xf] %vm7297, 0
        %7306 = vst.msk [vmem:[#allocation7 + $0xa0] sm:$0xf] %vm7297, 0
        %7307 = vst.msk [vmem:[#allocation7 + $0xa4] sm:$0xf] %vm7297, 0
        %7308 = vst.msk [vmem:[#allocation7 + $0xa8] sm:$0xf] %vm7297, 0
        %7309 = vst.msk [vmem:[#allocation7 + $0xac] sm:$0xf] %vm7297, 0
        %7310 = vst.msk [vmem:[#allocation7 + $0xb0] sm:$0xf] %vm7297, 0
        %7311 = vst.msk [vmem:[#allocation7 + $0xb4] sm:$0xf] %vm7297, 0
        %7312 = vst.msk [vmem:[#allocation7 + $0xb8] sm:$0xf] %vm7297, 0
        %7313 = vst.msk [vmem:[#allocation7 + $0xbc] sm:$0xf] %vm7297, 0
        %vm7314 = vcmask 716472
        %7315 = vst.msk [vmem:[#allocation7] sm:$0xf] %vm7314, 0
        %7316 = vst.msk [vmem:[#allocation7 + $0x4] sm:$0xf] %vm7314, 0
        %7317 = vst.msk [vmem:[#allocation7 + $0x8] sm:$0xf] %vm7314, 0
        %7318 = vst.msk [vmem:[#allocation7 + $0xc] sm:$0xf] %vm7314, 0
        %7319 = vst.msk [vmem:[#allocation7 + $0x10] sm:$0xf] %vm7314, 0
        %7320 = vst.msk [vmem:[#allocation7 + $0x14] sm:$0xf] %vm7314, 0
        %7321 = vst.msk [vmem:[#allocation7 + $0x18] sm:$0xf] %vm7314, 0
        %7322 = vst.msk [vmem:[#allocation7 + $0x1c] sm:$0xf] %vm7314, 0
        %7323 = vst.msk [vmem:[#allocation7 + $0x20] sm:$0xf] %vm7314, 0
        %7324 = vst.msk [vmem:[#allocation7 + $0x24] sm:$0xf] %vm7314, 0
        %7325 = vst.msk [vmem:[#allocation7 + $0x28] sm:$0xf] %vm7314, 0
        %7326 = vst.msk [vmem:[#allocation7 + $0x2c] sm:$0xf] %vm7314, 0
        %7327 = vst.msk [vmem:[#allocation7 + $0x30] sm:$0xf] %vm7314, 0
        %7328 = vst.msk [vmem:[#allocation7 + $0x34] sm:$0xf] %vm7314, 0
        %7329 = vst.msk [vmem:[#allocation7 + $0x38] sm:$0xf] %vm7314, 0
        %7330 = vst.msk [vmem:[#allocation7 + $0x3c] sm:$0xf] %vm7314, 0
        %vm7331 = vcmask 946072
        %7332 = vst.msk [vmem:[#allocation7 + $0x80] sm:$0xf] %vm7331, 0
        %7333 = vst.msk [vmem:[#allocation7 + $0x84] sm:$0xf] %vm7331, 0
        %7334 = vst.msk [vmem:[#allocation7 + $0x88] sm:$0xf] %vm7331, 0
        %7335 = vst.msk [vmem:[#allocation7 + $0x8c] sm:$0xf] %vm7331, 0
        %7336 = vst.msk [vmem:[#allocation7 + $0x90] sm:$0xf] %vm7331, 0
        %7337 = vst.msk [vmem:[#allocation7 + $0x94] sm:$0xf] %vm7331, 0
        %7338 = vst.msk [vmem:[#allocation7 + $0x98] sm:$0xf] %vm7331, 0
        %7339 = vst.msk [vmem:[#allocation7 + $0x9c] sm:$0xf] %vm7331, 0
        %7340 = vst.msk [vmem:[#allocation7 + $0xa0] sm:$0xf] %vm7331, 0
        %7341 = vst.msk [vmem:[#allocation7 + $0xa4] sm:$0xf] %vm7331, 0
        %7342 = vst.msk [vmem:[#allocation7 + $0xa8] sm:$0xf] %vm7331, 0
        %7343 = vst.msk [vmem:[#allocation7 + $0xac] sm:$0xf] %vm7331, 0
        %7344 = vst.msk [vmem:[#allocation7 + $0xb0] sm:$0xf] %vm7331, 0
        %7345 = vst.msk [vmem:[#allocation7 + $0xb4] sm:$0xf] %vm7331, 0
        %7346 = vst.msk [vmem:[#allocation7 + $0xb8] sm:$0xf] %vm7331, 0
        %7347 = vst.msk [vmem:[#allocation7 + $0xbc] sm:$0xf] %vm7331, 0
        %v7348 = vld [vmem:[#allocation16] sm:$0x3f]
        %v7349 = vld [vmem:[#allocation7] sm:$0xf]
        %v7350 = vld [vmem:[#allocation7 + $0x4] sm:$0xf]
        %v7351 = vld [vmem:[#allocation7 + $0x8] sm:$0xf]
        %v7352 = vld [vmem:[#allocation7 + $0xc] sm:$0xf]
        %v7353 = vld [vmem:[#allocation7 + $0x10] sm:$0xf]
        %v7354 = vld [vmem:[#allocation7 + $0x14] sm:$0xf]
        %v7355 = vld [vmem:[#allocation7 + $0x18] sm:$0xf]
        %v7356 = vld [vmem:[#allocation7 + $0x1c] sm:$0xf]
        %v7357 = vld [vmem:[#allocation7 + $0x20] sm:$0xf]
        %v7358 = vld [vmem:[#allocation7 + $0x24] sm:$0xf]
        %v7359 = vld [vmem:[#allocation7 + $0x28] sm:$0xf]
        %v7360 = vld [vmem:[#allocation7 + $0x2c] sm:$0xf]
        %v7361 = vld [vmem:[#allocation7 + $0x30] sm:$0xf]
        %v7362 = vld [vmem:[#allocation7 + $0x34] sm:$0xf]
        %v7363 = vld [vmem:[#allocation7 + $0x38] sm:$0xf]
        %v7364 = vld [vmem:[#allocation7 + $0x3c] sm:$0xf]
        %v7365 = vld [vmem:[#allocation7 + $0x40] sm:$0xf]
        %v7366 = vld [vmem:[#allocation7 + $0x44] sm:$0xf]
        %v7367 = vld [vmem:[#allocation7 + $0x48] sm:$0xf]
        %v7368 = vld [vmem:[#allocation7 + $0x4c] sm:$0xf]
        %v7369 = vld [vmem:[#allocation7 + $0x50] sm:$0xf]
        %v7370 = vld [vmem:[#allocation7 + $0x54] sm:$0xf]
        %v7371 = vld [vmem:[#allocation7 + $0x58] sm:$0xf]
        %v7372 = vld [vmem:[#allocation7 + $0x5c] sm:$0xf]
        %v7373 = vld [vmem:[#allocation7 + $0x60] sm:$0xf]
        %v7374 = vld [vmem:[#allocation7 + $0x64] sm:$0xf]
        %v7375 = vld [vmem:[#allocation7 + $0x68] sm:$0xf]
        %v7376 = vld [vmem:[#allocation7 + $0x6c] sm:$0xf]
        %v7377 = vld [vmem:[#allocation7 + $0x70] sm:$0xf]
        %v7378 = vld [vmem:[#allocation7 + $0x74] sm:$0xf]
        %v7379 = vld [vmem:[#allocation7 + $0x78] sm:$0xf]
        %v7380 = vld [vmem:[#allocation7 + $0x7c] sm:$0xf]
        %v7381 = vld [vmem:[#allocation7 + $0x80] sm:$0xf]
        %v7382 = vld [vmem:[#allocation7 + $0x84] sm:$0xf]
        %v7383 = vld [vmem:[#allocation7 + $0x88] sm:$0xf]
        %v7384 = vld [vmem:[#allocation7 + $0x8c] sm:$0xf]
        %v7385 = vld [vmem:[#allocation7 + $0x90] sm:$0xf]
        %v7386 = vld [vmem:[#allocation7 + $0x94] sm:$0xf]
        %v7387 = vld [vmem:[#allocation7 + $0x98] sm:$0xf]
        %v7388 = vld [vmem:[#allocation7 + $0x9c] sm:$0xf]
        %v7389 = vld [vmem:[#allocation7 + $0xa0] sm:$0xf]
        %v7390 = vld [vmem:[#allocation7 + $0xa4] sm:$0xf]
        %v7391 = vld [vmem:[#allocation7 + $0xa8] sm:$0xf]
        %v7392 = vld [vmem:[#allocation7 + $0xac] sm:$0xf]
        %v7393 = vld [vmem:[#allocation7 + $0xb0] sm:$0xf]
        %v7394 = vld [vmem:[#allocation7 + $0xb4] sm:$0xf]
        %v7395 = vld [vmem:[#allocation7 + $0xb8] sm:$0xf]
        %v7396 = vld [vmem:[#allocation7 + $0xbc] sm:$0xf]
        %v7398 = vcombine.high %v7348, %v7348
        %v7400 = vunpack.c.l.s4 1983009808
        %v7401 = vunpack.c.0.s8 %v7400
        %v7402 = vlaneseq
        %v7403 = vshrl.u32 %v7402, 7
        %v7404 = vsub.s32 %v7401, %v7403
        %v7405 = vrot.slane %v7348, %v7404
        %v7407 = vunpack.c.l.s4 1983009808
        %v7408 = vunpack.c.0.s8 %v7407
        %v7409 = vlaneseq
        %v7410 = vshrl.u32 %v7409, 7
        %v7411 = vsub.s32 %v7408, %v7410
        %v7412 = vrot.slane %v7398, %v7411
        %v7413 = vcombine.high %v7405, %v7405
        %v7465 = vunpack.c.l.b16 %v7349
        %v7466 = vunpack.c.l.b16 %v7350
        %v7467 = vunpack.c.l.b16 %v7351
        %v7468 = vunpack.c.l.b16 %v7352
        %v7469 = vunpack.c.l.b16 %v7353
        %v7470 = vunpack.c.l.b16 %v7354
        %v7471 = vunpack.c.l.b16 %v7355
        %v7472 = vunpack.c.l.b16 %v7356
        %v7473 = vunpack.c.l.b16 %v7357
        %v7474 = vunpack.c.l.b16 %v7358
        %v7475 = vunpack.c.l.b16 %v7359
        %v7476 = vunpack.c.l.b16 %v7360
        %v7477 = vunpack.c.l.b16 %v7361
        %v7478 = vunpack.c.l.b16 %v7362
        %v7479 = vunpack.c.l.b16 %v7363
        %v7480 = vunpack.c.l.b16 %v7364
        %v7481 = vunpack.c.l.b16 %v7365
        %v7482 = vunpack.c.l.b16 %v7366
        %v7483 = vunpack.c.l.b16 %v7367
        %v7484 = vunpack.c.l.b16 %v7368
        %v7485 = vunpack.c.l.b16 %v7369
        %v7486 = vunpack.c.l.b16 %v7370
        %v7487 = vunpack.c.l.b16 %v7371
        %v7488 = vunpack.c.l.b16 %v7372
        %v7489 = vunpack.c.l.b16 %v7373
        %v7490 = vunpack.c.l.b16 %v7374
        %v7491 = vunpack.c.l.b16 %v7375
        %v7492 = vunpack.c.l.b16 %v7376
        %v7493 = vunpack.c.l.b16 %v7377
        %v7494 = vunpack.c.l.b16 %v7378
        %v7495 = vunpack.c.l.b16 %v7379
        %v7496 = vunpack.c.l.b16 %v7380
        %v7497 = vunpack.c.l.b16 %v7381
        %v7498 = vunpack.c.l.b16 %v7382
        %v7499 = vunpack.c.l.b16 %v7383
        %v7500 = vunpack.c.l.b16 %v7384
        %v7501 = vunpack.c.l.b16 %v7385
        %v7502 = vunpack.c.l.b16 %v7386
        %v7503 = vunpack.c.l.b16 %v7387
        %v7504 = vunpack.c.l.b16 %v7388
        %v7505 = vunpack.c.l.b16 %v7389
        %v7506 = vunpack.c.l.b16 %v7390
        %v7507 = vunpack.c.l.b16 %v7391
        %v7508 = vunpack.c.l.b16 %v7392
        %v7509 = vunpack.c.l.b16 %v7393
        %v7510 = vunpack.c.l.b16 %v7394
        %v7511 = vunpack.c.l.b16 %v7395
        %v7512 = vunpack.c.l.b16 %v7396
        %v7513 = vpack.c.b16 %v7466, %v7465
        %v7514 = vpack.c.b16 %v7468, %v7467
        %v7515 = vpack.c.b16 %v7470, %v7469
        %v7516 = vpack.c.b16 %v7472, %v7471
        %v7517 = vpack.c.b16 %v7474, %v7473
        %v7518 = vpack.c.b16 %v7476, %v7475
        %v7519 = vpack.c.b16 %v7478, %v7477
        %v7520 = vpack.c.b16 %v7480, %v7479
        %v7521 = vpack.c.b16 %v7482, %v7481
        %v7522 = vpack.c.b16 %v7484, %v7483
        %v7523 = vpack.c.b16 %v7486, %v7485
        %v7524 = vpack.c.b16 %v7488, %v7487
        %v7525 = vpack.c.b16 %v7490, %v7489
        %v7526 = vpack.c.b16 %v7492, %v7491
        %v7527 = vpack.c.b16 %v7494, %v7493
        %v7528 = vpack.c.b16 %v7496, %v7495
        %v7529 = vpack.c.b16 %v7498, %v7497
        %v7530 = vpack.c.b16 %v7500, %v7499
        %v7531 = vpack.c.b16 %v7502, %v7501
        %v7532 = vpack.c.b16 %v7504, %v7503
        %v7533 = vpack.c.b16 %v7506, %v7505
        %v7534 = vpack.c.b16 %v7508, %v7507
        %v7535 = vpack.c.b16 %v7510, %v7509
        %v7536 = vpack.c.b16 %v7512, %v7511
        %7561 = vmatprep.subr.bf16.mxu0 0
        %7562 = vmatpush1.bf16.msra.mxu0 %v7520
        %7563 = vmatprep.subr.bf16.mxu0 0
        %7564 = vmatpush1.bf16.msra.mxu0 %v7519
        %7565 = vmatprep.subr.bf16.mxu0 0
        %7566 = vmatpush1.bf16.msra.mxu0 %v7518
        %7567 = vmatprep.subr.bf16.mxu0 0
        %7568 = vmatpush1.bf16.msra.mxu0 %v7517
        %7569 = vmatprep.subr.bf16.mxu0 0
        %7570 = vmatpush1.bf16.msra.mxu0 %v7516
        %7571 = vmatprep.subr.bf16.mxu0 0
        %7572 = vmatpush1.bf16.msra.mxu0 %v7515
        %7573 = vmatprep.subr.bf16.mxu0 0
        %7574 = vmatpush1.bf16.msra.mxu0 %v7514
        %7575 = vmatprep.subr.bf16.mxu0 0
        %7576 = vmatpush1.bf16.msra.mxu0 %v7513
        %7577 = vmatprep.subr.bf16.mxu0 0
        %7578 = vmatpush2.bf16.msra.mxu0 %v7528
        %7579 = vmatprep.subr.bf16.mxu0 0
        %7580 = vmatpush2.bf16.msra.mxu0 %v7527
        %7581 = vmatprep.subr.bf16.mxu0 0
        %7582 = vmatpush2.bf16.msra.mxu0 %v7526
        %7583 = vmatprep.subr.bf16.mxu0 0
        %7584 = vmatpush2.bf16.msra.mxu0 %v7525
        %7585 = vmatprep.subr.bf16.mxu0 0
        %7586 = vmatpush2.bf16.msra.mxu0 %v7524
        %7587 = vmatprep.subr.bf16.mxu0 0
        %7588 = vmatpush2.bf16.msra.mxu0 %v7523
        %7589 = vmatprep.subr.bf16.mxu0 0
        %7590 = vmatpush2.bf16.msra.mxu0 %v7522
        %7591 = vmatprep.subr.bf16.mxu0 0
        %7592 = vmatpush2.bf16.msra.mxu0 %v7521
        %7593 = vmatprep.mubr.bf16.mxu0 %v7413
        %7594 = vmatmul.mubr.bf16.gmra.mxu0 %v7405
        %v7595 = vpop.f32.mrf.mxu0
        %v7596 = vadd.f32 0.0, %v7595
        %v7597 = vpop.f32.mrf.mxu0
        %v7598 = vpop.f32.mrf.mxu0
        %v7599 = vpop.f32.mrf.mxu0
        %7600 = vdwg.mxu0
        %7601 = vmatprep.subr.bf16.mxu0 0
        %7602 = vmatpush1.bf16.msra.mxu0 %v7536
        %7603 = vmatprep.subr.bf16.mxu0 0
        %7604 = vmatpush1.bf16.msra.mxu0 %v7535
        %7605 = vmatprep.subr.bf16.mxu0 0
        %7606 = vmatpush1.bf16.msra.mxu0 %v7534
        %7607 = vmatprep.subr.bf16.mxu0 0
        %7608 = vmatpush1.bf16.msra.mxu0 %v7533
        %7609 = vmatprep.subr.bf16.mxu0 0
        %7610 = vmatpush1.bf16.msra.mxu0 %v7532
        %7611 = vmatprep.subr.bf16.mxu0 0
        %7612 = vmatpush1.bf16.msra.mxu0 %v7531
        %7613 = vmatprep.subr.bf16.mxu0 0
        %7614 = vmatpush1.bf16.msra.mxu0 %v7530
        %7615 = vmatprep.subr.bf16.mxu0 0
        %7616 = vmatpush1.bf16.msra.mxu0 %v7529
        %7617 = vmatprep.subr.bf16.mxu0 0
        %7618 = vmatpush2.bf16.msra.mxu0 0
        %7619 = vmatprep.subr.bf16.mxu0 0
        %7620 = vmatpush2.bf16.msra.mxu0 0
        %7621 = vmatprep.subr.bf16.mxu0 0
        %7622 = vmatpush2.bf16.msra.mxu0 0
        %7623 = vmatprep.subr.bf16.mxu0 0
        %7624 = vmatpush2.bf16.msra.mxu0 0
        %7625 = vmatprep.subr.bf16.mxu0 0
        %7626 = vmatpush2.bf16.msra.mxu0 0
        %7627 = vmatprep.subr.bf16.mxu0 0
        %7628 = vmatpush2.bf16.msra.mxu0 0
        %7629 = vmatprep.subr.bf16.mxu0 0
        %7630 = vmatpush2.bf16.msra.mxu0 0
        %7631 = vmatprep.subr.bf16.mxu0 0
        %7632 = vmatpush2.bf16.msra.mxu0 0
        %7633 = vmatprep.mubr.bf16.mxu0 0
        %7634 = vmatmul.mubr.bf16.gmra.mxu0 %v7412
        %v7635 = vpop.f32.mrf.mxu0
        %v7636 = vadd.f32 %v7596, %v7635
        %v7637 = vpop.f32.mrf.mxu0
        %v7638 = vpop.f32.mrf.mxu0
        %v7639 = vpop.f32.mrf.mxu0
        %7640 = vdwg.mxu0
        %v7641 = vpack.c.bf16 %v7636, %v7636
        %v7642 = vld [vmem:[%s18] sm:$0xff]
        %v7643 = vld [vmem:[%s18 + $0x8] sm:$0xff]
        %v7644 = vld [vmem:[%s18 + $0x10] sm:$0xff]
        %v7645 = vld [vmem:[%s18 + $0x18] sm:$0xff]
        %v7646 = vld [vmem:[%s18 + $0x20] sm:$0xff]
        %v7647 = vld [vmem:[%s18 + $0x28] sm:$0xff]
        %v7648 = vld [vmem:[%s18 + $0x30] sm:$0xff]
        %v7649 = vld [vmem:[%s18 + $0x38] sm:$0xff]
        %v7650 = vld [vmem:[%s18 + $0x40] sm:$0xff]
        %v7651 = vld [vmem:[%s18 + $0x48] sm:$0xff]
        %v7652 = vld [vmem:[%s18 + $0x50] sm:$0xff]
        %v7653 = vld [vmem:[%s18 + $0x58] sm:$0xff]
        %v7654 = vld [vmem:[%s18 + $0x60] sm:$0xff]
        %v7655 = vld [vmem:[%s18 + $0x68] sm:$0xff]
        %v7656 = vld [vmem:[%s18 + $0x70] sm:$0xff]
        %v7657 = vld [vmem:[%s18 + $0x78] sm:$0xff]
        %v7658 = vld [vmem:[%s18 + $0x80] sm:$0xff]
        %v7659 = vld [vmem:[%s18 + $0x88] sm:$0xff]
        %v7660 = vld [vmem:[%s18 + $0x90] sm:$0xff]
        %v7661 = vld [vmem:[%s18 + $0x98] sm:$0xff]
        %v7662 = vld [vmem:[%s18 + $0xa0] sm:$0xff]
        %v7663 = vld [vmem:[%s18 + $0xa8] sm:$0xff]
        %v7664 = vld [vmem:[%s18 + $0xb0] sm:$0xff]
        %v7665 = vld [vmem:[%s18 + $0xb8] sm:$0xff]
        %v7666 = vld [vmem:[%s18 + $0xc0] sm:$0xff]
        %v7667 = vld [vmem:[%s18 + $0xc8] sm:$0xff]
        %v7668 = vld [vmem:[%s18 + $0xd0] sm:$0xff]
        %v7669 = vld [vmem:[%s18 + $0xd8] sm:$0xff]
        %v7670 = vld [vmem:[%s18 + $0xe0] sm:$0x33]
        %v7671 = vld [vmem:[%s18 + $0xe8] sm:$0x33]
        %v7672 = vld [vmem:[#allocation9] sm:$0xff]
        %v7673 = vld [vmem:[#allocation9 + $0x8] sm:$0xff]
        %v7704 = vunpack.c.l.b16 %v7642
        %v7705 = vunpack.c.h.b16 %v7642
        %v7706 = vunpack.c.l.b16 %v7643
        %v7707 = vunpack.c.h.b16 %v7643
        %v7708 = vunpack.c.l.b16 %v7644
        %v7709 = vunpack.c.h.b16 %v7644
        %v7710 = vunpack.c.l.b16 %v7645
        %v7711 = vunpack.c.h.b16 %v7645
        %v7712 = vunpack.c.l.b16 %v7646
        %v7713 = vunpack.c.h.b16 %v7646
        %v7714 = vunpack.c.l.b16 %v7647
        %v7715 = vunpack.c.h.b16 %v7647
        %v7716 = vunpack.c.l.b16 %v7648
        %v7717 = vunpack.c.h.b16 %v7648
        %v7718 = vunpack.c.l.b16 %v7649
        %v7719 = vunpack.c.h.b16 %v7649
        %v7720 = vunpack.c.l.b16 %v7650
        %v7721 = vunpack.c.h.b16 %v7650
        %v7722 = vunpack.c.l.b16 %v7651
        %v7723 = vunpack.c.h.b16 %v7651
        %v7724 = vunpack.c.l.b16 %v7652
        %v7725 = vunpack.c.h.b16 %v7652
        %v7726 = vunpack.c.l.b16 %v7653
        %v7727 = vunpack.c.h.b16 %v7653
        %v7728 = vunpack.c.l.b16 %v7654
        %v7729 = vunpack.c.h.b16 %v7654
        %v7730 = vunpack.c.l.b16 %v7655
        %v7731 = vunpack.c.h.b16 %v7655
        %v7732 = vunpack.c.l.b16 %v7656
        %v7733 = vunpack.c.h.b16 %v7656
        %v7734 = vunpack.c.l.b16 %v7657
        %v7735 = vunpack.c.h.b16 %v7657
        %v7736 = vunpack.c.l.b16 %v7658
        %v7737 = vunpack.c.h.b16 %v7658
        %v7738 = vunpack.c.l.b16 %v7659
        %v7739 = vunpack.c.h.b16 %v7659
        %v7740 = vunpack.c.l.b16 %v7660
        %v7741 = vunpack.c.h.b16 %v7660
        %v7742 = vunpack.c.l.b16 %v7661
        %v7743 = vunpack.c.h.b16 %v7661
        %v7744 = vunpack.c.l.b16 %v7662
        %v7745 = vunpack.c.h.b16 %v7662
        %v7746 = vunpack.c.l.b16 %v7663
        %v7747 = vunpack.c.h.b16 %v7663
        %v7748 = vunpack.c.l.b16 %v7664
        %v7749 = vunpack.c.h.b16 %v7664
        %v7750 = vunpack.c.l.b16 %v7665
        %v7751 = vunpack.c.h.b16 %v7665
        %v7752 = vunpack.c.l.b16 %v7666
        %v7753 = vunpack.c.h.b16 %v7666
        %v7754 = vunpack.c.l.b16 %v7667
        %v7755 = vunpack.c.h.b16 %v7667
        %v7756 = vunpack.c.l.b16 %v7668
        %v7757 = vunpack.c.h.b16 %v7668
        %v7758 = vunpack.c.l.b16 %v7669
        %v7759 = vunpack.c.h.b16 %v7669
        %v7760 = vunpack.c.l.b16 %v7670
        %v7761 = vunpack.c.h.b16 %v7670
        %v7762 = vunpack.c.l.b16 %v7671
        %v7763 = vunpack.c.h.b16 %v7671
        %v7764 = vpack.c.b16 %v7708, %v7704
        %v7765 = vpack.c.b16 %v7709, %v7705
        %v7766 = vpack.c.b16 %v7710, %v7706
        %v7767 = vpack.c.b16 %v7711, %v7707
        %v7768 = vpack.c.b16 %v7716, %v7712
        %v7769 = vpack.c.b16 %v7717, %v7713
        %v7770 = vpack.c.b16 %v7718, %v7714
        %v7771 = vpack.c.b16 %v7719, %v7715
        %v7772 = vpack.c.b16 %v7724, %v7720
        %v7773 = vpack.c.b16 %v7725, %v7721
        %v7774 = vpack.c.b16 %v7726, %v7722
        %v7775 = vpack.c.b16 %v7727, %v7723
        %v7776 = vpack.c.b16 %v7732, %v7728
        %v7777 = vpack.c.b16 %v7733, %v7729
        %v7778 = vpack.c.b16 %v7734, %v7730
        %v7779 = vpack.c.b16 %v7735, %v7731
        %v7780 = vpack.c.b16 %v7740, %v7736
        %v7781 = vpack.c.b16 %v7741, %v7737
        %v7782 = vpack.c.b16 %v7742, %v7738
        %v7783 = vpack.c.b16 %v7743, %v7739
        %v7784 = vpack.c.b16 %v7748, %v7744
        %v7785 = vpack.c.b16 %v7749, %v7745
        %v7786 = vpack.c.b16 %v7750, %v7746
        %v7787 = vpack.c.b16 %v7751, %v7747
        %v7788 = vpack.c.b16 %v7756, %v7752
        %v7789 = vpack.c.b16 %v7757, %v7753
        %v7790 = vpack.c.b16 %v7758, %v7754
        %v7791 = vpack.c.b16 %v7759, %v7755
        %v7792 = vpack.c.b16 %v7760, %v7760
        %v7793 = vpack.c.b16 %v7761, %v7761
        %v7794 = vpack.c.b16 %v7762, %v7762
        %v7795 = vpack.c.b16 %v7763, %v7763
        %v7826 = vcombine.high %v7672, %v7672
        %v7827 = vcombine.high %v7673, %v7673
        %vm7830 = vcmask 949248
        %v7832 = vsel %vm7830, %v7641, 0
        %vm7834 = vcmask 1041408
        %v7836 = vsel %vm7834, %v7792, 0
        %v7839 = vsel %vm7834, %v7793, 0
        %v7842 = vsel %vm7834, %v7794, 0
        %v7845 = vsel %vm7834, %v7795, 0
        %7847 = vmatprep.subr.bf16.mxu0 %v7839
        %7848 = vmatpush1.bf16.msra.mxu0 %v7836
        %7849 = vmatprep.subr.bf16.mxu0 %v7789
        %7850 = vmatpush1.bf16.msra.mxu0 %v7788
        %7851 = vmatprep.subr.bf16.mxu0 %v7785
        %7852 = vmatpush1.bf16.msra.mxu0 %v7784
        %7853 = vmatprep.subr.bf16.mxu0 %v7781
        %7854 = vmatpush1.bf16.msra.mxu0 %v7780
        %7855 = vmatprep.subr.bf16.mxu0 %v7777
        %7856 = vmatpush1.bf16.msra.mxu0 %v7776
        %7857 = vmatprep.subr.bf16.mxu0 %v7773
        %7858 = vmatpush1.bf16.msra.mxu0 %v7772
        %7859 = vmatprep.subr.bf16.mxu0 %v7769
        %7860 = vmatpush1.bf16.msra.mxu0 %v7768
        %7861 = vmatprep.subr.bf16.mxu0 %v7765
        %7862 = vmatpush1.bf16.msra.mxu0 %v7764
        %7863 = vmatprep.subr.bf16.mxu0 0
        %7864 = vmatpush2.bf16.msra.mxu0 0
        %7865 = vmatprep.subr.bf16.mxu0 0
        %7866 = vmatpush2.bf16.msra.mxu0 0
        %7867 = vmatprep.subr.bf16.mxu0 0
        %7868 = vmatpush2.bf16.msra.mxu0 0
        %7869 = vmatprep.subr.bf16.mxu0 0
        %7870 = vmatpush2.bf16.msra.mxu0 0
        %7871 = vmatprep.subr.bf16.mxu0 0
        %7872 = vmatpush2.bf16.msra.mxu0 0
        %7873 = vmatprep.subr.bf16.mxu0 0
        %7874 = vmatpush2.bf16.msra.mxu0 0
        %7875 = vmatprep.subr.bf16.mxu0 0
        %7876 = vmatpush2.bf16.msra.mxu0 0
        %7877 = vmatprep.subr.bf16.mxu0 0
        %7878 = vmatpush2.bf16.msra.mxu0 0
        %7879 = vmatprep.mubr.bf16.mxu0 0
        %7880 = vmatmul.mubr.bf16.gmra.mxu0 %v7832
        %v7881 = vpop.f32.mrf.mxu0
        %v7882 = vadd.f32 %v7672, %v7881
        %v7883 = vpop.f32.mrf.mxu0
        %v7884 = vadd.f32 %v7826, %v7883
        %v7885 = vpop.f32.mrf.mxu0
        %v7886 = vpop.f32.mrf.mxu0
        %7887 = vdwg.mxu0
        %7888 = vmatprep.subr.bf16.mxu0 %v7845
        %7889 = vmatpush1.bf16.msra.mxu0 %v7842
        %7890 = vmatprep.subr.bf16.mxu0 %v7791
        %7891 = vmatpush1.bf16.msra.mxu0 %v7790
        %7892 = vmatprep.subr.bf16.mxu0 %v7787
        %7893 = vmatpush1.bf16.msra.mxu0 %v7786
        %7894 = vmatprep.subr.bf16.mxu0 %v7783
        %7895 = vmatpush1.bf16.msra.mxu0 %v7782
        %7896 = vmatprep.subr.bf16.mxu0 %v7779
        %7897 = vmatpush1.bf16.msra.mxu0 %v7778
        %7898 = vmatprep.subr.bf16.mxu0 %v7775
        %7899 = vmatpush1.bf16.msra.mxu0 %v7774
        %7900 = vmatprep.subr.bf16.mxu0 %v7771
        %7901 = vmatpush1.bf16.msra.mxu0 %v7770
        %7902 = vmatprep.subr.bf16.mxu0 %v7767
        %7903 = vmatpush1.bf16.msra.mxu0 %v7766
        %7904 = vmatprep.subr.bf16.mxu0 0
        %7905 = vmatpush2.bf16.msra.mxu0 0
        %7906 = vmatprep.subr.bf16.mxu0 0
        %7907 = vmatpush2.bf16.msra.mxu0 0
        %7908 = vmatprep.subr.bf16.mxu0 0
        %7909 = vmatpush2.bf16.msra.mxu0 0
        %7910 = vmatprep.subr.bf16.mxu0 0
        %7911 = vmatpush2.bf16.msra.mxu0 0
        %7912 = vmatprep.subr.bf16.mxu0 0
        %7913 = vmatpush2.bf16.msra.mxu0 0
        %7914 = vmatprep.subr.bf16.mxu0 0
        %7915 = vmatpush2.bf16.msra.mxu0 0
        %7916 = vmatprep.subr.bf16.mxu0 0
        %7917 = vmatpush2.bf16.msra.mxu0 0
        %7918 = vmatprep.subr.bf16.mxu0 0
        %7919 = vmatpush2.bf16.msra.mxu0 0
        %7920 = vmatprep.mubr.bf16.mxu0 0
        %7921 = vmatmul.mubr.bf16.gmra.mxu0 %v7832
        %v7922 = vpop.f32.mrf.mxu0
        %v7923 = vadd.f32 %v7673, %v7922
        %v7924 = vpop.f32.mrf.mxu0
        %v7925 = vadd.f32 %v7827, %v7924
        %v7926 = vpop.f32.mrf.mxu0
        %v7927 = vpop.f32.mrf.mxu0
        %7928 = vdwg.mxu0
        %v7929 = vmax.f32 %v7882, 0.0
        %v7930 = vmax.f32 %v7884, 0.0
        %v7931 = vmax.f32 %v7923, 0.0
        %v7932 = vmax.f32 %v7925, 0.0
        %v7933 = vpack.c.bf16 %v7929, %v7929
        %v7934 = vpack.c.bf16 %v7930, %v7930
        %v7935 = vpack.c.bf16 %v7931, %v7931
        %v7936 = vpack.c.bf16 %v7932, %v7932
        %v7941 = vunpack.c.l.b16 %v7933
        %v7942 = vunpack.c.l.b16 %v7934
        %v7943 = vunpack.c.l.b16 %v7935
        %v7944 = vunpack.c.l.b16 %v7936
        %v7945 = vpack.c.b16 %v7942, %v7941
        %v7946 = vpack.c.b16 %v7944, %v7943
        %v7947 = vrot.slane %v7945, 6
        %v7948 = vrot.slane %v7946, 6
        %7951 = vst [vmem:[#allocation8] sm:$0xcc] %v7947
        %7952 = vst [vmem:[#allocation8 + $0x8] sm:$0xcc] %v7948
        %7953 = vrot.lane.b32.xlu0 %v7945, 1
        %v7954 = vpop.permute.xlu0 %7953
        %7955 = vrot.lane.b32.xlu0 %v7946, 1
        %v7956 = vpop.permute.xlu0 %7955
        %v7957 = vrot.slane %v7954, 4
        %v7958 = vrot.slane %v7956, 4
        %vm7959 = vcmask 7168
        %v7960 = vsel %vm7959, %v7957, %v7954
        %vm7961 = vcmask 1043456
        %v7962 = vsel %vm7961, %v7957, %v7958
        %v7963 = vsel %vm7959, %v7962, %v7956
        %vm7966 = vcmask 1041416
        %vm7967 = vcmask 1045508
        %vm7968 = vmor %vm7967, %vm7966
        %7969 = vst.msk [vmem:[#allocation8] sm:$0x33] %vm7968, %v7960
        %7970 = vst [vmem:[#allocation8 + $0x8] sm:$0x33] %v7963
        %7971 = vrot.lane.b32.xlu0 %v7945, 127
        %v7972 = vpop.permute.xlu0 %7971
        %7973 = vrot.lane.b32.xlu0 %v7946, 127
        %v7974 = vpop.permute.xlu0 %7973
        %v7975 = vrot.slane %v7972, 4
        %v7976 = vrot.slane %v7974, 4
        %v7977 = vsel %vm7961, %v7975, %v7976
        %vm7978 = vcmask 1039360
        %v7979 = vsel %vm7978, %v7972, %v7977
        %v7980 = vsel %vm7978, %v7974, %v7976
        %7983 = vst [vmem:[#allocation8 + $0x10] sm:$0x33] %v7979
        %vm7984 = vcmask 1037316
        %vm7985 = vmor %vm7984, %vm7834
        %7986 = vst.msk [vmem:[#allocation8 + $0x18] sm:$0x33] %vm7985, %v7980
        %vm7987 = vcmask 1024
        %7988 = vst.msk [vmem:[#allocation8] sm:$0x3] %vm7987, 0
        %vm7989 = vcmask 1042424
        %7990 = vst.msk [vmem:[#allocation8 + $0x10] sm:$0x3] %vm7989, 0
        %7991 = vst.msk [vmem:[#allocation8 + $0x4] sm:$0x3] %vm7987, 0
        %7992 = vst.msk [vmem:[#allocation8 + $0x14] sm:$0x3] %vm7989, 0
        %7993 = vst.msk [vmem:[#allocation8 + $0x8] sm:$0x3] %vm7987, 0
        %7994 = vst.msk [vmem:[#allocation8 + $0x18] sm:$0x3] %vm7989, 0
        %7995 = vst.msk [vmem:[#allocation8 + $0xc] sm:$0x3] %vm7987, 0
        %7996 = vst.msk [vmem:[#allocation8 + $0x1c] sm:$0x3] %vm7989, 0
        %v7997 = vld [vmem:[%s12] sm:$0x1]
        %v7998 = vld [vmem:[#allocation8] sm:$0xff]
        %v7999 = vld [vmem:[#allocation8 + $0x8] sm:$0xff]
        %v8000 = vld [vmem:[#allocation8 + $0x10] sm:$0x33]
        %v8001 = vld [vmem:[#allocation8 + $0x18] sm:$0x33]
        %v8006 = vunpack.c.l.b16 %v7998
        %v8007 = vunpack.c.h.b16 %v7998
        %v8008 = vunpack.c.l.b16 %v7999
        %v8009 = vunpack.c.h.b16 %v7999
        %v8010 = vunpack.c.l.b16 %v8000
        %v8011 = vunpack.c.h.b16 %v8000
        %v8012 = vunpack.c.l.b16 %v8001
        %v8013 = vunpack.c.h.b16 %v8001
        %v8014 = vpack.c.b16 %v8010, %v8006
        %v8015 = vpack.c.b16 %v8011, %v8007
        %v8016 = vpack.c.b16 %v8012, %v8008
        %v8017 = vpack.c.b16 %v8013, %v8009
        %vm8018 = vcmask 97280
        %v8020 = vsel %vm8018, %v7997, 0
        %v8023 = vsel %vm2993, %v8014, 0
        %v8026 = vsel %vm2993, %v8015, 0
        %v8029 = vsel %vm2993, %v8016, 0
        %v8032 = vsel %vm2993, %v8017, 0
        %8034 = vmatprep.subr.bf16.mxu0 0
        %8035 = vmatpush1.bf16.msra.mxu0 0
        %8036 = vmatprep.subr.bf16.mxu0 0
        %8037 = vmatpush1.bf16.msra.mxu0 0
        %8038 = vmatprep.subr.bf16.mxu0 0
        %8039 = vmatpush1.bf16.msra.mxu0 0
        %8040 = vmatprep.subr.bf16.mxu0 0
        %8041 = vmatpush1.bf16.msra.mxu0 0
        %8042 = vmatprep.subr.bf16.mxu0 0
        %8043 = vmatpush1.bf16.msra.mxu0 0
        %8044 = vmatprep.subr.bf16.mxu0 0
        %8045 = vmatpush1.bf16.msra.mxu0 0
        %8046 = vmatprep.subr.bf16.mxu0 0
        %8047 = vmatpush1.bf16.msra.mxu0 0
        %8048 = vmatprep.subr.bf16.mxu0 %v8026
        %8049 = vmatpush1.bf16.msra.mxu0 %v8023
        %8050 = vmatprep.subr.bf16.mxu0 0
        %8051 = vmatpush2.bf16.msra.mxu0 0
        %8052 = vmatprep.subr.bf16.mxu0 0
        %8053 = vmatpush2.bf16.msra.mxu0 0
        %8054 = vmatprep.subr.bf16.mxu0 0
        %8055 = vmatpush2.bf16.msra.mxu0 0
        %8056 = vmatprep.subr.bf16.mxu0 0
        %8057 = vmatpush2.bf16.msra.mxu0 0
        %8058 = vmatprep.subr.bf16.mxu0 0
        %8059 = vmatpush2.bf16.msra.mxu0 0
        %8060 = vmatprep.subr.bf16.mxu0 0
        %8061 = vmatpush2.bf16.msra.mxu0 0
        %8062 = vmatprep.subr.bf16.mxu0 0
        %8063 = vmatpush2.bf16.msra.mxu0 0
        %8064 = vmatprep.subr.bf16.mxu0 0
        %8065 = vmatpush2.bf16.msra.mxu0 0
        %8066 = vmatprep.mubr.bf16.mxu0 0
        %8067 = vmatmul.mubr.bf16.gmra.mxu0 %v8020
        %v8068 = vpop.f32.mrf.mxu0
        %v8069 = vadd.f32 0.0, %v8068
        %v8070 = vpop.f32.mrf.mxu0
        %v8071 = vadd.f32 0.0, %v8070
        %v8072 = vpop.f32.mrf.mxu0
        %v8073 = vpop.f32.mrf.mxu0
        %8074 = vdwg.mxu0
        %8075 = vmatprep.subr.bf16.mxu0 0
        %8076 = vmatpush1.bf16.msra.mxu0 0
        %8077 = vmatprep.subr.bf16.mxu0 0
        %8078 = vmatpush1.bf16.msra.mxu0 0
        %8079 = vmatprep.subr.bf16.mxu0 0
        %8080 = vmatpush1.bf16.msra.mxu0 0
        %8081 = vmatprep.subr.bf16.mxu0 0
        %8082 = vmatpush1.bf16.msra.mxu0 0
        %8083 = vmatprep.subr.bf16.mxu0 0
        %8084 = vmatpush1.bf16.msra.mxu0 0
        %8085 = vmatprep.subr.bf16.mxu0 0
        %8086 = vmatpush1.bf16.msra.mxu0 0
        %8087 = vmatprep.subr.bf16.mxu0 0
        %8088 = vmatpush1.bf16.msra.mxu0 0
        %8089 = vmatprep.subr.bf16.mxu0 %v8032
        %8090 = vmatpush1.bf16.msra.mxu0 %v8029
        %8091 = vmatprep.subr.bf16.mxu0 0
        %8092 = vmatpush2.bf16.msra.mxu0 0
        %8093 = vmatprep.subr.bf16.mxu0 0
        %8094 = vmatpush2.bf16.msra.mxu0 0
        %8095 = vmatprep.subr.bf16.mxu0 0
        %8096 = vmatpush2.bf16.msra.mxu0 0
        %8097 = vmatprep.subr.bf16.mxu0 0
        %8098 = vmatpush2.bf16.msra.mxu0 0
        %8099 = vmatprep.subr.bf16.mxu0 0
        %8100 = vmatpush2.bf16.msra.mxu0 0
        %8101 = vmatprep.subr.bf16.mxu0 0
        %8102 = vmatpush2.bf16.msra.mxu0 0
        %8103 = vmatprep.subr.bf16.mxu0 0
        %8104 = vmatpush2.bf16.msra.mxu0 0
        %8105 = vmatprep.subr.bf16.mxu0 0
        %8106 = vmatpush2.bf16.msra.mxu0 0
        %8107 = vmatprep.mubr.bf16.mxu0 0
        %8108 = vmatmul.mubr.bf16.gmra.mxu0 %v8020
        %v8109 = vpop.f32.mrf.mxu0
        %v8110 = vadd.f32 0.0, %v8109
        %v8111 = vpop.f32.mrf.mxu0
        %v8112 = vadd.f32 0.0, %v8111
        %v8113 = vpop.f32.mrf.mxu0
        %v8114 = vpop.f32.mrf.mxu0
        %8115 = vdwg.mxu0
        %v8116 = vxor.u32 %v8069, 2147483648
        %v8117 = vxor.u32 %v8071, 2147483648
        %v8118 = vxor.u32 %v8110, 2147483648
        %v8119 = vxor.u32 %v8112, 2147483648
        %v8120 = vmul.f32 %v8116, 1.442695
        %v8121 = vpow.pop %v8120
        %v8122 = vmul.f32 %v8117, 1.442695
        %v8123 = vpow.pop %v8122
        %v8124 = vmul.f32 %v8118, 1.442695
        %v8125 = vpow.pop %v8124
        %v8126 = vmul.f32 %v8119, 1.442695
        %v8127 = vpow.pop %v8126
        %v8128 = vadd.f32 %v8121, 1.0
        %v8129 = vadd.f32 %v8123, 1.0
        %v8130 = vadd.f32 %v8125, 1.0
        %v8131 = vadd.f32 %v8127, 1.0
        %v8132 = vrcp.pop %v8128
        %v8133 = vmul.f32 1.0, %v8132
        %v8134 = vrcp.pop %v8129
        %v8135 = vmul.f32 1.0, %v8134
        %v8136 = vrcp.pop %v8130
        %v8137 = vmul.f32 1.0, %v8136
        %v8138 = vrcp.pop %v8131
        %v8139 = vmul.f32 1.0, %v8138
        %8140 = vst [vmem:[%s695] sm:$0x1] %v8133
        %s8141 = scalar_lea.vmem %s695, 1 [#allocation19]
        %8142 = vst [vmem:[%s8141] sm:$0x1] %v8135
        %s8143 = scalar_lea.vmem %s695, 2 [#allocation19]
        %8144 = vst [vmem:[%s8143] sm:$0x1] %v8137
        %s8145 = scalar_lea.vmem %s695, 3 [#allocation19]
        %8146 = vst [vmem:[%s8145] sm:$0x1] %v8139
        %s8147 = sand.u32 %s450, 1
        %s8148 = scalar_lea.sflag [#allocation12], %s8147
        %s8149 = sand.u32 %s450, 1
        %s8150 = smul.addr %s8149, 4
        %s8151 = scalar_lea.vmem [#allocation19], %s8150
        %s8152 = smul.u32 4, %s38
        %p8153 = scmp.lt.s32.totalorder %s8152, 7
        %s8154 = scalar_select %p8153, %s8152, 7
        %s8155 = smul.addr %s8154, 16
        %s8156 = smul.addr %s8155, 8
        %s8157 = scalar_lea.vmem %s20, %s8156
        // Predicated region
        $region117: #{fcnp_forward.1} parent=95 // pred_check
          %p8158 = pneg %p460
        $region118: #{fcnp_forward.1} parent=95 // pred_check_branch
          %8160 = sbr.rel (%p8158) target = $region120
        $region119: #{fcnp_forward.1} parent=95 // pred_region
          %s8161 = smul.u32 4, %s38
          %s8163 = ssub.s32 64, 64
          %8164 = vsyncadd %s8148, %s8163
          %s8165 = smul.addr %s8161, 16
          %s8166 = scalar_lea.hbm %s19, %s8165
          %s8167 = sshll.u32 %s8151, 4
          %s8168 = int_to_ptr.vmem [resolvable:$true] %s8167
          %8173 = dma.vmem_to_hbm [thread:$0]  %s8168, 64, %s8166, %s8148, 16, 16, 1
        $region120: #{fcnp_forward.1} parent=95 // pred_fallthru
          _
        // Predicated region
        $region121: #{fcnp_forward.1} parent=95 // pred_check
          %p8174 = pneg %p486
        $region122: #{fcnp_forward.1} parent=95 // pred_check_branch
          %8176 = sbr.rel (%p8174) target = $region124
        $region123: #{fcnp_forward.1} parent=95 // pred_region
          %s8177 = smul.u32 4, %s38
        $region124: #{fcnp_forward.1} parent=95 // pred_fallthru
          _
      $region96: #{fcnp_forward.1} parent=5 // pred_fallthru
        _
      %p8178 = scmp.le.s32.totalorder 2, %s33
      // Predicated region
      $region125: #{fcnp_forward.1} parent=5 // pred_check
        %p8179 = pneg %p8178
      $region126: #{fcnp_forward.1} parent=5 // pred_check_branch
        %8181 = sbr.rel (%p8179) target = $region128
      $region127: #{fcnp_forward.1} parent=5 // pred_region
        %s8182 = ssub.s32 %s33, 2
        // Predicated region
        $region129: #{fcnp_forward.1} parent=127 // pred_check
          %p8183 = pneg %p466
        $region130: #{fcnp_forward.1} parent=127 // pred_check_branch
          %8185 = sbr.rel (%p8183) target = $region132
        $region131: #{fcnp_forward.1} parent=127 // pred_region
          %s8186 = sand.u32 %s451, 1
          %s8187 = scalar_lea.sflag [#allocation12], %s8186
          %s8188 = sand.u32 %s451, 1
          %s8189 = smul.addr %s8188, 4
          %s8190 = scalar_lea.vmem [#allocation19], %s8189
          %8191 = dma.done %s8187, 64
        $region132: #{fcnp_forward.1} parent=127 // pred_fallthru
          _
        // Predicated region
        $region133: #{fcnp_forward.1} parent=127 // pred_check
          %p8192 = pneg %p492
        $region134: #{fcnp_forward.1} parent=127 // pred_check_branch
          %8194 = sbr.rel (%p8192) target = $region136
        $region135: #{fcnp_forward.1} parent=127 // pred_region
          %s8195 = smul.u32 4, %s39
          %p8196 = scmp.lt.s32.totalorder %s8195, 7
          %s8197 = scalar_select %p8196, %s8195, 7
          %s8198 = smul.addr %s8197, 16
          %s8199 = smul.addr %s8198, 8
          %s8200 = scalar_lea.vmem %s20, %s8199
        $region136: #{fcnp_forward.1} parent=127 // pred_fallthru
          _
      $region128: #{fcnp_forward.1} parent=5 // pred_fallthru
        _
    $region6: #{fcnp_forward.1} parent=1 // loop_footer
      %s37 = sadd.s32 1, %s33
    $region7: #{fcnp_forward.1} parent=1 // loop_footer_branch
      %32 = sbr.rel target = $region3
    $region8: #{fcnp_forward.1} parent=1 // loop_exit
      _
    %8201 = vsyncpa [#allocation11], 1
    %s8202 = scalar_lea.sflag [#allocation11], 1
    %8203 = vsyncpa %s8202, 1
    %8204 = vsyncpa [#allocation14], 1
    %8205 = vsyncpa [#allocation17], 1
    %8206 = vsyncpa [#allocation12], 1
    %s8207 = scalar_lea.sflag [#allocation12], 1
    %8208 = vsyncpa %s8207, 1

</llo_original>
